<compile_context>
chip_gen: v7x
topology: tpu7x:2x2x1
jax: 0.10.0
libtpu: 0.0.40
codegen_flags: <defaults>
</compile_context>

<pallas_src>
import functools
import math

import jax
import jax.numpy as jnp
from jax.experimental import pallas as pl
from jax.experimental.pallas import tpu as pltpu


# ---------------------------------------------------------------------------
# fused whole-model kernel
# ---------------------------------------------------------------------------
def _fused_model_kernel(
    # inputs
    x_ref, pe_ref, emb_w_ref, emb_b_ref,
    in_w_ref, in_b_ref, out_w_ref, out_b_ref,
    l1_w_ref, l1_b_ref, l2_w_ref, l2_b_ref,
    ln1_g_ref, ln1_b_ref, ln2_g_ref, ln2_b_ref,
    m1_w_ref, m1_b_ref, m2_w_ref, m2_b_ref,
    m3_w_ref, m3_b_ref, m4_w_ref, m4_b_ref,
    # output
    o_ref,
    # scratch
    attn_scr,
    *, seq, batch, num_heads, num_layers, eps, scale,
):
    e = x_ref.shape[-1]
    dh = e // num_heads

    def layer_norm(v, g, b):
        mu = jnp.mean(v, axis=-1, keepdims=True)
        var = jnp.mean(jnp.square(v - mu), axis=-1, keepdims=True)
        return (v - mu) * jax.lax.rsqrt(var + eps) * g + b

    # ---- embedding Linear + positional encoding (dropout = identity) -------
    h = jnp.dot(x_ref[...], emb_w_ref[...], preferred_element_type=jnp.float32)
    h = h + emb_b_ref[...] + pe_ref[...]

    # ---- TransformerEncoder stack (post-norm, ReLU FFN, eval-mode dropout) --
    for li in range(num_layers):
        # fused QKV projection: (N, E) @ (E, 3E), kept as a value (no scratch)
        qkv = (jnp.dot(h, in_w_ref[li], preferred_element_type=jnp.float32)
               + in_b_ref[li])

        # per-(batch, head) self-attention on static slices; rows are (b, s)
        for b in range(batch):
            r0 = b * seq
            for hd in range(num_heads):
                c0 = hd * dh
                q_bh = qkv[r0:r0 + seq, c0:c0 + dh]
                k_bh = qkv[r0:r0 + seq, e + c0:e + c0 + dh]
                v_bh = qkv[r0:r0 + seq, 2 * e + c0:2 * e + c0 + dh]
                # scores = q @ k^T (transpose expressed via dot_general dims)
                s_bh = jax.lax.dot_general(
                    q_bh, k_bh, (((1,), (1,)), ((), ())),
                    preferred_element_type=jnp.float32) * scale
                m_bh = jnp.max(s_bh, axis=-1, keepdims=True)
                p_bh = jnp.exp(s_bh - m_bh)
                denom = jnp.sum(p_bh, axis=-1, keepdims=True)
                p_bh = p_bh * pl.reciprocal(denom, approx=True)   # EUP slot
                attn_scr[r0:r0 + seq, c0:c0 + dh] = jnp.dot(
                    p_bh, v_bh, preferred_element_type=jnp.float32)

        attn = (jnp.dot(attn_scr[...], out_w_ref[li],
                        preferred_element_type=jnp.float32) + out_b_ref[li])
        h = layer_norm(h + attn, ln1_g_ref[li], ln1_b_ref[li])

        ff = (jnp.dot(h, l1_w_ref[li], preferred_element_type=jnp.float32)
              + l1_b_ref[li])
        ff = jnp.maximum(ff, 0.0)
        ff = (jnp.dot(ff, l2_w_ref[li], preferred_element_type=jnp.float32)
              + l2_b_ref[li])
        h = layer_norm(h + ff, ln2_g_ref[li], ln2_b_ref[li])

    # ---- x.mean(dim=1): rows ordered (b, s) -> average over the batch ------
    hm = h[0:seq, :]
    for b in range(1, batch):
        hm = hm + h[b * seq:(b + 1) * seq, :]
    hm = hm * (1.0 / batch)

    # ---- output MLP head E -> 1024 -> 512 -> 256 -> out (dropout = id) -----
    y = jnp.dot(hm, m1_w_ref[...], preferred_element_type=jnp.float32) + m1_b_ref[...]
    y = jnp.maximum(y, 0.0)
    y = jnp.dot(y, m2_w_ref[...], preferred_element_type=jnp.float32) + m2_b_ref[...]
    y = jnp.maximum(y, 0.0)
    y = jnp.dot(y, m3_w_ref[...], preferred_element_type=jnp.float32) + m3_b_ref[...]
    y = jnp.maximum(y, 0.0)
    y = jnp.dot(y, m4_w_ref[...], preferred_element_type=jnp.float32) + m4_b_ref[...]
    o_ref[...] = y.astype(o_ref.dtype)


# ---------------------------------------------------------------------------
# parameter construction (deterministic, synthetic)
# ---------------------------------------------------------------------------
def _init_linear(key, din, dout):
    kw, kb = jax.random.split(key)
    w = jax.random.normal(kw, (din, dout), jnp.float32) / math.sqrt(din)
    b = jax.random.normal(kb, (1, dout), jnp.float32) * 0.01
    return w, b


def make_positional_encoding(max_len, d_model):
    position = jnp.arange(max_len, dtype=jnp.float32)[:, None]
    div_term = jnp.exp(jnp.arange(0, d_model, 2, dtype=jnp.float32)
                       * (-math.log(10000.0) / d_model))
    pe = jnp.zeros((max_len, d_model), jnp.float32)
    pe = pe.at[:, 0::2].set(jnp.sin(position * div_term))
    pe = pe.at[:, 1::2].set(jnp.cos(position * div_term))
    return pe                                          # (max_len, d_model)


def init_params(key, input_size, num_layers, num_heads, dim_feedforward,
                output_size, max_len=5000):
    e = input_size
    keys = iter(jax.random.split(key, 1 + 4 * num_layers + 4))
    params = {}
    params["emb_w"], params["emb_b"] = _init_linear(next(keys), e, e)
    params["pe"] = make_positional_encoding(max_len, e)

    in_w, in_b, out_w, out_b = [], [], [], []
    l1_w, l1_b, l2_w, l2_b = [], [], [], []
    for _ in range(num_layers):
        w, b = _init_linear(next(keys), e, 3 * e); in_w.append(w); in_b.append(b)
        w, b = _init_linear(next(keys), e, e); out_w.append(w); out_b.append(b)
        w, b = _init_linear(next(keys), e, dim_feedforward); l1_w.append(w); l1_b.append(b)
        w, b = _init_linear(next(keys), dim_feedforward, e); l2_w.append(w); l2_b.append(b)
    params["in_w"] = jnp.stack(in_w);   params["in_b"] = jnp.stack(in_b)
    params["out_w"] = jnp.stack(out_w); params["out_b"] = jnp.stack(out_b)
    params["l1_w"] = jnp.stack(l1_w);   params["l1_b"] = jnp.stack(l1_b)
    params["l2_w"] = jnp.stack(l2_w);   params["l2_b"] = jnp.stack(l2_b)
    params["ln1_g"] = jnp.ones((num_layers, 1, e), jnp.float32)
    params["ln1_b"] = jnp.zeros((num_layers, 1, e), jnp.float32)
    params["ln2_g"] = jnp.ones((num_layers, 1, e), jnp.float32)
    params["ln2_b"] = jnp.zeros((num_layers, 1, e), jnp.float32)

    dims = [e, 1024, 512, 256, output_size]
    for i in range(4):
        w, b = _init_linear(next(keys), dims[i], dims[i + 1])
        params[f"m{i + 1}_w"] = w
        params[f"m{i + 1}_b"] = b
    return params


# ---------------------------------------------------------------------------
# model forward: one fused pallas_call
# ---------------------------------------------------------------------------
def transformer_encoder_model(x, params, num_heads):
    """x: (seq, batch, input_size) -> (seq, output_size)."""
    s, b, e = x.shape
    n = s * b
    num_layers = params["in_w"].shape[0]
    out_dim = params["m4_w"].shape[1]
    dh = e // num_heads

    # Flatten tokens with rows ordered (batch, seq) so per-(b, h) attention is
    # a static slice inside the kernel; tile PE with the same ordering.
    x_flat = jnp.transpose(x, (1, 0, 2)).reshape(n, e)
    pe_flat = jnp.tile(params["pe"][:s], (b, 1))

    kernel = functools.partial(
        _fused_model_kernel,
        seq=s, batch=b, num_heads=num_heads, num_layers=num_layers,
        eps=1e-5, scale=1.0 / math.sqrt(dh))

    return pl.pallas_call(
        kernel,
        out_shape=jax.ShapeDtypeStruct((s, out_dim), jnp.float32),
        scratch_shapes=[
            pltpu.VMEM((n, e), jnp.float32),   # attention output assembly
        ],
    )(x_flat, pe_flat,
      params["emb_w"], params["emb_b"],
      params["in_w"], params["in_b"], params["out_w"], params["out_b"],
      params["l1_w"], params["l1_b"], params["l2_w"], params["l2_b"],
      params["ln1_g"], params["ln1_b"], params["ln2_g"], params["ln2_b"],
      params["m1_w"], params["m1_b"], params["m2_w"], params["m2_b"],
      params["m3_w"], params["m3_b"], params["m4_w"], params["m4_b"])


# ---------------------------------------------------------------------------
if __name__ == "__main__":
    SEQ, BATCH = 8, 2
    INPUT_SIZE = 32          # d_model
    NUM_LAYERS = 2
    NUM_HEADS = 4
    DIM_FEEDFORWARD = 64
    OUTPUT_SIZE = 8

    key = jax.random.PRNGKey(0)
    pkey, xkey = jax.random.split(key)

    params = init_params(pkey, INPUT_SIZE, NUM_LAYERS, NUM_HEADS,
                         DIM_FEEDFORWARD, OUTPUT_SIZE)
    x = jax.random.normal(xkey, (SEQ, BATCH, INPUT_SIZE), dtype=jnp.float32)

    fwd = jax.jit(functools.partial(transformer_encoder_model,
                                    num_heads=NUM_HEADS))
    out = fwd(x, params)
    out = jax.block_until_ready(out)

    assert out.shape == (SEQ, OUTPUT_SIZE), out.shape
    assert bool(jnp.all(jnp.isfinite(out)))
    print("KERNEL_OK")
</pallas_src>

<mosaic_0001>
module attributes {stable_mosaic.version = 11 : i64} {
  func.func @_fused_model_kernel(%arg0: memref<16x32xf32, #tpu.memory_space<vmem>>, %arg1: memref<16x32xf32, #tpu.memory_space<vmem>>, %arg2: memref<32x32xf32, #tpu.memory_space<vmem>>, %arg3: memref<1x32xf32, #tpu.memory_space<vmem>>, %arg4: memref<2x32x96xf32, #tpu.memory_space<vmem>>, %arg5: memref<2x1x96xf32, #tpu.memory_space<vmem>>, %arg6: memref<2x32x32xf32, #tpu.memory_space<vmem>>, %arg7: memref<2x1x32xf32, #tpu.memory_space<vmem>>, %arg8: memref<2x32x64xf32, #tpu.memory_space<vmem>>, %arg9: memref<2x1x64xf32, #tpu.memory_space<vmem>>, %arg10: memref<2x64x32xf32, #tpu.memory_space<vmem>>, %arg11: memref<2x1x32xf32, #tpu.memory_space<vmem>>, %arg12: memref<2x1x32xf32, #tpu.memory_space<vmem>>, %arg13: memref<2x1x32xf32, #tpu.memory_space<vmem>>, %arg14: memref<2x1x32xf32, #tpu.memory_space<vmem>>, %arg15: memref<2x1x32xf32, #tpu.memory_space<vmem>>, %arg16: memref<32x1024xf32, #tpu.memory_space<vmem>>, %arg17: memref<1x1024xf32, #tpu.memory_space<vmem>>, %arg18: memref<1024x512xf32, #tpu.memory_space<vmem>>, %arg19: memref<1x512xf32, #tpu.memory_space<vmem>>, %arg20: memref<512x256xf32, #tpu.memory_space<vmem>>, %arg21: memref<1x256xf32, #tpu.memory_space<vmem>>, %arg22: memref<256x8xf32, #tpu.memory_space<vmem>>, %arg23: memref<1x8xf32, #tpu.memory_space<vmem>>, %arg24: memref<8x8xf32, #tpu.memory_space<vmem>>, %arg25: memref<16x32xf32, #tpu.memory_space<vmem>>) attributes {dimension_semantics = [], scalar_prefetch = 0 : i64, scratch_operands = 1 : i64, tpu.core_type = #tpu.core_type<tc>} {
    %c0 = arith.constant 0 : index
    %c0_0 = arith.constant 0 : index
    %0 = vector.load %arg0[%c0, %c0_0] : memref<16x32xf32, #tpu.memory_space<vmem>>, vector<16x32xf32>
    %c0_1 = arith.constant 0 : index
    %c0_2 = arith.constant 0 : index
    %1 = vector.load %arg2[%c0_1, %c0_2] : memref<32x32xf32, #tpu.memory_space<vmem>>, vector<32x32xf32>
    %cst = arith.constant dense<0.000000e+00> : vector<16x32xf32>
    %2 = tpu.matmul %0, %1, %cst {dimension_numbers = #tpu.dot_dimension_numbers<[1], [0], [0], [1], [0, 0, 1, 1], [], []>} : vector<16x32xf32>, vector<32x32xf32>, vector<16x32xf32> -> vector<16x32xf32>
    %c0_3 = arith.constant 0 : index
    %c0_4 = arith.constant 0 : index
    %3 = vector.load %arg3[%c0_3, %c0_4] : memref<1x32xf32, #tpu.memory_space<vmem>>, vector<1x32xf32>
    %4 = vector.broadcast %3 : vector<1x32xf32> to vector<16x32xf32>
    %5 = arith.addf %2, %4 : vector<16x32xf32>
    %c0_5 = arith.constant 0 : index
    %c0_6 = arith.constant 0 : index
    %6 = vector.load %arg1[%c0_5, %c0_6] : memref<16x32xf32, #tpu.memory_space<vmem>>, vector<16x32xf32>
    %7 = arith.addf %5, %6 : vector<16x32xf32>
    %c0_7 = arith.constant 0 : index
    %c0_8 = arith.constant 0 : index
    %c0_9 = arith.constant 0 : index
    %8 = vector.load %arg4[%c0_7, %c0_8, %c0_9] : memref<2x32x96xf32, #tpu.memory_space<vmem>>, vector<1x32x96xf32>
    %9 = vector.shape_cast %8 : vector<1x32x96xf32> to vector<32x96xf32>
    %cst_10 = arith.constant dense<0.000000e+00> : vector<16x96xf32>
    %10 = tpu.matmul %7, %9, %cst_10 {dimension_numbers = #tpu.dot_dimension_numbers<[1], [0], [0], [1], [0, 0, 1, 1], [], []>} : vector<16x32xf32>, vector<32x96xf32>, vector<16x96xf32> -> vector<16x96xf32>
    %c0_11 = arith.constant 0 : index
    %c0_12 = arith.constant 0 : index
    %c0_13 = arith.constant 0 : index
    %11 = vector.load %arg5[%c0_11, %c0_12, %c0_13] : memref<2x1x96xf32, #tpu.memory_space<vmem>>, vector<1x1x96xf32>
    %12 = vector.shape_cast %11 : vector<1x1x96xf32> to vector<1x96xf32>
    %13 = vector.broadcast %12 : vector<1x96xf32> to vector<16x96xf32>
    %14 = arith.addf %10, %13 : vector<16x96xf32>
    %15 = vector.extract_strided_slice %14 {offsets = [0, 0], sizes = [8, 8], strides = [1, 1]} : vector<16x96xf32> to vector<8x8xf32>
    %16 = vector.extract_strided_slice %14 {offsets = [0, 32], sizes = [8, 8], strides = [1, 1]} : vector<16x96xf32> to vector<8x8xf32>
    %17 = vector.extract_strided_slice %14 {offsets = [0, 64], sizes = [8, 8], strides = [1, 1]} : vector<16x96xf32> to vector<8x8xf32>
    %cst_14 = arith.constant dense<0.000000e+00> : vector<8x8xf32>
    %18 = tpu.matmul %15, %16, %cst_14 {dimension_numbers = #tpu.dot_dimension_numbers<[1], [1], [0], [0], [0, 0, 1, 0], [], []>} : vector<8x8xf32>, vector<8x8xf32>, vector<8x8xf32> -> vector<8x8xf32>
    %cst_15 = arith.constant 0.353553385 : f32
    %19 = vector.broadcast %cst_15 : f32 to vector<8x8xf32>
    %20 = arith.mulf %18, %19 : vector<8x8xf32>
    %cst_16 = arith.constant dense<0xFF800000> : vector<8xf32>
    %21 = vector.multi_reduction <maximumf>, %20, %cst_16 [1] : vector<8x8xf32> to vector<8xf32>
    %22 = vector.shape_cast %21 : vector<8xf32> to vector<8x1xf32>
    %23 = vector.broadcast %22 : vector<8x1xf32> to vector<8x8xf32>
    %24 = arith.subf %20, %23 : vector<8x8xf32>
    %25 = math.exp %24 : vector<8x8xf32>
    %cst_17 = arith.constant dense<0.000000e+00> : vector<8xf32>
    %26 = vector.multi_reduction <add>, %25, %cst_17 [1] : vector<8x8xf32> to vector<8xf32>
    %27 = vector.shape_cast %26 : vector<8xf32> to vector<8x1xf32>
    %28 = tpu.reciprocal %27 {approx = true} : vector<8x1xf32> -> vector<8x1xf32>
    %29 = vector.broadcast %28 : vector<8x1xf32> to vector<8x8xf32>
    %30 = arith.mulf %25, %29 : vector<8x8xf32>
    %cst_18 = arith.constant dense<0.000000e+00> : vector<8x8xf32>
    %31 = tpu.matmul %30, %17, %cst_18 {dimension_numbers = #tpu.dot_dimension_numbers<[1], [0], [0], [1], [0, 0, 1, 1], [], []>} : vector<8x8xf32>, vector<8x8xf32>, vector<8x8xf32> -> vector<8x8xf32>
    %c0_19 = arith.constant 0 : index
    %c0_20 = arith.constant 0 : index
    %32 = vector.load %arg25[%c0_19, %c0_20] : memref<16x32xf32, #tpu.memory_space<vmem>>, vector<8x8xf32>
    tpu.vector_store %arg25[%c0_19, %c0_20], %31 {strides = array<i32>} : memref<16x32xf32, #tpu.memory_space<vmem>>, vector<8x8xf32>,
    %33 = vector.extract_strided_slice %14 {offsets = [0, 8], sizes = [8, 8], strides = [1, 1]} : vector<16x96xf32> to vector<8x8xf32>
    %34 = vector.extract_strided_slice %14 {offsets = [0, 40], sizes = [8, 8], strides = [1, 1]} : vector<16x96xf32> to vector<8x8xf32>
    %35 = vector.extract_strided_slice %14 {offsets = [0, 72], sizes = [8, 8], strides = [1, 1]} : vector<16x96xf32> to vector<8x8xf32>
    %cst_21 = arith.constant dense<0.000000e+00> : vector<8x8xf32>
    %36 = tpu.matmul %33, %34, %cst_21 {dimension_numbers = #tpu.dot_dimension_numbers<[1], [1], [0], [0], [0, 0, 1, 0], [], []>} : vector<8x8xf32>, vector<8x8xf32>, vector<8x8xf32> -> vector<8x8xf32>
    %cst_22 = arith.constant 0.353553385 : f32
    %37 = vector.broadcast %cst_22 : f32 to vector<8x8xf32>
    %38 = arith.mulf %36, %37 : vector<8x8xf32>
    %cst_23 = arith.constant dense<0xFF800000> : vector<8xf32>
    %39 = vector.multi_reduction <maximumf>, %38, %cst_23 [1] : vector<8x8xf32> to vector<8xf32>
    %40 = vector.shape_cast %39 : vector<8xf32> to vector<8x1xf32>
    %41 = vector.broadcast %40 : vector<8x1xf32> to vector<8x8xf32>
    %42 = arith.subf %38, %41 : vector<8x8xf32>
    %43 = math.exp %42 : vector<8x8xf32>
    %cst_24 = arith.constant dense<0.000000e+00> : vector<8xf32>
    %44 = vector.multi_reduction <add>, %43, %cst_24 [1] : vector<8x8xf32> to vector<8xf32>
    %45 = vector.shape_cast %44 : vector<8xf32> to vector<8x1xf32>
    %46 = tpu.reciprocal %45 {approx = true} : vector<8x1xf32> -> vector<8x1xf32>
    %47 = vector.broadcast %46 : vector<8x1xf32> to vector<8x8xf32>
    %48 = arith.mulf %43, %47 : vector<8x8xf32>
    %cst_25 = arith.constant dense<0.000000e+00> : vector<8x8xf32>
    %49 = tpu.matmul %48, %35, %cst_25 {dimension_numbers = #tpu.dot_dimension_numbers<[1], [0], [0], [1], [0, 0, 1, 1], [], []>} : vector<8x8xf32>, vector<8x8xf32>, vector<8x8xf32> -> vector<8x8xf32>
    %c0_26 = arith.constant 0 : index
    %c8 = arith.constant 8 : index
    %50 = vector.load %arg25[%c0_26, %c8] : memref<16x32xf32, #tpu.memory_space<vmem>>, vector<8x8xf32>
    tpu.vector_store %arg25[%c0_26, %c8], %49 {strides = array<i32>} : memref<16x32xf32, #tpu.memory_space<vmem>>, vector<8x8xf32>,
    %51 = vector.extract_strided_slice %14 {offsets = [0, 16], sizes = [8, 8], strides = [1, 1]} : vector<16x96xf32> to vector<8x8xf32>
    %52 = vector.extract_strided_slice %14 {offsets = [0, 48], sizes = [8, 8], strides = [1, 1]} : vector<16x96xf32> to vector<8x8xf32>
    %53 = vector.extract_strided_slice %14 {offsets = [0, 80], sizes = [8, 8], strides = [1, 1]} : vector<16x96xf32> to vector<8x8xf32>
    %cst_27 = arith.constant dense<0.000000e+00> : vector<8x8xf32>
    %54 = tpu.matmul %51, %52, %cst_27 {dimension_numbers = #tpu.dot_dimension_numbers<[1], [1], [0], [0], [0, 0, 1, 0], [], []>} : vector<8x8xf32>, vector<8x8xf32>, vector<8x8xf32> -> vector<8x8xf32>
    %cst_28 = arith.constant 0.353553385 : f32
    %55 = vector.broadcast %cst_28 : f32 to vector<8x8xf32>
    %56 = arith.mulf %54, %55 : vector<8x8xf32>
    %cst_29 = arith.constant dense<0xFF800000> : vector<8xf32>
    %57 = vector.multi_reduction <maximumf>, %56, %cst_29 [1] : vector<8x8xf32> to vector<8xf32>
    %58 = vector.shape_cast %57 : vector<8xf32> to vector<8x1xf32>
    %59 = vector.broadcast %58 : vector<8x1xf32> to vector<8x8xf32>
    %60 = arith.subf %56, %59 : vector<8x8xf32>
    %61 = math.exp %60 : vector<8x8xf32>
    %cst_30 = arith.constant dense<0.000000e+00> : vector<8xf32>
    %62 = vector.multi_reduction <add>, %61, %cst_30 [1] : vector<8x8xf32> to vector<8xf32>
    %63 = vector.shape_cast %62 : vector<8xf32> to vector<8x1xf32>
    %64 = tpu.reciprocal %63 {approx = true} : vector<8x1xf32> -> vector<8x1xf32>
    %65 = vector.broadcast %64 : vector<8x1xf32> to vector<8x8xf32>
    %66 = arith.mulf %61, %65 : vector<8x8xf32>
    %cst_31 = arith.constant dense<0.000000e+00> : vector<8x8xf32>
    %67 = tpu.matmul %66, %53, %cst_31 {dimension_numbers = #tpu.dot_dimension_numbers<[1], [0], [0], [1], [0, 0, 1, 1], [], []>} : vector<8x8xf32>, vector<8x8xf32>, vector<8x8xf32> -> vector<8x8xf32>
    %c0_32 = arith.constant 0 : index
    %c16 = arith.constant 16 : index
    %68 = vector.load %arg25[%c0_32, %c16] : memref<16x32xf32, #tpu.memory_space<vmem>>, vector<8x8xf32>
    tpu.vector_store %arg25[%c0_32, %c16], %67 {strides = array<i32>} : memref<16x32xf32, #tpu.memory_space<vmem>>, vector<8x8xf32>,
    %69 = vector.extract_strided_slice %14 {offsets = [0, 24], sizes = [8, 8], strides = [1, 1]} : vector<16x96xf32> to vector<8x8xf32>
    %70 = vector.extract_strided_slice %14 {offsets = [0, 56], sizes = [8, 8], strides = [1, 1]} : vector<16x96xf32> to vector<8x8xf32>
    %71 = vector.extract_strided_slice %14 {offsets = [0, 88], sizes = [8, 8], strides = [1, 1]} : vector<16x96xf32> to vector<8x8xf32>
    %cst_33 = arith.constant dense<0.000000e+00> : vector<8x8xf32>
    %72 = tpu.matmul %69, %70, %cst_33 {dimension_numbers = #tpu.dot_dimension_numbers<[1], [1], [0], [0], [0, 0, 1, 0], [], []>} : vector<8x8xf32>, vector<8x8xf32>, vector<8x8xf32> -> vector<8x8xf32>
    %cst_34 = arith.constant 0.353553385 : f32
    %73 = vector.broadcast %cst_34 : f32 to vector<8x8xf32>
    %74 = arith.mulf %72, %73 : vector<8x8xf32>
    %cst_35 = arith.constant dense<0xFF800000> : vector<8xf32>
    %75 = vector.multi_reduction <maximumf>, %74, %cst_35 [1] : vector<8x8xf32> to vector<8xf32>
    %76 = vector.shape_cast %75 : vector<8xf32> to vector<8x1xf32>
    %77 = vector.broadcast %76 : vector<8x1xf32> to vector<8x8xf32>
    %78 = arith.subf %74, %77 : vector<8x8xf32>
    %79 = math.exp %78 : vector<8x8xf32>
    %cst_36 = arith.constant dense<0.000000e+00> : vector<8xf32>
    %80 = vector.multi_reduction <add>, %79, %cst_36 [1] : vector<8x8xf32> to vector<8xf32>
    %81 = vector.shape_cast %80 : vector<8xf32> to vector<8x1xf32>
    %82 = tpu.reciprocal %81 {approx = true} : vector<8x1xf32> -> vector<8x1xf32>
    %83 = vector.broadcast %82 : vector<8x1xf32> to vector<8x8xf32>
    %84 = arith.mulf %79, %83 : vector<8x8xf32>
    %cst_37 = arith.constant dense<0.000000e+00> : vector<8x8xf32>
    %85 = tpu.matmul %84, %71, %cst_37 {dimension_numbers = #tpu.dot_dimension_numbers<[1], [0], [0], [1], [0, 0, 1, 1], [], []>} : vector<8x8xf32>, vector<8x8xf32>, vector<8x8xf32> -> vector<8x8xf32>
    %c0_38 = arith.constant 0 : index
    %c24 = arith.constant 24 : index
    %86 = vector.load %arg25[%c0_38, %c24] : memref<16x32xf32, #tpu.memory_space<vmem>>, vector<8x8xf32>
    tpu.vector_store %arg25[%c0_38, %c24], %85 {strides = array<i32>} : memref<16x32xf32, #tpu.memory_space<vmem>>, vector<8x8xf32>,
    %87 = vector.extract_strided_slice %14 {offsets = [8, 0], sizes = [8, 8], strides = [1, 1]} : vector<16x96xf32> to vector<8x8xf32>
    %88 = vector.extract_strided_slice %14 {offsets = [8, 32], sizes = [8, 8], strides = [1, 1]} : vector<16x96xf32> to vector<8x8xf32>
    %89 = vector.extract_strided_slice %14 {offsets = [8, 64], sizes = [8, 8], strides = [1, 1]} : vector<16x96xf32> to vector<8x8xf32>
    %cst_39 = arith.constant dense<0.000000e+00> : vector<8x8xf32>
    %90 = tpu.matmul %87, %88, %cst_39 {dimension_numbers = #tpu.dot_dimension_numbers<[1], [1], [0], [0], [0, 0, 1, 0], [], []>} : vector<8x8xf32>, vector<8x8xf32>, vector<8x8xf32> -> vector<8x8xf32>
    %cst_40 = arith.constant 0.353553385 : f32
    %91 = vector.broadcast %cst_40 : f32 to vector<8x8xf32>
    %92 = arith.mulf %90, %91 : vector<8x8xf32>
    %cst_41 = arith.constant dense<0xFF800000> : vector<8xf32>
    %93 = vector.multi_reduction <maximumf>, %92, %cst_41 [1] : vector<8x8xf32> to vector<8xf32>
    %94 = vector.shape_cast %93 : vector<8xf32> to vector<8x1xf32>
    %95 = vector.broadcast %94 : vector<8x1xf32> to vector<8x8xf32>
    %96 = arith.subf %92, %95 : vector<8x8xf32>
    %97 = math.exp %96 : vector<8x8xf32>
    %cst_42 = arith.constant dense<0.000000e+00> : vector<8xf32>
    %98 = vector.multi_reduction <add>, %97, %cst_42 [1] : vector<8x8xf32> to vector<8xf32>
    %99 = vector.shape_cast %98 : vector<8xf32> to vector<8x1xf32>
    %100 = tpu.reciprocal %99 {approx = true} : vector<8x1xf32> -> vector<8x1xf32>
    %101 = vector.broadcast %100 : vector<8x1xf32> to vector<8x8xf32>
    %102 = arith.mulf %97, %101 : vector<8x8xf32>
    %cst_43 = arith.constant dense<0.000000e+00> : vector<8x8xf32>
    %103 = tpu.matmul %102, %89, %cst_43 {dimension_numbers = #tpu.dot_dimension_numbers<[1], [0], [0], [1], [0, 0, 1, 1], [], []>} : vector<8x8xf32>, vector<8x8xf32>, vector<8x8xf32> -> vector<8x8xf32>
    %c8_44 = arith.constant 8 : index
    %c0_45 = arith.constant 0 : index
    %104 = vector.load %arg25[%c8_44, %c0_45] : memref<16x32xf32, #tpu.memory_space<vmem>>, vector<8x8xf32>
    tpu.vector_store %arg25[%c8_44, %c0_45], %103 {strides = array<i32>} : memref<16x32xf32, #tpu.memory_space<vmem>>, vector<8x8xf32>,
    %105 = vector.extract_strided_slice %14 {offsets = [8, 8], sizes = [8, 8], strides = [1, 1]} : vector<16x96xf32> to vector<8x8xf32>
    %106 = vector.extract_strided_slice %14 {offsets = [8, 40], sizes = [8, 8], strides = [1, 1]} : vector<16x96xf32> to vector<8x8xf32>
    %107 = vector.extract_strided_slice %14 {offsets = [8, 72], sizes = [8, 8], strides = [1, 1]} : vector<16x96xf32> to vector<8x8xf32>
    %cst_46 = arith.constant dense<0.000000e+00> : vector<8x8xf32>
    %108 = tpu.matmul %105, %106, %cst_46 {dimension_numbers = #tpu.dot_dimension_numbers<[1], [1], [0], [0], [0, 0, 1, 0], [], []>} : vector<8x8xf32>, vector<8x8xf32>, vector<8x8xf32> -> vector<8x8xf32>
    %cst_47 = arith.constant 0.353553385 : f32
    %109 = vector.broadcast %cst_47 : f32 to vector<8x8xf32>
    %110 = arith.mulf %108, %109 : vector<8x8xf32>
    %cst_48 = arith.constant dense<0xFF800000> : vector<8xf32>
    %111 = vector.multi_reduction <maximumf>, %110, %cst_48 [1] : vector<8x8xf32> to vector<8xf32>
    %112 = vector.shape_cast %111 : vector<8xf32> to vector<8x1xf32>
    %113 = vector.broadcast %112 : vector<8x1xf32> to vector<8x8xf32>
    %114 = arith.subf %110, %113 : vector<8x8xf32>
    %115 = math.exp %114 : vector<8x8xf32>
    %cst_49 = arith.constant dense<0.000000e+00> : vector<8xf32>
    %116 = vector.multi_reduction <add>, %115, %cst_49 [1] : vector<8x8xf32> to vector<8xf32>
    %117 = vector.shape_cast %116 : vector<8xf32> to vector<8x1xf32>
    %118 = tpu.reciprocal %117 {approx = true} : vector<8x1xf32> -> vector<8x1xf32>
    %119 = vector.broadcast %118 : vector<8x1xf32> to vector<8x8xf32>
    %120 = arith.mulf %115, %119 : vector<8x8xf32>
    %cst_50 = arith.constant dense<0.000000e+00> : vector<8x8xf32>
    %121 = tpu.matmul %120, %107, %cst_50 {dimension_numbers = #tpu.dot_dimension_numbers<[1], [0], [0], [1], [0, 0, 1, 1], [], []>} : vector<8x8xf32>, vector<8x8xf32>, vector<8x8xf32> -> vector<8x8xf32>
    %c8_51 = arith.constant 8 : index
    %c8_52 = arith.constant 8 : index
    %122 = vector.load %arg25[%c8_51, %c8_52] : memref<16x32xf32, #tpu.memory_space<vmem>>, vector<8x8xf32>
    tpu.vector_store %arg25[%c8_51, %c8_52], %121 {strides = array<i32>} : memref<16x32xf32, #tpu.memory_space<vmem>>, vector<8x8xf32>,
    %123 = vector.extract_strided_slice %14 {offsets = [8, 16], sizes = [8, 8], strides = [1, 1]} : vector<16x96xf32> to vector<8x8xf32>
    %124 = vector.extract_strided_slice %14 {offsets = [8, 48], sizes = [8, 8], strides = [1, 1]} : vector<16x96xf32> to vector<8x8xf32>
    %125 = vector.extract_strided_slice %14 {offsets = [8, 80], sizes = [8, 8], strides = [1, 1]} : vector<16x96xf32> to vector<8x8xf32>
    %cst_53 = arith.constant dense<0.000000e+00> : vector<8x8xf32>
    %126 = tpu.matmul %123, %124, %cst_53 {dimension_numbers = #tpu.dot_dimension_numbers<[1], [1], [0], [0], [0, 0, 1, 0], [], []>} : vector<8x8xf32>, vector<8x8xf32>, vector<8x8xf32> -> vector<8x8xf32>
    %cst_54 = arith.constant 0.353553385 : f32
    %127 = vector.broadcast %cst_54 : f32 to vector<8x8xf32>
    %128 = arith.mulf %126, %127 : vector<8x8xf32>
    %cst_55 = arith.constant dense<0xFF800000> : vector<8xf32>
    %129 = vector.multi_reduction <maximumf>, %128, %cst_55 [1] : vector<8x8xf32> to vector<8xf32>
    %130 = vector.shape_cast %129 : vector<8xf32> to vector<8x1xf32>
    %131 = vector.broadcast %130 : vector<8x1xf32> to vector<8x8xf32>
    %132 = arith.subf %128, %131 : vector<8x8xf32>
    %133 = math.exp %132 : vector<8x8xf32>
    %cst_56 = arith.constant dense<0.000000e+00> : vector<8xf32>
    %134 = vector.multi_reduction <add>, %133, %cst_56 [1] : vector<8x8xf32> to vector<8xf32>
    %135 = vector.shape_cast %134 : vector<8xf32> to vector<8x1xf32>
    %136 = tpu.reciprocal %135 {approx = true} : vector<8x1xf32> -> vector<8x1xf32>
    %137 = vector.broadcast %136 : vector<8x1xf32> to vector<8x8xf32>
    %138 = arith.mulf %133, %137 : vector<8x8xf32>
    %cst_57 = arith.constant dense<0.000000e+00> : vector<8x8xf32>
    %139 = tpu.matmul %138, %125, %cst_57 {dimension_numbers = #tpu.dot_dimension_numbers<[1], [0], [0], [1], [0, 0, 1, 1], [], []>} : vector<8x8xf32>, vector<8x8xf32>, vector<8x8xf32> -> vector<8x8xf32>
    %c8_58 = arith.constant 8 : index
    %c16_59 = arith.constant 16 : index
    %140 = vector.load %arg25[%c8_58, %c16_59] : memref<16x32xf32, #tpu.memory_space<vmem>>, vector<8x8xf32>
    tpu.vector_store %arg25[%c8_58, %c16_59], %139 {strides = array<i32>} : memref<16x32xf32, #tpu.memory_space<vmem>>, vector<8x8xf32>,
    %141 = vector.extract_strided_slice %14 {offsets = [8, 24], sizes = [8, 8], strides = [1, 1]} : vector<16x96xf32> to vector<8x8xf32>
    %142 = vector.extract_strided_slice %14 {offsets = [8, 56], sizes = [8, 8], strides = [1, 1]} : vector<16x96xf32> to vector<8x8xf32>
    %143 = vector.extract_strided_slice %14 {offsets = [8, 88], sizes = [8, 8], strides = [1, 1]} : vector<16x96xf32> to vector<8x8xf32>
    %cst_60 = arith.constant dense<0.000000e+00> : vector<8x8xf32>
    %144 = tpu.matmul %141, %142, %cst_60 {dimension_numbers = #tpu.dot_dimension_numbers<[1], [1], [0], [0], [0, 0, 1, 0], [], []>} : vector<8x8xf32>, vector<8x8xf32>, vector<8x8xf32> -> vector<8x8xf32>
    %cst_61 = arith.constant 0.353553385 : f32
    %145 = vector.broadcast %cst_61 : f32 to vector<8x8xf32>
    %146 = arith.mulf %144, %145 : vector<8x8xf32>
    %cst_62 = arith.constant dense<0xFF800000> : vector<8xf32>
    %147 = vector.multi_reduction <maximumf>, %146, %cst_62 [1] : vector<8x8xf32> to vector<8xf32>
    %148 = vector.shape_cast %147 : vector<8xf32> to vector<8x1xf32>
    %149 = vector.broadcast %148 : vector<8x1xf32> to vector<8x8xf32>
    %150 = arith.subf %146, %149 : vector<8x8xf32>
    %151 = math.exp %150 : vector<8x8xf32>
    %cst_63 = arith.constant dense<0.000000e+00> : vector<8xf32>
    %152 = vector.multi_reduction <add>, %151, %cst_63 [1] : vector<8x8xf32> to vector<8xf32>
    %153 = vector.shape_cast %152 : vector<8xf32> to vector<8x1xf32>
    %154 = tpu.reciprocal %153 {approx = true} : vector<8x1xf32> -> vector<8x1xf32>
    %155 = vector.broadcast %154 : vector<8x1xf32> to vector<8x8xf32>
    %156 = arith.mulf %151, %155 : vector<8x8xf32>
    %cst_64 = arith.constant dense<0.000000e+00> : vector<8x8xf32>
    %157 = tpu.matmul %156, %143, %cst_64 {dimension_numbers = #tpu.dot_dimension_numbers<[1], [0], [0], [1], [0, 0, 1, 1], [], []>} : vector<8x8xf32>, vector<8x8xf32>, vector<8x8xf32> -> vector<8x8xf32>
    %c8_65 = arith.constant 8 : index
    %c24_66 = arith.constant 24 : index
    %158 = vector.load %arg25[%c8_65, %c24_66] : memref<16x32xf32, #tpu.memory_space<vmem>>, vector<8x8xf32>
    tpu.vector_store %arg25[%c8_65, %c24_66], %157 {strides = array<i32>} : memref<16x32xf32, #tpu.memory_space<vmem>>, vector<8x8xf32>,
    %c0_67 = arith.constant 0 : index
    %c0_68 = arith.constant 0 : index
    %159 = vector.load %arg25[%c0_67, %c0_68] : memref<16x32xf32, #tpu.memory_space<vmem>>, vector<16x32xf32>
    %c0_69 = arith.constant 0 : index
    %c0_70 = arith.constant 0 : index
    %c0_71 = arith.constant 0 : index
    %160 = vector.load %arg6[%c0_69, %c0_70, %c0_71] : memref<2x32x32xf32, #tpu.memory_space<vmem>>, vector<1x32x32xf32>
    %161 = vector.shape_cast %160 : vector<1x32x32xf32> to vector<32x32xf32>
    %cst_72 = arith.constant dense<0.000000e+00> : vector<16x32xf32>
    %162 = tpu.matmul %159, %161, %cst_72 {dimension_numbers = #tpu.dot_dimension_numbers<[1], [0], [0], [1], [0, 0, 1, 1], [], []>} : vector<16x32xf32>, vector<32x32xf32>, vector<16x32xf32> -> vector<16x32xf32>
    %c0_73 = arith.constant 0 : index
    %c0_74 = arith.constant 0 : index
    %c0_75 = arith.constant 0 : index
    %163 = vector.load %arg7[%c0_73, %c0_74, %c0_75] : memref<2x1x32xf32, #tpu.memory_space<vmem>>, vector<1x1x32xf32>
    %164 = vector.shape_cast %163 : vector<1x1x32xf32> to vector<1x32xf32>
    %165 = vector.broadcast %164 : vector<1x32xf32> to vector<16x32xf32>
    %166 = arith.addf %162, %165 : vector<16x32xf32>
    %167 = arith.addf %7, %166 : vector<16x32xf32>
    %c0_76 = arith.constant 0 : index
    %c0_77 = arith.constant 0 : index
    %c0_78 = arith.constant 0 : index
    %168 = vector.load %arg12[%c0_76, %c0_77, %c0_78] : memref<2x1x32xf32, #tpu.memory_space<vmem>>, vector<1x1x32xf32>
    %169 = vector.shape_cast %168 : vector<1x1x32xf32> to vector<1x32xf32>
    %c0_79 = arith.constant 0 : index
    %c0_80 = arith.constant 0 : index
    %c0_81 = arith.constant 0 : index
    %170 = vector.load %arg13[%c0_79, %c0_80, %c0_81] : memref<2x1x32xf32, #tpu.memory_space<vmem>>, vector<1x1x32xf32>
    %171 = vector.shape_cast %170 : vector<1x1x32xf32> to vector<1x32xf32>
    %cst_82 = arith.constant dense<0.000000e+00> : vector<16xf32>
    %172 = vector.multi_reduction <add>, %167, %cst_82 [1] : vector<16x32xf32> to vector<16xf32>
    %173 = vector.shape_cast %172 : vector<16xf32> to vector<16x1xf32>
    %cst_83 = arith.constant 3.200000e+01 : f32
    %174 = vector.broadcast %cst_83 : f32 to vector<16x1xf32>
    %175 = arith.divf %173, %174 : vector<16x1xf32>
    %176 = vector.broadcast %175 : vector<16x1xf32> to vector<16x32xf32>
    %177 = arith.subf %167, %176 : vector<16x32xf32>
    %178 = arith.mulf %177, %177 : vector<16x32xf32>
    %cst_84 = arith.constant dense<0.000000e+00> : vector<16xf32>
    %179 = vector.multi_reduction <add>, %178, %cst_84 [1] : vector<16x32xf32> to vector<16xf32>
    %180 = vector.shape_cast %179 : vector<16xf32> to vector<16x1xf32>
    %cst_85 = arith.constant 3.200000e+01 : f32
    %181 = vector.broadcast %cst_85 : f32 to vector<16x1xf32>
    %182 = arith.divf %180, %181 : vector<16x1xf32>
    %183 = vector.broadcast %175 : vector<16x1xf32> to vector<16x32xf32>
    %184 = arith.subf %167, %183 : vector<16x32xf32>
    %cst_86 = arith.constant 9.99999974E-6 : f32
    %185 = vector.broadcast %cst_86 : f32 to vector<16x1xf32>
    %186 = arith.addf %182, %185 : vector<16x1xf32>
    %187 = math.rsqrt %186 : vector<16x1xf32>
    %188 = vector.broadcast %187 : vector<16x1xf32> to vector<16x32xf32>
    %189 = arith.mulf %184, %188 : vector<16x32xf32>
    %190 = vector.broadcast %169 : vector<1x32xf32> to vector<16x32xf32>
    %191 = arith.mulf %189, %190 : vector<16x32xf32>
    %192 = vector.broadcast %171 : vector<1x32xf32> to vector<16x32xf32>
    %193 = arith.addf %191, %192 : vector<16x32xf32>
    %c0_87 = arith.constant 0 : index
    %c0_88 = arith.constant 0 : index
    %c0_89 = arith.constant 0 : index
    %194 = vector.load %arg8[%c0_87, %c0_88, %c0_89] : memref<2x32x64xf32, #tpu.memory_space<vmem>>, vector<1x32x64xf32>
    %195 = vector.shape_cast %194 : vector<1x32x64xf32> to vector<32x64xf32>
    %cst_90 = arith.constant dense<0.000000e+00> : vector<16x64xf32>
    %196 = tpu.matmul %193, %195, %cst_90 {dimension_numbers = #tpu.dot_dimension_numbers<[1], [0], [0], [1], [0, 0, 1, 1], [], []>} : vector<16x32xf32>, vector<32x64xf32>, vector<16x64xf32> -> vector<16x64xf32>
    %c0_91 = arith.constant 0 : index
    %c0_92 = arith.constant 0 : index
    %c0_93 = arith.constant 0 : index
    %197 = vector.load %arg9[%c0_91, %c0_92, %c0_93] : memref<2x1x64xf32, #tpu.memory_space<vmem>>, vector<1x1x64xf32>
    %198 = vector.shape_cast %197 : vector<1x1x64xf32> to vector<1x64xf32>
    %199 = vector.broadcast %198 : vector<1x64xf32> to vector<16x64xf32>
    %200 = arith.addf %196, %199 : vector<16x64xf32>
    %cst_94 = arith.constant 0.000000e+00 : f32
    %201 = vector.broadcast %cst_94 : f32 to vector<16x64xf32>
    %202 = arith.maximumf %200, %201 : vector<16x64xf32>
    %c0_95 = arith.constant 0 : index
    %c0_96 = arith.constant 0 : index
    %c0_97 = arith.constant 0 : index
    %203 = vector.load %arg10[%c0_95, %c0_96, %c0_97] : memref<2x64x32xf32, #tpu.memory_space<vmem>>, vector<1x64x32xf32>
    %204 = vector.shape_cast %203 : vector<1x64x32xf32> to vector<64x32xf32>
    %cst_98 = arith.constant dense<0.000000e+00> : vector<16x32xf32>
    %205 = tpu.matmul %202, %204, %cst_98 {dimension_numbers = #tpu.dot_dimension_numbers<[1], [0], [0], [1], [0, 0, 1, 1], [], []>} : vector<16x64xf32>, vector<64x32xf32>, vector<16x32xf32> -> vector<16x32xf32>
    %c0_99 = arith.constant 0 : index
    %c0_100 = arith.constant 0 : index
    %c0_101 = arith.constant 0 : index
    %206 = vector.load %arg11[%c0_99, %c0_100, %c0_101] : memref<2x1x32xf32, #tpu.memory_space<vmem>>, vector<1x1x32xf32>
    %207 = vector.shape_cast %206 : vector<1x1x32xf32> to vector<1x32xf32>
    %208 = vector.broadcast %207 : vector<1x32xf32> to vector<16x32xf32>
    %209 = arith.addf %205, %208 : vector<16x32xf32>
    %210 = arith.addf %193, %209 : vector<16x32xf32>
    %c0_102 = arith.constant 0 : index
    %c0_103 = arith.constant 0 : index
    %c0_104 = arith.constant 0 : index
    %211 = vector.load %arg14[%c0_102, %c0_103, %c0_104] : memref<2x1x32xf32, #tpu.memory_space<vmem>>, vector<1x1x32xf32>
    %212 = vector.shape_cast %211 : vector<1x1x32xf32> to vector<1x32xf32>
    %c0_105 = arith.constant 0 : index
    %c0_106 = arith.constant 0 : index
    %c0_107 = arith.constant 0 : index
    %213 = vector.load %arg15[%c0_105, %c0_106, %c0_107] : memref<2x1x32xf32, #tpu.memory_space<vmem>>, vector<1x1x32xf32>
    %214 = vector.shape_cast %213 : vector<1x1x32xf32> to vector<1x32xf32>
    %cst_108 = arith.constant dense<0.000000e+00> : vector<16xf32>
    %215 = vector.multi_reduction <add>, %210, %cst_108 [1] : vector<16x32xf32> to vector<16xf32>
    %216 = vector.shape_cast %215 : vector<16xf32> to vector<16x1xf32>
    %cst_109 = arith.constant 3.200000e+01 : f32
    %217 = vector.broadcast %cst_109 : f32 to vector<16x1xf32>
    %218 = arith.divf %216, %217 : vector<16x1xf32>
    %219 = vector.broadcast %218 : vector<16x1xf32> to vector<16x32xf32>
    %220 = arith.subf %210, %219 : vector<16x32xf32>
    %221 = arith.mulf %220, %220 : vector<16x32xf32>
    %cst_110 = arith.constant dense<0.000000e+00> : vector<16xf32>
    %222 = vector.multi_reduction <add>, %221, %cst_110 [1] : vector<16x32xf32> to vector<16xf32>
    %223 = vector.shape_cast %222 : vector<16xf32> to vector<16x1xf32>
    %cst_111 = arith.constant 3.200000e+01 : f32
    %224 = vector.broadcast %cst_111 : f32 to vector<16x1xf32>
    %225 = arith.divf %223, %224 : vector<16x1xf32>
    %226 = vector.broadcast %218 : vector<16x1xf32> to vector<16x32xf32>
    %227 = arith.subf %210, %226 : vector<16x32xf32>
    %cst_112 = arith.constant 9.99999974E-6 : f32
    %228 = vector.broadcast %cst_112 : f32 to vector<16x1xf32>
    %229 = arith.addf %225, %228 : vector<16x1xf32>
    %230 = math.rsqrt %229 : vector<16x1xf32>
    %231 = vector.broadcast %230 : vector<16x1xf32> to vector<16x32xf32>
    %232 = arith.mulf %227, %231 : vector<16x32xf32>
    %233 = vector.broadcast %212 : vector<1x32xf32> to vector<16x32xf32>
    %234 = arith.mulf %232, %233 : vector<16x32xf32>
    %235 = vector.broadcast %214 : vector<1x32xf32> to vector<16x32xf32>
    %236 = arith.addf %234, %235 : vector<16x32xf32>
    %c1 = arith.constant 1 : index
    %c0_113 = arith.constant 0 : index
    %c0_114 = arith.constant 0 : index
    %237 = vector.load %arg4[%c1, %c0_113, %c0_114] : memref<2x32x96xf32, #tpu.memory_space<vmem>>, vector<1x32x96xf32>
    %238 = vector.shape_cast %237 : vector<1x32x96xf32> to vector<32x96xf32>
    %cst_115 = arith.constant dense<0.000000e+00> : vector<16x96xf32>
    %239 = tpu.matmul %236, %238, %cst_115 {dimension_numbers = #tpu.dot_dimension_numbers<[1], [0], [0], [1], [0, 0, 1, 1], [], []>} : vector<16x32xf32>, vector<32x96xf32>, vector<16x96xf32> -> vector<16x96xf32>
    %c1_116 = arith.constant 1 : index
    %c0_117 = arith.constant 0 : index
    %c0_118 = arith.constant 0 : index
    %240 = vector.load %arg5[%c1_116, %c0_117, %c0_118] : memref<2x1x96xf32, #tpu.memory_space<vmem>>, vector<1x1x96xf32>
    %241 = vector.shape_cast %240 : vector<1x1x96xf32> to vector<1x96xf32>
    %242 = vector.broadcast %241 : vector<1x96xf32> to vector<16x96xf32>
    %243 = arith.addf %239, %242 : vector<16x96xf32>
    %244 = vector.extract_strided_slice %243 {offsets = [0, 0], sizes = [8, 8], strides = [1, 1]} : vector<16x96xf32> to vector<8x8xf32>
    %245 = vector.extract_strided_slice %243 {offsets = [0, 32], sizes = [8, 8], strides = [1, 1]} : vector<16x96xf32> to vector<8x8xf32>
    %246 = vector.extract_strided_slice %243 {offsets = [0, 64], sizes = [8, 8], strides = [1, 1]} : vector<16x96xf32> to vector<8x8xf32>
    %cst_119 = arith.constant dense<0.000000e+00> : vector<8x8xf32>
    %247 = tpu.matmul %244, %245, %cst_119 {dimension_numbers = #tpu.dot_dimension_numbers<[1], [1], [0], [0], [0, 0, 1, 0], [], []>} : vector<8x8xf32>, vector<8x8xf32>, vector<8x8xf32> -> vector<8x8xf32>
    %cst_120 = arith.constant 0.353553385 : f32
    %248 = vector.broadcast %cst_120 : f32 to vector<8x8xf32>
    %249 = arith.mulf %247, %248 : vector<8x8xf32>
    %cst_121 = arith.constant dense<0xFF800000> : vector<8xf32>
    %250 = vector.multi_reduction <maximumf>, %249, %cst_121 [1] : vector<8x8xf32> to vector<8xf32>
    %251 = vector.shape_cast %250 : vector<8xf32> to vector<8x1xf32>
    %252 = vector.broadcast %251 : vector<8x1xf32> to vector<8x8xf32>
    %253 = arith.subf %249, %252 : vector<8x8xf32>
    %254 = math.exp %253 : vector<8x8xf32>
    %cst_122 = arith.constant dense<0.000000e+00> : vector<8xf32>
    %255 = vector.multi_reduction <add>, %254, %cst_122 [1] : vector<8x8xf32> to vector<8xf32>
    %256 = vector.shape_cast %255 : vector<8xf32> to vector<8x1xf32>
    %257 = tpu.reciprocal %256 {approx = true} : vector<8x1xf32> -> vector<8x1xf32>
    %258 = vector.broadcast %257 : vector<8x1xf32> to vector<8x8xf32>
    %259 = arith.mulf %254, %258 : vector<8x8xf32>
    %cst_123 = arith.constant dense<0.000000e+00> : vector<8x8xf32>
    %260 = tpu.matmul %259, %246, %cst_123 {dimension_numbers = #tpu.dot_dimension_numbers<[1], [0], [0], [1], [0, 0, 1, 1], [], []>} : vector<8x8xf32>, vector<8x8xf32>, vector<8x8xf32> -> vector<8x8xf32>
    %c0_124 = arith.constant 0 : index
    %c0_125 = arith.constant 0 : index
    %261 = vector.load %arg25[%c0_124, %c0_125] : memref<16x32xf32, #tpu.memory_space<vmem>>, vector<8x8xf32>
    tpu.vector_store %arg25[%c0_124, %c0_125], %260 {strides = array<i32>} : memref<16x32xf32, #tpu.memory_space<vmem>>, vector<8x8xf32>,
    %262 = vector.extract_strided_slice %243 {offsets = [0, 8], sizes = [8, 8], strides = [1, 1]} : vector<16x96xf32> to vector<8x8xf32>
    %263 = vector.extract_strided_slice %243 {offsets = [0, 40], sizes = [8, 8], strides = [1, 1]} : vector<16x96xf32> to vector<8x8xf32>
    %264 = vector.extract_strided_slice %243 {offsets = [0, 72], sizes = [8, 8], strides = [1, 1]} : vector<16x96xf32> to vector<8x8xf32>
    %cst_126 = arith.constant dense<0.000000e+00> : vector<8x8xf32>
    %265 = tpu.matmul %262, %263, %cst_126 {dimension_numbers = #tpu.dot_dimension_numbers<[1], [1], [0], [0], [0, 0, 1, 0], [], []>} : vector<8x8xf32>, vector<8x8xf32>, vector<8x8xf32> -> vector<8x8xf32>
    %cst_127 = arith.constant 0.353553385 : f32
    %266 = vector.broadcast %cst_127 : f32 to vector<8x8xf32>
    %267 = arith.mulf %265, %266 : vector<8x8xf32>
    %cst_128 = arith.constant dense<0xFF800000> : vector<8xf32>
    %268 = vector.multi_reduction <maximumf>, %267, %cst_128 [1] : vector<8x8xf32> to vector<8xf32>
    %269 = vector.shape_cast %268 : vector<8xf32> to vector<8x1xf32>
    %270 = vector.broadcast %269 : vector<8x1xf32> to vector<8x8xf32>
    %271 = arith.subf %267, %270 : vector<8x8xf32>
    %272 = math.exp %271 : vector<8x8xf32>
    %cst_129 = arith.constant dense<0.000000e+00> : vector<8xf32>
    %273 = vector.multi_reduction <add>, %272, %cst_129 [1] : vector<8x8xf32> to vector<8xf32>
    %274 = vector.shape_cast %273 : vector<8xf32> to vector<8x1xf32>
    %275 = tpu.reciprocal %274 {approx = true} : vector<8x1xf32> -> vector<8x1xf32>
    %276 = vector.broadcast %275 : vector<8x1xf32> to vector<8x8xf32>
    %277 = arith.mulf %272, %276 : vector<8x8xf32>
    %cst_130 = arith.constant dense<0.000000e+00> : vector<8x8xf32>
    %278 = tpu.matmul %277, %264, %cst_130 {dimension_numbers = #tpu.dot_dimension_numbers<[1], [0], [0], [1], [0, 0, 1, 1], [], []>} : vector<8x8xf32>, vector<8x8xf32>, vector<8x8xf32> -> vector<8x8xf32>
    %c0_131 = arith.constant 0 : index
    %c8_132 = arith.constant 8 : index
    %279 = vector.load %arg25[%c0_131, %c8_132] : memref<16x32xf32, #tpu.memory_space<vmem>>, vector<8x8xf32>
    tpu.vector_store %arg25[%c0_131, %c8_132], %278 {strides = array<i32>} : memref<16x32xf32, #tpu.memory_space<vmem>>, vector<8x8xf32>,
    %280 = vector.extract_strided_slice %243 {offsets = [0, 16], sizes = [8, 8], strides = [1, 1]} : vector<16x96xf32> to vector<8x8xf32>
    %281 = vector.extract_strided_slice %243 {offsets = [0, 48], sizes = [8, 8], strides = [1, 1]} : vector<16x96xf32> to vector<8x8xf32>
    %282 = vector.extract_strided_slice %243 {offsets = [0, 80], sizes = [8, 8], strides = [1, 1]} : vector<16x96xf32> to vector<8x8xf32>
    %cst_133 = arith.constant dense<0.000000e+00> : vector<8x8xf32>
    %283 = tpu.matmul %280, %281, %cst_133 {dimension_numbers = #tpu.dot_dimension_numbers<[1], [1], [0], [0], [0, 0, 1, 0], [], []>} : vector<8x8xf32>, vector<8x8xf32>, vector<8x8xf32> -> vector<8x8xf32>
    %cst_134 = arith.constant 0.353553385 : f32
    %284 = vector.broadcast %cst_134 : f32 to vector<8x8xf32>
    %285 = arith.mulf %283, %284 : vector<8x8xf32>
    %cst_135 = arith.constant dense<0xFF800000> : vector<8xf32>
    %286 = vector.multi_reduction <maximumf>, %285, %cst_135 [1] : vector<8x8xf32> to vector<8xf32>
    %287 = vector.shape_cast %286 : vector<8xf32> to vector<8x1xf32>
    %288 = vector.broadcast %287 : vector<8x1xf32> to vector<8x8xf32>
    %289 = arith.subf %285, %288 : vector<8x8xf32>
    %290 = math.exp %289 : vector<8x8xf32>
    %cst_136 = arith.constant dense<0.000000e+00> : vector<8xf32>
    %291 = vector.multi_reduction <add>, %290, %cst_136 [1] : vector<8x8xf32> to vector<8xf32>
    %292 = vector.shape_cast %291 : vector<8xf32> to vector<8x1xf32>
    %293 = tpu.reciprocal %292 {approx = true} : vector<8x1xf32> -> vector<8x1xf32>
    %294 = vector.broadcast %293 : vector<8x1xf32> to vector<8x8xf32>
    %295 = arith.mulf %290, %294 : vector<8x8xf32>
    %cst_137 = arith.constant dense<0.000000e+00> : vector<8x8xf32>
    %296 = tpu.matmul %295, %282, %cst_137 {dimension_numbers = #tpu.dot_dimension_numbers<[1], [0], [0], [1], [0, 0, 1, 1], [], []>} : vector<8x8xf32>, vector<8x8xf32>, vector<8x8xf32> -> vector<8x8xf32>
    %c0_138 = arith.constant 0 : index
    %c16_139 = arith.constant 16 : index
    %297 = vector.load %arg25[%c0_138, %c16_139] : memref<16x32xf32, #tpu.memory_space<vmem>>, vector<8x8xf32>
    tpu.vector_store %arg25[%c0_138, %c16_139], %296 {strides = array<i32>} : memref<16x32xf32, #tpu.memory_space<vmem>>, vector<8x8xf32>,
    %298 = vector.extract_strided_slice %243 {offsets = [0, 24], sizes = [8, 8], strides = [1, 1]} : vector<16x96xf32> to vector<8x8xf32>
    %299 = vector.extract_strided_slice %243 {offsets = [0, 56], sizes = [8, 8], strides = [1, 1]} : vector<16x96xf32> to vector<8x8xf32>
    %300 = vector.extract_strided_slice %243 {offsets = [0, 88], sizes = [8, 8], strides = [1, 1]} : vector<16x96xf32> to vector<8x8xf32>
    %cst_140 = arith.constant dense<0.000000e+00> : vector<8x8xf32>
    %301 = tpu.matmul %298, %299, %cst_140 {dimension_numbers = #tpu.dot_dimension_numbers<[1], [1], [0], [0], [0, 0, 1, 0], [], []>} : vector<8x8xf32>, vector<8x8xf32>, vector<8x8xf32> -> vector<8x8xf32>
    %cst_141 = arith.constant 0.353553385 : f32
    %302 = vector.broadcast %cst_141 : f32 to vector<8x8xf32>
    %303 = arith.mulf %301, %302 : vector<8x8xf32>
    %cst_142 = arith.constant dense<0xFF800000> : vector<8xf32>
    %304 = vector.multi_reduction <maximumf>, %303, %cst_142 [1] : vector<8x8xf32> to vector<8xf32>
    %305 = vector.shape_cast %304 : vector<8xf32> to vector<8x1xf32>
    %306 = vector.broadcast %305 : vector<8x1xf32> to vector<8x8xf32>
    %307 = arith.subf %303, %306 : vector<8x8xf32>
    %308 = math.exp %307 : vector<8x8xf32>
    %cst_143 = arith.constant dense<0.000000e+00> : vector<8xf32>
    %309 = vector.multi_reduction <add>, %308, %cst_143 [1] : vector<8x8xf32> to vector<8xf32>
    %310 = vector.shape_cast %309 : vector<8xf32> to vector<8x1xf32>
    %311 = tpu.reciprocal %310 {approx = true} : vector<8x1xf32> -> vector<8x1xf32>
    %312 = vector.broadcast %311 : vector<8x1xf32> to vector<8x8xf32>
    %313 = arith.mulf %308, %312 : vector<8x8xf32>
    %cst_144 = arith.constant dense<0.000000e+00> : vector<8x8xf32>
    %314 = tpu.matmul %313, %300, %cst_144 {dimension_numbers = #tpu.dot_dimension_numbers<[1], [0], [0], [1], [0, 0, 1, 1], [], []>} : vector<8x8xf32>, vector<8x8xf32>, vector<8x8xf32> -> vector<8x8xf32>
    %c0_145 = arith.constant 0 : index
    %c24_146 = arith.constant 24 : index
    %315 = vector.load %arg25[%c0_145, %c24_146] : memref<16x32xf32, #tpu.memory_space<vmem>>, vector<8x8xf32>
    tpu.vector_store %arg25[%c0_145, %c24_146], %314 {strides = array<i32>} : memref<16x32xf32, #tpu.memory_space<vmem>>, vector<8x8xf32>,
    %316 = vector.extract_strided_slice %243 {offsets = [8, 0], sizes = [8, 8], strides = [1, 1]} : vector<16x96xf32> to vector<8x8xf32>
    %317 = vector.extract_strided_slice %243 {offsets = [8, 32], sizes = [8, 8], strides = [1, 1]} : vector<16x96xf32> to vector<8x8xf32>
    %318 = vector.extract_strided_slice %243 {offsets = [8, 64], sizes = [8, 8], strides = [1, 1]} : vector<16x96xf32> to vector<8x8xf32>
    %cst_147 = arith.constant dense<0.000000e+00> : vector<8x8xf32>
    %319 = tpu.matmul %316, %317, %cst_147 {dimension_numbers = #tpu.dot_dimension_numbers<[1], [1], [0], [0], [0, 0, 1, 0], [], []>} : vector<8x8xf32>, vector<8x8xf32>, vector<8x8xf32> -> vector<8x8xf32>
    %cst_148 = arith.constant 0.353553385 : f32
    %320 = vector.broadcast %cst_148 : f32 to vector<8x8xf32>
    %321 = arith.mulf %319, %320 : vector<8x8xf32>
    %cst_149 = arith.constant dense<0xFF800000> : vector<8xf32>
    %322 = vector.multi_reduction <maximumf>, %321, %cst_149 [1] : vector<8x8xf32> to vector<8xf32>
    %323 = vector.shape_cast %322 : vector<8xf32> to vector<8x1xf32>
    %324 = vector.broadcast %323 : vector<8x1xf32> to vector<8x8xf32>
    %325 = arith.subf %321, %324 : vector<8x8xf32>
    %326 = math.exp %325 : vector<8x8xf32>
    %cst_150 = arith.constant dense<0.000000e+00> : vector<8xf32>
    %327 = vector.multi_reduction <add>, %326, %cst_150 [1] : vector<8x8xf32> to vector<8xf32>
    %328 = vector.shape_cast %327 : vector<8xf32> to vector<8x1xf32>
    %329 = tpu.reciprocal %328 {approx = true} : vector<8x1xf32> -> vector<8x1xf32>
    %330 = vector.broadcast %329 : vector<8x1xf32> to vector<8x8xf32>
    %331 = arith.mulf %326, %330 : vector<8x8xf32>
    %cst_151 = arith.constant dense<0.000000e+00> : vector<8x8xf32>
    %332 = tpu.matmul %331, %318, %cst_151 {dimension_numbers = #tpu.dot_dimension_numbers<[1], [0], [0], [1], [0, 0, 1, 1], [], []>} : vector<8x8xf32>, vector<8x8xf32>, vector<8x8xf32> -> vector<8x8xf32>
    %c8_152 = arith.constant 8 : index
    %c0_153 = arith.constant 0 : index
    %333 = vector.load %arg25[%c8_152, %c0_153] : memref<16x32xf32, #tpu.memory_space<vmem>>, vector<8x8xf32>
    tpu.vector_store %arg25[%c8_152, %c0_153], %332 {strides = array<i32>} : memref<16x32xf32, #tpu.memory_space<vmem>>, vector<8x8xf32>,
    %334 = vector.extract_strided_slice %243 {offsets = [8, 8], sizes = [8, 8], strides = [1, 1]} : vector<16x96xf32> to vector<8x8xf32>
    %335 = vector.extract_strided_slice %243 {offsets = [8, 40], sizes = [8, 8], strides = [1, 1]} : vector<16x96xf32> to vector<8x8xf32>
    %336 = vector.extract_strided_slice %243 {offsets = [8, 72], sizes = [8, 8], strides = [1, 1]} : vector<16x96xf32> to vector<8x8xf32>
    %cst_154 = arith.constant dense<0.000000e+00> : vector<8x8xf32>
    %337 = tpu.matmul %334, %335, %cst_154 {dimension_numbers = #tpu.dot_dimension_numbers<[1], [1], [0], [0], [0, 0, 1, 0], [], []>} : vector<8x8xf32>, vector<8x8xf32>, vector<8x8xf32> -> vector<8x8xf32>
    %cst_155 = arith.constant 0.353553385 : f32
    %338 = vector.broadcast %cst_155 : f32 to vector<8x8xf32>
    %339 = arith.mulf %337, %338 : vector<8x8xf32>
    %cst_156 = arith.constant dense<0xFF800000> : vector<8xf32>
    %340 = vector.multi_reduction <maximumf>, %339, %cst_156 [1] : vector<8x8xf32> to vector<8xf32>
    %341 = vector.shape_cast %340 : vector<8xf32> to vector<8x1xf32>
    %342 = vector.broadcast %341 : vector<8x1xf32> to vector<8x8xf32>
    %343 = arith.subf %339, %342 : vector<8x8xf32>
    %344 = math.exp %343 : vector<8x8xf32>
    %cst_157 = arith.constant dense<0.000000e+00> : vector<8xf32>
    %345 = vector.multi_reduction <add>, %344, %cst_157 [1] : vector<8x8xf32> to vector<8xf32>
    %346 = vector.shape_cast %345 : vector<8xf32> to vector<8x1xf32>
    %347 = tpu.reciprocal %346 {approx = true} : vector<8x1xf32> -> vector<8x1xf32>
    %348 = vector.broadcast %347 : vector<8x1xf32> to vector<8x8xf32>
    %349 = arith.mulf %344, %348 : vector<8x8xf32>
    %cst_158 = arith.constant dense<0.000000e+00> : vector<8x8xf32>
    %350 = tpu.matmul %349, %336, %cst_158 {dimension_numbers = #tpu.dot_dimension_numbers<[1], [0], [0], [1], [0, 0, 1, 1], [], []>} : vector<8x8xf32>, vector<8x8xf32>, vector<8x8xf32> -> vector<8x8xf32>
    %c8_159 = arith.constant 8 : index
    %c8_160 = arith.constant 8 : index
    %351 = vector.load %arg25[%c8_159, %c8_160] : memref<16x32xf32, #tpu.memory_space<vmem>>, vector<8x8xf32>
    tpu.vector_store %arg25[%c8_159, %c8_160], %350 {strides = array<i32>} : memref<16x32xf32, #tpu.memory_space<vmem>>, vector<8x8xf32>,
    %352 = vector.extract_strided_slice %243 {offsets = [8, 16], sizes = [8, 8], strides = [1, 1]} : vector<16x96xf32> to vector<8x8xf32>
    %353 = vector.extract_strided_slice %243 {offsets = [8, 48], sizes = [8, 8], strides = [1, 1]} : vector<16x96xf32> to vector<8x8xf32>
    %354 = vector.extract_strided_slice %243 {offsets = [8, 80], sizes = [8, 8], strides = [1, 1]} : vector<16x96xf32> to vector<8x8xf32>
    %cst_161 = arith.constant dense<0.000000e+00> : vector<8x8xf32>
    %355 = tpu.matmul %352, %353, %cst_161 {dimension_numbers = #tpu.dot_dimension_numbers<[1], [1], [0], [0], [0, 0, 1, 0], [], []>} : vector<8x8xf32>, vector<8x8xf32>, vector<8x8xf32> -> vector<8x8xf32>
    %cst_162 = arith.constant 0.353553385 : f32
    %356 = vector.broadcast %cst_162 : f32 to vector<8x8xf32>
    %357 = arith.mulf %355, %356 : vector<8x8xf32>
    %cst_163 = arith.constant dense<0xFF800000> : vector<8xf32>
    %358 = vector.multi_reduction <maximumf>, %357, %cst_163 [1] : vector<8x8xf32> to vector<8xf32>
    %359 = vector.shape_cast %358 : vector<8xf32> to vector<8x1xf32>
    %360 = vector.broadcast %359 : vector<8x1xf32> to vector<8x8xf32>
    %361 = arith.subf %357, %360 : vector<8x8xf32>
    %362 = math.exp %361 : vector<8x8xf32>
    %cst_164 = arith.constant dense<0.000000e+00> : vector<8xf32>
    %363 = vector.multi_reduction <add>, %362, %cst_164 [1] : vector<8x8xf32> to vector<8xf32>
    %364 = vector.shape_cast %363 : vector<8xf32> to vector<8x1xf32>
    %365 = tpu.reciprocal %364 {approx = true} : vector<8x1xf32> -> vector<8x1xf32>
    %366 = vector.broadcast %365 : vector<8x1xf32> to vector<8x8xf32>
    %367 = arith.mulf %362, %366 : vector<8x8xf32>
    %cst_165 = arith.constant dense<0.000000e+00> : vector<8x8xf32>
    %368 = tpu.matmul %367, %354, %cst_165 {dimension_numbers = #tpu.dot_dimension_numbers<[1], [0], [0], [1], [0, 0, 1, 1], [], []>} : vector<8x8xf32>, vector<8x8xf32>, vector<8x8xf32> -> vector<8x8xf32>
    %c8_166 = arith.constant 8 : index
    %c16_167 = arith.constant 16 : index
    %369 = vector.load %arg25[%c8_166, %c16_167] : memref<16x32xf32, #tpu.memory_space<vmem>>, vector<8x8xf32>
    tpu.vector_store %arg25[%c8_166, %c16_167], %368 {strides = array<i32>} : memref<16x32xf32, #tpu.memory_space<vmem>>, vector<8x8xf32>,
    %370 = vector.extract_strided_slice %243 {offsets = [8, 24], sizes = [8, 8], strides = [1, 1]} : vector<16x96xf32> to vector<8x8xf32>
    %371 = vector.extract_strided_slice %243 {offsets = [8, 56], sizes = [8, 8], strides = [1, 1]} : vector<16x96xf32> to vector<8x8xf32>
    %372 = vector.extract_strided_slice %243 {offsets = [8, 88], sizes = [8, 8], strides = [1, 1]} : vector<16x96xf32> to vector<8x8xf32>
    %cst_168 = arith.constant dense<0.000000e+00> : vector<8x8xf32>
    %373 = tpu.matmul %370, %371, %cst_168 {dimension_numbers = #tpu.dot_dimension_numbers<[1], [1], [0], [0], [0, 0, 1, 0], [], []>} : vector<8x8xf32>, vector<8x8xf32>, vector<8x8xf32> -> vector<8x8xf32>
    %cst_169 = arith.constant 0.353553385 : f32
    %374 = vector.broadcast %cst_169 : f32 to vector<8x8xf32>
    %375 = arith.mulf %373, %374 : vector<8x8xf32>
    %cst_170 = arith.constant dense<0xFF800000> : vector<8xf32>
    %376 = vector.multi_reduction <maximumf>, %375, %cst_170 [1] : vector<8x8xf32> to vector<8xf32>
    %377 = vector.shape_cast %376 : vector<8xf32> to vector<8x1xf32>
    %378 = vector.broadcast %377 : vector<8x1xf32> to vector<8x8xf32>
    %379 = arith.subf %375, %378 : vector<8x8xf32>
    %380 = math.exp %379 : vector<8x8xf32>
    %cst_171 = arith.constant dense<0.000000e+00> : vector<8xf32>
    %381 = vector.multi_reduction <add>, %380, %cst_171 [1] : vector<8x8xf32> to vector<8xf32>
    %382 = vector.shape_cast %381 : vector<8xf32> to vector<8x1xf32>
    %383 = tpu.reciprocal %382 {approx = true} : vector<8x1xf32> -> vector<8x1xf32>
    %384 = vector.broadcast %383 : vector<8x1xf32> to vector<8x8xf32>
    %385 = arith.mulf %380, %384 : vector<8x8xf32>
    %cst_172 = arith.constant dense<0.000000e+00> : vector<8x8xf32>
    %386 = tpu.matmul %385, %372, %cst_172 {dimension_numbers = #tpu.dot_dimension_numbers<[1], [0], [0], [1], [0, 0, 1, 1], [], []>} : vector<8x8xf32>, vector<8x8xf32>, vector<8x8xf32> -> vector<8x8xf32>
    %c8_173 = arith.constant 8 : index
    %c24_174 = arith.constant 24 : index
    %387 = vector.load %arg25[%c8_173, %c24_174] : memref<16x32xf32, #tpu.memory_space<vmem>>, vector<8x8xf32>
    tpu.vector_store %arg25[%c8_173, %c24_174], %386 {strides = array<i32>} : memref<16x32xf32, #tpu.memory_space<vmem>>, vector<8x8xf32>,
    %c0_175 = arith.constant 0 : index
    %c0_176 = arith.constant 0 : index
    %388 = vector.load %arg25[%c0_175, %c0_176] : memref<16x32xf32, #tpu.memory_space<vmem>>, vector<16x32xf32>
    %c1_177 = arith.constant 1 : index
    %c0_178 = arith.constant 0 : index
    %c0_179 = arith.constant 0 : index
    %389 = vector.load %arg6[%c1_177, %c0_178, %c0_179] : memref<2x32x32xf32, #tpu.memory_space<vmem>>, vector<1x32x32xf32>
    %390 = vector.shape_cast %389 : vector<1x32x32xf32> to vector<32x32xf32>
    %cst_180 = arith.constant dense<0.000000e+00> : vector<16x32xf32>
    %391 = tpu.matmul %388, %390, %cst_180 {dimension_numbers = #tpu.dot_dimension_numbers<[1], [0], [0], [1], [0, 0, 1, 1], [], []>} : vector<16x32xf32>, vector<32x32xf32>, vector<16x32xf32> -> vector<16x32xf32>
    %c1_181 = arith.constant 1 : index
    %c0_182 = arith.constant 0 : index
    %c0_183 = arith.constant 0 : index
    %392 = vector.load %arg7[%c1_181, %c0_182, %c0_183] : memref<2x1x32xf32, #tpu.memory_space<vmem>>, vector<1x1x32xf32>
    %393 = vector.shape_cast %392 : vector<1x1x32xf32> to vector<1x32xf32>
    %394 = vector.broadcast %393 : vector<1x32xf32> to vector<16x32xf32>
    %395 = arith.addf %391, %394 : vector<16x32xf32>
    %396 = arith.addf %236, %395 : vector<16x32xf32>
    %c1_184 = arith.constant 1 : index
    %c0_185 = arith.constant 0 : index
    %c0_186 = arith.constant 0 : index
    %397 = vector.load %arg12[%c1_184, %c0_185, %c0_186] : memref<2x1x32xf32, #tpu.memory_space<vmem>>, vector<1x1x32xf32>
    %398 = vector.shape_cast %397 : vector<1x1x32xf32> to vector<1x32xf32>
    %c1_187 = arith.constant 1 : index
    %c0_188 = arith.constant 0 : index
    %c0_189 = arith.constant 0 : index
    %399 = vector.load %arg13[%c1_187, %c0_188, %c0_189] : memref<2x1x32xf32, #tpu.memory_space<vmem>>, vector<1x1x32xf32>
    %400 = vector.shape_cast %399 : vector<1x1x32xf32> to vector<1x32xf32>
    %cst_190 = arith.constant dense<0.000000e+00> : vector<16xf32>
    %401 = vector.multi_reduction <add>, %396, %cst_190 [1] : vector<16x32xf32> to vector<16xf32>
    %402 = vector.shape_cast %401 : vector<16xf32> to vector<16x1xf32>
    %cst_191 = arith.constant 3.200000e+01 : f32
    %403 = vector.broadcast %cst_191 : f32 to vector<16x1xf32>
    %404 = arith.divf %402, %403 : vector<16x1xf32>
    %405 = vector.broadcast %404 : vector<16x1xf32> to vector<16x32xf32>
    %406 = arith.subf %396, %405 : vector<16x32xf32>
    %407 = arith.mulf %406, %406 : vector<16x32xf32>
    %cst_192 = arith.constant dense<0.000000e+00> : vector<16xf32>
    %408 = vector.multi_reduction <add>, %407, %cst_192 [1] : vector<16x32xf32> to vector<16xf32>
    %409 = vector.shape_cast %408 : vector<16xf32> to vector<16x1xf32>
    %cst_193 = arith.constant 3.200000e+01 : f32
    %410 = vector.broadcast %cst_193 : f32 to vector<16x1xf32>
    %411 = arith.divf %409, %410 : vector<16x1xf32>
    %412 = vector.broadcast %404 : vector<16x1xf32> to vector<16x32xf32>
    %413 = arith.subf %396, %412 : vector<16x32xf32>
    %cst_194 = arith.constant 9.99999974E-6 : f32
    %414 = vector.broadcast %cst_194 : f32 to vector<16x1xf32>
    %415 = arith.addf %411, %414 : vector<16x1xf32>
    %416 = math.rsqrt %415 : vector<16x1xf32>
    %417 = vector.broadcast %416 : vector<16x1xf32> to vector<16x32xf32>
    %418 = arith.mulf %413, %417 : vector<16x32xf32>
    %419 = vector.broadcast %398 : vector<1x32xf32> to vector<16x32xf32>
    %420 = arith.mulf %418, %419 : vector<16x32xf32>
    %421 = vector.broadcast %400 : vector<1x32xf32> to vector<16x32xf32>
    %422 = arith.addf %420, %421 : vector<16x32xf32>
    %c1_195 = arith.constant 1 : index
    %c0_196 = arith.constant 0 : index
    %c0_197 = arith.constant 0 : index
    %423 = vector.load %arg8[%c1_195, %c0_196, %c0_197] : memref<2x32x64xf32, #tpu.memory_space<vmem>>, vector<1x32x64xf32>
    %424 = vector.shape_cast %423 : vector<1x32x64xf32> to vector<32x64xf32>
    %cst_198 = arith.constant dense<0.000000e+00> : vector<16x64xf32>
    %425 = tpu.matmul %422, %424, %cst_198 {dimension_numbers = #tpu.dot_dimension_numbers<[1], [0], [0], [1], [0, 0, 1, 1], [], []>} : vector<16x32xf32>, vector<32x64xf32>, vector<16x64xf32> -> vector<16x64xf32>
    %c1_199 = arith.constant 1 : index
    %c0_200 = arith.constant 0 : index
    %c0_201 = arith.constant 0 : index
    %426 = vector.load %arg9[%c1_199, %c0_200, %c0_201] : memref<2x1x64xf32, #tpu.memory_space<vmem>>, vector<1x1x64xf32>
    %427 = vector.shape_cast %426 : vector<1x1x64xf32> to vector<1x64xf32>
    %428 = vector.broadcast %427 : vector<1x64xf32> to vector<16x64xf32>
    %429 = arith.addf %425, %428 : vector<16x64xf32>
    %cst_202 = arith.constant 0.000000e+00 : f32
    %430 = vector.broadcast %cst_202 : f32 to vector<16x64xf32>
    %431 = arith.maximumf %429, %430 : vector<16x64xf32>
    %c1_203 = arith.constant 1 : index
    %c0_204 = arith.constant 0 : index
    %c0_205 = arith.constant 0 : index
    %432 = vector.load %arg10[%c1_203, %c0_204, %c0_205] : memref<2x64x32xf32, #tpu.memory_space<vmem>>, vector<1x64x32xf32>
    %433 = vector.shape_cast %432 : vector<1x64x32xf32> to vector<64x32xf32>
    %cst_206 = arith.constant dense<0.000000e+00> : vector<16x32xf32>
    %434 = tpu.matmul %431, %433, %cst_206 {dimension_numbers = #tpu.dot_dimension_numbers<[1], [0], [0], [1], [0, 0, 1, 1], [], []>} : vector<16x64xf32>, vector<64x32xf32>, vector<16x32xf32> -> vector<16x32xf32>
    %c1_207 = arith.constant 1 : index
    %c0_208 = arith.constant 0 : index
    %c0_209 = arith.constant 0 : index
    %435 = vector.load %arg11[%c1_207, %c0_208, %c0_209] : memref<2x1x32xf32, #tpu.memory_space<vmem>>, vector<1x1x32xf32>
    %436 = vector.shape_cast %435 : vector<1x1x32xf32> to vector<1x32xf32>
    %437 = vector.broadcast %436 : vector<1x32xf32> to vector<16x32xf32>
    %438 = arith.addf %434, %437 : vector<16x32xf32>
    %439 = arith.addf %422, %438 : vector<16x32xf32>
    %c1_210 = arith.constant 1 : index
    %c0_211 = arith.constant 0 : index
    %c0_212 = arith.constant 0 : index
    %440 = vector.load %arg14[%c1_210, %c0_211, %c0_212] : memref<2x1x32xf32, #tpu.memory_space<vmem>>, vector<1x1x32xf32>
    %441 = vector.shape_cast %440 : vector<1x1x32xf32> to vector<1x32xf32>
    %c1_213 = arith.constant 1 : index
    %c0_214 = arith.constant 0 : index
    %c0_215 = arith.constant 0 : index
    %442 = vector.load %arg15[%c1_213, %c0_214, %c0_215] : memref<2x1x32xf32, #tpu.memory_space<vmem>>, vector<1x1x32xf32>
    %443 = vector.shape_cast %442 : vector<1x1x32xf32> to vector<1x32xf32>
    %cst_216 = arith.constant dense<0.000000e+00> : vector<16xf32>
    %444 = vector.multi_reduction <add>, %439, %cst_216 [1] : vector<16x32xf32> to vector<16xf32>
    %445 = vector.shape_cast %444 : vector<16xf32> to vector<16x1xf32>
    %cst_217 = arith.constant 3.200000e+01 : f32
    %446 = vector.broadcast %cst_217 : f32 to vector<16x1xf32>
    %447 = arith.divf %445, %446 : vector<16x1xf32>
    %448 = vector.broadcast %447 : vector<16x1xf32> to vector<16x32xf32>
    %449 = arith.subf %439, %448 : vector<16x32xf32>
    %450 = arith.mulf %449, %449 : vector<16x32xf32>
    %cst_218 = arith.constant dense<0.000000e+00> : vector<16xf32>
    %451 = vector.multi_reduction <add>, %450, %cst_218 [1] : vector<16x32xf32> to vector<16xf32>
    %452 = vector.shape_cast %451 : vector<16xf32> to vector<16x1xf32>
    %cst_219 = arith.constant 3.200000e+01 : f32
    %453 = vector.broadcast %cst_219 : f32 to vector<16x1xf32>
    %454 = arith.divf %452, %453 : vector<16x1xf32>
    %455 = vector.broadcast %447 : vector<16x1xf32> to vector<16x32xf32>
    %456 = arith.subf %439, %455 : vector<16x32xf32>
    %cst_220 = arith.constant 9.99999974E-6 : f32
    %457 = vector.broadcast %cst_220 : f32 to vector<16x1xf32>
    %458 = arith.addf %454, %457 : vector<16x1xf32>
    %459 = math.rsqrt %458 : vector<16x1xf32>
    %460 = vector.broadcast %459 : vector<16x1xf32> to vector<16x32xf32>
    %461 = arith.mulf %456, %460 : vector<16x32xf32>
    %462 = vector.broadcast %441 : vector<1x32xf32> to vector<16x32xf32>
    %463 = arith.mulf %461, %462 : vector<16x32xf32>
    %464 = vector.broadcast %443 : vector<1x32xf32> to vector<16x32xf32>
    %465 = arith.addf %463, %464 : vector<16x32xf32>
    %466 = vector.extract_strided_slice %465 {offsets = [0, 0], sizes = [8, 32], strides = [1, 1]} : vector<16x32xf32> to vector<8x32xf32>
    %467 = vector.extract_strided_slice %465 {offsets = [8, 0], sizes = [8, 32], strides = [1, 1]} : vector<16x32xf32> to vector<8x32xf32>
    %468 = arith.addf %466, %467 : vector<8x32xf32>
    %cst_221 = arith.constant 5.000000e-01 : f32
    %469 = vector.broadcast %cst_221 : f32 to vector<8x32xf32>
    %470 = arith.mulf %468, %469 : vector<8x32xf32>
    %c0_222 = arith.constant 0 : index
    %c0_223 = arith.constant 0 : index
    %471 = vector.load %arg16[%c0_222, %c0_223] : memref<32x1024xf32, #tpu.memory_space<vmem>>, vector<32x1024xf32>
    %cst_224 = arith.constant dense<0.000000e+00> : vector<8x1024xf32>
    %472 = tpu.matmul %470, %471, %cst_224 {dimension_numbers = #tpu.dot_dimension_numbers<[1], [0], [0], [1], [0, 0, 1, 1], [], []>} : vector<8x32xf32>, vector<32x1024xf32>, vector<8x1024xf32> -> vector<8x1024xf32>
    %c0_225 = arith.constant 0 : index
    %c0_226 = arith.constant 0 : index
    %473 = vector.load %arg17[%c0_225, %c0_226] : memref<1x1024xf32, #tpu.memory_space<vmem>>, vector<1x1024xf32>
    %474 = vector.broadcast %473 : vector<1x1024xf32> to vector<8x1024xf32>
    %475 = arith.addf %472, %474 : vector<8x1024xf32>
    %cst_227 = arith.constant 0.000000e+00 : f32
    %476 = vector.broadcast %cst_227 : f32 to vector<8x1024xf32>
    %477 = arith.maximumf %475, %476 : vector<8x1024xf32>
    %c0_228 = arith.constant 0 : index
    %c0_229 = arith.constant 0 : index
    %478 = vector.load %arg18[%c0_228, %c0_229] : memref<1024x512xf32, #tpu.memory_space<vmem>>, vector<1024x512xf32>
    %cst_230 = arith.constant dense<0.000000e+00> : vector<8x512xf32>
    %479 = tpu.matmul %477, %478, %cst_230 {dimension_numbers = #tpu.dot_dimension_numbers<[1], [0], [0], [1], [0, 0, 1, 1], [], []>} : vector<8x1024xf32>, vector<1024x512xf32>, vector<8x512xf32> -> vector<8x512xf32>
    %c0_231 = arith.constant 0 : index
    %c0_232 = arith.constant 0 : index
    %480 = vector.load %arg19[%c0_231, %c0_232] : memref<1x512xf32, #tpu.memory_space<vmem>>, vector<1x512xf32>
    %481 = vector.broadcast %480 : vector<1x512xf32> to vector<8x512xf32>
    %482 = arith.addf %479, %481 : vector<8x512xf32>
    %cst_233 = arith.constant 0.000000e+00 : f32
    %483 = vector.broadcast %cst_233 : f32 to vector<8x512xf32>
    %484 = arith.maximumf %482, %483 : vector<8x512xf32>
    %c0_234 = arith.constant 0 : index
    %c0_235 = arith.constant 0 : index
    %485 = vector.load %arg20[%c0_234, %c0_235] : memref<512x256xf32, #tpu.memory_space<vmem>>, vector<512x256xf32>
    %cst_236 = arith.constant dense<0.000000e+00> : vector<8x256xf32>
    %486 = tpu.matmul %484, %485, %cst_236 {dimension_numbers = #tpu.dot_dimension_numbers<[1], [0], [0], [1], [0, 0, 1, 1], [], []>} : vector<8x512xf32>, vector<512x256xf32>, vector<8x256xf32> -> vector<8x256xf32>
    %c0_237 = arith.constant 0 : index
    %c0_238 = arith.constant 0 : index
    %487 = vector.load %arg21[%c0_237, %c0_238] : memref<1x256xf32, #tpu.memory_space<vmem>>, vector<1x256xf32>
    %488 = vector.broadcast %487 : vector<1x256xf32> to vector<8x256xf32>
    %489 = arith.addf %486, %488 : vector<8x256xf32>
    %cst_239 = arith.constant 0.000000e+00 : f32
    %490 = vector.broadcast %cst_239 : f32 to vector<8x256xf32>
    %491 = arith.maximumf %489, %490 : vector<8x256xf32>
    %c0_240 = arith.constant 0 : index
    %c0_241 = arith.constant 0 : index
    %492 = vector.load %arg22[%c0_240, %c0_241] : memref<256x8xf32, #tpu.memory_space<vmem>>, vector<256x8xf32>
    %cst_242 = arith.constant dense<0.000000e+00> : vector<8x8xf32>
    %493 = tpu.matmul %491, %492, %cst_242 {dimension_numbers = #tpu.dot_dimension_numbers<[1], [0], [0], [1], [0, 0, 1, 1], [], []>} : vector<8x256xf32>, vector<256x8xf32>, vector<8x8xf32> -> vector<8x8xf32>
    %c0_243 = arith.constant 0 : index
    %c0_244 = arith.constant 0 : index
    %494 = vector.load %arg23[%c0_243, %c0_244] : memref<1x8xf32, #tpu.memory_space<vmem>>, vector<1x8xf32>
    %495 = vector.broadcast %494 : vector<1x8xf32> to vector<8x8xf32>
    %496 = arith.addf %493, %495 : vector<8x8xf32>
    %c0_245 = arith.constant 0 : index
    %c0_246 = arith.constant 0 : index
    %497 = vector.load %arg24[%c0_245, %c0_246] : memref<8x8xf32, #tpu.memory_space<vmem>>, vector<8x8xf32>
    tpu.vector_store %arg24[%c0_245, %c0_246], %496 {strides = array<i32>} : memref<8x8xf32, #tpu.memory_space<vmem>>, vector<8x8xf32>,
    return
  }
}

</mosaic_0001>

<llo_original>
// kernel: transformer_encoder_model.1
$region0: #{transformer_encoder_model.1}
  #allocation0 [shape = 'u32[]', space=smem, size = 0x4, offset = 0x4, fixed_abs, tag = 'smem constant byte address 0x4 - core index']
  #allocation1 [shape = 'u32[144,128]{1,0:T(1,128)}', space=vmem, size = 0x12000, scoped, tag = 'internal scratch']
  #allocation2 [shape = 'f32[16,32]{1,0:T(8,128)}', space=vmem, size = 0x2000, scoped, tag = 'scratch operand']
  %s0 = inlined_call_operand.vmem [shape: f32[16,32], index: 0, kind: input, shape index: {}]
  %s1 = inlined_call_operand.vmem [shape: f32[16,32], index: 1, kind: input, shape index: {}]
  %s2 = inlined_call_operand.hbm [shape: f32[32,32], index: 2, kind: input, shape index: {}]
  %s3 = inlined_call_operand.hbm [shape: f32[1,32], index: 3, kind: input, shape index: {}]
  %s4 = inlined_call_operand.hbm [shape: f32[2,32,96], index: 4, kind: input, shape index: {}]
  %s5 = inlined_call_operand.hbm [shape: f32[2,1,96], index: 5, kind: input, shape index: {}]
  %s6 = inlined_call_operand.hbm [shape: f32[2,32,32], index: 6, kind: input, shape index: {}]
  %s7 = inlined_call_operand.hbm [shape: f32[2,1,32], index: 7, kind: input, shape index: {}]
  %s8 = inlined_call_operand.hbm [shape: f32[2,32,64], index: 8, kind: input, shape index: {}]
  %s9 = inlined_call_operand.hbm [shape: f32[2,1,64], index: 9, kind: input, shape index: {}]
  %s10 = inlined_call_operand.vmem [shape: f32[2,64,32], index: 10, kind: input, shape index: {}]
  %s11 = inlined_call_operand.hbm [shape: f32[2,1,32], index: 11, kind: input, shape index: {}]
  %s12 = inlined_call_operand.hbm [shape: f32[2,1,32], index: 12, kind: input, shape index: {}]
  %s13 = inlined_call_operand.hbm [shape: f32[2,1,32], index: 13, kind: input, shape index: {}]
  %s14 = inlined_call_operand.hbm [shape: f32[2,1,32], index: 14, kind: input, shape index: {}]
  %s15 = inlined_call_operand.hbm [shape: f32[2,1,32], index: 15, kind: input, shape index: {}]
  %s16 = inlined_call_operand.hbm [shape: f32[32,1024], index: 16, kind: input, shape index: {}]
  %s17 = inlined_call_operand.hbm [shape: f32[1,1024], index: 17, kind: input, shape index: {}]
  %s18 = inlined_call_operand.hbm [shape: f32[1024,512], index: 18, kind: input, shape index: {}]
  %s19 = inlined_call_operand.hbm [shape: f32[1,512], index: 19, kind: input, shape index: {}]
  %s20 = inlined_call_operand.hbm [shape: f32[512,256], index: 20, kind: input, shape index: {}]
  %s21 = inlined_call_operand.hbm [shape: f32[1,256], index: 21, kind: input, shape index: {}]
  %s22 = inlined_call_operand.vmem [shape: f32[256,8], index: 22, kind: input, shape index: {}]
  %s23 = inlined_call_operand.hbm [shape: f32[1,8], index: 23, kind: input, shape index: {}]
  %s24 = inlined_call_operand.hbm [shape: f32[8,8], index: 24, kind: output, shape index: {}]
  %s25 = sld [smem:[#allocation0]]
  $region186: #{transformer_encoder_model.1} parent=0
    _
  %s27 = ssub.s32 1, %s25
  %s28 = scalar_select 0, %s27, %s25
  $region1: #{transformer_encoder_model.1} parent=0
    #allocation3 [shape = 'u8[16384]{0}', space=vmem, size = 0x4000, scoped, tag = 'input window, operand 2, single buffered']
    #allocation4 [shape = 's32[1]{0}', space=sflag, size = 0x4, scoped, tag = 'scoped memory for transformer_encoder_model.1']
    #allocation5 [shape = 's32[1]{0}', space=sflag, size = 0x4, scoped, tag = 'scoped memory for transformer_encoder_model.1']
    #allocation6 [shape = 'u8[512]{0}', space=vmem, size = 0x400, scoped, tag = 'input window, operand 3, single buffered']
    #allocation7 [shape = 's32[1]{0}', space=sflag, size = 0x4, scoped, tag = 'scoped memory for transformer_encoder_model.1']
    #allocation8 [shape = 'u8[32768]{0}', space=vmem, size = 0x8000, scoped, tag = 'input window, operand 4, single buffered']
    #allocation9 [shape = 'u8[1024]{0}', space=vmem, size = 0x400, scoped, tag = 'input window, operand 5, single buffered']
    #allocation10 [shape = 's32[1]{0}', space=sflag, size = 0x4, scoped, tag = 'scoped memory for transformer_encoder_model.1']
    #allocation11 [shape = 'u8[32768]{0}', space=vmem, size = 0x8000, scoped, tag = 'input window, operand 6, single buffered']
    #allocation12 [shape = 'u8[1024]{0}', space=vmem, size = 0x400, scoped, tag = 'input window, operand 7, single buffered']
    #allocation13 [shape = 's32[1]{0}', space=sflag, size = 0x4, scoped, tag = 'scoped memory for transformer_encoder_model.1']
    #allocation14 [shape = 'u8[32768]{0}', space=vmem, size = 0x8000, scoped, tag = 'input window, operand 8, single buffered']
    #allocation15 [shape = 'u8[1024]{0}', space=vmem, size = 0x400, scoped, tag = 'input window, operand 9, single buffered']
    #allocation16 [shape = 's32[1]{0}', space=sflag, size = 0x4, scoped, tag = 'scoped memory for transformer_encoder_model.1']
    #allocation17 [shape = 'u8[1024]{0}', space=vmem, size = 0x400, scoped, tag = 'input window, operand 11, single buffered']
    #allocation18 [shape = 'u8[1024]{0}', space=vmem, size = 0x400, scoped, tag = 'input window, operand 12, single buffered']
    #allocation19 [shape = 's32[1]{0}', space=sflag, size = 0x4, scoped, tag = 'scoped memory for transformer_encoder_model.1']
    #allocation20 [shape = 'u8[1024]{0}', space=vmem, size = 0x400, scoped, tag = 'input window, operand 13, single buffered']
    #allocation21 [shape = 'u8[1024]{0}', space=vmem, size = 0x400, scoped, tag = 'input window, operand 14, single buffered']
    #allocation22 [shape = 's32[1]{0}', space=sflag, size = 0x4, scoped, tag = 'scoped memory for transformer_encoder_model.1']
    #allocation23 [shape = 'u8[1024]{0}', space=vmem, size = 0x400, scoped, tag = 'input window, operand 15, single buffered']
    #allocation24 [shape = 'u8[131072]{0}', space=vmem, size = 0x20000, scoped, tag = 'input window, operand 16, single buffered']
    #allocation25 [shape = 's32[1]{0}', space=sflag, size = 0x4, scoped, tag = 'scoped memory for transformer_encoder_model.1']
    #allocation26 [shape = 'u8[4096]{0}', space=vmem, size = 0x1000, scoped, tag = 'input window, operand 17, single buffered']
    #allocation27 [shape = 'u8[2097152]{0}', space=vmem, size = 0x200000, scoped, tag = 'input window, operand 18, single buffered']
    #allocation28 [shape = 's32[1]{0}', space=sflag, size = 0x4, scoped, tag = 'scoped memory for transformer_encoder_model.1']
    #allocation29 [shape = 'u8[2048]{0}', space=vmem, size = 0x800, scoped, tag = 'input window, operand 19, single buffered']
    #allocation30 [shape = 'u8[524288]{0}', space=vmem, size = 0x80000, scoped, tag = 'input window, operand 20, single buffered']
    #allocation31 [shape = 's32[1]{0}', space=sflag, size = 0x4, scoped, tag = 'scoped memory for transformer_encoder_model.1']
    #allocation32 [shape = 'u8[1024]{0}', space=vmem, size = 0x400, scoped, tag = 'input window, operand 21, single buffered']
    #allocation33 [shape = 'u8[512]{0}', space=vmem, size = 0x400, scoped, tag = 'input window, operand 23, single buffered']
    #allocation34 [shape = 's32[1]{0}', space=sflag, size = 0x4, scoped, tag = 'scoped memory for transformer_encoder_model.1']
    #allocation35 [shape = 'u8[4096]{0}', space=vmem, size = 0x1000, scoped, tag = 'output window, operand 0, single buffered']
    %29 = vsyncpa [#allocation4], 0
    %30 = vsyncpa [#allocation7], 0
    %31 = vsyncpa [#allocation10], 0
    %32 = vsyncpa [#allocation13], 0
    %33 = vsyncpa [#allocation16], 0
    %34 = vsyncpa [#allocation19], 0
    %35 = vsyncpa [#allocation22], 0
    %36 = vsyncpa [#allocation25], 0
    %37 = vsyncpa [#allocation28], 0
    %38 = vsyncpa [#allocation31], 0
    %39 = vsyncpa [#allocation34], 0
    %40 = vsyncpa [#allocation5], 0
    // Predicated region
    $region2: #{transformer_encoder_model.1} parent=1 // pred_check
      _
    $region3: #{transformer_encoder_model.1} parent=1 // pred_check_branch
      %42 = sbr.rel (0) target = $region5
    $region4: #{transformer_encoder_model.1} parent=1 // pred_region
      _
    $region5: #{transformer_encoder_model.1} parent=1 // pred_fallthru
      _
    // Predicated region
    $region6: #{transformer_encoder_model.1} parent=1 // pred_check
      _
    $region7: #{transformer_encoder_model.1} parent=1 // pred_check_branch
      %44 = sbr.rel (0) target = $region9
    $region8: #{transformer_encoder_model.1} parent=1 // pred_region
      _
    $region9: #{transformer_encoder_model.1} parent=1 // pred_fallthru
      _
    // Predicated region
    $region10: #{transformer_encoder_model.1} parent=1 // pred_check
      _
    $region11: #{transformer_encoder_model.1} parent=1 // pred_check_branch
      %46 = sbr.rel (0) target = $region13
    $region12: #{transformer_encoder_model.1} parent=1 // pred_region
      %s48 = ssub.s32 512, 512
      %49 = vsyncadd [#allocation4], %s48
      %s50 = sshll.u32 [#allocation3], 4
      %s51 = int_to_ptr.vmem [resolvable:$true] %s50
      %56 = dma.hbm_to_vmem [thread:$0]  %s2, 512, %s51, [#allocation4], 128, 128, 8
    $region13: #{transformer_encoder_model.1} parent=1 // pred_fallthru
      _
    // Predicated region
    $region14: #{transformer_encoder_model.1} parent=1 // pred_check
      _
    $region15: #{transformer_encoder_model.1} parent=1 // pred_check_branch
      %58 = sbr.rel (0) target = $region17
    $region16: #{transformer_encoder_model.1} parent=1 // pred_region
      %s60 = ssub.s32 16, 16
      %61 = vsyncadd [#allocation7], %s60
      %s63 = sshll.u32 [#allocation6], 4
      %s64 = int_to_ptr.vmem [resolvable:$true] %s63
      %66 = dma.hbm_to_vmem [thread:$0]  %s3, 16, %s64, [#allocation7]
    $region17: #{transformer_encoder_model.1} parent=1 // pred_fallthru
      _
    // Predicated region
    $region18: #{transformer_encoder_model.1} parent=1 // pred_check
      _
    $region19: #{transformer_encoder_model.1} parent=1 // pred_check_branch
      %68 = sbr.rel (0) target = $region21
    $region20: #{transformer_encoder_model.1} parent=1 // pred_region
      %s70 = ssub.s32 1024, 1024
      %71 = vsyncadd [#allocation7], %s70
      %s72 = sshll.u32 [#allocation8], 4
      %s73 = int_to_ptr.vmem [resolvable:$true] %s72
      %78 = dma.hbm_to_vmem [thread:$0]  %s4, 1024, %s73, [#allocation7], 128, 128, 8
    $region21: #{transformer_encoder_model.1} parent=1 // pred_fallthru
      _
    // Predicated region
    $region22: #{transformer_encoder_model.1} parent=1 // pred_check
      _
    $region23: #{transformer_encoder_model.1} parent=1 // pred_check_branch
      %80 = sbr.rel (0) target = $region25
    $region24: #{transformer_encoder_model.1} parent=1 // pred_region
      %s82 = ssub.s32 32, 32
      %83 = vsyncadd [#allocation10], %s82
      %s84 = sshll.u32 [#allocation9], 4
      %s85 = int_to_ptr.vmem [resolvable:$true] %s84
      %90 = dma.hbm_to_vmem [thread:$0]  %s5, 32, %s85, [#allocation10], 16, 16, 1
    $region25: #{transformer_encoder_model.1} parent=1 // pred_fallthru
      _
    // Predicated region
    $region26: #{transformer_encoder_model.1} parent=1 // pred_check
      _
    $region27: #{transformer_encoder_model.1} parent=1 // pred_check_branch
      %92 = sbr.rel (0) target = $region29
    $region28: #{transformer_encoder_model.1} parent=1 // pred_region
      %s94 = ssub.s32 1024, 1024
      %95 = vsyncadd [#allocation10], %s94
      %s96 = sshll.u32 [#allocation11], 4
      %s97 = int_to_ptr.vmem [resolvable:$true] %s96
      %102 = dma.hbm_to_vmem [thread:$0]  %s6, 1024, %s97, [#allocation10], 128, 128, 8
    $region29: #{transformer_encoder_model.1} parent=1 // pred_fallthru
      _
    // Predicated region
    $region30: #{transformer_encoder_model.1} parent=1 // pred_check
      _
    $region31: #{transformer_encoder_model.1} parent=1 // pred_check_branch
      %104 = sbr.rel (0) target = $region33
    $region32: #{transformer_encoder_model.1} parent=1 // pred_region
      %s106 = ssub.s32 32, 32
      %107 = vsyncadd [#allocation13], %s106
      %s108 = sshll.u32 [#allocation12], 4
      %s109 = int_to_ptr.vmem [resolvable:$true] %s108
      %114 = dma.hbm_to_vmem [thread:$0]  %s7, 32, %s109, [#allocation13], 16, 16, 1
    $region33: #{transformer_encoder_model.1} parent=1 // pred_fallthru
      _
    // Predicated region
    $region34: #{transformer_encoder_model.1} parent=1 // pred_check
      _
    $region35: #{transformer_encoder_model.1} parent=1 // pred_check_branch
      %116 = sbr.rel (0) target = $region37
    $region36: #{transformer_encoder_model.1} parent=1 // pred_region
      %s118 = ssub.s32 1024, 1024
      %119 = vsyncadd [#allocation13], %s118
      %s120 = sshll.u32 [#allocation14], 4
      %s121 = int_to_ptr.vmem [resolvable:$true] %s120
      %126 = dma.hbm_to_vmem [thread:$0]  %s8, 1024, %s121, [#allocation13], 128, 128, 8
    $region37: #{transformer_encoder_model.1} parent=1 // pred_fallthru
      _
    // Predicated region
    $region38: #{transformer_encoder_model.1} parent=1 // pred_check
      _
    $region39: #{transformer_encoder_model.1} parent=1 // pred_check_branch
      %128 = sbr.rel (0) target = $region41
    $region40: #{transformer_encoder_model.1} parent=1 // pred_region
      %s130 = ssub.s32 32, 32
      %131 = vsyncadd [#allocation16], %s130
      %s132 = sshll.u32 [#allocation15], 4
      %s133 = int_to_ptr.vmem [resolvable:$true] %s132
      %138 = dma.hbm_to_vmem [thread:$0]  %s9, 32, %s133, [#allocation16], 16, 16, 1
    $region41: #{transformer_encoder_model.1} parent=1 // pred_fallthru
      _
    // Predicated region
    $region42: #{transformer_encoder_model.1} parent=1 // pred_check
      _
    $region43: #{transformer_encoder_model.1} parent=1 // pred_check_branch
      %140 = sbr.rel (0) target = $region45
    $region44: #{transformer_encoder_model.1} parent=1 // pred_region
      _
    $region45: #{transformer_encoder_model.1} parent=1 // pred_fallthru
      _
    // Predicated region
    $region46: #{transformer_encoder_model.1} parent=1 // pred_check
      _
    $region47: #{transformer_encoder_model.1} parent=1 // pred_check_branch
      %142 = sbr.rel (0) target = $region49
    $region48: #{transformer_encoder_model.1} parent=1 // pred_region
      %s144 = ssub.s32 32, 32
      %145 = vsyncadd [#allocation16], %s144
      %s146 = sshll.u32 [#allocation17], 4
      %s147 = int_to_ptr.vmem [resolvable:$true] %s146
      %152 = dma.hbm_to_vmem [thread:$0]  %s11, 32, %s147, [#allocation16], 16, 16, 1
    $region49: #{transformer_encoder_model.1} parent=1 // pred_fallthru
      _
    // Predicated region
    $region50: #{transformer_encoder_model.1} parent=1 // pred_check
      _
    $region51: #{transformer_encoder_model.1} parent=1 // pred_check_branch
      %154 = sbr.rel (0) target = $region53
    $region52: #{transformer_encoder_model.1} parent=1 // pred_region
      %s156 = ssub.s32 32, 32
      %157 = vsyncadd [#allocation19], %s156
      %s158 = sshll.u32 [#allocation18], 4
      %s159 = int_to_ptr.vmem [resolvable:$true] %s158
      %164 = dma.hbm_to_vmem [thread:$0]  %s12, 32, %s159, [#allocation19], 16, 16, 1
    $region53: #{transformer_encoder_model.1} parent=1 // pred_fallthru
      _
    // Predicated region
    $region54: #{transformer_encoder_model.1} parent=1 // pred_check
      _
    $region55: #{transformer_encoder_model.1} parent=1 // pred_check_branch
      %166 = sbr.rel (0) target = $region57
    $region56: #{transformer_encoder_model.1} parent=1 // pred_region
      %s168 = ssub.s32 32, 32
      %169 = vsyncadd [#allocation19], %s168
      %s170 = sshll.u32 [#allocation20], 4
      %s171 = int_to_ptr.vmem [resolvable:$true] %s170
      %176 = dma.hbm_to_vmem [thread:$0]  %s13, 32, %s171, [#allocation19], 16, 16, 1
    $region57: #{transformer_encoder_model.1} parent=1 // pred_fallthru
      _
    // Predicated region
    $region58: #{transformer_encoder_model.1} parent=1 // pred_check
      _
    $region59: #{transformer_encoder_model.1} parent=1 // pred_check_branch
      %178 = sbr.rel (0) target = $region61
    $region60: #{transformer_encoder_model.1} parent=1 // pred_region
      %s180 = ssub.s32 32, 32
      %181 = vsyncadd [#allocation22], %s180
      %s182 = sshll.u32 [#allocation21], 4
      %s183 = int_to_ptr.vmem [resolvable:$true] %s182
      %188 = dma.hbm_to_vmem [thread:$0]  %s14, 32, %s183, [#allocation22], 16, 16, 1
    $region61: #{transformer_encoder_model.1} parent=1 // pred_fallthru
      _
    // Predicated region
    $region62: #{transformer_encoder_model.1} parent=1 // pred_check
      _
    $region63: #{transformer_encoder_model.1} parent=1 // pred_check_branch
      %190 = sbr.rel (0) target = $region65
    $region64: #{transformer_encoder_model.1} parent=1 // pred_region
      %s192 = ssub.s32 32, 32
      %193 = vsyncadd [#allocation22], %s192
      %s194 = sshll.u32 [#allocation23], 4
      %s195 = int_to_ptr.vmem [resolvable:$true] %s194
      %200 = dma.hbm_to_vmem [thread:$0]  %s15, 32, %s195, [#allocation22], 16, 16, 1
    $region65: #{transformer_encoder_model.1} parent=1 // pred_fallthru
      _
    // Predicated region
    $region66: #{transformer_encoder_model.1} parent=1 // pred_check
      _
    $region67: #{transformer_encoder_model.1} parent=1 // pred_check_branch
      %202 = sbr.rel (0) target = $region69
    $region68: #{transformer_encoder_model.1} parent=1 // pred_region
      %s204 = ssub.s32 4096, 4096
      %205 = vsyncadd [#allocation25], %s204
      %s206 = sshll.u32 [#allocation24], 4
      %s207 = int_to_ptr.vmem [resolvable:$true] %s206
      %212 = dma.hbm_to_vmem [thread:$0]  %s16, 4096, %s207, [#allocation25], 1024, 1024, 64
    $region69: #{transformer_encoder_model.1} parent=1 // pred_fallthru
      _
    // Predicated region
    $region70: #{transformer_encoder_model.1} parent=1 // pred_check
      _
    $region71: #{transformer_encoder_model.1} parent=1 // pred_check_branch
      %214 = sbr.rel (0) target = $region73
    $region72: #{transformer_encoder_model.1} parent=1 // pred_region
      %s216 = ssub.s32 128, 128
      %217 = vsyncadd [#allocation25], %s216
      %s219 = sshll.u32 [#allocation26], 4
      %s220 = int_to_ptr.vmem [resolvable:$true] %s219
      %222 = dma.hbm_to_vmem [thread:$0]  %s17, 128, %s220, [#allocation25]
    $region73: #{transformer_encoder_model.1} parent=1 // pred_fallthru
      _
    // Predicated region
    $region74: #{transformer_encoder_model.1} parent=1 // pred_check
      _
    $region75: #{transformer_encoder_model.1} parent=1 // pred_check_branch
      %224 = sbr.rel (0) target = $region77
    $region76: #{transformer_encoder_model.1} parent=1 // pred_region
      %s226 = ssub.s32 65536, 65536
      %227 = vsyncadd [#allocation28], %s226
      %s228 = sshll.u32 [#allocation27], 4
      %s229 = int_to_ptr.vmem [resolvable:$true] %s228
      %234 = dma.hbm_to_vmem [thread:$0]  %s18, 65536, %s229, [#allocation28], 512, 512, 32
    $region77: #{transformer_encoder_model.1} parent=1 // pred_fallthru
      _
    // Predicated region
    $region78: #{transformer_encoder_model.1} parent=1 // pred_check
      _
    $region79: #{transformer_encoder_model.1} parent=1 // pred_check_branch
      %236 = sbr.rel (0) target = $region81
    $region80: #{transformer_encoder_model.1} parent=1 // pred_region
      %s238 = ssub.s32 64, 64
      %239 = vsyncadd [#allocation28], %s238
      %s241 = sshll.u32 [#allocation29], 4
      %s242 = int_to_ptr.vmem [resolvable:$true] %s241
      %244 = dma.hbm_to_vmem [thread:$0]  %s19, 64, %s242, [#allocation28]
    $region81: #{transformer_encoder_model.1} parent=1 // pred_fallthru
      _
    // Predicated region
    $region82: #{transformer_encoder_model.1} parent=1 // pred_check
      _
    $region83: #{transformer_encoder_model.1} parent=1 // pred_check_branch
      %246 = sbr.rel (0) target = $region85
    $region84: #{transformer_encoder_model.1} parent=1 // pred_region
      %s248 = ssub.s32 16384, 16384
      %249 = vsyncadd [#allocation31], %s248
      %s250 = sshll.u32 [#allocation30], 4
      %s251 = int_to_ptr.vmem [resolvable:$true] %s250
      %256 = dma.hbm_to_vmem [thread:$0]  %s20, 16384, %s251, [#allocation31], 256, 256, 16
    $region85: #{transformer_encoder_model.1} parent=1 // pred_fallthru
      _
    // Predicated region
    $region86: #{transformer_encoder_model.1} parent=1 // pred_check
      _
    $region87: #{transformer_encoder_model.1} parent=1 // pred_check_branch
      %258 = sbr.rel (0) target = $region89
    $region88: #{transformer_encoder_model.1} parent=1 // pred_region
      %s260 = ssub.s32 32, 32
      %261 = vsyncadd [#allocation31], %s260
      %s263 = sshll.u32 [#allocation32], 4
      %s264 = int_to_ptr.vmem [resolvable:$true] %s263
      %266 = dma.hbm_to_vmem [thread:$0]  %s21, 32, %s264, [#allocation31]
    $region89: #{transformer_encoder_model.1} parent=1 // pred_fallthru
      _
    // Predicated region
    $region90: #{transformer_encoder_model.1} parent=1 // pred_check
      _
    $region91: #{transformer_encoder_model.1} parent=1 // pred_check_branch
      %268 = sbr.rel (0) target = $region93
    $region92: #{transformer_encoder_model.1} parent=1 // pred_region
      _
    $region93: #{transformer_encoder_model.1} parent=1 // pred_fallthru
      _
    // Predicated region
    $region94: #{transformer_encoder_model.1} parent=1 // pred_check
      _
    $region95: #{transformer_encoder_model.1} parent=1 // pred_check_branch
      %270 = sbr.rel (0) target = $region97
    $region96: #{transformer_encoder_model.1} parent=1 // pred_region
      %s272 = ssub.s32 16, 16
      %273 = vsyncadd [#allocation34], %s272
      %s275 = sshll.u32 [#allocation33], 4
      %s276 = int_to_ptr.vmem [resolvable:$true] %s275
      %278 = dma.hbm_to_vmem [thread:$0]  %s23, 16, %s276, [#allocation34]
    $region97: #{transformer_encoder_model.1} parent=1 // pred_fallthru
      _
    // Predicated region
    $region98: #{transformer_encoder_model.1} parent=1 // pred_check
      _
    $region99: #{transformer_encoder_model.1} parent=1 // pred_check_branch
      %280 = sbr.rel (0) target = $region101
    $region100: #{transformer_encoder_model.1} parent=1 // pred_region
      %281 = dma.done [#allocation4], 512
    $region101: #{transformer_encoder_model.1} parent=1 // pred_fallthru
      _
    // Predicated region
    $region102: #{transformer_encoder_model.1} parent=1 // pred_check
      _
    $region103: #{transformer_encoder_model.1} parent=1 // pred_check_branch
      %283 = sbr.rel (0) target = $region105
    $region104: #{transformer_encoder_model.1} parent=1 // pred_region
      %284 = dma.done [#allocation7], 16
    $region105: #{transformer_encoder_model.1} parent=1 // pred_fallthru
      _
    // Predicated region
    $region106: #{transformer_encoder_model.1} parent=1 // pred_check
      _
    $region107: #{transformer_encoder_model.1} parent=1 // pred_check_branch
      %286 = sbr.rel (0) target = $region109
    $region108: #{transformer_encoder_model.1} parent=1 // pred_region
      %287 = dma.done [#allocation7], 1024
    $region109: #{transformer_encoder_model.1} parent=1 // pred_fallthru
      _
    // Predicated region
    $region110: #{transformer_encoder_model.1} parent=1 // pred_check
      _
    $region111: #{transformer_encoder_model.1} parent=1 // pred_check_branch
      %289 = sbr.rel (0) target = $region113
    $region112: #{transformer_encoder_model.1} parent=1 // pred_region
      %290 = dma.done [#allocation10], 32
    $region113: #{transformer_encoder_model.1} parent=1 // pred_fallthru
      _
    // Predicated region
    $region114: #{transformer_encoder_model.1} parent=1 // pred_check
      _
    $region115: #{transformer_encoder_model.1} parent=1 // pred_check_branch
      %292 = sbr.rel (0) target = $region117
    $region116: #{transformer_encoder_model.1} parent=1 // pred_region
      %293 = dma.done [#allocation10], 1024
    $region117: #{transformer_encoder_model.1} parent=1 // pred_fallthru
      _
    // Predicated region
    $region118: #{transformer_encoder_model.1} parent=1 // pred_check
      _
    $region119: #{transformer_encoder_model.1} parent=1 // pred_check_branch
      %295 = sbr.rel (0) target = $region121
    $region120: #{transformer_encoder_model.1} parent=1 // pred_region
      %296 = dma.done [#allocation13], 32
    $region121: #{transformer_encoder_model.1} parent=1 // pred_fallthru
      _
    // Predicated region
    $region122: #{transformer_encoder_model.1} parent=1 // pred_check
      _
    $region123: #{transformer_encoder_model.1} parent=1 // pred_check_branch
      %298 = sbr.rel (0) target = $region125
    $region124: #{transformer_encoder_model.1} parent=1 // pred_region
      %299 = dma.done [#allocation13], 1024
    $region125: #{transformer_encoder_model.1} parent=1 // pred_fallthru
      _
    // Predicated region
    $region126: #{transformer_encoder_model.1} parent=1 // pred_check
      _
    $region127: #{transformer_encoder_model.1} parent=1 // pred_check_branch
      %301 = sbr.rel (0) target = $region129
    $region128: #{transformer_encoder_model.1} parent=1 // pred_region
      %302 = dma.done [#allocation16], 32
    $region129: #{transformer_encoder_model.1} parent=1 // pred_fallthru
      _
    // Predicated region
    $region130: #{transformer_encoder_model.1} parent=1 // pred_check
      _
    $region131: #{transformer_encoder_model.1} parent=1 // pred_check_branch
      %304 = sbr.rel (0) target = $region133
    $region132: #{transformer_encoder_model.1} parent=1 // pred_region
      %305 = dma.done [#allocation16], 32
    $region133: #{transformer_encoder_model.1} parent=1 // pred_fallthru
      _
    // Predicated region
    $region134: #{transformer_encoder_model.1} parent=1 // pred_check
      _
    $region135: #{transformer_encoder_model.1} parent=1 // pred_check_branch
      %307 = sbr.rel (0) target = $region137
    $region136: #{transformer_encoder_model.1} parent=1 // pred_region
      %308 = dma.done [#allocation19], 32
    $region137: #{transformer_encoder_model.1} parent=1 // pred_fallthru
      _
    // Predicated region
    $region138: #{transformer_encoder_model.1} parent=1 // pred_check
      _
    $region139: #{transformer_encoder_model.1} parent=1 // pred_check_branch
      %310 = sbr.rel (0) target = $region141
    $region140: #{transformer_encoder_model.1} parent=1 // pred_region
      %311 = dma.done [#allocation19], 32
    $region141: #{transformer_encoder_model.1} parent=1 // pred_fallthru
      _
    // Predicated region
    $region142: #{transformer_encoder_model.1} parent=1 // pred_check
      _
    $region143: #{transformer_encoder_model.1} parent=1 // pred_check_branch
      %313 = sbr.rel (0) target = $region145
    $region144: #{transformer_encoder_model.1} parent=1 // pred_region
      %314 = dma.done [#allocation22], 32
    $region145: #{transformer_encoder_model.1} parent=1 // pred_fallthru
      _
    // Predicated region
    $region146: #{transformer_encoder_model.1} parent=1 // pred_check
      _
    $region147: #{transformer_encoder_model.1} parent=1 // pred_check_branch
      %316 = sbr.rel (0) target = $region149
    $region148: #{transformer_encoder_model.1} parent=1 // pred_region
      %317 = dma.done [#allocation22], 32
    $region149: #{transformer_encoder_model.1} parent=1 // pred_fallthru
      _
    // Predicated region
    $region150: #{transformer_encoder_model.1} parent=1 // pred_check
      _
    $region151: #{transformer_encoder_model.1} parent=1 // pred_check_branch
      %319 = sbr.rel (0) target = $region153
    $region152: #{transformer_encoder_model.1} parent=1 // pred_region
      %320 = dma.done [#allocation25], 4096
    $region153: #{transformer_encoder_model.1} parent=1 // pred_fallthru
      _
    // Predicated region
    $region154: #{transformer_encoder_model.1} parent=1 // pred_check
      _
    $region155: #{transformer_encoder_model.1} parent=1 // pred_check_branch
      %322 = sbr.rel (0) target = $region157
    $region156: #{transformer_encoder_model.1} parent=1 // pred_region
      %323 = dma.done [#allocation25], 128
    $region157: #{transformer_encoder_model.1} parent=1 // pred_fallthru
      _
    // Predicated region
    $region158: #{transformer_encoder_model.1} parent=1 // pred_check
      _
    $region159: #{transformer_encoder_model.1} parent=1 // pred_check_branch
      %325 = sbr.rel (0) target = $region161
    $region160: #{transformer_encoder_model.1} parent=1 // pred_region
      %326 = dma.done [#allocation28], 65536
    $region161: #{transformer_encoder_model.1} parent=1 // pred_fallthru
      _
    // Predicated region
    $region162: #{transformer_encoder_model.1} parent=1 // pred_check
      _
    $region163: #{transformer_encoder_model.1} parent=1 // pred_check_branch
      %328 = sbr.rel (0) target = $region165
    $region164: #{transformer_encoder_model.1} parent=1 // pred_region
      %329 = dma.done [#allocation28], 64
    $region165: #{transformer_encoder_model.1} parent=1 // pred_fallthru
      _
    // Predicated region
    $region166: #{transformer_encoder_model.1} parent=1 // pred_check
      _
    $region167: #{transformer_encoder_model.1} parent=1 // pred_check_branch
      %331 = sbr.rel (0) target = $region169
    $region168: #{transformer_encoder_model.1} parent=1 // pred_region
      %332 = dma.done [#allocation31], 16384
    $region169: #{transformer_encoder_model.1} parent=1 // pred_fallthru
      _
    // Predicated region
    $region170: #{transformer_encoder_model.1} parent=1 // pred_check
      _
    $region171: #{transformer_encoder_model.1} parent=1 // pred_check_branch
      %334 = sbr.rel (0) target = $region173
    $region172: #{transformer_encoder_model.1} parent=1 // pred_region
      %335 = dma.done [#allocation31], 32
    $region173: #{transformer_encoder_model.1} parent=1 // pred_fallthru
      _
    // Predicated region
    $region174: #{transformer_encoder_model.1} parent=1 // pred_check
      _
    $region175: #{transformer_encoder_model.1} parent=1 // pred_check_branch
      %337 = sbr.rel (0) target = $region177
    $region176: #{transformer_encoder_model.1} parent=1 // pred_region
      %338 = dma.done [#allocation34], 16
    $region177: #{transformer_encoder_model.1} parent=1 // pred_fallthru
      _
    %v339 = vld [vmem:[%s0] sm:$0xff]
    %v340 = vld [vmem:[%s0 + $0x8] sm:$0xff]
    %v341 = vld [vmem:[#allocation3] sm:$0xff]
    %v342 = vld [vmem:[#allocation3 + $0x8] sm:$0xff]
    %v343 = vld [vmem:[#allocation3 + $0x10] sm:$0xff]
    %v344 = vld [vmem:[#allocation3 + $0x18] sm:$0xff]
    %v345 = vld [vmem:[#allocation6] sm:$0x1]
    %v347 = vlaneseq
    %v348 = vshrl.u32 %v347, 7
    %v349 = vsub.s32 0, %v348
    %v350 = vrot.slane %v345, %v349
    %vm352 = vcmask 261120
    %v354 = vsel %vm352, %v339, 0
    %v357 = vsel %vm352, %v340, 0
    %359 = vmatprep.subr.mxu0 0.0
    %360 = vmatpush1.msra.mxu0 %v341
    %361 = vmatprep.subr.mxu0 0.0
    %362 = vmatpush1.msra.mxu0 %v342
    %363 = vmatprep.subr.mxu0 0.0
    %364 = vmatpush1.msra.mxu0 %v343
    %365 = vmatprep.subr.mxu0 0.0
    %366 = vmatpush1.msra.mxu0 %v344
    %367 = vmatprep.subr.mxu0 0.0
    %368 = vmatpush1.msra.mxu0 0.0
    %369 = vmatprep.subr.mxu0 0.0
    %370 = vmatpush1.msra.mxu0 0.0
    %371 = vmatprep.subr.mxu0 0.0
    %372 = vmatpush1.msra.mxu0 0.0
    %373 = vmatprep.subr.mxu0 0.0
    %374 = vmatpush1.msra.mxu0 0.0
    %375 = vmatprep.subr.mxu0 0.0
    %376 = vmatpush1.msra.mxu0 0.0
    %377 = vmatprep.subr.mxu0 0.0
    %378 = vmatpush1.msra.mxu0 0.0
    %379 = vmatprep.subr.mxu0 0.0
    %380 = vmatpush1.msra.mxu0 0.0
    %381 = vmatprep.subr.mxu0 0.0
    %382 = vmatpush1.msra.mxu0 0.0
    %383 = vmatprep.subr.mxu0 0.0
    %384 = vmatpush1.msra.mxu0 0.0
    %385 = vmatprep.subr.mxu0 0.0
    %386 = vmatpush1.msra.mxu0 0.0
    %387 = vmatprep.subr.mxu0 0.0
    %388 = vmatpush1.msra.mxu0 0.0
    %389 = vmatprep.subr.mxu0 0.0
    %390 = vmatpush1.msra.mxu0 0.0
    %391 = vmatprep.subr.mxu0 0.0
    %392 = vmatpush1.msra.mxu0 0.0
    %393 = vmatprep.subr.mxu0 0.0
    %394 = vmatpush1.msra.mxu0 0.0
    %395 = vmatprep.subr.mxu0 0.0
    %396 = vmatpush1.msra.mxu0 0.0
    %397 = vmatprep.subr.mxu0 0.0
    %398 = vmatpush1.msra.mxu0 0.0
    %399 = vmatprep.subr.mxu0 0.0
    %400 = vmatpush1.msra.mxu0 0.0
    %401 = vmatprep.subr.mxu0 0.0
    %402 = vmatpush1.msra.mxu0 0.0
    %403 = vmatprep.subr.mxu0 0.0
    %404 = vmatpush1.msra.mxu0 0.0
    %405 = vmatprep.subr.mxu0 0.0
    %406 = vmatpush1.msra.mxu0 0.0
    %407 = vmatprep.subr.mxu0 0.0
    %408 = vmatpush1.msra.mxu0 0.0
    %409 = vmatprep.subr.mxu0 0.0
    %410 = vmatpush1.msra.mxu0 0.0
    %411 = vmatprep.subr.mxu0 0.0
    %412 = vmatpush1.msra.mxu0 0.0
    %413 = vmatprep.subr.mxu0 0.0
    %414 = vmatpush1.msra.mxu0 0.0
    %415 = vmatprep.subr.mxu0 0.0
    %416 = vmatpush1.msra.mxu0 0.0
    %417 = vmatprep.subr.mxu0 0.0
    %418 = vmatpush1.msra.mxu0 0.0
    %419 = vmatprep.subr.mxu0 0.0
    %420 = vmatpush1.msra.mxu0 0.0
    %421 = vmatprep.subr.mxu0 0.0
    %422 = vmatpush1.msra.mxu0 0.0
    %423 = vmatprep.mubr.f32.mxu0 0.0
    %424 = vmatmul.mubr.f32.gmra.mrb[0].mxu0 %v354
    %v425 = vpop.f32.mrb[0].mxu0
    %v426 = vadd.f32 %v350, %v425
    %v427 = vpop.f32.mrb[0].mxu0
    %428 = vmatprep.mubr.f32.mxu0 0.0
    %429 = vmatmul.mubr.f32.gmra.mrb[0].mxu0 %v357
    %v430 = vpop.f32.mrb[0].mxu0
    %v431 = vadd.f32 %v350, %v430
    %v432 = vpop.f32.mrb[0].mxu0
    %433 = vdwg.mxu0
    %v434 = vld [vmem:[%s1] sm:$0xff]
    %v435 = vld [vmem:[%s1 + $0x8] sm:$0xff]
    %v436 = vadd.f32 %v426, %v434
    %v437 = vadd.f32 %v431, %v435
    %v438 = vld [vmem:[#allocation8] sm:$0xff]
    %v439 = vld [vmem:[#allocation8 + $0x8] sm:$0xff]
    %v440 = vld [vmem:[#allocation8 + $0x10] sm:$0xff]
    %v441 = vld [vmem:[#allocation8 + $0x18] sm:$0xff]
    %v442 = vld [vmem:[#allocation9] sm:$0x1]
    %v444 = vlaneseq
    %v445 = vshrl.u32 %v444, 7
    %v446 = vsub.s32 0, %v445
    %v447 = vrot.slane %v442, %v446
    %v450 = vsel %vm352, %v436, 0
    %v453 = vsel %vm352, %v437, 0
    %455 = vmatprep.subr.mxu0 0.0
    %456 = vmatpush1.msra.mxu0 %v438
    %457 = vmatprep.subr.mxu0 0.0
    %458 = vmatpush1.msra.mxu0 %v439
    %459 = vmatprep.subr.mxu0 0.0
    %460 = vmatpush1.msra.mxu0 %v440
    %461 = vmatprep.subr.mxu0 0.0
    %462 = vmatpush1.msra.mxu0 %v441
    %463 = vmatprep.subr.mxu0 0.0
    %464 = vmatpush1.msra.mxu0 0.0
    %465 = vmatprep.subr.mxu0 0.0
    %466 = vmatpush1.msra.mxu0 0.0
    %467 = vmatprep.subr.mxu0 0.0
    %468 = vmatpush1.msra.mxu0 0.0
    %469 = vmatprep.subr.mxu0 0.0
    %470 = vmatpush1.msra.mxu0 0.0
    %471 = vmatprep.subr.mxu0 0.0
    %472 = vmatpush1.msra.mxu0 0.0
    %473 = vmatprep.subr.mxu0 0.0
    %474 = vmatpush1.msra.mxu0 0.0
    %475 = vmatprep.subr.mxu0 0.0
    %476 = vmatpush1.msra.mxu0 0.0
    %477 = vmatprep.subr.mxu0 0.0
    %478 = vmatpush1.msra.mxu0 0.0
    %479 = vmatprep.subr.mxu0 0.0
    %480 = vmatpush1.msra.mxu0 0.0
    %481 = vmatprep.subr.mxu0 0.0
    %482 = vmatpush1.msra.mxu0 0.0
    %483 = vmatprep.subr.mxu0 0.0
    %484 = vmatpush1.msra.mxu0 0.0
    %485 = vmatprep.subr.mxu0 0.0
    %486 = vmatpush1.msra.mxu0 0.0
    %487 = vmatprep.subr.mxu0 0.0
    %488 = vmatpush1.msra.mxu0 0.0
    %489 = vmatprep.subr.mxu0 0.0
    %490 = vmatpush1.msra.mxu0 0.0
    %491 = vmatprep.subr.mxu0 0.0
    %492 = vmatpush1.msra.mxu0 0.0
    %493 = vmatprep.subr.mxu0 0.0
    %494 = vmatpush1.msra.mxu0 0.0
    %495 = vmatprep.subr.mxu0 0.0
    %496 = vmatpush1.msra.mxu0 0.0
    %497 = vmatprep.subr.mxu0 0.0
    %498 = vmatpush1.msra.mxu0 0.0
    %499 = vmatprep.subr.mxu0 0.0
    %500 = vmatpush1.msra.mxu0 0.0
    %501 = vmatprep.subr.mxu0 0.0
    %502 = vmatpush1.msra.mxu0 0.0
    %503 = vmatprep.subr.mxu0 0.0
    %504 = vmatpush1.msra.mxu0 0.0
    %505 = vmatprep.subr.mxu0 0.0
    %506 = vmatpush1.msra.mxu0 0.0
    %507 = vmatprep.subr.mxu0 0.0
    %508 = vmatpush1.msra.mxu0 0.0
    %509 = vmatprep.subr.mxu0 0.0
    %510 = vmatpush1.msra.mxu0 0.0
    %511 = vmatprep.subr.mxu0 0.0
    %512 = vmatpush1.msra.mxu0 0.0
    %513 = vmatprep.subr.mxu0 0.0
    %514 = vmatpush1.msra.mxu0 0.0
    %515 = vmatprep.subr.mxu0 0.0
    %516 = vmatpush1.msra.mxu0 0.0
    %517 = vmatprep.subr.mxu0 0.0
    %518 = vmatpush1.msra.mxu0 0.0
    %519 = vmatprep.mubr.f32.mxu0 0.0
    %520 = vmatmul.mubr.f32.gmra.mrb[0].mxu0 %v450
    %v521 = vpop.f32.mrb[0].mxu0
    %v522 = vadd.f32 %v447, %v521
    %v523 = vpop.f32.mrb[0].mxu0
    %524 = vmatprep.mubr.f32.mxu0 0.0
    %525 = vmatmul.mubr.f32.gmra.mrb[0].mxu0 %v453
    %v526 = vpop.f32.mrb[0].mxu0
    %v527 = vadd.f32 %v447, %v526
    %v528 = vpop.f32.mrb[0].mxu0
    %529 = vdwg.mxu0
    %531 = vrot.lane.b32.xlu0 %v522, 96
    %v532 = vpop.permute.xlu0 %531
    %vm533 = vcmask 64512
    %v534 = vsel %vm533, %v522, 0
    %v536 = vsel %vm533, %v532, 0
    %538 = vmatprep.subr.mxu0 0.0
    %539 = vmatpush1.xpose.msra.mxu0 %v536
    %540 = vmatprep.subr.mxu0 0.0
    %541 = vmatpush1.xpose.msra.mxu0 0.0
    %542 = vmatprep.subr.mxu0 0.0
    %543 = vmatpush1.xpose.msra.mxu0 0.0
    %544 = vmatprep.subr.mxu0 0.0
    %545 = vmatpush1.xpose.msra.mxu0 0.0
    %546 = vmatprep.subr.mxu0 0.0
    %547 = vmatpush1.xpose.msra.mxu0 0.0
    %548 = vmatprep.subr.mxu0 0.0
    %549 = vmatpush1.xpose.msra.mxu0 0.0
    %550 = vmatprep.subr.mxu0 0.0
    %551 = vmatpush1.xpose.msra.mxu0 0.0
    %552 = vmatprep.subr.mxu0 0.0
    %553 = vmatpush1.xpose.msra.mxu0 0.0
    %554 = vmatprep.subr.mxu0 0.0
    %555 = vmatpush1.xpose.msra.mxu0 0.0
    %556 = vmatprep.subr.mxu0 0.0
    %557 = vmatpush1.xpose.msra.mxu0 0.0
    %558 = vmatprep.subr.mxu0 0.0
    %559 = vmatpush1.xpose.msra.mxu0 0.0
    %560 = vmatprep.subr.mxu0 0.0
    %561 = vmatpush1.xpose.msra.mxu0 0.0
    %562 = vmatprep.subr.mxu0 0.0
    %563 = vmatpush1.xpose.msra.mxu0 0.0
    %564 = vmatprep.subr.mxu0 0.0
    %565 = vmatpush1.xpose.msra.mxu0 0.0
    %566 = vmatprep.subr.mxu0 0.0
    %567 = vmatpush1.xpose.msra.mxu0 0.0
    %568 = vmatprep.subr.mxu0 0.0
    %569 = vmatpush1.xpose.msra.mxu0 0.0
    %570 = vmatprep.subr.mxu0 0.0
    %571 = vmatpush1.xpose.msra.mxu0 0.0
    %572 = vmatprep.subr.mxu0 0.0
    %573 = vmatpush1.xpose.msra.mxu0 0.0
    %574 = vmatprep.subr.mxu0 0.0
    %575 = vmatpush1.xpose.msra.mxu0 0.0
    %576 = vmatprep.subr.mxu0 0.0
    %577 = vmatpush1.xpose.msra.mxu0 0.0
    %578 = vmatprep.subr.mxu0 0.0
    %579 = vmatpush1.xpose.msra.mxu0 0.0
    %580 = vmatprep.subr.mxu0 0.0
    %581 = vmatpush1.xpose.msra.mxu0 0.0
    %582 = vmatprep.subr.mxu0 0.0
    %583 = vmatpush1.xpose.msra.mxu0 0.0
    %584 = vmatprep.subr.mxu0 0.0
    %585 = vmatpush1.xpose.msra.mxu0 0.0
    %586 = vmatprep.subr.mxu0 0.0
    %587 = vmatpush1.xpose.msra.mxu0 0.0
    %588 = vmatprep.subr.mxu0 0.0
    %589 = vmatpush1.xpose.msra.mxu0 0.0
    %590 = vmatprep.subr.mxu0 0.0
    %591 = vmatpush1.xpose.msra.mxu0 0.0
    %592 = vmatprep.subr.mxu0 0.0
    %593 = vmatpush1.xpose.msra.mxu0 0.0
    %594 = vmatprep.subr.mxu0 0.0
    %595 = vmatpush1.xpose.msra.mxu0 0.0
    %596 = vmatprep.subr.mxu0 0.0
    %597 = vmatpush1.xpose.msra.mxu0 0.0
    %598 = vmatprep.subr.mxu0 0.0
    %599 = vmatpush1.xpose.msra.mxu0 0.0
    %600 = vmatprep.subr.mxu0 0.0
    %601 = vmatpush1.xpose.msra.mxu0 0.0
    %602 = vmatprep.mubr.f32.mxu0 0.0
    %603 = vmatmul.mubr.f32.gmra.mrb[0].mxu0 %v534
    %v604 = vpop.f32.mrb[0].mxu0
    %v605 = vadd.f32 0.0, %v604
    %v606 = vpop.f32.mrb[0].mxu0
    %607 = vdwg.mxu0
    %v608 = vmul.f32 %v605, 0.35355338
    %v609 = vsel %vm533, %v608, -inf
    %610 = vmax.xlane.f32.xlu0 %v609
    %v611 = vpop.xlane.xlu0 %610
    %v612 = vsub.f32 %v608, %v611
    %v613 = vmul.f32 %v612, 1.442695
    %v614 = vpow.pop %v613
    %v615 = vsel %vm533, %v614, 0.0
    %616 = vadd.xlane.f32.xlu0 %v615
    %v617 = vpop.xlane.xlu0 %616
    %v618 = vrcp.pop %v617
    %v619 = vmul.f32 %v614, %v618
    %620 = vrot.lane.b32.xlu0 %v522, 64
    %v621 = vpop.permute.xlu0 %620
    %v624 = vsel %vm533, %v619, 0
    %626 = vmatprep.subr.mxu0 0.0
    %627 = vmatpush1.msra.mxu0 %v621
    %628 = vmatprep.subr.mxu0 0.0
    %629 = vmatpush1.msra.mxu0 0.0
    %630 = vmatprep.subr.mxu0 0.0
    %631 = vmatpush1.msra.mxu0 0.0
    %632 = vmatprep.subr.mxu0 0.0
    %633 = vmatpush1.msra.mxu0 0.0
    %634 = vmatprep.subr.mxu0 0.0
    %635 = vmatpush1.msra.mxu0 0.0
    %636 = vmatprep.subr.mxu0 0.0
    %637 = vmatpush1.msra.mxu0 0.0
    %638 = vmatprep.subr.mxu0 0.0
    %639 = vmatpush1.msra.mxu0 0.0
    %640 = vmatprep.subr.mxu0 0.0
    %641 = vmatpush1.msra.mxu0 0.0
    %642 = vmatprep.subr.mxu0 0.0
    %643 = vmatpush1.msra.mxu0 0.0
    %644 = vmatprep.subr.mxu0 0.0
    %645 = vmatpush1.msra.mxu0 0.0
    %646 = vmatprep.subr.mxu0 0.0
    %647 = vmatpush1.msra.mxu0 0.0
    %648 = vmatprep.subr.mxu0 0.0
    %649 = vmatpush1.msra.mxu0 0.0
    %650 = vmatprep.subr.mxu0 0.0
    %651 = vmatpush1.msra.mxu0 0.0
    %652 = vmatprep.subr.mxu0 0.0
    %653 = vmatpush1.msra.mxu0 0.0
    %654 = vmatprep.subr.mxu0 0.0
    %655 = vmatpush1.msra.mxu0 0.0
    %656 = vmatprep.subr.mxu0 0.0
    %657 = vmatpush1.msra.mxu0 0.0
    %658 = vmatprep.subr.mxu0 0.0
    %659 = vmatpush1.msra.mxu0 0.0
    %660 = vmatprep.subr.mxu0 0.0
    %661 = vmatpush1.msra.mxu0 0.0
    %662 = vmatprep.subr.mxu0 0.0
    %663 = vmatpush1.msra.mxu0 0.0
    %664 = vmatprep.subr.mxu0 0.0
    %665 = vmatpush1.msra.mxu0 0.0
    %666 = vmatprep.subr.mxu0 0.0
    %667 = vmatpush1.msra.mxu0 0.0
    %668 = vmatprep.subr.mxu0 0.0
    %669 = vmatpush1.msra.mxu0 0.0
    %670 = vmatprep.subr.mxu0 0.0
    %671 = vmatpush1.msra.mxu0 0.0
    %672 = vmatprep.subr.mxu0 0.0
    %673 = vmatpush1.msra.mxu0 0.0
    %674 = vmatprep.subr.mxu0 0.0
    %675 = vmatpush1.msra.mxu0 0.0
    %676 = vmatprep.subr.mxu0 0.0
    %677 = vmatpush1.msra.mxu0 0.0
    %678 = vmatprep.subr.mxu0 0.0
    %679 = vmatpush1.msra.mxu0 0.0
    %680 = vmatprep.subr.mxu0 0.0
    %681 = vmatpush1.msra.mxu0 0.0
    %682 = vmatprep.subr.mxu0 0.0
    %683 = vmatpush1.msra.mxu0 0.0
    %684 = vmatprep.subr.mxu0 0.0
    %685 = vmatpush1.msra.mxu0 0.0
    %686 = vmatprep.subr.mxu0 0.0
    %687 = vmatpush1.msra.mxu0 0.0
    %688 = vmatprep.subr.mxu0 0.0
    %689 = vmatpush1.msra.mxu0 0.0
    %690 = vmatprep.mubr.f32.mxu0 0.0
    %691 = vmatmul.mubr.f32.gmra.mrb[0].mxu0 %v624
    %v692 = vpop.f32.mrb[0].mxu0
    %v693 = vadd.f32 0.0, %v692
    %v694 = vpop.f32.mrb[0].mxu0
    %695 = vdwg.mxu0
    %696 = vst.msk [vmem:[#allocation2] sm:$0xff] %vm533, %v693
    %697 = vrot.lane.b32.xlu0 %v522, 120
    %v698 = vpop.permute.xlu0 %697
    %699 = vrot.lane.b32.xlu0 %v522, 88
    %v700 = vpop.permute.xlu0 %699
    %v701 = vsel %vm533, %v698, 0
    %v703 = vsel %vm533, %v700, 0
    %705 = vmatprep.subr.mxu0 0.0
    %706 = vmatpush1.xpose.msra.mxu0 %v703
    %707 = vmatprep.subr.mxu0 0.0
    %708 = vmatpush1.xpose.msra.mxu0 0.0
    %709 = vmatprep.subr.mxu0 0.0
    %710 = vmatpush1.xpose.msra.mxu0 0.0
    %711 = vmatprep.subr.mxu0 0.0
    %712 = vmatpush1.xpose.msra.mxu0 0.0
    %713 = vmatprep.subr.mxu0 0.0
    %714 = vmatpush1.xpose.msra.mxu0 0.0
    %715 = vmatprep.subr.mxu0 0.0
    %716 = vmatpush1.xpose.msra.mxu0 0.0
    %717 = vmatprep.subr.mxu0 0.0
    %718 = vmatpush1.xpose.msra.mxu0 0.0
    %719 = vmatprep.subr.mxu0 0.0
    %720 = vmatpush1.xpose.msra.mxu0 0.0
    %721 = vmatprep.subr.mxu0 0.0
    %722 = vmatpush1.xpose.msra.mxu0 0.0
    %723 = vmatprep.subr.mxu0 0.0
    %724 = vmatpush1.xpose.msra.mxu0 0.0
    %725 = vmatprep.subr.mxu0 0.0
    %726 = vmatpush1.xpose.msra.mxu0 0.0
    %727 = vmatprep.subr.mxu0 0.0
    %728 = vmatpush1.xpose.msra.mxu0 0.0
    %729 = vmatprep.subr.mxu0 0.0
    %730 = vmatpush1.xpose.msra.mxu0 0.0
    %731 = vmatprep.subr.mxu0 0.0
    %732 = vmatpush1.xpose.msra.mxu0 0.0
    %733 = vmatprep.subr.mxu0 0.0
    %734 = vmatpush1.xpose.msra.mxu0 0.0
    %735 = vmatprep.subr.mxu0 0.0
    %736 = vmatpush1.xpose.msra.mxu0 0.0
    %737 = vmatprep.subr.mxu0 0.0
    %738 = vmatpush1.xpose.msra.mxu0 0.0
    %739 = vmatprep.subr.mxu0 0.0
    %740 = vmatpush1.xpose.msra.mxu0 0.0
    %741 = vmatprep.subr.mxu0 0.0
    %742 = vmatpush1.xpose.msra.mxu0 0.0
    %743 = vmatprep.subr.mxu0 0.0
    %744 = vmatpush1.xpose.msra.mxu0 0.0
    %745 = vmatprep.subr.mxu0 0.0
    %746 = vmatpush1.xpose.msra.mxu0 0.0
    %747 = vmatprep.subr.mxu0 0.0
    %748 = vmatpush1.xpose.msra.mxu0 0.0
    %749 = vmatprep.subr.mxu0 0.0
    %750 = vmatpush1.xpose.msra.mxu0 0.0
    %751 = vmatprep.subr.mxu0 0.0
    %752 = vmatpush1.xpose.msra.mxu0 0.0
    %753 = vmatprep.subr.mxu0 0.0
    %754 = vmatpush1.xpose.msra.mxu0 0.0
    %755 = vmatprep.subr.mxu0 0.0
    %756 = vmatpush1.xpose.msra.mxu0 0.0
    %757 = vmatprep.subr.mxu0 0.0
    %758 = vmatpush1.xpose.msra.mxu0 0.0
    %759 = vmatprep.subr.mxu0 0.0
    %760 = vmatpush1.xpose.msra.mxu0 0.0
    %761 = vmatprep.subr.mxu0 0.0
    %762 = vmatpush1.xpose.msra.mxu0 0.0
    %763 = vmatprep.subr.mxu0 0.0
    %764 = vmatpush1.xpose.msra.mxu0 0.0
    %765 = vmatprep.subr.mxu0 0.0
    %766 = vmatpush1.xpose.msra.mxu0 0.0
    %767 = vmatprep.subr.mxu0 0.0
    %768 = vmatpush1.xpose.msra.mxu0 0.0
    %769 = vmatprep.mubr.f32.mxu0 0.0
    %770 = vmatmul.mubr.f32.gmra.mrb[0].mxu0 %v701
    %v771 = vpop.f32.mrb[0].mxu0
    %v772 = vadd.f32 0.0, %v771
    %v773 = vpop.f32.mrb[0].mxu0
    %774 = vdwg.mxu0
    %v775 = vmul.f32 %v772, 0.35355338
    %v776 = vsel %vm533, %v775, -inf
    %777 = vmax.xlane.f32.xlu0 %v776
    %v778 = vpop.xlane.xlu0 %777
    %v779 = vsub.f32 %v775, %v778
    %v780 = vmul.f32 %v779, 1.442695
    %v781 = vpow.pop %v780
    %v782 = vsel %vm533, %v781, 0.0
    %783 = vadd.xlane.f32.xlu0 %v782
    %v784 = vpop.xlane.xlu0 %783
    %v785 = vrcp.pop %v784
    %v786 = vmul.f32 %v781, %v785
    %787 = vrot.lane.b32.xlu0 %v522, 56
    %v788 = vpop.permute.xlu0 %787
    %v791 = vsel %vm533, %v786, 0
    %793 = vmatprep.subr.mxu0 0.0
    %794 = vmatpush1.msra.mxu0 %v788
    %795 = vmatprep.subr.mxu0 0.0
    %796 = vmatpush1.msra.mxu0 0.0
    %797 = vmatprep.subr.mxu0 0.0
    %798 = vmatpush1.msra.mxu0 0.0
    %799 = vmatprep.subr.mxu0 0.0
    %800 = vmatpush1.msra.mxu0 0.0
    %801 = vmatprep.subr.mxu0 0.0
    %802 = vmatpush1.msra.mxu0 0.0
    %803 = vmatprep.subr.mxu0 0.0
    %804 = vmatpush1.msra.mxu0 0.0
    %805 = vmatprep.subr.mxu0 0.0
    %806 = vmatpush1.msra.mxu0 0.0
    %807 = vmatprep.subr.mxu0 0.0
    %808 = vmatpush1.msra.mxu0 0.0
    %809 = vmatprep.subr.mxu0 0.0
    %810 = vmatpush1.msra.mxu0 0.0
    %811 = vmatprep.subr.mxu0 0.0
    %812 = vmatpush1.msra.mxu0 0.0
    %813 = vmatprep.subr.mxu0 0.0
    %814 = vmatpush1.msra.mxu0 0.0
    %815 = vmatprep.subr.mxu0 0.0
    %816 = vmatpush1.msra.mxu0 0.0
    %817 = vmatprep.subr.mxu0 0.0
    %818 = vmatpush1.msra.mxu0 0.0
    %819 = vmatprep.subr.mxu0 0.0
    %820 = vmatpush1.msra.mxu0 0.0
    %821 = vmatprep.subr.mxu0 0.0
    %822 = vmatpush1.msra.mxu0 0.0
    %823 = vmatprep.subr.mxu0 0.0
    %824 = vmatpush1.msra.mxu0 0.0
    %825 = vmatprep.subr.mxu0 0.0
    %826 = vmatpush1.msra.mxu0 0.0
    %827 = vmatprep.subr.mxu0 0.0
    %828 = vmatpush1.msra.mxu0 0.0
    %829 = vmatprep.subr.mxu0 0.0
    %830 = vmatpush1.msra.mxu0 0.0
    %831 = vmatprep.subr.mxu0 0.0
    %832 = vmatpush1.msra.mxu0 0.0
    %833 = vmatprep.subr.mxu0 0.0
    %834 = vmatpush1.msra.mxu0 0.0
    %835 = vmatprep.subr.mxu0 0.0
    %836 = vmatpush1.msra.mxu0 0.0
    %837 = vmatprep.subr.mxu0 0.0
    %838 = vmatpush1.msra.mxu0 0.0
    %839 = vmatprep.subr.mxu0 0.0
    %840 = vmatpush1.msra.mxu0 0.0
    %841 = vmatprep.subr.mxu0 0.0
    %842 = vmatpush1.msra.mxu0 0.0
    %843 = vmatprep.subr.mxu0 0.0
    %844 = vmatpush1.msra.mxu0 0.0
    %845 = vmatprep.subr.mxu0 0.0
    %846 = vmatpush1.msra.mxu0 0.0
    %847 = vmatprep.subr.mxu0 0.0
    %848 = vmatpush1.msra.mxu0 0.0
    %849 = vmatprep.subr.mxu0 0.0
    %850 = vmatpush1.msra.mxu0 0.0
    %851 = vmatprep.subr.mxu0 0.0
    %852 = vmatpush1.msra.mxu0 0.0
    %853 = vmatprep.subr.mxu0 0.0
    %854 = vmatpush1.msra.mxu0 0.0
    %855 = vmatprep.subr.mxu0 0.0
    %856 = vmatpush1.msra.mxu0 0.0
    %857 = vmatprep.mubr.f32.mxu0 0.0
    %858 = vmatmul.mubr.f32.gmra.mrb[0].mxu0 %v791
    %v859 = vpop.f32.mrb[0].mxu0
    %v860 = vadd.f32 0.0, %v859
    %v861 = vpop.f32.mrb[0].mxu0
    %862 = vdwg.mxu0
    %864 = vrot.lane.b32.xlu0 %v860, 8
    %v865 = vpop.permute.xlu0 %864
    %vm867 = vcmask 130112
    %868 = vst.msk [vmem:[#allocation2] sm:$0xff] %vm867, %v865
    %869 = vrot.lane.b32.xlu0 %v522, 112
    %v870 = vpop.permute.xlu0 %869
    %871 = vrot.lane.b32.xlu0 %v522, 80
    %v872 = vpop.permute.xlu0 %871
    %v873 = vsel %vm533, %v870, 0
    %v875 = vsel %vm533, %v872, 0
    %877 = vmatprep.subr.mxu0 0.0
    %878 = vmatpush1.xpose.msra.mxu0 %v875
    %879 = vmatprep.subr.mxu0 0.0
    %880 = vmatpush1.xpose.msra.mxu0 0.0
    %881 = vmatprep.subr.mxu0 0.0
    %882 = vmatpush1.xpose.msra.mxu0 0.0
    %883 = vmatprep.subr.mxu0 0.0
    %884 = vmatpush1.xpose.msra.mxu0 0.0
    %885 = vmatprep.subr.mxu0 0.0
    %886 = vmatpush1.xpose.msra.mxu0 0.0
    %887 = vmatprep.subr.mxu0 0.0
    %888 = vmatpush1.xpose.msra.mxu0 0.0
    %889 = vmatprep.subr.mxu0 0.0
    %890 = vmatpush1.xpose.msra.mxu0 0.0
    %891 = vmatprep.subr.mxu0 0.0
    %892 = vmatpush1.xpose.msra.mxu0 0.0
    %893 = vmatprep.subr.mxu0 0.0
    %894 = vmatpush1.xpose.msra.mxu0 0.0
    %895 = vmatprep.subr.mxu0 0.0
    %896 = vmatpush1.xpose.msra.mxu0 0.0
    %897 = vmatprep.subr.mxu0 0.0
    %898 = vmatpush1.xpose.msra.mxu0 0.0
    %899 = vmatprep.subr.mxu0 0.0
    %900 = vmatpush1.xpose.msra.mxu0 0.0
    %901 = vmatprep.subr.mxu0 0.0
    %902 = vmatpush1.xpose.msra.mxu0 0.0
    %903 = vmatprep.subr.mxu0 0.0
    %904 = vmatpush1.xpose.msra.mxu0 0.0
    %905 = vmatprep.subr.mxu0 0.0
    %906 = vmatpush1.xpose.msra.mxu0 0.0
    %907 = vmatprep.subr.mxu0 0.0
    %908 = vmatpush1.xpose.msra.mxu0 0.0
    %909 = vmatprep.subr.mxu0 0.0
    %910 = vmatpush1.xpose.msra.mxu0 0.0
    %911 = vmatprep.subr.mxu0 0.0
    %912 = vmatpush1.xpose.msra.mxu0 0.0
    %913 = vmatprep.subr.mxu0 0.0
    %914 = vmatpush1.xpose.msra.mxu0 0.0
    %915 = vmatprep.subr.mxu0 0.0
    %916 = vmatpush1.xpose.msra.mxu0 0.0
    %917 = vmatprep.subr.mxu0 0.0
    %918 = vmatpush1.xpose.msra.mxu0 0.0
    %919 = vmatprep.subr.mxu0 0.0
    %920 = vmatpush1.xpose.msra.mxu0 0.0
    %921 = vmatprep.subr.mxu0 0.0
    %922 = vmatpush1.xpose.msra.mxu0 0.0
    %923 = vmatprep.subr.mxu0 0.0
    %924 = vmatpush1.xpose.msra.mxu0 0.0
    %925 = vmatprep.subr.mxu0 0.0
    %926 = vmatpush1.xpose.msra.mxu0 0.0
    %927 = vmatprep.subr.mxu0 0.0
    %928 = vmatpush1.xpose.msra.mxu0 0.0
    %929 = vmatprep.subr.mxu0 0.0
    %930 = vmatpush1.xpose.msra.mxu0 0.0
    %931 = vmatprep.subr.mxu0 0.0
    %932 = vmatpush1.xpose.msra.mxu0 0.0
    %933 = vmatprep.subr.mxu0 0.0
    %934 = vmatpush1.xpose.msra.mxu0 0.0
    %935 = vmatprep.subr.mxu0 0.0
    %936 = vmatpush1.xpose.msra.mxu0 0.0
    %937 = vmatprep.subr.mxu0 0.0
    %938 = vmatpush1.xpose.msra.mxu0 0.0
    %939 = vmatprep.subr.mxu0 0.0
    %940 = vmatpush1.xpose.msra.mxu0 0.0
    %941 = vmatprep.mubr.f32.mxu0 0.0
    %942 = vmatmul.mubr.f32.gmra.mrb[0].mxu0 %v873
    %v943 = vpop.f32.mrb[0].mxu0
    %v944 = vadd.f32 0.0, %v943
    %v945 = vpop.f32.mrb[0].mxu0
    %946 = vdwg.mxu0
    %v947 = vmul.f32 %v944, 0.35355338
    %v948 = vsel %vm533, %v947, -inf
    %949 = vmax.xlane.f32.xlu0 %v948
    %v950 = vpop.xlane.xlu0 %949
    %v951 = vsub.f32 %v947, %v950
    %v952 = vmul.f32 %v951, 1.442695
    %v953 = vpow.pop %v952
    %v954 = vsel %vm533, %v953, 0.0
    %955 = vadd.xlane.f32.xlu0 %v954
    %v956 = vpop.xlane.xlu0 %955
    %v957 = vrcp.pop %v956
    %v958 = vmul.f32 %v953, %v957
    %959 = vrot.lane.b32.xlu0 %v522, 48
    %v960 = vpop.permute.xlu0 %959
    %v963 = vsel %vm533, %v958, 0
    %965 = vmatprep.subr.mxu0 0.0
    %966 = vmatpush1.msra.mxu0 %v960
    %967 = vmatprep.subr.mxu0 0.0
    %968 = vmatpush1.msra.mxu0 0.0
    %969 = vmatprep.subr.mxu0 0.0
    %970 = vmatpush1.msra.mxu0 0.0
    %971 = vmatprep.subr.mxu0 0.0
    %972 = vmatpush1.msra.mxu0 0.0
    %973 = vmatprep.subr.mxu0 0.0
    %974 = vmatpush1.msra.mxu0 0.0
    %975 = vmatprep.subr.mxu0 0.0
    %976 = vmatpush1.msra.mxu0 0.0
    %977 = vmatprep.subr.mxu0 0.0
    %978 = vmatpush1.msra.mxu0 0.0
    %979 = vmatprep.subr.mxu0 0.0
    %980 = vmatpush1.msra.mxu0 0.0
    %981 = vmatprep.subr.mxu0 0.0
    %982 = vmatpush1.msra.mxu0 0.0
    %983 = vmatprep.subr.mxu0 0.0
    %984 = vmatpush1.msra.mxu0 0.0
    %985 = vmatprep.subr.mxu0 0.0
    %986 = vmatpush1.msra.mxu0 0.0
    %987 = vmatprep.subr.mxu0 0.0
    %988 = vmatpush1.msra.mxu0 0.0
    %989 = vmatprep.subr.mxu0 0.0
    %990 = vmatpush1.msra.mxu0 0.0
    %991 = vmatprep.subr.mxu0 0.0
    %992 = vmatpush1.msra.mxu0 0.0
    %993 = vmatprep.subr.mxu0 0.0
    %994 = vmatpush1.msra.mxu0 0.0
    %995 = vmatprep.subr.mxu0 0.0
    %996 = vmatpush1.msra.mxu0 0.0
    %997 = vmatprep.subr.mxu0 0.0
    %998 = vmatpush1.msra.mxu0 0.0
    %999 = vmatprep.subr.mxu0 0.0
    %1000 = vmatpush1.msra.mxu0 0.0
    %1001 = vmatprep.subr.mxu0 0.0
    %1002 = vmatpush1.msra.mxu0 0.0
    %1003 = vmatprep.subr.mxu0 0.0
    %1004 = vmatpush1.msra.mxu0 0.0
    %1005 = vmatprep.subr.mxu0 0.0
    %1006 = vmatpush1.msra.mxu0 0.0
    %1007 = vmatprep.subr.mxu0 0.0
    %1008 = vmatpush1.msra.mxu0 0.0
    %1009 = vmatprep.subr.mxu0 0.0
    %1010 = vmatpush1.msra.mxu0 0.0
    %1011 = vmatprep.subr.mxu0 0.0
    %1012 = vmatpush1.msra.mxu0 0.0
    %1013 = vmatprep.subr.mxu0 0.0
    %1014 = vmatpush1.msra.mxu0 0.0
    %1015 = vmatprep.subr.mxu0 0.0
    %1016 = vmatpush1.msra.mxu0 0.0
    %1017 = vmatprep.subr.mxu0 0.0
    %1018 = vmatpush1.msra.mxu0 0.0
    %1019 = vmatprep.subr.mxu0 0.0
    %1020 = vmatpush1.msra.mxu0 0.0
    %1021 = vmatprep.subr.mxu0 0.0
    %1022 = vmatpush1.msra.mxu0 0.0
    %1023 = vmatprep.subr.mxu0 0.0
    %1024 = vmatpush1.msra.mxu0 0.0
    %1025 = vmatprep.subr.mxu0 0.0
    %1026 = vmatpush1.msra.mxu0 0.0
    %1027 = vmatprep.subr.mxu0 0.0
    %1028 = vmatpush1.msra.mxu0 0.0
    %1029 = vmatprep.mubr.f32.mxu0 0.0
    %1030 = vmatmul.mubr.f32.gmra.mrb[0].mxu0 %v963
    %v1031 = vpop.f32.mrb[0].mxu0
    %v1032 = vadd.f32 0.0, %v1031
    %v1033 = vpop.f32.mrb[0].mxu0
    %1034 = vdwg.mxu0
    %1036 = vrot.lane.b32.xlu0 %v1032, 16
    %v1037 = vpop.permute.xlu0 %1036
    %vm1039 = vcmask 195712
    %1040 = vst.msk [vmem:[#allocation2] sm:$0xff] %vm1039, %v1037
    %1041 = vrot.lane.b32.xlu0 %v522, 104
    %v1042 = vpop.permute.xlu0 %1041
    %1043 = vrot.lane.b32.xlu0 %v522, 72
    %v1044 = vpop.permute.xlu0 %1043
    %v1045 = vsel %vm533, %v1042, 0
    %v1047 = vsel %vm533, %v1044, 0
    %1049 = vmatprep.subr.mxu0 0.0
    %1050 = vmatpush1.xpose.msra.mxu0 %v1047
    %1051 = vmatprep.subr.mxu0 0.0
    %1052 = vmatpush1.xpose.msra.mxu0 0.0
    %1053 = vmatprep.subr.mxu0 0.0
    %1054 = vmatpush1.xpose.msra.mxu0 0.0
    %1055 = vmatprep.subr.mxu0 0.0
    %1056 = vmatpush1.xpose.msra.mxu0 0.0
    %1057 = vmatprep.subr.mxu0 0.0
    %1058 = vmatpush1.xpose.msra.mxu0 0.0
    %1059 = vmatprep.subr.mxu0 0.0
    %1060 = vmatpush1.xpose.msra.mxu0 0.0
    %1061 = vmatprep.subr.mxu0 0.0
    %1062 = vmatpush1.xpose.msra.mxu0 0.0
    %1063 = vmatprep.subr.mxu0 0.0
    %1064 = vmatpush1.xpose.msra.mxu0 0.0
    %1065 = vmatprep.subr.mxu0 0.0
    %1066 = vmatpush1.xpose.msra.mxu0 0.0
    %1067 = vmatprep.subr.mxu0 0.0
    %1068 = vmatpush1.xpose.msra.mxu0 0.0
    %1069 = vmatprep.subr.mxu0 0.0
    %1070 = vmatpush1.xpose.msra.mxu0 0.0
    %1071 = vmatprep.subr.mxu0 0.0
    %1072 = vmatpush1.xpose.msra.mxu0 0.0
    %1073 = vmatprep.subr.mxu0 0.0
    %1074 = vmatpush1.xpose.msra.mxu0 0.0
    %1075 = vmatprep.subr.mxu0 0.0
    %1076 = vmatpush1.xpose.msra.mxu0 0.0
    %1077 = vmatprep.subr.mxu0 0.0
    %1078 = vmatpush1.xpose.msra.mxu0 0.0
    %1079 = vmatprep.subr.mxu0 0.0
    %1080 = vmatpush1.xpose.msra.mxu0 0.0
    %1081 = vmatprep.subr.mxu0 0.0
    %1082 = vmatpush1.xpose.msra.mxu0 0.0
    %1083 = vmatprep.subr.mxu0 0.0
    %1084 = vmatpush1.xpose.msra.mxu0 0.0
    %1085 = vmatprep.subr.mxu0 0.0
    %1086 = vmatpush1.xpose.msra.mxu0 0.0
    %1087 = vmatprep.subr.mxu0 0.0
    %1088 = vmatpush1.xpose.msra.mxu0 0.0
    %1089 = vmatprep.subr.mxu0 0.0
    %1090 = vmatpush1.xpose.msra.mxu0 0.0
    %1091 = vmatprep.subr.mxu0 0.0
    %1092 = vmatpush1.xpose.msra.mxu0 0.0
    %1093 = vmatprep.subr.mxu0 0.0
    %1094 = vmatpush1.xpose.msra.mxu0 0.0
    %1095 = vmatprep.subr.mxu0 0.0
    %1096 = vmatpush1.xpose.msra.mxu0 0.0
    %1097 = vmatprep.subr.mxu0 0.0
    %1098 = vmatpush1.xpose.msra.mxu0 0.0
    %1099 = vmatprep.subr.mxu0 0.0
    %1100 = vmatpush1.xpose.msra.mxu0 0.0
    %1101 = vmatprep.subr.mxu0 0.0
    %1102 = vmatpush1.xpose.msra.mxu0 0.0
    %1103 = vmatprep.subr.mxu0 0.0
    %1104 = vmatpush1.xpose.msra.mxu0 0.0
    %1105 = vmatprep.subr.mxu0 0.0
    %1106 = vmatpush1.xpose.msra.mxu0 0.0
    %1107 = vmatprep.subr.mxu0 0.0
    %1108 = vmatpush1.xpose.msra.mxu0 0.0
    %1109 = vmatprep.subr.mxu0 0.0
    %1110 = vmatpush1.xpose.msra.mxu0 0.0
    %1111 = vmatprep.subr.mxu0 0.0
    %1112 = vmatpush1.xpose.msra.mxu0 0.0
    %1113 = vmatprep.mubr.f32.mxu0 0.0
    %1114 = vmatmul.mubr.f32.gmra.mrb[0].mxu0 %v1045
    %v1115 = vpop.f32.mrb[0].mxu0
    %v1116 = vadd.f32 0.0, %v1115
    %v1117 = vpop.f32.mrb[0].mxu0
    %1118 = vdwg.mxu0
    %v1119 = vmul.f32 %v1116, 0.35355338
    %v1120 = vsel %vm533, %v1119, -inf
    %1121 = vmax.xlane.f32.xlu0 %v1120
    %v1122 = vpop.xlane.xlu0 %1121
    %v1123 = vsub.f32 %v1119, %v1122
    %v1124 = vmul.f32 %v1123, 1.442695
    %v1125 = vpow.pop %v1124
    %v1126 = vsel %vm533, %v1125, 0.0
    %1127 = vadd.xlane.f32.xlu0 %v1126
    %v1128 = vpop.xlane.xlu0 %1127
    %v1129 = vrcp.pop %v1128
    %v1130 = vmul.f32 %v1125, %v1129
    %1131 = vrot.lane.b32.xlu0 %v522, 40
    %v1132 = vpop.permute.xlu0 %1131
    %v1135 = vsel %vm533, %v1130, 0
    %1137 = vmatprep.subr.mxu0 0.0
    %1138 = vmatpush1.msra.mxu0 %v1132
    %1139 = vmatprep.subr.mxu0 0.0
    %1140 = vmatpush1.msra.mxu0 0.0
    %1141 = vmatprep.subr.mxu0 0.0
    %1142 = vmatpush1.msra.mxu0 0.0
    %1143 = vmatprep.subr.mxu0 0.0
    %1144 = vmatpush1.msra.mxu0 0.0
    %1145 = vmatprep.subr.mxu0 0.0
    %1146 = vmatpush1.msra.mxu0 0.0
    %1147 = vmatprep.subr.mxu0 0.0
    %1148 = vmatpush1.msra.mxu0 0.0
    %1149 = vmatprep.subr.mxu0 0.0
    %1150 = vmatpush1.msra.mxu0 0.0
    %1151 = vmatprep.subr.mxu0 0.0
    %1152 = vmatpush1.msra.mxu0 0.0
    %1153 = vmatprep.subr.mxu0 0.0
    %1154 = vmatpush1.msra.mxu0 0.0
    %1155 = vmatprep.subr.mxu0 0.0
    %1156 = vmatpush1.msra.mxu0 0.0
    %1157 = vmatprep.subr.mxu0 0.0
    %1158 = vmatpush1.msra.mxu0 0.0
    %1159 = vmatprep.subr.mxu0 0.0
    %1160 = vmatpush1.msra.mxu0 0.0
    %1161 = vmatprep.subr.mxu0 0.0
    %1162 = vmatpush1.msra.mxu0 0.0
    %1163 = vmatprep.subr.mxu0 0.0
    %1164 = vmatpush1.msra.mxu0 0.0
    %1165 = vmatprep.subr.mxu0 0.0
    %1166 = vmatpush1.msra.mxu0 0.0
    %1167 = vmatprep.subr.mxu0 0.0
    %1168 = vmatpush1.msra.mxu0 0.0
    %1169 = vmatprep.subr.mxu0 0.0
    %1170 = vmatpush1.msra.mxu0 0.0
    %1171 = vmatprep.subr.mxu0 0.0
    %1172 = vmatpush1.msra.mxu0 0.0
    %1173 = vmatprep.subr.mxu0 0.0
    %1174 = vmatpush1.msra.mxu0 0.0
    %1175 = vmatprep.subr.mxu0 0.0
    %1176 = vmatpush1.msra.mxu0 0.0
    %1177 = vmatprep.subr.mxu0 0.0
    %1178 = vmatpush1.msra.mxu0 0.0
    %1179 = vmatprep.subr.mxu0 0.0
    %1180 = vmatpush1.msra.mxu0 0.0
    %1181 = vmatprep.subr.mxu0 0.0
    %1182 = vmatpush1.msra.mxu0 0.0
    %1183 = vmatprep.subr.mxu0 0.0
    %1184 = vmatpush1.msra.mxu0 0.0
    %1185 = vmatprep.subr.mxu0 0.0
    %1186 = vmatpush1.msra.mxu0 0.0
    %1187 = vmatprep.subr.mxu0 0.0
    %1188 = vmatpush1.msra.mxu0 0.0
    %1189 = vmatprep.subr.mxu0 0.0
    %1190 = vmatpush1.msra.mxu0 0.0
    %1191 = vmatprep.subr.mxu0 0.0
    %1192 = vmatpush1.msra.mxu0 0.0
    %1193 = vmatprep.subr.mxu0 0.0
    %1194 = vmatpush1.msra.mxu0 0.0
    %1195 = vmatprep.subr.mxu0 0.0
    %1196 = vmatpush1.msra.mxu0 0.0
    %1197 = vmatprep.subr.mxu0 0.0
    %1198 = vmatpush1.msra.mxu0 0.0
    %1199 = vmatprep.subr.mxu0 0.0
    %1200 = vmatpush1.msra.mxu0 0.0
    %1201 = vmatprep.mubr.f32.mxu0 0.0
    %1202 = vmatmul.mubr.f32.gmra.mrb[0].mxu0 %v1135
    %v1203 = vpop.f32.mrb[0].mxu0
    %v1204 = vadd.f32 0.0, %v1203
    %v1205 = vpop.f32.mrb[0].mxu0
    %1206 = vdwg.mxu0
    %1208 = vrot.lane.b32.xlu0 %v1204, 24
    %v1209 = vpop.permute.xlu0 %1208
    %vm1211 = vcmask 261312
    %1212 = vst.msk [vmem:[#allocation2] sm:$0xff] %vm1211, %v1209
    %1214 = vrot.lane.b32.xlu0 %v527, 96
    %v1215 = vpop.permute.xlu0 %1214
    %v1216 = vsel %vm533, %v527, 0
    %v1218 = vsel %vm533, %v1215, 0
    %1220 = vmatprep.subr.mxu0 0.0
    %1221 = vmatpush1.xpose.msra.mxu0 %v1218
    %1222 = vmatprep.subr.mxu0 0.0
    %1223 = vmatpush1.xpose.msra.mxu0 0.0
    %1224 = vmatprep.subr.mxu0 0.0
    %1225 = vmatpush1.xpose.msra.mxu0 0.0
    %1226 = vmatprep.subr.mxu0 0.0
    %1227 = vmatpush1.xpose.msra.mxu0 0.0
    %1228 = vmatprep.subr.mxu0 0.0
    %1229 = vmatpush1.xpose.msra.mxu0 0.0
    %1230 = vmatprep.subr.mxu0 0.0
    %1231 = vmatpush1.xpose.msra.mxu0 0.0
    %1232 = vmatprep.subr.mxu0 0.0
    %1233 = vmatpush1.xpose.msra.mxu0 0.0
    %1234 = vmatprep.subr.mxu0 0.0
    %1235 = vmatpush1.xpose.msra.mxu0 0.0
    %1236 = vmatprep.subr.mxu0 0.0
    %1237 = vmatpush1.xpose.msra.mxu0 0.0
    %1238 = vmatprep.subr.mxu0 0.0
    %1239 = vmatpush1.xpose.msra.mxu0 0.0
    %1240 = vmatprep.subr.mxu0 0.0
    %1241 = vmatpush1.xpose.msra.mxu0 0.0
    %1242 = vmatprep.subr.mxu0 0.0
    %1243 = vmatpush1.xpose.msra.mxu0 0.0
    %1244 = vmatprep.subr.mxu0 0.0
    %1245 = vmatpush1.xpose.msra.mxu0 0.0
    %1246 = vmatprep.subr.mxu0 0.0
    %1247 = vmatpush1.xpose.msra.mxu0 0.0
    %1248 = vmatprep.subr.mxu0 0.0
    %1249 = vmatpush1.xpose.msra.mxu0 0.0
    %1250 = vmatprep.subr.mxu0 0.0
    %1251 = vmatpush1.xpose.msra.mxu0 0.0
    %1252 = vmatprep.subr.mxu0 0.0
    %1253 = vmatpush1.xpose.msra.mxu0 0.0
    %1254 = vmatprep.subr.mxu0 0.0
    %1255 = vmatpush1.xpose.msra.mxu0 0.0
    %1256 = vmatprep.subr.mxu0 0.0
    %1257 = vmatpush1.xpose.msra.mxu0 0.0
    %1258 = vmatprep.subr.mxu0 0.0
    %1259 = vmatpush1.xpose.msra.mxu0 0.0
    %1260 = vmatprep.subr.mxu0 0.0
    %1261 = vmatpush1.xpose.msra.mxu0 0.0
    %1262 = vmatprep.subr.mxu0 0.0
    %1263 = vmatpush1.xpose.msra.mxu0 0.0
    %1264 = vmatprep.subr.mxu0 0.0
    %1265 = vmatpush1.xpose.msra.mxu0 0.0
    %1266 = vmatprep.subr.mxu0 0.0
    %1267 = vmatpush1.xpose.msra.mxu0 0.0
    %1268 = vmatprep.subr.mxu0 0.0
    %1269 = vmatpush1.xpose.msra.mxu0 0.0
    %1270 = vmatprep.subr.mxu0 0.0
    %1271 = vmatpush1.xpose.msra.mxu0 0.0
    %1272 = vmatprep.subr.mxu0 0.0
    %1273 = vmatpush1.xpose.msra.mxu0 0.0
    %1274 = vmatprep.subr.mxu0 0.0
    %1275 = vmatpush1.xpose.msra.mxu0 0.0
    %1276 = vmatprep.subr.mxu0 0.0
    %1277 = vmatpush1.xpose.msra.mxu0 0.0
    %1278 = vmatprep.subr.mxu0 0.0
    %1279 = vmatpush1.xpose.msra.mxu0 0.0
    %1280 = vmatprep.subr.mxu0 0.0
    %1281 = vmatpush1.xpose.msra.mxu0 0.0
    %1282 = vmatprep.subr.mxu0 0.0
    %1283 = vmatpush1.xpose.msra.mxu0 0.0
    %1284 = vmatprep.mubr.f32.mxu0 0.0
    %1285 = vmatmul.mubr.f32.gmra.mrb[0].mxu0 %v1216
    %v1286 = vpop.f32.mrb[0].mxu0
    %v1287 = vadd.f32 0.0, %v1286
    %v1288 = vpop.f32.mrb[0].mxu0
    %1289 = vdwg.mxu0
    %v1290 = vmul.f32 %v1287, 0.35355338
    %v1291 = vsel %vm533, %v1290, -inf
    %1292 = vmax.xlane.f32.xlu0 %v1291
    %v1293 = vpop.xlane.xlu0 %1292
    %v1294 = vsub.f32 %v1290, %v1293
    %v1295 = vmul.f32 %v1294, 1.442695
    %v1296 = vpow.pop %v1295
    %v1297 = vsel %vm533, %v1296, 0.0
    %1298 = vadd.xlane.f32.xlu0 %v1297
    %v1299 = vpop.xlane.xlu0 %1298
    %v1300 = vrcp.pop %v1299
    %v1301 = vmul.f32 %v1296, %v1300
    %1302 = vrot.lane.b32.xlu0 %v527, 64
    %v1303 = vpop.permute.xlu0 %1302
    %v1306 = vsel %vm533, %v1301, 0
    %1308 = vmatprep.subr.mxu0 0.0
    %1309 = vmatpush1.msra.mxu0 %v1303
    %1310 = vmatprep.subr.mxu0 0.0
    %1311 = vmatpush1.msra.mxu0 0.0
    %1312 = vmatprep.subr.mxu0 0.0
    %1313 = vmatpush1.msra.mxu0 0.0
    %1314 = vmatprep.subr.mxu0 0.0
    %1315 = vmatpush1.msra.mxu0 0.0
    %1316 = vmatprep.subr.mxu0 0.0
    %1317 = vmatpush1.msra.mxu0 0.0
    %1318 = vmatprep.subr.mxu0 0.0
    %1319 = vmatpush1.msra.mxu0 0.0
    %1320 = vmatprep.subr.mxu0 0.0
    %1321 = vmatpush1.msra.mxu0 0.0
    %1322 = vmatprep.subr.mxu0 0.0
    %1323 = vmatpush1.msra.mxu0 0.0
    %1324 = vmatprep.subr.mxu0 0.0
    %1325 = vmatpush1.msra.mxu0 0.0
    %1326 = vmatprep.subr.mxu0 0.0
    %1327 = vmatpush1.msra.mxu0 0.0
    %1328 = vmatprep.subr.mxu0 0.0
    %1329 = vmatpush1.msra.mxu0 0.0
    %1330 = vmatprep.subr.mxu0 0.0
    %1331 = vmatpush1.msra.mxu0 0.0
    %1332 = vmatprep.subr.mxu0 0.0
    %1333 = vmatpush1.msra.mxu0 0.0
    %1334 = vmatprep.subr.mxu0 0.0
    %1335 = vmatpush1.msra.mxu0 0.0
    %1336 = vmatprep.subr.mxu0 0.0
    %1337 = vmatpush1.msra.mxu0 0.0
    %1338 = vmatprep.subr.mxu0 0.0
    %1339 = vmatpush1.msra.mxu0 0.0
    %1340 = vmatprep.subr.mxu0 0.0
    %1341 = vmatpush1.msra.mxu0 0.0
    %1342 = vmatprep.subr.mxu0 0.0
    %1343 = vmatpush1.msra.mxu0 0.0
    %1344 = vmatprep.subr.mxu0 0.0
    %1345 = vmatpush1.msra.mxu0 0.0
    %1346 = vmatprep.subr.mxu0 0.0
    %1347 = vmatpush1.msra.mxu0 0.0
    %1348 = vmatprep.subr.mxu0 0.0
    %1349 = vmatpush1.msra.mxu0 0.0
    %1350 = vmatprep.subr.mxu0 0.0
    %1351 = vmatpush1.msra.mxu0 0.0
    %1352 = vmatprep.subr.mxu0 0.0
    %1353 = vmatpush1.msra.mxu0 0.0
    %1354 = vmatprep.subr.mxu0 0.0
    %1355 = vmatpush1.msra.mxu0 0.0
    %1356 = vmatprep.subr.mxu0 0.0
    %1357 = vmatpush1.msra.mxu0 0.0
    %1358 = vmatprep.subr.mxu0 0.0
    %1359 = vmatpush1.msra.mxu0 0.0
    %1360 = vmatprep.subr.mxu0 0.0
    %1361 = vmatpush1.msra.mxu0 0.0
    %1362 = vmatprep.subr.mxu0 0.0
    %1363 = vmatpush1.msra.mxu0 0.0
    %1364 = vmatprep.subr.mxu0 0.0
    %1365 = vmatpush1.msra.mxu0 0.0
    %1366 = vmatprep.subr.mxu0 0.0
    %1367 = vmatpush1.msra.mxu0 0.0
    %1368 = vmatprep.subr.mxu0 0.0
    %1369 = vmatpush1.msra.mxu0 0.0
    %1370 = vmatprep.subr.mxu0 0.0
    %1371 = vmatpush1.msra.mxu0 0.0
    %1372 = vmatprep.mubr.f32.mxu0 0.0
    %1373 = vmatmul.mubr.f32.gmra.mrb[0].mxu0 %v1306
    %v1374 = vpop.f32.mrb[0].mxu0
    %v1375 = vadd.f32 0.0, %v1374
    %v1376 = vpop.f32.mrb[0].mxu0
    %1377 = vdwg.mxu0
    %1378 = vst.msk [vmem:[#allocation2 + $0x8] sm:$0xff] %vm533, %v1375
    %1379 = vrot.lane.b32.xlu0 %v527, 120
    %v1380 = vpop.permute.xlu0 %1379
    %1381 = vrot.lane.b32.xlu0 %v527, 88
    %v1382 = vpop.permute.xlu0 %1381
    %v1383 = vsel %vm533, %v1380, 0
    %v1385 = vsel %vm533, %v1382, 0
    %1387 = vmatprep.subr.mxu0 0.0
    %1388 = vmatpush1.xpose.msra.mxu0 %v1385
    %1389 = vmatprep.subr.mxu0 0.0
    %1390 = vmatpush1.xpose.msra.mxu0 0.0
    %1391 = vmatprep.subr.mxu0 0.0
    %1392 = vmatpush1.xpose.msra.mxu0 0.0
    %1393 = vmatprep.subr.mxu0 0.0
    %1394 = vmatpush1.xpose.msra.mxu0 0.0
    %1395 = vmatprep.subr.mxu0 0.0
    %1396 = vmatpush1.xpose.msra.mxu0 0.0
    %1397 = vmatprep.subr.mxu0 0.0
    %1398 = vmatpush1.xpose.msra.mxu0 0.0
    %1399 = vmatprep.subr.mxu0 0.0
    %1400 = vmatpush1.xpose.msra.mxu0 0.0
    %1401 = vmatprep.subr.mxu0 0.0
    %1402 = vmatpush1.xpose.msra.mxu0 0.0
    %1403 = vmatprep.subr.mxu0 0.0
    %1404 = vmatpush1.xpose.msra.mxu0 0.0
    %1405 = vmatprep.subr.mxu0 0.0
    %1406 = vmatpush1.xpose.msra.mxu0 0.0
    %1407 = vmatprep.subr.mxu0 0.0
    %1408 = vmatpush1.xpose.msra.mxu0 0.0
    %1409 = vmatprep.subr.mxu0 0.0
    %1410 = vmatpush1.xpose.msra.mxu0 0.0
    %1411 = vmatprep.subr.mxu0 0.0
    %1412 = vmatpush1.xpose.msra.mxu0 0.0
    %1413 = vmatprep.subr.mxu0 0.0
    %1414 = vmatpush1.xpose.msra.mxu0 0.0
    %1415 = vmatprep.subr.mxu0 0.0
    %1416 = vmatpush1.xpose.msra.mxu0 0.0
    %1417 = vmatprep.subr.mxu0 0.0
    %1418 = vmatpush1.xpose.msra.mxu0 0.0
    %1419 = vmatprep.subr.mxu0 0.0
    %1420 = vmatpush1.xpose.msra.mxu0 0.0
    %1421 = vmatprep.subr.mxu0 0.0
    %1422 = vmatpush1.xpose.msra.mxu0 0.0
    %1423 = vmatprep.subr.mxu0 0.0
    %1424 = vmatpush1.xpose.msra.mxu0 0.0
    %1425 = vmatprep.subr.mxu0 0.0
    %1426 = vmatpush1.xpose.msra.mxu0 0.0
    %1427 = vmatprep.subr.mxu0 0.0
    %1428 = vmatpush1.xpose.msra.mxu0 0.0
    %1429 = vmatprep.subr.mxu0 0.0
    %1430 = vmatpush1.xpose.msra.mxu0 0.0
    %1431 = vmatprep.subr.mxu0 0.0
    %1432 = vmatpush1.xpose.msra.mxu0 0.0
    %1433 = vmatprep.subr.mxu0 0.0
    %1434 = vmatpush1.xpose.msra.mxu0 0.0
    %1435 = vmatprep.subr.mxu0 0.0
    %1436 = vmatpush1.xpose.msra.mxu0 0.0
    %1437 = vmatprep.subr.mxu0 0.0
    %1438 = vmatpush1.xpose.msra.mxu0 0.0
    %1439 = vmatprep.subr.mxu0 0.0
    %1440 = vmatpush1.xpose.msra.mxu0 0.0
    %1441 = vmatprep.subr.mxu0 0.0
    %1442 = vmatpush1.xpose.msra.mxu0 0.0
    %1443 = vmatprep.subr.mxu0 0.0
    %1444 = vmatpush1.xpose.msra.mxu0 0.0
    %1445 = vmatprep.subr.mxu0 0.0
    %1446 = vmatpush1.xpose.msra.mxu0 0.0
    %1447 = vmatprep.subr.mxu0 0.0
    %1448 = vmatpush1.xpose.msra.mxu0 0.0
    %1449 = vmatprep.subr.mxu0 0.0
    %1450 = vmatpush1.xpose.msra.mxu0 0.0
    %1451 = vmatprep.mubr.f32.mxu0 0.0
    %1452 = vmatmul.mubr.f32.gmra.mrb[0].mxu0 %v1383
    %v1453 = vpop.f32.mrb[0].mxu0
    %v1454 = vadd.f32 0.0, %v1453
    %v1455 = vpop.f32.mrb[0].mxu0
    %1456 = vdwg.mxu0
    %v1457 = vmul.f32 %v1454, 0.35355338
    %v1458 = vsel %vm533, %v1457, -inf
    %1459 = vmax.xlane.f32.xlu0 %v1458
    %v1460 = vpop.xlane.xlu0 %1459
    %v1461 = vsub.f32 %v1457, %v1460
    %v1462 = vmul.f32 %v1461, 1.442695
    %v1463 = vpow.pop %v1462
    %v1464 = vsel %vm533, %v1463, 0.0
    %1465 = vadd.xlane.f32.xlu0 %v1464
    %v1466 = vpop.xlane.xlu0 %1465
    %v1467 = vrcp.pop %v1466
    %v1468 = vmul.f32 %v1463, %v1467
    %1469 = vrot.lane.b32.xlu0 %v527, 56
    %v1470 = vpop.permute.xlu0 %1469
    %v1473 = vsel %vm533, %v1468, 0
    %1475 = vmatprep.subr.mxu0 0.0
    %1476 = vmatpush1.msra.mxu0 %v1470
    %1477 = vmatprep.subr.mxu0 0.0
    %1478 = vmatpush1.msra.mxu0 0.0
    %1479 = vmatprep.subr.mxu0 0.0
    %1480 = vmatpush1.msra.mxu0 0.0
    %1481 = vmatprep.subr.mxu0 0.0
    %1482 = vmatpush1.msra.mxu0 0.0
    %1483 = vmatprep.subr.mxu0 0.0
    %1484 = vmatpush1.msra.mxu0 0.0
    %1485 = vmatprep.subr.mxu0 0.0
    %1486 = vmatpush1.msra.mxu0 0.0
    %1487 = vmatprep.subr.mxu0 0.0
    %1488 = vmatpush1.msra.mxu0 0.0
    %1489 = vmatprep.subr.mxu0 0.0
    %1490 = vmatpush1.msra.mxu0 0.0
    %1491 = vmatprep.subr.mxu0 0.0
    %1492 = vmatpush1.msra.mxu0 0.0
    %1493 = vmatprep.subr.mxu0 0.0
    %1494 = vmatpush1.msra.mxu0 0.0
    %1495 = vmatprep.subr.mxu0 0.0
    %1496 = vmatpush1.msra.mxu0 0.0
    %1497 = vmatprep.subr.mxu0 0.0
    %1498 = vmatpush1.msra.mxu0 0.0
    %1499 = vmatprep.subr.mxu0 0.0
    %1500 = vmatpush1.msra.mxu0 0.0
    %1501 = vmatprep.subr.mxu0 0.0
    %1502 = vmatpush1.msra.mxu0 0.0
    %1503 = vmatprep.subr.mxu0 0.0
    %1504 = vmatpush1.msra.mxu0 0.0
    %1505 = vmatprep.subr.mxu0 0.0
    %1506 = vmatpush1.msra.mxu0 0.0
    %1507 = vmatprep.subr.mxu0 0.0
    %1508 = vmatpush1.msra.mxu0 0.0
    %1509 = vmatprep.subr.mxu0 0.0
    %1510 = vmatpush1.msra.mxu0 0.0
    %1511 = vmatprep.subr.mxu0 0.0
    %1512 = vmatpush1.msra.mxu0 0.0
    %1513 = vmatprep.subr.mxu0 0.0
    %1514 = vmatpush1.msra.mxu0 0.0
    %1515 = vmatprep.subr.mxu0 0.0
    %1516 = vmatpush1.msra.mxu0 0.0
    %1517 = vmatprep.subr.mxu0 0.0
    %1518 = vmatpush1.msra.mxu0 0.0
    %1519 = vmatprep.subr.mxu0 0.0
    %1520 = vmatpush1.msra.mxu0 0.0
    %1521 = vmatprep.subr.mxu0 0.0
    %1522 = vmatpush1.msra.mxu0 0.0
    %1523 = vmatprep.subr.mxu0 0.0
    %1524 = vmatpush1.msra.mxu0 0.0
    %1525 = vmatprep.subr.mxu0 0.0
    %1526 = vmatpush1.msra.mxu0 0.0
    %1527 = vmatprep.subr.mxu0 0.0
    %1528 = vmatpush1.msra.mxu0 0.0
    %1529 = vmatprep.subr.mxu0 0.0
    %1530 = vmatpush1.msra.mxu0 0.0
    %1531 = vmatprep.subr.mxu0 0.0
    %1532 = vmatpush1.msra.mxu0 0.0
    %1533 = vmatprep.subr.mxu0 0.0
    %1534 = vmatpush1.msra.mxu0 0.0
    %1535 = vmatprep.subr.mxu0 0.0
    %1536 = vmatpush1.msra.mxu0 0.0
    %1537 = vmatprep.subr.mxu0 0.0
    %1538 = vmatpush1.msra.mxu0 0.0
    %1539 = vmatprep.mubr.f32.mxu0 0.0
    %1540 = vmatmul.mubr.f32.gmra.mrb[0].mxu0 %v1473
    %v1541 = vpop.f32.mrb[0].mxu0
    %v1542 = vadd.f32 0.0, %v1541
    %v1543 = vpop.f32.mrb[0].mxu0
    %1544 = vdwg.mxu0
    %1546 = vrot.lane.b32.xlu0 %v1542, 8
    %v1547 = vpop.permute.xlu0 %1546
    %1549 = vst.msk [vmem:[#allocation2 + $0x8] sm:$0xff] %vm867, %v1547
    %1550 = vrot.lane.b32.xlu0 %v527, 112
    %v1551 = vpop.permute.xlu0 %1550
    %1552 = vrot.lane.b32.xlu0 %v527, 80
    %v1553 = vpop.permute.xlu0 %1552
    %v1554 = vsel %vm533, %v1551, 0
    %v1556 = vsel %vm533, %v1553, 0
    %1558 = vmatprep.subr.mxu0 0.0
    %1559 = vmatpush1.xpose.msra.mxu0 %v1556
    %1560 = vmatprep.subr.mxu0 0.0
    %1561 = vmatpush1.xpose.msra.mxu0 0.0
    %1562 = vmatprep.subr.mxu0 0.0
    %1563 = vmatpush1.xpose.msra.mxu0 0.0
    %1564 = vmatprep.subr.mxu0 0.0
    %1565 = vmatpush1.xpose.msra.mxu0 0.0
    %1566 = vmatprep.subr.mxu0 0.0
    %1567 = vmatpush1.xpose.msra.mxu0 0.0
    %1568 = vmatprep.subr.mxu0 0.0
    %1569 = vmatpush1.xpose.msra.mxu0 0.0
    %1570 = vmatprep.subr.mxu0 0.0
    %1571 = vmatpush1.xpose.msra.mxu0 0.0
    %1572 = vmatprep.subr.mxu0 0.0
    %1573 = vmatpush1.xpose.msra.mxu0 0.0
    %1574 = vmatprep.subr.mxu0 0.0
    %1575 = vmatpush1.xpose.msra.mxu0 0.0
    %1576 = vmatprep.subr.mxu0 0.0
    %1577 = vmatpush1.xpose.msra.mxu0 0.0
    %1578 = vmatprep.subr.mxu0 0.0
    %1579 = vmatpush1.xpose.msra.mxu0 0.0
    %1580 = vmatprep.subr.mxu0 0.0
    %1581 = vmatpush1.xpose.msra.mxu0 0.0
    %1582 = vmatprep.subr.mxu0 0.0
    %1583 = vmatpush1.xpose.msra.mxu0 0.0
    %1584 = vmatprep.subr.mxu0 0.0
    %1585 = vmatpush1.xpose.msra.mxu0 0.0
    %1586 = vmatprep.subr.mxu0 0.0
    %1587 = vmatpush1.xpose.msra.mxu0 0.0
    %1588 = vmatprep.subr.mxu0 0.0
    %1589 = vmatpush1.xpose.msra.mxu0 0.0
    %1590 = vmatprep.subr.mxu0 0.0
    %1591 = vmatpush1.xpose.msra.mxu0 0.0
    %1592 = vmatprep.subr.mxu0 0.0
    %1593 = vmatpush1.xpose.msra.mxu0 0.0
    %1594 = vmatprep.subr.mxu0 0.0
    %1595 = vmatpush1.xpose.msra.mxu0 0.0
    %1596 = vmatprep.subr.mxu0 0.0
    %1597 = vmatpush1.xpose.msra.mxu0 0.0
    %1598 = vmatprep.subr.mxu0 0.0
    %1599 = vmatpush1.xpose.msra.mxu0 0.0
    %1600 = vmatprep.subr.mxu0 0.0
    %1601 = vmatpush1.xpose.msra.mxu0 0.0
    %1602 = vmatprep.subr.mxu0 0.0
    %1603 = vmatpush1.xpose.msra.mxu0 0.0
    %1604 = vmatprep.subr.mxu0 0.0
    %1605 = vmatpush1.xpose.msra.mxu0 0.0
    %1606 = vmatprep.subr.mxu0 0.0
    %1607 = vmatpush1.xpose.msra.mxu0 0.0
    %1608 = vmatprep.subr.mxu0 0.0
    %1609 = vmatpush1.xpose.msra.mxu0 0.0
    %1610 = vmatprep.subr.mxu0 0.0
    %1611 = vmatpush1.xpose.msra.mxu0 0.0
    %1612 = vmatprep.subr.mxu0 0.0
    %1613 = vmatpush1.xpose.msra.mxu0 0.0
    %1614 = vmatprep.subr.mxu0 0.0
    %1615 = vmatpush1.xpose.msra.mxu0 0.0
    %1616 = vmatprep.subr.mxu0 0.0
    %1617 = vmatpush1.xpose.msra.mxu0 0.0
    %1618 = vmatprep.subr.mxu0 0.0
    %1619 = vmatpush1.xpose.msra.mxu0 0.0
    %1620 = vmatprep.subr.mxu0 0.0
    %1621 = vmatpush1.xpose.msra.mxu0 0.0
    %1622 = vmatprep.mubr.f32.mxu0 0.0
    %1623 = vmatmul.mubr.f32.gmra.mrb[0].mxu0 %v1554
    %v1624 = vpop.f32.mrb[0].mxu0
    %v1625 = vadd.f32 0.0, %v1624
    %v1626 = vpop.f32.mrb[0].mxu0
    %1627 = vdwg.mxu0
    %v1628 = vmul.f32 %v1625, 0.35355338
    %v1629 = vsel %vm533, %v1628, -inf
    %1630 = vmax.xlane.f32.xlu0 %v1629
    %v1631 = vpop.xlane.xlu0 %1630
    %v1632 = vsub.f32 %v1628, %v1631
    %v1633 = vmul.f32 %v1632, 1.442695
    %v1634 = vpow.pop %v1633
    %v1635 = vsel %vm533, %v1634, 0.0
    %1636 = vadd.xlane.f32.xlu0 %v1635
    %v1637 = vpop.xlane.xlu0 %1636
    %v1638 = vrcp.pop %v1637
    %v1639 = vmul.f32 %v1634, %v1638
    %1640 = vrot.lane.b32.xlu0 %v527, 48
    %v1641 = vpop.permute.xlu0 %1640
    %v1644 = vsel %vm533, %v1639, 0
    %1646 = vmatprep.subr.mxu0 0.0
    %1647 = vmatpush1.msra.mxu0 %v1641
    %1648 = vmatprep.subr.mxu0 0.0
    %1649 = vmatpush1.msra.mxu0 0.0
    %1650 = vmatprep.subr.mxu0 0.0
    %1651 = vmatpush1.msra.mxu0 0.0
    %1652 = vmatprep.subr.mxu0 0.0
    %1653 = vmatpush1.msra.mxu0 0.0
    %1654 = vmatprep.subr.mxu0 0.0
    %1655 = vmatpush1.msra.mxu0 0.0
    %1656 = vmatprep.subr.mxu0 0.0
    %1657 = vmatpush1.msra.mxu0 0.0
    %1658 = vmatprep.subr.mxu0 0.0
    %1659 = vmatpush1.msra.mxu0 0.0
    %1660 = vmatprep.subr.mxu0 0.0
    %1661 = vmatpush1.msra.mxu0 0.0
    %1662 = vmatprep.subr.mxu0 0.0
    %1663 = vmatpush1.msra.mxu0 0.0
    %1664 = vmatprep.subr.mxu0 0.0
    %1665 = vmatpush1.msra.mxu0 0.0
    %1666 = vmatprep.subr.mxu0 0.0
    %1667 = vmatpush1.msra.mxu0 0.0
    %1668 = vmatprep.subr.mxu0 0.0
    %1669 = vmatpush1.msra.mxu0 0.0
    %1670 = vmatprep.subr.mxu0 0.0
    %1671 = vmatpush1.msra.mxu0 0.0
    %1672 = vmatprep.subr.mxu0 0.0
    %1673 = vmatpush1.msra.mxu0 0.0
    %1674 = vmatprep.subr.mxu0 0.0
    %1675 = vmatpush1.msra.mxu0 0.0
    %1676 = vmatprep.subr.mxu0 0.0
    %1677 = vmatpush1.msra.mxu0 0.0
    %1678 = vmatprep.subr.mxu0 0.0
    %1679 = vmatpush1.msra.mxu0 0.0
    %1680 = vmatprep.subr.mxu0 0.0
    %1681 = vmatpush1.msra.mxu0 0.0
    %1682 = vmatprep.subr.mxu0 0.0
    %1683 = vmatpush1.msra.mxu0 0.0
    %1684 = vmatprep.subr.mxu0 0.0
    %1685 = vmatpush1.msra.mxu0 0.0
    %1686 = vmatprep.subr.mxu0 0.0
    %1687 = vmatpush1.msra.mxu0 0.0
    %1688 = vmatprep.subr.mxu0 0.0
    %1689 = vmatpush1.msra.mxu0 0.0
    %1690 = vmatprep.subr.mxu0 0.0
    %1691 = vmatpush1.msra.mxu0 0.0
    %1692 = vmatprep.subr.mxu0 0.0
    %1693 = vmatpush1.msra.mxu0 0.0
    %1694 = vmatprep.subr.mxu0 0.0
    %1695 = vmatpush1.msra.mxu0 0.0
    %1696 = vmatprep.subr.mxu0 0.0
    %1697 = vmatpush1.msra.mxu0 0.0
    %1698 = vmatprep.subr.mxu0 0.0
    %1699 = vmatpush1.msra.mxu0 0.0
    %1700 = vmatprep.subr.mxu0 0.0
    %1701 = vmatpush1.msra.mxu0 0.0
    %1702 = vmatprep.subr.mxu0 0.0
    %1703 = vmatpush1.msra.mxu0 0.0
    %1704 = vmatprep.subr.mxu0 0.0
    %1705 = vmatpush1.msra.mxu0 0.0
    %1706 = vmatprep.subr.mxu0 0.0
    %1707 = vmatpush1.msra.mxu0 0.0
    %1708 = vmatprep.subr.mxu0 0.0
    %1709 = vmatpush1.msra.mxu0 0.0
    %1710 = vmatprep.mubr.f32.mxu0 0.0
    %1711 = vmatmul.mubr.f32.gmra.mrb[0].mxu0 %v1644
    %v1712 = vpop.f32.mrb[0].mxu0
    %v1713 = vadd.f32 0.0, %v1712
    %v1714 = vpop.f32.mrb[0].mxu0
    %1715 = vdwg.mxu0
    %1717 = vrot.lane.b32.xlu0 %v1713, 16
    %v1718 = vpop.permute.xlu0 %1717
    %1720 = vst.msk [vmem:[#allocation2 + $0x8] sm:$0xff] %vm1039, %v1718
    %1721 = vrot.lane.b32.xlu0 %v527, 104
    %v1722 = vpop.permute.xlu0 %1721
    %1723 = vrot.lane.b32.xlu0 %v527, 72
    %v1724 = vpop.permute.xlu0 %1723
    %v1725 = vsel %vm533, %v1722, 0
    %v1727 = vsel %vm533, %v1724, 0
    %1729 = vmatprep.subr.mxu0 0.0
    %1730 = vmatpush1.xpose.msra.mxu0 %v1727
    %1731 = vmatprep.subr.mxu0 0.0
    %1732 = vmatpush1.xpose.msra.mxu0 0.0
    %1733 = vmatprep.subr.mxu0 0.0
    %1734 = vmatpush1.xpose.msra.mxu0 0.0
    %1735 = vmatprep.subr.mxu0 0.0
    %1736 = vmatpush1.xpose.msra.mxu0 0.0
    %1737 = vmatprep.subr.mxu0 0.0
    %1738 = vmatpush1.xpose.msra.mxu0 0.0
    %1739 = vmatprep.subr.mxu0 0.0
    %1740 = vmatpush1.xpose.msra.mxu0 0.0
    %1741 = vmatprep.subr.mxu0 0.0
    %1742 = vmatpush1.xpose.msra.mxu0 0.0
    %1743 = vmatprep.subr.mxu0 0.0
    %1744 = vmatpush1.xpose.msra.mxu0 0.0
    %1745 = vmatprep.subr.mxu0 0.0
    %1746 = vmatpush1.xpose.msra.mxu0 0.0
    %1747 = vmatprep.subr.mxu0 0.0
    %1748 = vmatpush1.xpose.msra.mxu0 0.0
    %1749 = vmatprep.subr.mxu0 0.0
    %1750 = vmatpush1.xpose.msra.mxu0 0.0
    %1751 = vmatprep.subr.mxu0 0.0
    %1752 = vmatpush1.xpose.msra.mxu0 0.0
    %1753 = vmatprep.subr.mxu0 0.0
    %1754 = vmatpush1.xpose.msra.mxu0 0.0
    %1755 = vmatprep.subr.mxu0 0.0
    %1756 = vmatpush1.xpose.msra.mxu0 0.0
    %1757 = vmatprep.subr.mxu0 0.0
    %1758 = vmatpush1.xpose.msra.mxu0 0.0
    %1759 = vmatprep.subr.mxu0 0.0
    %1760 = vmatpush1.xpose.msra.mxu0 0.0
    %1761 = vmatprep.subr.mxu0 0.0
    %1762 = vmatpush1.xpose.msra.mxu0 0.0
    %1763 = vmatprep.subr.mxu0 0.0
    %1764 = vmatpush1.xpose.msra.mxu0 0.0
    %1765 = vmatprep.subr.mxu0 0.0
    %1766 = vmatpush1.xpose.msra.mxu0 0.0
    %1767 = vmatprep.subr.mxu0 0.0
    %1768 = vmatpush1.xpose.msra.mxu0 0.0
    %1769 = vmatprep.subr.mxu0 0.0
    %1770 = vmatpush1.xpose.msra.mxu0 0.0
    %1771 = vmatprep.subr.mxu0 0.0
    %1772 = vmatpush1.xpose.msra.mxu0 0.0
    %1773 = vmatprep.subr.mxu0 0.0
    %1774 = vmatpush1.xpose.msra.mxu0 0.0
    %1775 = vmatprep.subr.mxu0 0.0
    %1776 = vmatpush1.xpose.msra.mxu0 0.0
    %1777 = vmatprep.subr.mxu0 0.0
    %1778 = vmatpush1.xpose.msra.mxu0 0.0
    %1779 = vmatprep.subr.mxu0 0.0
    %1780 = vmatpush1.xpose.msra.mxu0 0.0
    %1781 = vmatprep.subr.mxu0 0.0
    %1782 = vmatpush1.xpose.msra.mxu0 0.0
    %1783 = vmatprep.subr.mxu0 0.0
    %1784 = vmatpush1.xpose.msra.mxu0 0.0
    %1785 = vmatprep.subr.mxu0 0.0
    %1786 = vmatpush1.xpose.msra.mxu0 0.0
    %1787 = vmatprep.subr.mxu0 0.0
    %1788 = vmatpush1.xpose.msra.mxu0 0.0
    %1789 = vmatprep.subr.mxu0 0.0
    %1790 = vmatpush1.xpose.msra.mxu0 0.0
    %1791 = vmatprep.subr.mxu0 0.0
    %1792 = vmatpush1.xpose.msra.mxu0 0.0
    %1793 = vmatprep.mubr.f32.mxu0 0.0
    %1794 = vmatmul.mubr.f32.gmra.mrb[0].mxu0 %v1725
    %v1795 = vpop.f32.mrb[0].mxu0
    %v1796 = vadd.f32 0.0, %v1795
    %v1797 = vpop.f32.mrb[0].mxu0
    %1798 = vdwg.mxu0
    %v1799 = vmul.f32 %v1796, 0.35355338
    %v1800 = vsel %vm533, %v1799, -inf
    %1801 = vmax.xlane.f32.xlu0 %v1800
    %v1802 = vpop.xlane.xlu0 %1801
    %v1803 = vsub.f32 %v1799, %v1802
    %v1804 = vmul.f32 %v1803, 1.442695
    %v1805 = vpow.pop %v1804
    %v1806 = vsel %vm533, %v1805, 0.0
    %1807 = vadd.xlane.f32.xlu0 %v1806
    %v1808 = vpop.xlane.xlu0 %1807
    %v1809 = vrcp.pop %v1808
    %v1810 = vmul.f32 %v1805, %v1809
    %1811 = vrot.lane.b32.xlu0 %v527, 40
    %v1812 = vpop.permute.xlu0 %1811
    %v1815 = vsel %vm533, %v1810, 0
    %1817 = vmatprep.subr.mxu0 0.0
    %1818 = vmatpush1.msra.mxu0 %v1812
    %1819 = vmatprep.subr.mxu0 0.0
    %1820 = vmatpush1.msra.mxu0 0.0
    %1821 = vmatprep.subr.mxu0 0.0
    %1822 = vmatpush1.msra.mxu0 0.0
    %1823 = vmatprep.subr.mxu0 0.0
    %1824 = vmatpush1.msra.mxu0 0.0
    %1825 = vmatprep.subr.mxu0 0.0
    %1826 = vmatpush1.msra.mxu0 0.0
    %1827 = vmatprep.subr.mxu0 0.0
    %1828 = vmatpush1.msra.mxu0 0.0
    %1829 = vmatprep.subr.mxu0 0.0
    %1830 = vmatpush1.msra.mxu0 0.0
    %1831 = vmatprep.subr.mxu0 0.0
    %1832 = vmatpush1.msra.mxu0 0.0
    %1833 = vmatprep.subr.mxu0 0.0
    %1834 = vmatpush1.msra.mxu0 0.0
    %1835 = vmatprep.subr.mxu0 0.0
    %1836 = vmatpush1.msra.mxu0 0.0
    %1837 = vmatprep.subr.mxu0 0.0
    %1838 = vmatpush1.msra.mxu0 0.0
    %1839 = vmatprep.subr.mxu0 0.0
    %1840 = vmatpush1.msra.mxu0 0.0
    %1841 = vmatprep.subr.mxu0 0.0
    %1842 = vmatpush1.msra.mxu0 0.0
    %1843 = vmatprep.subr.mxu0 0.0
    %1844 = vmatpush1.msra.mxu0 0.0
    %1845 = vmatprep.subr.mxu0 0.0
    %1846 = vmatpush1.msra.mxu0 0.0
    %1847 = vmatprep.subr.mxu0 0.0
    %1848 = vmatpush1.msra.mxu0 0.0
    %1849 = vmatprep.subr.mxu0 0.0
    %1850 = vmatpush1.msra.mxu0 0.0
    %1851 = vmatprep.subr.mxu0 0.0
    %1852 = vmatpush1.msra.mxu0 0.0
    %1853 = vmatprep.subr.mxu0 0.0
    %1854 = vmatpush1.msra.mxu0 0.0
    %1855 = vmatprep.subr.mxu0 0.0
    %1856 = vmatpush1.msra.mxu0 0.0
    %1857 = vmatprep.subr.mxu0 0.0
    %1858 = vmatpush1.msra.mxu0 0.0
    %1859 = vmatprep.subr.mxu0 0.0
    %1860 = vmatpush1.msra.mxu0 0.0
    %1861 = vmatprep.subr.mxu0 0.0
    %1862 = vmatpush1.msra.mxu0 0.0
    %1863 = vmatprep.subr.mxu0 0.0
    %1864 = vmatpush1.msra.mxu0 0.0
    %1865 = vmatprep.subr.mxu0 0.0
    %1866 = vmatpush1.msra.mxu0 0.0
    %1867 = vmatprep.subr.mxu0 0.0
    %1868 = vmatpush1.msra.mxu0 0.0
    %1869 = vmatprep.subr.mxu0 0.0
    %1870 = vmatpush1.msra.mxu0 0.0
    %1871 = vmatprep.subr.mxu0 0.0
    %1872 = vmatpush1.msra.mxu0 0.0
    %1873 = vmatprep.subr.mxu0 0.0
    %1874 = vmatpush1.msra.mxu0 0.0
    %1875 = vmatprep.subr.mxu0 0.0
    %1876 = vmatpush1.msra.mxu0 0.0
    %1877 = vmatprep.subr.mxu0 0.0
    %1878 = vmatpush1.msra.mxu0 0.0
    %1879 = vmatprep.subr.mxu0 0.0
    %1880 = vmatpush1.msra.mxu0 0.0
    %1881 = vmatprep.mubr.f32.mxu0 0.0
    %1882 = vmatmul.mubr.f32.gmra.mrb[0].mxu0 %v1815
    %v1883 = vpop.f32.mrb[0].mxu0
    %v1884 = vadd.f32 0.0, %v1883
    %v1885 = vpop.f32.mrb[0].mxu0
    %1886 = vdwg.mxu0
    %1888 = vrot.lane.b32.xlu0 %v1884, 24
    %v1889 = vpop.permute.xlu0 %1888
    %1891 = vst.msk [vmem:[#allocation2 + $0x8] sm:$0xff] %vm1211, %v1889
    %v1892 = vld [vmem:[#allocation2] sm:$0xff]
    %v1893 = vld [vmem:[#allocation2 + $0x8] sm:$0xff]
    %v1894 = vld [vmem:[#allocation11] sm:$0xff]
    %v1895 = vld [vmem:[#allocation11 + $0x8] sm:$0xff]
    %v1896 = vld [vmem:[#allocation11 + $0x10] sm:$0xff]
    %v1897 = vld [vmem:[#allocation11 + $0x18] sm:$0xff]
    %v1898 = vld [vmem:[#allocation12] sm:$0x1]
    %v1900 = vlaneseq
    %v1901 = vshrl.u32 %v1900, 7
    %v1902 = vsub.s32 0, %v1901
    %v1903 = vrot.slane %v1898, %v1902
    %v1906 = vsel %vm352, %v1892, 0
    %v1909 = vsel %vm352, %v1893, 0
    %1911 = vmatprep.subr.mxu0 0.0
    %1912 = vmatpush1.msra.mxu0 %v1894
    %1913 = vmatprep.subr.mxu0 0.0
    %1914 = vmatpush1.msra.mxu0 %v1895
    %1915 = vmatprep.subr.mxu0 0.0
    %1916 = vmatpush1.msra.mxu0 %v1896
    %1917 = vmatprep.subr.mxu0 0.0
    %1918 = vmatpush1.msra.mxu0 %v1897
    %1919 = vmatprep.subr.mxu0 0.0
    %1920 = vmatpush1.msra.mxu0 0.0
    %1921 = vmatprep.subr.mxu0 0.0
    %1922 = vmatpush1.msra.mxu0 0.0
    %1923 = vmatprep.subr.mxu0 0.0
    %1924 = vmatpush1.msra.mxu0 0.0
    %1925 = vmatprep.subr.mxu0 0.0
    %1926 = vmatpush1.msra.mxu0 0.0
    %1927 = vmatprep.subr.mxu0 0.0
    %1928 = vmatpush1.msra.mxu0 0.0
    %1929 = vmatprep.subr.mxu0 0.0
    %1930 = vmatpush1.msra.mxu0 0.0
    %1931 = vmatprep.subr.mxu0 0.0
    %1932 = vmatpush1.msra.mxu0 0.0
    %1933 = vmatprep.subr.mxu0 0.0
    %1934 = vmatpush1.msra.mxu0 0.0
    %1935 = vmatprep.subr.mxu0 0.0
    %1936 = vmatpush1.msra.mxu0 0.0
    %1937 = vmatprep.subr.mxu0 0.0
    %1938 = vmatpush1.msra.mxu0 0.0
    %1939 = vmatprep.subr.mxu0 0.0
    %1940 = vmatpush1.msra.mxu0 0.0
    %1941 = vmatprep.subr.mxu0 0.0
    %1942 = vmatpush1.msra.mxu0 0.0
    %1943 = vmatprep.subr.mxu0 0.0
    %1944 = vmatpush1.msra.mxu0 0.0
    %1945 = vmatprep.subr.mxu0 0.0
    %1946 = vmatpush1.msra.mxu0 0.0
    %1947 = vmatprep.subr.mxu0 0.0
    %1948 = vmatpush1.msra.mxu0 0.0
    %1949 = vmatprep.subr.mxu0 0.0
    %1950 = vmatpush1.msra.mxu0 0.0
    %1951 = vmatprep.subr.mxu0 0.0
    %1952 = vmatpush1.msra.mxu0 0.0
    %1953 = vmatprep.subr.mxu0 0.0
    %1954 = vmatpush1.msra.mxu0 0.0
    %1955 = vmatprep.subr.mxu0 0.0
    %1956 = vmatpush1.msra.mxu0 0.0
    %1957 = vmatprep.subr.mxu0 0.0
    %1958 = vmatpush1.msra.mxu0 0.0
    %1959 = vmatprep.subr.mxu0 0.0
    %1960 = vmatpush1.msra.mxu0 0.0
    %1961 = vmatprep.subr.mxu0 0.0
    %1962 = vmatpush1.msra.mxu0 0.0
    %1963 = vmatprep.subr.mxu0 0.0
    %1964 = vmatpush1.msra.mxu0 0.0
    %1965 = vmatprep.subr.mxu0 0.0
    %1966 = vmatpush1.msra.mxu0 0.0
    %1967 = vmatprep.subr.mxu0 0.0
    %1968 = vmatpush1.msra.mxu0 0.0
    %1969 = vmatprep.subr.mxu0 0.0
    %1970 = vmatpush1.msra.mxu0 0.0
    %1971 = vmatprep.subr.mxu0 0.0
    %1972 = vmatpush1.msra.mxu0 0.0
    %1973 = vmatprep.subr.mxu0 0.0
    %1974 = vmatpush1.msra.mxu0 0.0
    %1975 = vmatprep.mubr.f32.mxu0 0.0
    %1976 = vmatmul.mubr.f32.gmra.mrb[0].mxu0 %v1906
    %v1977 = vpop.f32.mrb[0].mxu0
    %v1978 = vadd.f32 %v1903, %v1977
    %v1979 = vpop.f32.mrb[0].mxu0
    %1980 = vmatprep.mubr.f32.mxu0 0.0
    %1981 = vmatmul.mubr.f32.gmra.mrb[0].mxu0 %v1909
    %v1982 = vpop.f32.mrb[0].mxu0
    %v1983 = vadd.f32 %v1903, %v1982
    %v1984 = vpop.f32.mrb[0].mxu0
    %1985 = vdwg.mxu0
    %v1986 = vadd.f32 %v436, %v1978
    %v1987 = vadd.f32 %v437, %v1983
    %v1988 = vld [vmem:[#allocation18] sm:$0x1]
    %v1989 = vld [vmem:[#allocation20] sm:$0x1]
    %v1990 = vsel %vm352, %v1986, 0.0
    %1991 = vadd.xlane.f32.xlu0 %v1990
    %v1992 = vpop.xlane.xlu0 %1991
    %v1993 = vsel %vm352, %v1987, 0.0
    %1994 = vadd.xlane.f32.xlu0 %v1993
    %v1995 = vpop.xlane.xlu0 %1994
    %v1996 = vrcp.pop 32.0
    %v1997 = vmul.f32 %v1992, %v1996
    %v1998 = vmul.f32 %v1995, %v1996
    %v1999 = vsub.f32 %v1986, %v1997
    %v2000 = vsub.f32 %v1987, %v1998
    %v2001 = vmul.f32 %v1999, %v1999
    %v2002 = vmul.f32 %v2000, %v2000
    %v2003 = vsel %vm352, %v2001, 0.0
    %2004 = vadd.xlane.f32.xlu0 %v2003
    %v2005 = vpop.xlane.xlu0 %2004
    %v2006 = vsel %vm352, %v2002, 0.0
    %2007 = vadd.xlane.f32.xlu0 %v2006
    %v2008 = vpop.xlane.xlu0 %2007
    %v2009 = vmul.f32 %v2005, %v1996
    %v2010 = vmul.f32 %v2008, %v1996
    %v2011 = vadd.f32 %v2009, 1e-05
    %v2012 = vadd.f32 %v2010, 1e-05
    %v2013 = vrsqrt.pop %v2011
    %v2014 = vrsqrt.pop %v2012
    %v2015 = vmul.f32 %v1999, %v2013
    %v2016 = vmul.f32 %v2000, %v2014
    %v2018 = vlaneseq
    %v2019 = vshrl.u32 %v2018, 7
    %v2020 = vsub.s32 0, %v2019
    %v2021 = vrot.slane %v1988, %v2020
    %v2023 = vmul.f32 %v2015, %v2021
    %v2024 = vmul.f32 %v2016, %v2021
    %v2026 = vlaneseq
    %v2027 = vshrl.u32 %v2026, 7
    %v2028 = vsub.s32 0, %v2027
    %v2029 = vrot.slane %v1989, %v2028
    %v2031 = vadd.f32 %v2023, %v2029
    %v2032 = vadd.f32 %v2024, %v2029
    %v2033 = vld [vmem:[#allocation14] sm:$0xff]
    %v2034 = vld [vmem:[#allocation14 + $0x8] sm:$0xff]
    %v2035 = vld [vmem:[#allocation14 + $0x10] sm:$0xff]
    %v2036 = vld [vmem:[#allocation14 + $0x18] sm:$0xff]
    %v2037 = vld [vmem:[#allocation15] sm:$0x1]
    %v2039 = vlaneseq
    %v2040 = vshrl.u32 %v2039, 7
    %v2041 = vsub.s32 0, %v2040
    %v2042 = vrot.slane %v2037, %v2041
    %v2045 = vsel %vm352, %v2031, 0
    %v2048 = vsel %vm352, %v2032, 0
    %2050 = vmatprep.subr.mxu0 0.0
    %2051 = vmatpush1.msra.mxu0 %v2033
    %2052 = vmatprep.subr.mxu0 0.0
    %2053 = vmatpush1.msra.mxu0 %v2034
    %2054 = vmatprep.subr.mxu0 0.0
    %2055 = vmatpush1.msra.mxu0 %v2035
    %2056 = vmatprep.subr.mxu0 0.0
    %2057 = vmatpush1.msra.mxu0 %v2036
    %2058 = vmatprep.subr.mxu0 0.0
    %2059 = vmatpush1.msra.mxu0 0.0
    %2060 = vmatprep.subr.mxu0 0.0
    %2061 = vmatpush1.msra.mxu0 0.0
    %2062 = vmatprep.subr.mxu0 0.0
    %2063 = vmatpush1.msra.mxu0 0.0
    %2064 = vmatprep.subr.mxu0 0.0
    %2065 = vmatpush1.msra.mxu0 0.0
    %2066 = vmatprep.subr.mxu0 0.0
    %2067 = vmatpush1.msra.mxu0 0.0
    %2068 = vmatprep.subr.mxu0 0.0
    %2069 = vmatpush1.msra.mxu0 0.0
    %2070 = vmatprep.subr.mxu0 0.0
    %2071 = vmatpush1.msra.mxu0 0.0
    %2072 = vmatprep.subr.mxu0 0.0
    %2073 = vmatpush1.msra.mxu0 0.0
    %2074 = vmatprep.subr.mxu0 0.0
    %2075 = vmatpush1.msra.mxu0 0.0
    %2076 = vmatprep.subr.mxu0 0.0
    %2077 = vmatpush1.msra.mxu0 0.0
    %2078 = vmatprep.subr.mxu0 0.0
    %2079 = vmatpush1.msra.mxu0 0.0
    %2080 = vmatprep.subr.mxu0 0.0
    %2081 = vmatpush1.msra.mxu0 0.0
    %2082 = vmatprep.subr.mxu0 0.0
    %2083 = vmatpush1.msra.mxu0 0.0
    %2084 = vmatprep.subr.mxu0 0.0
    %2085 = vmatpush1.msra.mxu0 0.0
    %2086 = vmatprep.subr.mxu0 0.0
    %2087 = vmatpush1.msra.mxu0 0.0
    %2088 = vmatprep.subr.mxu0 0.0
    %2089 = vmatpush1.msra.mxu0 0.0
    %2090 = vmatprep.subr.mxu0 0.0
    %2091 = vmatpush1.msra.mxu0 0.0
    %2092 = vmatprep.subr.mxu0 0.0
    %2093 = vmatpush1.msra.mxu0 0.0
    %2094 = vmatprep.subr.mxu0 0.0
    %2095 = vmatpush1.msra.mxu0 0.0
    %2096 = vmatprep.subr.mxu0 0.0
    %2097 = vmatpush1.msra.mxu0 0.0
    %2098 = vmatprep.subr.mxu0 0.0
    %2099 = vmatpush1.msra.mxu0 0.0
    %2100 = vmatprep.subr.mxu0 0.0
    %2101 = vmatpush1.msra.mxu0 0.0
    %2102 = vmatprep.subr.mxu0 0.0
    %2103 = vmatpush1.msra.mxu0 0.0
    %2104 = vmatprep.subr.mxu0 0.0
    %2105 = vmatpush1.msra.mxu0 0.0
    %2106 = vmatprep.subr.mxu0 0.0
    %2107 = vmatpush1.msra.mxu0 0.0
    %2108 = vmatprep.subr.mxu0 0.0
    %2109 = vmatpush1.msra.mxu0 0.0
    %2110 = vmatprep.subr.mxu0 0.0
    %2111 = vmatpush1.msra.mxu0 0.0
    %2112 = vmatprep.subr.mxu0 0.0
    %2113 = vmatpush1.msra.mxu0 0.0
    %2114 = vmatprep.mubr.f32.mxu0 0.0
    %2115 = vmatmul.mubr.f32.gmra.mrb[0].mxu0 %v2045
    %v2116 = vpop.f32.mrb[0].mxu0
    %v2117 = vadd.f32 %v2042, %v2116
    %v2118 = vpop.f32.mrb[0].mxu0
    %2119 = vmatprep.mubr.f32.mxu0 0.0
    %2120 = vmatmul.mubr.f32.gmra.mrb[0].mxu0 %v2048
    %v2121 = vpop.f32.mrb[0].mxu0
    %v2122 = vadd.f32 %v2042, %v2121
    %v2123 = vpop.f32.mrb[0].mxu0
    %2124 = vdwg.mxu0
    %v2125 = vmax.f32 %v2117, 0.0
    %v2126 = vmax.f32 %v2122, 0.0
    %v2127 = vld [vmem:[%s10] sm:$0xff]
    %v2128 = vld [vmem:[%s10 + $0x8] sm:$0xff]
    %v2129 = vld [vmem:[%s10 + $0x10] sm:$0xff]
    %v2130 = vld [vmem:[%s10 + $0x18] sm:$0xff]
    %v2131 = vld [vmem:[%s10 + $0x20] sm:$0xff]
    %v2132 = vld [vmem:[%s10 + $0x28] sm:$0xff]
    %v2133 = vld [vmem:[%s10 + $0x30] sm:$0xff]
    %v2134 = vld [vmem:[%s10 + $0x38] sm:$0xff]
    %v2135 = vld [vmem:[#allocation17] sm:$0x1]
    %v2137 = vlaneseq
    %v2138 = vshrl.u32 %v2137, 7
    %v2139 = vsub.s32 0, %v2138
    %v2140 = vrot.slane %v2135, %v2139
    %vm2142 = vcmask 523264
    %v2144 = vsel %vm2142, %v2125, 0
    %v2147 = vsel %vm2142, %v2126, 0
    %2149 = vmatprep.subr.mxu0 0.0
    %2150 = vmatpush1.msra.mxu0 %v2127
    %2151 = vmatprep.subr.mxu0 0.0
    %2152 = vmatpush1.msra.mxu0 %v2128
    %2153 = vmatprep.subr.mxu0 0.0
    %2154 = vmatpush1.msra.mxu0 %v2129
    %2155 = vmatprep.subr.mxu0 0.0
    %2156 = vmatpush1.msra.mxu0 %v2130
    %2157 = vmatprep.subr.mxu0 0.0
    %2158 = vmatpush1.msra.mxu0 %v2131
    %2159 = vmatprep.subr.mxu0 0.0
    %2160 = vmatpush1.msra.mxu0 %v2132
    %2161 = vmatprep.subr.mxu0 0.0
    %2162 = vmatpush1.msra.mxu0 %v2133
    %2163 = vmatprep.subr.mxu0 0.0
    %2164 = vmatpush1.msra.mxu0 %v2134
    %2165 = vmatprep.subr.mxu0 0.0
    %2166 = vmatpush1.msra.mxu0 0.0
    %2167 = vmatprep.subr.mxu0 0.0
    %2168 = vmatpush1.msra.mxu0 0.0
    %2169 = vmatprep.subr.mxu0 0.0
    %2170 = vmatpush1.msra.mxu0 0.0
    %2171 = vmatprep.subr.mxu0 0.0
    %2172 = vmatpush1.msra.mxu0 0.0
    %2173 = vmatprep.subr.mxu0 0.0
    %2174 = vmatpush1.msra.mxu0 0.0
    %2175 = vmatprep.subr.mxu0 0.0
    %2176 = vmatpush1.msra.mxu0 0.0
    %2177 = vmatprep.subr.mxu0 0.0
    %2178 = vmatpush1.msra.mxu0 0.0
    %2179 = vmatprep.subr.mxu0 0.0
    %2180 = vmatpush1.msra.mxu0 0.0
    %2181 = vmatprep.subr.mxu0 0.0
    %2182 = vmatpush1.msra.mxu0 0.0
    %2183 = vmatprep.subr.mxu0 0.0
    %2184 = vmatpush1.msra.mxu0 0.0
    %2185 = vmatprep.subr.mxu0 0.0
    %2186 = vmatpush1.msra.mxu0 0.0
    %2187 = vmatprep.subr.mxu0 0.0
    %2188 = vmatpush1.msra.mxu0 0.0
    %2189 = vmatprep.subr.mxu0 0.0
    %2190 = vmatpush1.msra.mxu0 0.0
    %2191 = vmatprep.subr.mxu0 0.0
    %2192 = vmatpush1.msra.mxu0 0.0
    %2193 = vmatprep.subr.mxu0 0.0
    %2194 = vmatpush1.msra.mxu0 0.0
    %2195 = vmatprep.subr.mxu0 0.0
    %2196 = vmatpush1.msra.mxu0 0.0
    %2197 = vmatprep.subr.mxu0 0.0
    %2198 = vmatpush1.msra.mxu0 0.0
    %2199 = vmatprep.subr.mxu0 0.0
    %2200 = vmatpush1.msra.mxu0 0.0
    %2201 = vmatprep.subr.mxu0 0.0
    %2202 = vmatpush1.msra.mxu0 0.0
    %2203 = vmatprep.subr.mxu0 0.0
    %2204 = vmatpush1.msra.mxu0 0.0
    %2205 = vmatprep.subr.mxu0 0.0
    %2206 = vmatpush1.msra.mxu0 0.0
    %2207 = vmatprep.subr.mxu0 0.0
    %2208 = vmatpush1.msra.mxu0 0.0
    %2209 = vmatprep.subr.mxu0 0.0
    %2210 = vmatpush1.msra.mxu0 0.0
    %2211 = vmatprep.subr.mxu0 0.0
    %2212 = vmatpush1.msra.mxu0 0.0
    %2213 = vmatprep.mubr.f32.mxu0 0.0
    %2214 = vmatmul.mubr.f32.gmra.mrb[0].mxu0 %v2144
    %v2215 = vpop.f32.mrb[0].mxu0
    %v2216 = vadd.f32 %v2140, %v2215
    %v2217 = vpop.f32.mrb[0].mxu0
    %2218 = vmatprep.mubr.f32.mxu0 0.0
    %2219 = vmatmul.mubr.f32.gmra.mrb[0].mxu0 %v2147
    %v2220 = vpop.f32.mrb[0].mxu0
    %v2221 = vadd.f32 %v2140, %v2220
    %v2222 = vpop.f32.mrb[0].mxu0
    %2223 = vdwg.mxu0
    %v2224 = vadd.f32 %v2031, %v2216
    %v2225 = vadd.f32 %v2032, %v2221
    %v2226 = vld [vmem:[#allocation21] sm:$0x1]
    %v2227 = vld [vmem:[#allocation23] sm:$0x1]
    %v2228 = vsel %vm352, %v2224, 0.0
    %2229 = vadd.xlane.f32.xlu0 %v2228
    %v2230 = vpop.xlane.xlu0 %2229
    %v2231 = vsel %vm352, %v2225, 0.0
    %2232 = vadd.xlane.f32.xlu0 %v2231
    %v2233 = vpop.xlane.xlu0 %2232
    %v2234 = vmul.f32 %v2230, %v1996
    %v2235 = vmul.f32 %v2233, %v1996
    %v2236 = vsub.f32 %v2224, %v2234
    %v2237 = vsub.f32 %v2225, %v2235
    %v2238 = vmul.f32 %v2236, %v2236
    %v2239 = vmul.f32 %v2237, %v2237
    %v2240 = vsel %vm352, %v2238, 0.0
    %2241 = vadd.xlane.f32.xlu0 %v2240
    %v2242 = vpop.xlane.xlu0 %2241
    %v2243 = vsel %vm352, %v2239, 0.0
    %2244 = vadd.xlane.f32.xlu0 %v2243
    %v2245 = vpop.xlane.xlu0 %2244
    %v2246 = vmul.f32 %v2242, %v1996
    %v2247 = vmul.f32 %v2245, %v1996
    %v2248 = vadd.f32 %v2246, 1e-05
    %v2249 = vadd.f32 %v2247, 1e-05
    %v2250 = vrsqrt.pop %v2248
    %v2251 = vrsqrt.pop %v2249
    %v2252 = vmul.f32 %v2236, %v2250
    %v2253 = vmul.f32 %v2237, %v2251
    %v2255 = vlaneseq
    %v2256 = vshrl.u32 %v2255, 7
    %v2257 = vsub.s32 0, %v2256
    %v2258 = vrot.slane %v2226, %v2257
    %v2260 = vmul.f32 %v2252, %v2258
    %v2261 = vmul.f32 %v2253, %v2258
    %v2263 = vlaneseq
    %v2264 = vshrl.u32 %v2263, 7
    %v2265 = vsub.s32 0, %v2264
    %v2266 = vrot.slane %v2227, %v2265
    %v2268 = vadd.f32 %v2260, %v2266
    %v2269 = vadd.f32 %v2261, %v2266
    %s2270 = scalar_lea.vmem [#allocation8], 32
    %v2271 = vld [vmem:[%s2270] sm:$0xff]
    %v2272 = vld [vmem:[%s2270 + $0x8] sm:$0xff]
    %v2273 = vld [vmem:[%s2270 + $0x10] sm:$0xff]
    %v2274 = vld [vmem:[%s2270 + $0x18] sm:$0xff]
    %s2275 = scalar_lea.vmem [#allocation9], 1
    %v2276 = vld [vmem:[%s2275] sm:$0x1]
    %v2278 = vlaneseq
    %v2279 = vshrl.u32 %v2278, 7
    %v2280 = vsub.s32 0, %v2279
    %v2281 = vrot.slane %v2276, %v2280
    %v2284 = vsel %vm352, %v2268, 0
    %v2287 = vsel %vm352, %v2269, 0
    %2289 = vmatprep.subr.mxu0 0.0
    %2290 = vmatpush1.msra.mxu0 %v2271
    %2291 = vmatprep.subr.mxu0 0.0
    %2292 = vmatpush1.msra.mxu0 %v2272
    %2293 = vmatprep.subr.mxu0 0.0
    %2294 = vmatpush1.msra.mxu0 %v2273
    %2295 = vmatprep.subr.mxu0 0.0
    %2296 = vmatpush1.msra.mxu0 %v2274
    %2297 = vmatprep.subr.mxu0 0.0
    %2298 = vmatpush1.msra.mxu0 0.0
    %2299 = vmatprep.subr.mxu0 0.0
    %2300 = vmatpush1.msra.mxu0 0.0
    %2301 = vmatprep.subr.mxu0 0.0
    %2302 = vmatpush1.msra.mxu0 0.0
    %2303 = vmatprep.subr.mxu0 0.0
    %2304 = vmatpush1.msra.mxu0 0.0
    %2305 = vmatprep.subr.mxu0 0.0
    %2306 = vmatpush1.msra.mxu0 0.0
    %2307 = vmatprep.subr.mxu0 0.0
    %2308 = vmatpush1.msra.mxu0 0.0
    %2309 = vmatprep.subr.mxu0 0.0
    %2310 = vmatpush1.msra.mxu0 0.0
    %2311 = vmatprep.subr.mxu0 0.0
    %2312 = vmatpush1.msra.mxu0 0.0
    %2313 = vmatprep.subr.mxu0 0.0
    %2314 = vmatpush1.msra.mxu0 0.0
    %2315 = vmatprep.subr.mxu0 0.0
    %2316 = vmatpush1.msra.mxu0 0.0
    %2317 = vmatprep.subr.mxu0 0.0
    %2318 = vmatpush1.msra.mxu0 0.0
    %2319 = vmatprep.subr.mxu0 0.0
    %2320 = vmatpush1.msra.mxu0 0.0
    %2321 = vmatprep.subr.mxu0 0.0
    %2322 = vmatpush1.msra.mxu0 0.0
    %2323 = vmatprep.subr.mxu0 0.0
    %2324 = vmatpush1.msra.mxu0 0.0
    %2325 = vmatprep.subr.mxu0 0.0
    %2326 = vmatpush1.msra.mxu0 0.0
    %2327 = vmatprep.subr.mxu0 0.0
    %2328 = vmatpush1.msra.mxu0 0.0
    %2329 = vmatprep.subr.mxu0 0.0
    %2330 = vmatpush1.msra.mxu0 0.0
    %2331 = vmatprep.subr.mxu0 0.0
    %2332 = vmatpush1.msra.mxu0 0.0
    %2333 = vmatprep.subr.mxu0 0.0
    %2334 = vmatpush1.msra.mxu0 0.0
    %2335 = vmatprep.subr.mxu0 0.0
    %2336 = vmatpush1.msra.mxu0 0.0
    %2337 = vmatprep.subr.mxu0 0.0
    %2338 = vmatpush1.msra.mxu0 0.0
    %2339 = vmatprep.subr.mxu0 0.0
    %2340 = vmatpush1.msra.mxu0 0.0
    %2341 = vmatprep.subr.mxu0 0.0
    %2342 = vmatpush1.msra.mxu0 0.0
    %2343 = vmatprep.subr.mxu0 0.0
    %2344 = vmatpush1.msra.mxu0 0.0
    %2345 = vmatprep.subr.mxu0 0.0
    %2346 = vmatpush1.msra.mxu0 0.0
    %2347 = vmatprep.subr.mxu0 0.0
    %2348 = vmatpush1.msra.mxu0 0.0
    %2349 = vmatprep.subr.mxu0 0.0
    %2350 = vmatpush1.msra.mxu0 0.0
    %2351 = vmatprep.subr.mxu0 0.0
    %2352 = vmatpush1.msra.mxu0 0.0
    %2353 = vmatprep.mubr.f32.mxu0 0.0
    %2354 = vmatmul.mubr.f32.gmra.mrb[0].mxu0 %v2284
    %v2355 = vpop.f32.mrb[0].mxu0
    %v2356 = vadd.f32 %v2281, %v2355
    %v2357 = vpop.f32.mrb[0].mxu0
    %2358 = vmatprep.mubr.f32.mxu0 0.0
    %2359 = vmatmul.mubr.f32.gmra.mrb[0].mxu0 %v2287
    %v2360 = vpop.f32.mrb[0].mxu0
    %v2361 = vadd.f32 %v2281, %v2360
    %v2362 = vpop.f32.mrb[0].mxu0
    %2363 = vdwg.mxu0
    %2365 = vrot.lane.b32.xlu0 %v2356, 96
    %v2366 = vpop.permute.xlu0 %2365
    %v2367 = vsel %vm533, %v2356, 0
    %v2369 = vsel %vm533, %v2366, 0
    %2371 = vmatprep.subr.mxu0 0.0
    %2372 = vmatpush1.xpose.msra.mxu0 %v2369
    %2373 = vmatprep.subr.mxu0 0.0
    %2374 = vmatpush1.xpose.msra.mxu0 0.0
    %2375 = vmatprep.subr.mxu0 0.0
    %2376 = vmatpush1.xpose.msra.mxu0 0.0
    %2377 = vmatprep.subr.mxu0 0.0
    %2378 = vmatpush1.xpose.msra.mxu0 0.0
    %2379 = vmatprep.subr.mxu0 0.0
    %2380 = vmatpush1.xpose.msra.mxu0 0.0
    %2381 = vmatprep.subr.mxu0 0.0
    %2382 = vmatpush1.xpose.msra.mxu0 0.0
    %2383 = vmatprep.subr.mxu0 0.0
    %2384 = vmatpush1.xpose.msra.mxu0 0.0
    %2385 = vmatprep.subr.mxu0 0.0
    %2386 = vmatpush1.xpose.msra.mxu0 0.0
    %2387 = vmatprep.subr.mxu0 0.0
    %2388 = vmatpush1.xpose.msra.mxu0 0.0
    %2389 = vmatprep.subr.mxu0 0.0
    %2390 = vmatpush1.xpose.msra.mxu0 0.0
    %2391 = vmatprep.subr.mxu0 0.0
    %2392 = vmatpush1.xpose.msra.mxu0 0.0
    %2393 = vmatprep.subr.mxu0 0.0
    %2394 = vmatpush1.xpose.msra.mxu0 0.0
    %2395 = vmatprep.subr.mxu0 0.0
    %2396 = vmatpush1.xpose.msra.mxu0 0.0
    %2397 = vmatprep.subr.mxu0 0.0
    %2398 = vmatpush1.xpose.msra.mxu0 0.0
    %2399 = vmatprep.subr.mxu0 0.0
    %2400 = vmatpush1.xpose.msra.mxu0 0.0
    %2401 = vmatprep.subr.mxu0 0.0
    %2402 = vmatpush1.xpose.msra.mxu0 0.0
    %2403 = vmatprep.subr.mxu0 0.0
    %2404 = vmatpush1.xpose.msra.mxu0 0.0
    %2405 = vmatprep.subr.mxu0 0.0
    %2406 = vmatpush1.xpose.msra.mxu0 0.0
    %2407 = vmatprep.subr.mxu0 0.0
    %2408 = vmatpush1.xpose.msra.mxu0 0.0
    %2409 = vmatprep.subr.mxu0 0.0
    %2410 = vmatpush1.xpose.msra.mxu0 0.0
    %2411 = vmatprep.subr.mxu0 0.0
    %2412 = vmatpush1.xpose.msra.mxu0 0.0
    %2413 = vmatprep.subr.mxu0 0.0
    %2414 = vmatpush1.xpose.msra.mxu0 0.0
    %2415 = vmatprep.subr.mxu0 0.0
    %2416 = vmatpush1.xpose.msra.mxu0 0.0
    %2417 = vmatprep.subr.mxu0 0.0
    %2418 = vmatpush1.xpose.msra.mxu0 0.0
    %2419 = vmatprep.subr.mxu0 0.0
    %2420 = vmatpush1.xpose.msra.mxu0 0.0
    %2421 = vmatprep.subr.mxu0 0.0
    %2422 = vmatpush1.xpose.msra.mxu0 0.0
    %2423 = vmatprep.subr.mxu0 0.0
    %2424 = vmatpush1.xpose.msra.mxu0 0.0
    %2425 = vmatprep.subr.mxu0 0.0
    %2426 = vmatpush1.xpose.msra.mxu0 0.0
    %2427 = vmatprep.subr.mxu0 0.0
    %2428 = vmatpush1.xpose.msra.mxu0 0.0
    %2429 = vmatprep.subr.mxu0 0.0
    %2430 = vmatpush1.xpose.msra.mxu0 0.0
    %2431 = vmatprep.subr.mxu0 0.0
    %2432 = vmatpush1.xpose.msra.mxu0 0.0
    %2433 = vmatprep.subr.mxu0 0.0
    %2434 = vmatpush1.xpose.msra.mxu0 0.0
    %2435 = vmatprep.mubr.f32.mxu0 0.0
    %2436 = vmatmul.mubr.f32.gmra.mrb[0].mxu0 %v2367
    %v2437 = vpop.f32.mrb[0].mxu0
    %v2438 = vadd.f32 0.0, %v2437
    %v2439 = vpop.f32.mrb[0].mxu0
    %2440 = vdwg.mxu0
    %v2441 = vmul.f32 %v2438, 0.35355338
    %v2442 = vsel %vm533, %v2441, -inf
    %2443 = vmax.xlane.f32.xlu0 %v2442
    %v2444 = vpop.xlane.xlu0 %2443
    %v2445 = vsub.f32 %v2441, %v2444
    %v2446 = vmul.f32 %v2445, 1.442695
    %v2447 = vpow.pop %v2446
    %v2448 = vsel %vm533, %v2447, 0.0
    %2449 = vadd.xlane.f32.xlu0 %v2448
    %v2450 = vpop.xlane.xlu0 %2449
    %v2451 = vrcp.pop %v2450
    %v2452 = vmul.f32 %v2447, %v2451
    %2453 = vrot.lane.b32.xlu0 %v2356, 64
    %v2454 = vpop.permute.xlu0 %2453
    %v2457 = vsel %vm533, %v2452, 0
    %2459 = vmatprep.subr.mxu0 0.0
    %2460 = vmatpush1.msra.mxu0 %v2454
    %2461 = vmatprep.subr.mxu0 0.0
    %2462 = vmatpush1.msra.mxu0 0.0
    %2463 = vmatprep.subr.mxu0 0.0
    %2464 = vmatpush1.msra.mxu0 0.0
    %2465 = vmatprep.subr.mxu0 0.0
    %2466 = vmatpush1.msra.mxu0 0.0
    %2467 = vmatprep.subr.mxu0 0.0
    %2468 = vmatpush1.msra.mxu0 0.0
    %2469 = vmatprep.subr.mxu0 0.0
    %2470 = vmatpush1.msra.mxu0 0.0
    %2471 = vmatprep.subr.mxu0 0.0
    %2472 = vmatpush1.msra.mxu0 0.0
    %2473 = vmatprep.subr.mxu0 0.0
    %2474 = vmatpush1.msra.mxu0 0.0
    %2475 = vmatprep.subr.mxu0 0.0
    %2476 = vmatpush1.msra.mxu0 0.0
    %2477 = vmatprep.subr.mxu0 0.0
    %2478 = vmatpush1.msra.mxu0 0.0
    %2479 = vmatprep.subr.mxu0 0.0
    %2480 = vmatpush1.msra.mxu0 0.0
    %2481 = vmatprep.subr.mxu0 0.0
    %2482 = vmatpush1.msra.mxu0 0.0
    %2483 = vmatprep.subr.mxu0 0.0
    %2484 = vmatpush1.msra.mxu0 0.0
    %2485 = vmatprep.subr.mxu0 0.0
    %2486 = vmatpush1.msra.mxu0 0.0
    %2487 = vmatprep.subr.mxu0 0.0
    %2488 = vmatpush1.msra.mxu0 0.0
    %2489 = vmatprep.subr.mxu0 0.0
    %2490 = vmatpush1.msra.mxu0 0.0
    %2491 = vmatprep.subr.mxu0 0.0
    %2492 = vmatpush1.msra.mxu0 0.0
    %2493 = vmatprep.subr.mxu0 0.0
    %2494 = vmatpush1.msra.mxu0 0.0
    %2495 = vmatprep.subr.mxu0 0.0
    %2496 = vmatpush1.msra.mxu0 0.0
    %2497 = vmatprep.subr.mxu0 0.0
    %2498 = vmatpush1.msra.mxu0 0.0
    %2499 = vmatprep.subr.mxu0 0.0
    %2500 = vmatpush1.msra.mxu0 0.0
    %2501 = vmatprep.subr.mxu0 0.0
    %2502 = vmatpush1.msra.mxu0 0.0
    %2503 = vmatprep.subr.mxu0 0.0
    %2504 = vmatpush1.msra.mxu0 0.0
    %2505 = vmatprep.subr.mxu0 0.0
    %2506 = vmatpush1.msra.mxu0 0.0
    %2507 = vmatprep.subr.mxu0 0.0
    %2508 = vmatpush1.msra.mxu0 0.0
    %2509 = vmatprep.subr.mxu0 0.0
    %2510 = vmatpush1.msra.mxu0 0.0
    %2511 = vmatprep.subr.mxu0 0.0
    %2512 = vmatpush1.msra.mxu0 0.0
    %2513 = vmatprep.subr.mxu0 0.0
    %2514 = vmatpush1.msra.mxu0 0.0
    %2515 = vmatprep.subr.mxu0 0.0
    %2516 = vmatpush1.msra.mxu0 0.0
    %2517 = vmatprep.subr.mxu0 0.0
    %2518 = vmatpush1.msra.mxu0 0.0
    %2519 = vmatprep.subr.mxu0 0.0
    %2520 = vmatpush1.msra.mxu0 0.0
    %2521 = vmatprep.subr.mxu0 0.0
    %2522 = vmatpush1.msra.mxu0 0.0
    %2523 = vmatprep.mubr.f32.mxu0 0.0
    %2524 = vmatmul.mubr.f32.gmra.mrb[0].mxu0 %v2457
    %v2525 = vpop.f32.mrb[0].mxu0
    %v2526 = vadd.f32 0.0, %v2525
    %v2527 = vpop.f32.mrb[0].mxu0
    %2528 = vdwg.mxu0
    %2529 = vst.msk [vmem:[#allocation2] sm:$0xff] %vm533, %v2526
    %2530 = vrot.lane.b32.xlu0 %v2356, 120
    %v2531 = vpop.permute.xlu0 %2530
    %2532 = vrot.lane.b32.xlu0 %v2356, 88
    %v2533 = vpop.permute.xlu0 %2532
    %v2534 = vsel %vm533, %v2531, 0
    %v2536 = vsel %vm533, %v2533, 0
    %2538 = vmatprep.subr.mxu0 0.0
    %2539 = vmatpush1.xpose.msra.mxu0 %v2536
    %2540 = vmatprep.subr.mxu0 0.0
    %2541 = vmatpush1.xpose.msra.mxu0 0.0
    %2542 = vmatprep.subr.mxu0 0.0
    %2543 = vmatpush1.xpose.msra.mxu0 0.0
    %2544 = vmatprep.subr.mxu0 0.0
    %2545 = vmatpush1.xpose.msra.mxu0 0.0
    %2546 = vmatprep.subr.mxu0 0.0
    %2547 = vmatpush1.xpose.msra.mxu0 0.0
    %2548 = vmatprep.subr.mxu0 0.0
    %2549 = vmatpush1.xpose.msra.mxu0 0.0
    %2550 = vmatprep.subr.mxu0 0.0
    %2551 = vmatpush1.xpose.msra.mxu0 0.0
    %2552 = vmatprep.subr.mxu0 0.0
    %2553 = vmatpush1.xpose.msra.mxu0 0.0
    %2554 = vmatprep.subr.mxu0 0.0
    %2555 = vmatpush1.xpose.msra.mxu0 0.0
    %2556 = vmatprep.subr.mxu0 0.0
    %2557 = vmatpush1.xpose.msra.mxu0 0.0
    %2558 = vmatprep.subr.mxu0 0.0
    %2559 = vmatpush1.xpose.msra.mxu0 0.0
    %2560 = vmatprep.subr.mxu0 0.0
    %2561 = vmatpush1.xpose.msra.mxu0 0.0
    %2562 = vmatprep.subr.mxu0 0.0
    %2563 = vmatpush1.xpose.msra.mxu0 0.0
    %2564 = vmatprep.subr.mxu0 0.0
    %2565 = vmatpush1.xpose.msra.mxu0 0.0
    %2566 = vmatprep.subr.mxu0 0.0
    %2567 = vmatpush1.xpose.msra.mxu0 0.0
    %2568 = vmatprep.subr.mxu0 0.0
    %2569 = vmatpush1.xpose.msra.mxu0 0.0
    %2570 = vmatprep.subr.mxu0 0.0
    %2571 = vmatpush1.xpose.msra.mxu0 0.0
    %2572 = vmatprep.subr.mxu0 0.0
    %2573 = vmatpush1.xpose.msra.mxu0 0.0
    %2574 = vmatprep.subr.mxu0 0.0
    %2575 = vmatpush1.xpose.msra.mxu0 0.0
    %2576 = vmatprep.subr.mxu0 0.0
    %2577 = vmatpush1.xpose.msra.mxu0 0.0
    %2578 = vmatprep.subr.mxu0 0.0
    %2579 = vmatpush1.xpose.msra.mxu0 0.0
    %2580 = vmatprep.subr.mxu0 0.0
    %2581 = vmatpush1.xpose.msra.mxu0 0.0
    %2582 = vmatprep.subr.mxu0 0.0
    %2583 = vmatpush1.xpose.msra.mxu0 0.0
    %2584 = vmatprep.subr.mxu0 0.0
    %2585 = vmatpush1.xpose.msra.mxu0 0.0
    %2586 = vmatprep.subr.mxu0 0.0
    %2587 = vmatpush1.xpose.msra.mxu0 0.0
    %2588 = vmatprep.subr.mxu0 0.0
    %2589 = vmatpush1.xpose.msra.mxu0 0.0
    %2590 = vmatprep.subr.mxu0 0.0
    %2591 = vmatpush1.xpose.msra.mxu0 0.0
    %2592 = vmatprep.subr.mxu0 0.0
    %2593 = vmatpush1.xpose.msra.mxu0 0.0
    %2594 = vmatprep.subr.mxu0 0.0
    %2595 = vmatpush1.xpose.msra.mxu0 0.0
    %2596 = vmatprep.subr.mxu0 0.0
    %2597 = vmatpush1.xpose.msra.mxu0 0.0
    %2598 = vmatprep.subr.mxu0 0.0
    %2599 = vmatpush1.xpose.msra.mxu0 0.0
    %2600 = vmatprep.subr.mxu0 0.0
    %2601 = vmatpush1.xpose.msra.mxu0 0.0
    %2602 = vmatprep.mubr.f32.mxu0 0.0
    %2603 = vmatmul.mubr.f32.gmra.mrb[0].mxu0 %v2534
    %v2604 = vpop.f32.mrb[0].mxu0
    %v2605 = vadd.f32 0.0, %v2604
    %v2606 = vpop.f32.mrb[0].mxu0
    %2607 = vdwg.mxu0
    %v2608 = vmul.f32 %v2605, 0.35355338
    %v2609 = vsel %vm533, %v2608, -inf
    %2610 = vmax.xlane.f32.xlu0 %v2609
    %v2611 = vpop.xlane.xlu0 %2610
    %v2612 = vsub.f32 %v2608, %v2611
    %v2613 = vmul.f32 %v2612, 1.442695
    %v2614 = vpow.pop %v2613
    %v2615 = vsel %vm533, %v2614, 0.0
    %2616 = vadd.xlane.f32.xlu0 %v2615
    %v2617 = vpop.xlane.xlu0 %2616
    %v2618 = vrcp.pop %v2617
    %v2619 = vmul.f32 %v2614, %v2618
    %2620 = vrot.lane.b32.xlu0 %v2356, 56
    %v2621 = vpop.permute.xlu0 %2620
    %v2624 = vsel %vm533, %v2619, 0
    %2626 = vmatprep.subr.mxu0 0.0
    %2627 = vmatpush1.msra.mxu0 %v2621
    %2628 = vmatprep.subr.mxu0 0.0
    %2629 = vmatpush1.msra.mxu0 0.0
    %2630 = vmatprep.subr.mxu0 0.0
    %2631 = vmatpush1.msra.mxu0 0.0
    %2632 = vmatprep.subr.mxu0 0.0
    %2633 = vmatpush1.msra.mxu0 0.0
    %2634 = vmatprep.subr.mxu0 0.0
    %2635 = vmatpush1.msra.mxu0 0.0
    %2636 = vmatprep.subr.mxu0 0.0
    %2637 = vmatpush1.msra.mxu0 0.0
    %2638 = vmatprep.subr.mxu0 0.0
    %2639 = vmatpush1.msra.mxu0 0.0
    %2640 = vmatprep.subr.mxu0 0.0
    %2641 = vmatpush1.msra.mxu0 0.0
    %2642 = vmatprep.subr.mxu0 0.0
    %2643 = vmatpush1.msra.mxu0 0.0
    %2644 = vmatprep.subr.mxu0 0.0
    %2645 = vmatpush1.msra.mxu0 0.0
    %2646 = vmatprep.subr.mxu0 0.0
    %2647 = vmatpush1.msra.mxu0 0.0
    %2648 = vmatprep.subr.mxu0 0.0
    %2649 = vmatpush1.msra.mxu0 0.0
    %2650 = vmatprep.subr.mxu0 0.0
    %2651 = vmatpush1.msra.mxu0 0.0
    %2652 = vmatprep.subr.mxu0 0.0
    %2653 = vmatpush1.msra.mxu0 0.0
    %2654 = vmatprep.subr.mxu0 0.0
    %2655 = vmatpush1.msra.mxu0 0.0
    %2656 = vmatprep.subr.mxu0 0.0
    %2657 = vmatpush1.msra.mxu0 0.0
    %2658 = vmatprep.subr.mxu0 0.0
    %2659 = vmatpush1.msra.mxu0 0.0
    %2660 = vmatprep.subr.mxu0 0.0
    %2661 = vmatpush1.msra.mxu0 0.0
    %2662 = vmatprep.subr.mxu0 0.0
    %2663 = vmatpush1.msra.mxu0 0.0
    %2664 = vmatprep.subr.mxu0 0.0
    %2665 = vmatpush1.msra.mxu0 0.0
    %2666 = vmatprep.subr.mxu0 0.0
    %2667 = vmatpush1.msra.mxu0 0.0
    %2668 = vmatprep.subr.mxu0 0.0
    %2669 = vmatpush1.msra.mxu0 0.0
    %2670 = vmatprep.subr.mxu0 0.0
    %2671 = vmatpush1.msra.mxu0 0.0
    %2672 = vmatprep.subr.mxu0 0.0
    %2673 = vmatpush1.msra.mxu0 0.0
    %2674 = vmatprep.subr.mxu0 0.0
    %2675 = vmatpush1.msra.mxu0 0.0
    %2676 = vmatprep.subr.mxu0 0.0
    %2677 = vmatpush1.msra.mxu0 0.0
    %2678 = vmatprep.subr.mxu0 0.0
    %2679 = vmatpush1.msra.mxu0 0.0
    %2680 = vmatprep.subr.mxu0 0.0
    %2681 = vmatpush1.msra.mxu0 0.0
    %2682 = vmatprep.subr.mxu0 0.0
    %2683 = vmatpush1.msra.mxu0 0.0
    %2684 = vmatprep.subr.mxu0 0.0
    %2685 = vmatpush1.msra.mxu0 0.0
    %2686 = vmatprep.subr.mxu0 0.0
    %2687 = vmatpush1.msra.mxu0 0.0
    %2688 = vmatprep.subr.mxu0 0.0
    %2689 = vmatpush1.msra.mxu0 0.0
    %2690 = vmatprep.mubr.f32.mxu0 0.0
    %2691 = vmatmul.mubr.f32.gmra.mrb[0].mxu0 %v2624
    %v2692 = vpop.f32.mrb[0].mxu0
    %v2693 = vadd.f32 0.0, %v2692
    %v2694 = vpop.f32.mrb[0].mxu0
    %2695 = vdwg.mxu0
    %2697 = vrot.lane.b32.xlu0 %v2693, 8
    %v2698 = vpop.permute.xlu0 %2697
    %2700 = vst.msk [vmem:[#allocation2] sm:$0xff] %vm867, %v2698
    %2701 = vrot.lane.b32.xlu0 %v2356, 112
    %v2702 = vpop.permute.xlu0 %2701
    %2703 = vrot.lane.b32.xlu0 %v2356, 80
    %v2704 = vpop.permute.xlu0 %2703
    %v2705 = vsel %vm533, %v2702, 0
    %v2707 = vsel %vm533, %v2704, 0
    %2709 = vmatprep.subr.mxu0 0.0
    %2710 = vmatpush1.xpose.msra.mxu0 %v2707
    %2711 = vmatprep.subr.mxu0 0.0
    %2712 = vmatpush1.xpose.msra.mxu0 0.0
    %2713 = vmatprep.subr.mxu0 0.0
    %2714 = vmatpush1.xpose.msra.mxu0 0.0
    %2715 = vmatprep.subr.mxu0 0.0
    %2716 = vmatpush1.xpose.msra.mxu0 0.0
    %2717 = vmatprep.subr.mxu0 0.0
    %2718 = vmatpush1.xpose.msra.mxu0 0.0
    %2719 = vmatprep.subr.mxu0 0.0
    %2720 = vmatpush1.xpose.msra.mxu0 0.0
    %2721 = vmatprep.subr.mxu0 0.0
    %2722 = vmatpush1.xpose.msra.mxu0 0.0
    %2723 = vmatprep.subr.mxu0 0.0
    %2724 = vmatpush1.xpose.msra.mxu0 0.0
    %2725 = vmatprep.subr.mxu0 0.0
    %2726 = vmatpush1.xpose.msra.mxu0 0.0
    %2727 = vmatprep.subr.mxu0 0.0
    %2728 = vmatpush1.xpose.msra.mxu0 0.0
    %2729 = vmatprep.subr.mxu0 0.0
    %2730 = vmatpush1.xpose.msra.mxu0 0.0
    %2731 = vmatprep.subr.mxu0 0.0
    %2732 = vmatpush1.xpose.msra.mxu0 0.0
    %2733 = vmatprep.subr.mxu0 0.0
    %2734 = vmatpush1.xpose.msra.mxu0 0.0
    %2735 = vmatprep.subr.mxu0 0.0
    %2736 = vmatpush1.xpose.msra.mxu0 0.0
    %2737 = vmatprep.subr.mxu0 0.0
    %2738 = vmatpush1.xpose.msra.mxu0 0.0
    %2739 = vmatprep.subr.mxu0 0.0
    %2740 = vmatpush1.xpose.msra.mxu0 0.0
    %2741 = vmatprep.subr.mxu0 0.0
    %2742 = vmatpush1.xpose.msra.mxu0 0.0
    %2743 = vmatprep.subr.mxu0 0.0
    %2744 = vmatpush1.xpose.msra.mxu0 0.0
    %2745 = vmatprep.subr.mxu0 0.0
    %2746 = vmatpush1.xpose.msra.mxu0 0.0
    %2747 = vmatprep.subr.mxu0 0.0
    %2748 = vmatpush1.xpose.msra.mxu0 0.0
    %2749 = vmatprep.subr.mxu0 0.0
    %2750 = vmatpush1.xpose.msra.mxu0 0.0
    %2751 = vmatprep.subr.mxu0 0.0
    %2752 = vmatpush1.xpose.msra.mxu0 0.0
    %2753 = vmatprep.subr.mxu0 0.0
    %2754 = vmatpush1.xpose.msra.mxu0 0.0
    %2755 = vmatprep.subr.mxu0 0.0
    %2756 = vmatpush1.xpose.msra.mxu0 0.0
    %2757 = vmatprep.subr.mxu0 0.0
    %2758 = vmatpush1.xpose.msra.mxu0 0.0
    %2759 = vmatprep.subr.mxu0 0.0
    %2760 = vmatpush1.xpose.msra.mxu0 0.0
    %2761 = vmatprep.subr.mxu0 0.0
    %2762 = vmatpush1.xpose.msra.mxu0 0.0
    %2763 = vmatprep.subr.mxu0 0.0
    %2764 = vmatpush1.xpose.msra.mxu0 0.0
    %2765 = vmatprep.subr.mxu0 0.0
    %2766 = vmatpush1.xpose.msra.mxu0 0.0
    %2767 = vmatprep.subr.mxu0 0.0
    %2768 = vmatpush1.xpose.msra.mxu0 0.0
    %2769 = vmatprep.subr.mxu0 0.0
    %2770 = vmatpush1.xpose.msra.mxu0 0.0
    %2771 = vmatprep.subr.mxu0 0.0
    %2772 = vmatpush1.xpose.msra.mxu0 0.0
    %2773 = vmatprep.mubr.f32.mxu0 0.0
    %2774 = vmatmul.mubr.f32.gmra.mrb[0].mxu0 %v2705
    %v2775 = vpop.f32.mrb[0].mxu0
    %v2776 = vadd.f32 0.0, %v2775
    %v2777 = vpop.f32.mrb[0].mxu0
    %2778 = vdwg.mxu0
    %v2779 = vmul.f32 %v2776, 0.35355338
    %v2780 = vsel %vm533, %v2779, -inf
    %2781 = vmax.xlane.f32.xlu0 %v2780
    %v2782 = vpop.xlane.xlu0 %2781
    %v2783 = vsub.f32 %v2779, %v2782
    %v2784 = vmul.f32 %v2783, 1.442695
    %v2785 = vpow.pop %v2784
    %v2786 = vsel %vm533, %v2785, 0.0
    %2787 = vadd.xlane.f32.xlu0 %v2786
    %v2788 = vpop.xlane.xlu0 %2787
    %v2789 = vrcp.pop %v2788
    %v2790 = vmul.f32 %v2785, %v2789
    %2791 = vrot.lane.b32.xlu0 %v2356, 48
    %v2792 = vpop.permute.xlu0 %2791
    %v2795 = vsel %vm533, %v2790, 0
    %2797 = vmatprep.subr.mxu0 0.0
    %2798 = vmatpush1.msra.mxu0 %v2792
    %2799 = vmatprep.subr.mxu0 0.0
    %2800 = vmatpush1.msra.mxu0 0.0
    %2801 = vmatprep.subr.mxu0 0.0
    %2802 = vmatpush1.msra.mxu0 0.0
    %2803 = vmatprep.subr.mxu0 0.0
    %2804 = vmatpush1.msra.mxu0 0.0
    %2805 = vmatprep.subr.mxu0 0.0
    %2806 = vmatpush1.msra.mxu0 0.0
    %2807 = vmatprep.subr.mxu0 0.0
    %2808 = vmatpush1.msra.mxu0 0.0
    %2809 = vmatprep.subr.mxu0 0.0
    %2810 = vmatpush1.msra.mxu0 0.0
    %2811 = vmatprep.subr.mxu0 0.0
    %2812 = vmatpush1.msra.mxu0 0.0
    %2813 = vmatprep.subr.mxu0 0.0
    %2814 = vmatpush1.msra.mxu0 0.0
    %2815 = vmatprep.subr.mxu0 0.0
    %2816 = vmatpush1.msra.mxu0 0.0
    %2817 = vmatprep.subr.mxu0 0.0
    %2818 = vmatpush1.msra.mxu0 0.0
    %2819 = vmatprep.subr.mxu0 0.0
    %2820 = vmatpush1.msra.mxu0 0.0
    %2821 = vmatprep.subr.mxu0 0.0
    %2822 = vmatpush1.msra.mxu0 0.0
    %2823 = vmatprep.subr.mxu0 0.0
    %2824 = vmatpush1.msra.mxu0 0.0
    %2825 = vmatprep.subr.mxu0 0.0
    %2826 = vmatpush1.msra.mxu0 0.0
    %2827 = vmatprep.subr.mxu0 0.0
    %2828 = vmatpush1.msra.mxu0 0.0
    %2829 = vmatprep.subr.mxu0 0.0
    %2830 = vmatpush1.msra.mxu0 0.0
    %2831 = vmatprep.subr.mxu0 0.0
    %2832 = vmatpush1.msra.mxu0 0.0
    %2833 = vmatprep.subr.mxu0 0.0
    %2834 = vmatpush1.msra.mxu0 0.0
    %2835 = vmatprep.subr.mxu0 0.0
    %2836 = vmatpush1.msra.mxu0 0.0
    %2837 = vmatprep.subr.mxu0 0.0
    %2838 = vmatpush1.msra.mxu0 0.0
    %2839 = vmatprep.subr.mxu0 0.0
    %2840 = vmatpush1.msra.mxu0 0.0
    %2841 = vmatprep.subr.mxu0 0.0
    %2842 = vmatpush1.msra.mxu0 0.0
    %2843 = vmatprep.subr.mxu0 0.0
    %2844 = vmatpush1.msra.mxu0 0.0
    %2845 = vmatprep.subr.mxu0 0.0
    %2846 = vmatpush1.msra.mxu0 0.0
    %2847 = vmatprep.subr.mxu0 0.0
    %2848 = vmatpush1.msra.mxu0 0.0
    %2849 = vmatprep.subr.mxu0 0.0
    %2850 = vmatpush1.msra.mxu0 0.0
    %2851 = vmatprep.subr.mxu0 0.0
    %2852 = vmatpush1.msra.mxu0 0.0
    %2853 = vmatprep.subr.mxu0 0.0
    %2854 = vmatpush1.msra.mxu0 0.0
    %2855 = vmatprep.subr.mxu0 0.0
    %2856 = vmatpush1.msra.mxu0 0.0
    %2857 = vmatprep.subr.mxu0 0.0
    %2858 = vmatpush1.msra.mxu0 0.0
    %2859 = vmatprep.subr.mxu0 0.0
    %2860 = vmatpush1.msra.mxu0 0.0
    %2861 = vmatprep.mubr.f32.mxu0 0.0
    %2862 = vmatmul.mubr.f32.gmra.mrb[0].mxu0 %v2795
    %v2863 = vpop.f32.mrb[0].mxu0
    %v2864 = vadd.f32 0.0, %v2863
    %v2865 = vpop.f32.mrb[0].mxu0
    %2866 = vdwg.mxu0
    %2868 = vrot.lane.b32.xlu0 %v2864, 16
    %v2869 = vpop.permute.xlu0 %2868
    %2871 = vst.msk [vmem:[#allocation2] sm:$0xff] %vm1039, %v2869
    %2872 = vrot.lane.b32.xlu0 %v2356, 104
    %v2873 = vpop.permute.xlu0 %2872
    %2874 = vrot.lane.b32.xlu0 %v2356, 72
    %v2875 = vpop.permute.xlu0 %2874
    %v2876 = vsel %vm533, %v2873, 0
    %v2878 = vsel %vm533, %v2875, 0
    %2880 = vmatprep.subr.mxu0 0.0
    %2881 = vmatpush1.xpose.msra.mxu0 %v2878
    %2882 = vmatprep.subr.mxu0 0.0
    %2883 = vmatpush1.xpose.msra.mxu0 0.0
    %2884 = vmatprep.subr.mxu0 0.0
    %2885 = vmatpush1.xpose.msra.mxu0 0.0
    %2886 = vmatprep.subr.mxu0 0.0
    %2887 = vmatpush1.xpose.msra.mxu0 0.0
    %2888 = vmatprep.subr.mxu0 0.0
    %2889 = vmatpush1.xpose.msra.mxu0 0.0
    %2890 = vmatprep.subr.mxu0 0.0
    %2891 = vmatpush1.xpose.msra.mxu0 0.0
    %2892 = vmatprep.subr.mxu0 0.0
    %2893 = vmatpush1.xpose.msra.mxu0 0.0
    %2894 = vmatprep.subr.mxu0 0.0
    %2895 = vmatpush1.xpose.msra.mxu0 0.0
    %2896 = vmatprep.subr.mxu0 0.0
    %2897 = vmatpush1.xpose.msra.mxu0 0.0
    %2898 = vmatprep.subr.mxu0 0.0
    %2899 = vmatpush1.xpose.msra.mxu0 0.0
    %2900 = vmatprep.subr.mxu0 0.0
    %2901 = vmatpush1.xpose.msra.mxu0 0.0
    %2902 = vmatprep.subr.mxu0 0.0
    %2903 = vmatpush1.xpose.msra.mxu0 0.0
    %2904 = vmatprep.subr.mxu0 0.0
    %2905 = vmatpush1.xpose.msra.mxu0 0.0
    %2906 = vmatprep.subr.mxu0 0.0
    %2907 = vmatpush1.xpose.msra.mxu0 0.0
    %2908 = vmatprep.subr.mxu0 0.0
    %2909 = vmatpush1.xpose.msra.mxu0 0.0
    %2910 = vmatprep.subr.mxu0 0.0
    %2911 = vmatpush1.xpose.msra.mxu0 0.0
    %2912 = vmatprep.subr.mxu0 0.0
    %2913 = vmatpush1.xpose.msra.mxu0 0.0
    %2914 = vmatprep.subr.mxu0 0.0
    %2915 = vmatpush1.xpose.msra.mxu0 0.0
    %2916 = vmatprep.subr.mxu0 0.0
    %2917 = vmatpush1.xpose.msra.mxu0 0.0
    %2918 = vmatprep.subr.mxu0 0.0
    %2919 = vmatpush1.xpose.msra.mxu0 0.0
    %2920 = vmatprep.subr.mxu0 0.0
    %2921 = vmatpush1.xpose.msra.mxu0 0.0
    %2922 = vmatprep.subr.mxu0 0.0
    %2923 = vmatpush1.xpose.msra.mxu0 0.0
    %2924 = vmatprep.subr.mxu0 0.0
    %2925 = vmatpush1.xpose.msra.mxu0 0.0
    %2926 = vmatprep.subr.mxu0 0.0
    %2927 = vmatpush1.xpose.msra.mxu0 0.0
    %2928 = vmatprep.subr.mxu0 0.0
    %2929 = vmatpush1.xpose.msra.mxu0 0.0
    %2930 = vmatprep.subr.mxu0 0.0
    %2931 = vmatpush1.xpose.msra.mxu0 0.0
    %2932 = vmatprep.subr.mxu0 0.0
    %2933 = vmatpush1.xpose.msra.mxu0 0.0
    %2934 = vmatprep.subr.mxu0 0.0
    %2935 = vmatpush1.xpose.msra.mxu0 0.0
    %2936 = vmatprep.subr.mxu0 0.0
    %2937 = vmatpush1.xpose.msra.mxu0 0.0
    %2938 = vmatprep.subr.mxu0 0.0
    %2939 = vmatpush1.xpose.msra.mxu0 0.0
    %2940 = vmatprep.subr.mxu0 0.0
    %2941 = vmatpush1.xpose.msra.mxu0 0.0
    %2942 = vmatprep.subr.mxu0 0.0
    %2943 = vmatpush1.xpose.msra.mxu0 0.0
    %2944 = vmatprep.mubr.f32.mxu0 0.0
    %2945 = vmatmul.mubr.f32.gmra.mrb[0].mxu0 %v2876
    %v2946 = vpop.f32.mrb[0].mxu0
    %v2947 = vadd.f32 0.0, %v2946
    %v2948 = vpop.f32.mrb[0].mxu0
    %2949 = vdwg.mxu0
    %v2950 = vmul.f32 %v2947, 0.35355338
    %v2951 = vsel %vm533, %v2950, -inf
    %2952 = vmax.xlane.f32.xlu0 %v2951
    %v2953 = vpop.xlane.xlu0 %2952
    %v2954 = vsub.f32 %v2950, %v2953
    %v2955 = vmul.f32 %v2954, 1.442695
    %v2956 = vpow.pop %v2955
    %v2957 = vsel %vm533, %v2956, 0.0
    %2958 = vadd.xlane.f32.xlu0 %v2957
    %v2959 = vpop.xlane.xlu0 %2958
    %v2960 = vrcp.pop %v2959
    %v2961 = vmul.f32 %v2956, %v2960
    %2962 = vrot.lane.b32.xlu0 %v2356, 40
    %v2963 = vpop.permute.xlu0 %2962
    %v2966 = vsel %vm533, %v2961, 0
    %2968 = vmatprep.subr.mxu0 0.0
    %2969 = vmatpush1.msra.mxu0 %v2963
    %2970 = vmatprep.subr.mxu0 0.0
    %2971 = vmatpush1.msra.mxu0 0.0
    %2972 = vmatprep.subr.mxu0 0.0
    %2973 = vmatpush1.msra.mxu0 0.0
    %2974 = vmatprep.subr.mxu0 0.0
    %2975 = vmatpush1.msra.mxu0 0.0
    %2976 = vmatprep.subr.mxu0 0.0
    %2977 = vmatpush1.msra.mxu0 0.0
    %2978 = vmatprep.subr.mxu0 0.0
    %2979 = vmatpush1.msra.mxu0 0.0
    %2980 = vmatprep.subr.mxu0 0.0
    %2981 = vmatpush1.msra.mxu0 0.0
    %2982 = vmatprep.subr.mxu0 0.0
    %2983 = vmatpush1.msra.mxu0 0.0
    %2984 = vmatprep.subr.mxu0 0.0
    %2985 = vmatpush1.msra.mxu0 0.0
    %2986 = vmatprep.subr.mxu0 0.0
    %2987 = vmatpush1.msra.mxu0 0.0
    %2988 = vmatprep.subr.mxu0 0.0
    %2989 = vmatpush1.msra.mxu0 0.0
    %2990 = vmatprep.subr.mxu0 0.0
    %2991 = vmatpush1.msra.mxu0 0.0
    %2992 = vmatprep.subr.mxu0 0.0
    %2993 = vmatpush1.msra.mxu0 0.0
    %2994 = vmatprep.subr.mxu0 0.0
    %2995 = vmatpush1.msra.mxu0 0.0
    %2996 = vmatprep.subr.mxu0 0.0
    %2997 = vmatpush1.msra.mxu0 0.0
    %2998 = vmatprep.subr.mxu0 0.0
    %2999 = vmatpush1.msra.mxu0 0.0
    %3000 = vmatprep.subr.mxu0 0.0
    %3001 = vmatpush1.msra.mxu0 0.0
    %3002 = vmatprep.subr.mxu0 0.0
    %3003 = vmatpush1.msra.mxu0 0.0
    %3004 = vmatprep.subr.mxu0 0.0
    %3005 = vmatpush1.msra.mxu0 0.0
    %3006 = vmatprep.subr.mxu0 0.0
    %3007 = vmatpush1.msra.mxu0 0.0
    %3008 = vmatprep.subr.mxu0 0.0
    %3009 = vmatpush1.msra.mxu0 0.0
    %3010 = vmatprep.subr.mxu0 0.0
    %3011 = vmatpush1.msra.mxu0 0.0
    %3012 = vmatprep.subr.mxu0 0.0
    %3013 = vmatpush1.msra.mxu0 0.0
    %3014 = vmatprep.subr.mxu0 0.0
    %3015 = vmatpush1.msra.mxu0 0.0
    %3016 = vmatprep.subr.mxu0 0.0
    %3017 = vmatpush1.msra.mxu0 0.0
    %3018 = vmatprep.subr.mxu0 0.0
    %3019 = vmatpush1.msra.mxu0 0.0
    %3020 = vmatprep.subr.mxu0 0.0
    %3021 = vmatpush1.msra.mxu0 0.0
    %3022 = vmatprep.subr.mxu0 0.0
    %3023 = vmatpush1.msra.mxu0 0.0
    %3024 = vmatprep.subr.mxu0 0.0
    %3025 = vmatpush1.msra.mxu0 0.0
    %3026 = vmatprep.subr.mxu0 0.0
    %3027 = vmatpush1.msra.mxu0 0.0
    %3028 = vmatprep.subr.mxu0 0.0
    %3029 = vmatpush1.msra.mxu0 0.0
    %3030 = vmatprep.subr.mxu0 0.0
    %3031 = vmatpush1.msra.mxu0 0.0
    %3032 = vmatprep.mubr.f32.mxu0 0.0
    %3033 = vmatmul.mubr.f32.gmra.mrb[0].mxu0 %v2966
    %v3034 = vpop.f32.mrb[0].mxu0
    %v3035 = vadd.f32 0.0, %v3034
    %v3036 = vpop.f32.mrb[0].mxu0
    %3037 = vdwg.mxu0
    %3039 = vrot.lane.b32.xlu0 %v3035, 24
    %v3040 = vpop.permute.xlu0 %3039
    %3042 = vst.msk [vmem:[#allocation2] sm:$0xff] %vm1211, %v3040
    %3044 = vrot.lane.b32.xlu0 %v2361, 96
    %v3045 = vpop.permute.xlu0 %3044
    %v3046 = vsel %vm533, %v2361, 0
    %v3048 = vsel %vm533, %v3045, 0
    %3050 = vmatprep.subr.mxu0 0.0
    %3051 = vmatpush1.xpose.msra.mxu0 %v3048
    %3052 = vmatprep.subr.mxu0 0.0
    %3053 = vmatpush1.xpose.msra.mxu0 0.0
    %3054 = vmatprep.subr.mxu0 0.0
    %3055 = vmatpush1.xpose.msra.mxu0 0.0
    %3056 = vmatprep.subr.mxu0 0.0
    %3057 = vmatpush1.xpose.msra.mxu0 0.0
    %3058 = vmatprep.subr.mxu0 0.0
    %3059 = vmatpush1.xpose.msra.mxu0 0.0
    %3060 = vmatprep.subr.mxu0 0.0
    %3061 = vmatpush1.xpose.msra.mxu0 0.0
    %3062 = vmatprep.subr.mxu0 0.0
    %3063 = vmatpush1.xpose.msra.mxu0 0.0
    %3064 = vmatprep.subr.mxu0 0.0
    %3065 = vmatpush1.xpose.msra.mxu0 0.0
    %3066 = vmatprep.subr.mxu0 0.0
    %3067 = vmatpush1.xpose.msra.mxu0 0.0
    %3068 = vmatprep.subr.mxu0 0.0
    %3069 = vmatpush1.xpose.msra.mxu0 0.0
    %3070 = vmatprep.subr.mxu0 0.0
    %3071 = vmatpush1.xpose.msra.mxu0 0.0
    %3072 = vmatprep.subr.mxu0 0.0
    %3073 = vmatpush1.xpose.msra.mxu0 0.0
    %3074 = vmatprep.subr.mxu0 0.0
    %3075 = vmatpush1.xpose.msra.mxu0 0.0
    %3076 = vmatprep.subr.mxu0 0.0
    %3077 = vmatpush1.xpose.msra.mxu0 0.0
    %3078 = vmatprep.subr.mxu0 0.0
    %3079 = vmatpush1.xpose.msra.mxu0 0.0
    %3080 = vmatprep.subr.mxu0 0.0
    %3081 = vmatpush1.xpose.msra.mxu0 0.0
    %3082 = vmatprep.subr.mxu0 0.0
    %3083 = vmatpush1.xpose.msra.mxu0 0.0
    %3084 = vmatprep.subr.mxu0 0.0
    %3085 = vmatpush1.xpose.msra.mxu0 0.0
    %3086 = vmatprep.subr.mxu0 0.0
    %3087 = vmatpush1.xpose.msra.mxu0 0.0
    %3088 = vmatprep.subr.mxu0 0.0
    %3089 = vmatpush1.xpose.msra.mxu0 0.0
    %3090 = vmatprep.subr.mxu0 0.0
    %3091 = vmatpush1.xpose.msra.mxu0 0.0
    %3092 = vmatprep.subr.mxu0 0.0
    %3093 = vmatpush1.xpose.msra.mxu0 0.0
    %3094 = vmatprep.subr.mxu0 0.0
    %3095 = vmatpush1.xpose.msra.mxu0 0.0
    %3096 = vmatprep.subr.mxu0 0.0
    %3097 = vmatpush1.xpose.msra.mxu0 0.0
    %3098 = vmatprep.subr.mxu0 0.0
    %3099 = vmatpush1.xpose.msra.mxu0 0.0
    %3100 = vmatprep.subr.mxu0 0.0
    %3101 = vmatpush1.xpose.msra.mxu0 0.0
    %3102 = vmatprep.subr.mxu0 0.0
    %3103 = vmatpush1.xpose.msra.mxu0 0.0
    %3104 = vmatprep.subr.mxu0 0.0
    %3105 = vmatpush1.xpose.msra.mxu0 0.0
    %3106 = vmatprep.subr.mxu0 0.0
    %3107 = vmatpush1.xpose.msra.mxu0 0.0
    %3108 = vmatprep.subr.mxu0 0.0
    %3109 = vmatpush1.xpose.msra.mxu0 0.0
    %3110 = vmatprep.subr.mxu0 0.0
    %3111 = vmatpush1.xpose.msra.mxu0 0.0
    %3112 = vmatprep.subr.mxu0 0.0
    %3113 = vmatpush1.xpose.msra.mxu0 0.0
    %3114 = vmatprep.mubr.f32.mxu0 0.0
    %3115 = vmatmul.mubr.f32.gmra.mrb[0].mxu0 %v3046
    %v3116 = vpop.f32.mrb[0].mxu0
    %v3117 = vadd.f32 0.0, %v3116
    %v3118 = vpop.f32.mrb[0].mxu0
    %3119 = vdwg.mxu0
    %v3120 = vmul.f32 %v3117, 0.35355338
    %v3121 = vsel %vm533, %v3120, -inf
    %3122 = vmax.xlane.f32.xlu0 %v3121
    %v3123 = vpop.xlane.xlu0 %3122
    %v3124 = vsub.f32 %v3120, %v3123
    %v3125 = vmul.f32 %v3124, 1.442695
    %v3126 = vpow.pop %v3125
    %v3127 = vsel %vm533, %v3126, 0.0
    %3128 = vadd.xlane.f32.xlu0 %v3127
    %v3129 = vpop.xlane.xlu0 %3128
    %v3130 = vrcp.pop %v3129
    %v3131 = vmul.f32 %v3126, %v3130
    %3132 = vrot.lane.b32.xlu0 %v2361, 64
    %v3133 = vpop.permute.xlu0 %3132
    %v3136 = vsel %vm533, %v3131, 0
    %3138 = vmatprep.subr.mxu0 0.0
    %3139 = vmatpush1.msra.mxu0 %v3133
    %3140 = vmatprep.subr.mxu0 0.0
    %3141 = vmatpush1.msra.mxu0 0.0
    %3142 = vmatprep.subr.mxu0 0.0
    %3143 = vmatpush1.msra.mxu0 0.0
    %3144 = vmatprep.subr.mxu0 0.0
    %3145 = vmatpush1.msra.mxu0 0.0
    %3146 = vmatprep.subr.mxu0 0.0
    %3147 = vmatpush1.msra.mxu0 0.0
    %3148 = vmatprep.subr.mxu0 0.0
    %3149 = vmatpush1.msra.mxu0 0.0
    %3150 = vmatprep.subr.mxu0 0.0
    %3151 = vmatpush1.msra.mxu0 0.0
    %3152 = vmatprep.subr.mxu0 0.0
    %3153 = vmatpush1.msra.mxu0 0.0
    %3154 = vmatprep.subr.mxu0 0.0
    %3155 = vmatpush1.msra.mxu0 0.0
    %3156 = vmatprep.subr.mxu0 0.0
    %3157 = vmatpush1.msra.mxu0 0.0
    %3158 = vmatprep.subr.mxu0 0.0
    %3159 = vmatpush1.msra.mxu0 0.0
    %3160 = vmatprep.subr.mxu0 0.0
    %3161 = vmatpush1.msra.mxu0 0.0
    %3162 = vmatprep.subr.mxu0 0.0
    %3163 = vmatpush1.msra.mxu0 0.0
    %3164 = vmatprep.subr.mxu0 0.0
    %3165 = vmatpush1.msra.mxu0 0.0
    %3166 = vmatprep.subr.mxu0 0.0
    %3167 = vmatpush1.msra.mxu0 0.0
    %3168 = vmatprep.subr.mxu0 0.0
    %3169 = vmatpush1.msra.mxu0 0.0
    %3170 = vmatprep.subr.mxu0 0.0
    %3171 = vmatpush1.msra.mxu0 0.0
    %3172 = vmatprep.subr.mxu0 0.0
    %3173 = vmatpush1.msra.mxu0 0.0
    %3174 = vmatprep.subr.mxu0 0.0
    %3175 = vmatpush1.msra.mxu0 0.0
    %3176 = vmatprep.subr.mxu0 0.0
    %3177 = vmatpush1.msra.mxu0 0.0
    %3178 = vmatprep.subr.mxu0 0.0
    %3179 = vmatpush1.msra.mxu0 0.0
    %3180 = vmatprep.subr.mxu0 0.0
    %3181 = vmatpush1.msra.mxu0 0.0
    %3182 = vmatprep.subr.mxu0 0.0
    %3183 = vmatpush1.msra.mxu0 0.0
    %3184 = vmatprep.subr.mxu0 0.0
    %3185 = vmatpush1.msra.mxu0 0.0
    %3186 = vmatprep.subr.mxu0 0.0
    %3187 = vmatpush1.msra.mxu0 0.0
    %3188 = vmatprep.subr.mxu0 0.0
    %3189 = vmatpush1.msra.mxu0 0.0
    %3190 = vmatprep.subr.mxu0 0.0
    %3191 = vmatpush1.msra.mxu0 0.0
    %3192 = vmatprep.subr.mxu0 0.0
    %3193 = vmatpush1.msra.mxu0 0.0
    %3194 = vmatprep.subr.mxu0 0.0
    %3195 = vmatpush1.msra.mxu0 0.0
    %3196 = vmatprep.subr.mxu0 0.0
    %3197 = vmatpush1.msra.mxu0 0.0
    %3198 = vmatprep.subr.mxu0 0.0
    %3199 = vmatpush1.msra.mxu0 0.0
    %3200 = vmatprep.subr.mxu0 0.0
    %3201 = vmatpush1.msra.mxu0 0.0
    %3202 = vmatprep.mubr.f32.mxu0 0.0
    %3203 = vmatmul.mubr.f32.gmra.mrb[0].mxu0 %v3136
    %v3204 = vpop.f32.mrb[0].mxu0
    %v3205 = vadd.f32 0.0, %v3204
    %v3206 = vpop.f32.mrb[0].mxu0
    %3207 = vdwg.mxu0
    %3208 = vst.msk [vmem:[#allocation2 + $0x8] sm:$0xff] %vm533, %v3205
    %3209 = vrot.lane.b32.xlu0 %v2361, 120
    %v3210 = vpop.permute.xlu0 %3209
    %3211 = vrot.lane.b32.xlu0 %v2361, 88
    %v3212 = vpop.permute.xlu0 %3211
    %v3213 = vsel %vm533, %v3210, 0
    %v3215 = vsel %vm533, %v3212, 0
    %3217 = vmatprep.subr.mxu0 0.0
    %3218 = vmatpush1.xpose.msra.mxu0 %v3215
    %3219 = vmatprep.subr.mxu0 0.0
    %3220 = vmatpush1.xpose.msra.mxu0 0.0
    %3221 = vmatprep.subr.mxu0 0.0
    %3222 = vmatpush1.xpose.msra.mxu0 0.0
    %3223 = vmatprep.subr.mxu0 0.0
    %3224 = vmatpush1.xpose.msra.mxu0 0.0
    %3225 = vmatprep.subr.mxu0 0.0
    %3226 = vmatpush1.xpose.msra.mxu0 0.0
    %3227 = vmatprep.subr.mxu0 0.0
    %3228 = vmatpush1.xpose.msra.mxu0 0.0
    %3229 = vmatprep.subr.mxu0 0.0
    %3230 = vmatpush1.xpose.msra.mxu0 0.0
    %3231 = vmatprep.subr.mxu0 0.0
    %3232 = vmatpush1.xpose.msra.mxu0 0.0
    %3233 = vmatprep.subr.mxu0 0.0
    %3234 = vmatpush1.xpose.msra.mxu0 0.0
    %3235 = vmatprep.subr.mxu0 0.0
    %3236 = vmatpush1.xpose.msra.mxu0 0.0
    %3237 = vmatprep.subr.mxu0 0.0
    %3238 = vmatpush1.xpose.msra.mxu0 0.0
    %3239 = vmatprep.subr.mxu0 0.0
    %3240 = vmatpush1.xpose.msra.mxu0 0.0
    %3241 = vmatprep.subr.mxu0 0.0
    %3242 = vmatpush1.xpose.msra.mxu0 0.0
    %3243 = vmatprep.subr.mxu0 0.0
    %3244 = vmatpush1.xpose.msra.mxu0 0.0
    %3245 = vmatprep.subr.mxu0 0.0
    %3246 = vmatpush1.xpose.msra.mxu0 0.0
    %3247 = vmatprep.subr.mxu0 0.0
    %3248 = vmatpush1.xpose.msra.mxu0 0.0
    %3249 = vmatprep.subr.mxu0 0.0
    %3250 = vmatpush1.xpose.msra.mxu0 0.0
    %3251 = vmatprep.subr.mxu0 0.0
    %3252 = vmatpush1.xpose.msra.mxu0 0.0
    %3253 = vmatprep.subr.mxu0 0.0
    %3254 = vmatpush1.xpose.msra.mxu0 0.0
    %3255 = vmatprep.subr.mxu0 0.0
    %3256 = vmatpush1.xpose.msra.mxu0 0.0
    %3257 = vmatprep.subr.mxu0 0.0
    %3258 = vmatpush1.xpose.msra.mxu0 0.0
    %3259 = vmatprep.subr.mxu0 0.0
    %3260 = vmatpush1.xpose.msra.mxu0 0.0
    %3261 = vmatprep.subr.mxu0 0.0
    %3262 = vmatpush1.xpose.msra.mxu0 0.0
    %3263 = vmatprep.subr.mxu0 0.0
    %3264 = vmatpush1.xpose.msra.mxu0 0.0
    %3265 = vmatprep.subr.mxu0 0.0
    %3266 = vmatpush1.xpose.msra.mxu0 0.0
    %3267 = vmatprep.subr.mxu0 0.0
    %3268 = vmatpush1.xpose.msra.mxu0 0.0
    %3269 = vmatprep.subr.mxu0 0.0
    %3270 = vmatpush1.xpose.msra.mxu0 0.0
    %3271 = vmatprep.subr.mxu0 0.0
    %3272 = vmatpush1.xpose.msra.mxu0 0.0
    %3273 = vmatprep.subr.mxu0 0.0
    %3274 = vmatpush1.xpose.msra.mxu0 0.0
    %3275 = vmatprep.subr.mxu0 0.0
    %3276 = vmatpush1.xpose.msra.mxu0 0.0
    %3277 = vmatprep.subr.mxu0 0.0
    %3278 = vmatpush1.xpose.msra.mxu0 0.0
    %3279 = vmatprep.subr.mxu0 0.0
    %3280 = vmatpush1.xpose.msra.mxu0 0.0
    %3281 = vmatprep.mubr.f32.mxu0 0.0
    %3282 = vmatmul.mubr.f32.gmra.mrb[0].mxu0 %v3213
    %v3283 = vpop.f32.mrb[0].mxu0
    %v3284 = vadd.f32 0.0, %v3283
    %v3285 = vpop.f32.mrb[0].mxu0
    %3286 = vdwg.mxu0
    %v3287 = vmul.f32 %v3284, 0.35355338
    %v3288 = vsel %vm533, %v3287, -inf
    %3289 = vmax.xlane.f32.xlu0 %v3288
    %v3290 = vpop.xlane.xlu0 %3289
    %v3291 = vsub.f32 %v3287, %v3290
    %v3292 = vmul.f32 %v3291, 1.442695
    %v3293 = vpow.pop %v3292
    %v3294 = vsel %vm533, %v3293, 0.0
    %3295 = vadd.xlane.f32.xlu0 %v3294
    %v3296 = vpop.xlane.xlu0 %3295
    %v3297 = vrcp.pop %v3296
    %v3298 = vmul.f32 %v3293, %v3297
    %3299 = vrot.lane.b32.xlu0 %v2361, 56
    %v3300 = vpop.permute.xlu0 %3299
    %v3303 = vsel %vm533, %v3298, 0
    %3305 = vmatprep.subr.mxu0 0.0
    %3306 = vmatpush1.msra.mxu0 %v3300
    %3307 = vmatprep.subr.mxu0 0.0
    %3308 = vmatpush1.msra.mxu0 0.0
    %3309 = vmatprep.subr.mxu0 0.0
    %3310 = vmatpush1.msra.mxu0 0.0
    %3311 = vmatprep.subr.mxu0 0.0
    %3312 = vmatpush1.msra.mxu0 0.0
    %3313 = vmatprep.subr.mxu0 0.0
    %3314 = vmatpush1.msra.mxu0 0.0
    %3315 = vmatprep.subr.mxu0 0.0
    %3316 = vmatpush1.msra.mxu0 0.0
    %3317 = vmatprep.subr.mxu0 0.0
    %3318 = vmatpush1.msra.mxu0 0.0
    %3319 = vmatprep.subr.mxu0 0.0
    %3320 = vmatpush1.msra.mxu0 0.0
    %3321 = vmatprep.subr.mxu0 0.0
    %3322 = vmatpush1.msra.mxu0 0.0
    %3323 = vmatprep.subr.mxu0 0.0
    %3324 = vmatpush1.msra.mxu0 0.0
    %3325 = vmatprep.subr.mxu0 0.0
    %3326 = vmatpush1.msra.mxu0 0.0
    %3327 = vmatprep.subr.mxu0 0.0
    %3328 = vmatpush1.msra.mxu0 0.0
    %3329 = vmatprep.subr.mxu0 0.0
    %3330 = vmatpush1.msra.mxu0 0.0
    %3331 = vmatprep.subr.mxu0 0.0
    %3332 = vmatpush1.msra.mxu0 0.0
    %3333 = vmatprep.subr.mxu0 0.0
    %3334 = vmatpush1.msra.mxu0 0.0
    %3335 = vmatprep.subr.mxu0 0.0
    %3336 = vmatpush1.msra.mxu0 0.0
    %3337 = vmatprep.subr.mxu0 0.0
    %3338 = vmatpush1.msra.mxu0 0.0
    %3339 = vmatprep.subr.mxu0 0.0
    %3340 = vmatpush1.msra.mxu0 0.0
    %3341 = vmatprep.subr.mxu0 0.0
    %3342 = vmatpush1.msra.mxu0 0.0
    %3343 = vmatprep.subr.mxu0 0.0
    %3344 = vmatpush1.msra.mxu0 0.0
    %3345 = vmatprep.subr.mxu0 0.0
    %3346 = vmatpush1.msra.mxu0 0.0
    %3347 = vmatprep.subr.mxu0 0.0
    %3348 = vmatpush1.msra.mxu0 0.0
    %3349 = vmatprep.subr.mxu0 0.0
    %3350 = vmatpush1.msra.mxu0 0.0
    %3351 = vmatprep.subr.mxu0 0.0
    %3352 = vmatpush1.msra.mxu0 0.0
    %3353 = vmatprep.subr.mxu0 0.0
    %3354 = vmatpush1.msra.mxu0 0.0
    %3355 = vmatprep.subr.mxu0 0.0
    %3356 = vmatpush1.msra.mxu0 0.0
    %3357 = vmatprep.subr.mxu0 0.0
    %3358 = vmatpush1.msra.mxu0 0.0
    %3359 = vmatprep.subr.mxu0 0.0
    %3360 = vmatpush1.msra.mxu0 0.0
    %3361 = vmatprep.subr.mxu0 0.0
    %3362 = vmatpush1.msra.mxu0 0.0
    %3363 = vmatprep.subr.mxu0 0.0
    %3364 = vmatpush1.msra.mxu0 0.0
    %3365 = vmatprep.subr.mxu0 0.0
    %3366 = vmatpush1.msra.mxu0 0.0
    %3367 = vmatprep.subr.mxu0 0.0
    %3368 = vmatpush1.msra.mxu0 0.0
    %3369 = vmatprep.mubr.f32.mxu0 0.0
    %3370 = vmatmul.mubr.f32.gmra.mrb[0].mxu0 %v3303
    %v3371 = vpop.f32.mrb[0].mxu0
    %v3372 = vadd.f32 0.0, %v3371
    %v3373 = vpop.f32.mrb[0].mxu0
    %3374 = vdwg.mxu0
    %3376 = vrot.lane.b32.xlu0 %v3372, 8
    %v3377 = vpop.permute.xlu0 %3376
    %3379 = vst.msk [vmem:[#allocation2 + $0x8] sm:$0xff] %vm867, %v3377
    %3380 = vrot.lane.b32.xlu0 %v2361, 112
    %v3381 = vpop.permute.xlu0 %3380
    %3382 = vrot.lane.b32.xlu0 %v2361, 80
    %v3383 = vpop.permute.xlu0 %3382
    %v3384 = vsel %vm533, %v3381, 0
    %v3386 = vsel %vm533, %v3383, 0
    %3388 = vmatprep.subr.mxu0 0.0
    %3389 = vmatpush1.xpose.msra.mxu0 %v3386
    %3390 = vmatprep.subr.mxu0 0.0
    %3391 = vmatpush1.xpose.msra.mxu0 0.0
    %3392 = vmatprep.subr.mxu0 0.0
    %3393 = vmatpush1.xpose.msra.mxu0 0.0
    %3394 = vmatprep.subr.mxu0 0.0
    %3395 = vmatpush1.xpose.msra.mxu0 0.0
    %3396 = vmatprep.subr.mxu0 0.0
    %3397 = vmatpush1.xpose.msra.mxu0 0.0
    %3398 = vmatprep.subr.mxu0 0.0
    %3399 = vmatpush1.xpose.msra.mxu0 0.0
    %3400 = vmatprep.subr.mxu0 0.0
    %3401 = vmatpush1.xpose.msra.mxu0 0.0
    %3402 = vmatprep.subr.mxu0 0.0
    %3403 = vmatpush1.xpose.msra.mxu0 0.0
    %3404 = vmatprep.subr.mxu0 0.0
    %3405 = vmatpush1.xpose.msra.mxu0 0.0
    %3406 = vmatprep.subr.mxu0 0.0
    %3407 = vmatpush1.xpose.msra.mxu0 0.0
    %3408 = vmatprep.subr.mxu0 0.0
    %3409 = vmatpush1.xpose.msra.mxu0 0.0
    %3410 = vmatprep.subr.mxu0 0.0
    %3411 = vmatpush1.xpose.msra.mxu0 0.0
    %3412 = vmatprep.subr.mxu0 0.0
    %3413 = vmatpush1.xpose.msra.mxu0 0.0
    %3414 = vmatprep.subr.mxu0 0.0
    %3415 = vmatpush1.xpose.msra.mxu0 0.0
    %3416 = vmatprep.subr.mxu0 0.0
    %3417 = vmatpush1.xpose.msra.mxu0 0.0
    %3418 = vmatprep.subr.mxu0 0.0
    %3419 = vmatpush1.xpose.msra.mxu0 0.0
    %3420 = vmatprep.subr.mxu0 0.0
    %3421 = vmatpush1.xpose.msra.mxu0 0.0
    %3422 = vmatprep.subr.mxu0 0.0
    %3423 = vmatpush1.xpose.msra.mxu0 0.0
    %3424 = vmatprep.subr.mxu0 0.0
    %3425 = vmatpush1.xpose.msra.mxu0 0.0
    %3426 = vmatprep.subr.mxu0 0.0
    %3427 = vmatpush1.xpose.msra.mxu0 0.0
    %3428 = vmatprep.subr.mxu0 0.0
    %3429 = vmatpush1.xpose.msra.mxu0 0.0
    %3430 = vmatprep.subr.mxu0 0.0
    %3431 = vmatpush1.xpose.msra.mxu0 0.0
    %3432 = vmatprep.subr.mxu0 0.0
    %3433 = vmatpush1.xpose.msra.mxu0 0.0
    %3434 = vmatprep.subr.mxu0 0.0
    %3435 = vmatpush1.xpose.msra.mxu0 0.0
    %3436 = vmatprep.subr.mxu0 0.0
    %3437 = vmatpush1.xpose.msra.mxu0 0.0
    %3438 = vmatprep.subr.mxu0 0.0
    %3439 = vmatpush1.xpose.msra.mxu0 0.0
    %3440 = vmatprep.subr.mxu0 0.0
    %3441 = vmatpush1.xpose.msra.mxu0 0.0
    %3442 = vmatprep.subr.mxu0 0.0
    %3443 = vmatpush1.xpose.msra.mxu0 0.0
    %3444 = vmatprep.subr.mxu0 0.0
    %3445 = vmatpush1.xpose.msra.mxu0 0.0
    %3446 = vmatprep.subr.mxu0 0.0
    %3447 = vmatpush1.xpose.msra.mxu0 0.0
    %3448 = vmatprep.subr.mxu0 0.0
    %3449 = vmatpush1.xpose.msra.mxu0 0.0
    %3450 = vmatprep.subr.mxu0 0.0
    %3451 = vmatpush1.xpose.msra.mxu0 0.0
    %3452 = vmatprep.mubr.f32.mxu0 0.0
    %3453 = vmatmul.mubr.f32.gmra.mrb[0].mxu0 %v3384
    %v3454 = vpop.f32.mrb[0].mxu0
    %v3455 = vadd.f32 0.0, %v3454
    %v3456 = vpop.f32.mrb[0].mxu0
    %3457 = vdwg.mxu0
    %v3458 = vmul.f32 %v3455, 0.35355338
    %v3459 = vsel %vm533, %v3458, -inf
    %3460 = vmax.xlane.f32.xlu0 %v3459
    %v3461 = vpop.xlane.xlu0 %3460
    %v3462 = vsub.f32 %v3458, %v3461
    %v3463 = vmul.f32 %v3462, 1.442695
    %v3464 = vpow.pop %v3463
    %v3465 = vsel %vm533, %v3464, 0.0
    %3466 = vadd.xlane.f32.xlu0 %v3465
    %v3467 = vpop.xlane.xlu0 %3466
    %v3468 = vrcp.pop %v3467
    %v3469 = vmul.f32 %v3464, %v3468
    %3470 = vrot.lane.b32.xlu0 %v2361, 48
    %v3471 = vpop.permute.xlu0 %3470
    %v3474 = vsel %vm533, %v3469, 0
    %3476 = vmatprep.subr.mxu0 0.0
    %3477 = vmatpush1.msra.mxu0 %v3471
    %3478 = vmatprep.subr.mxu0 0.0
    %3479 = vmatpush1.msra.mxu0 0.0
    %3480 = vmatprep.subr.mxu0 0.0
    %3481 = vmatpush1.msra.mxu0 0.0
    %3482 = vmatprep.subr.mxu0 0.0
    %3483 = vmatpush1.msra.mxu0 0.0
    %3484 = vmatprep.subr.mxu0 0.0
    %3485 = vmatpush1.msra.mxu0 0.0
    %3486 = vmatprep.subr.mxu0 0.0
    %3487 = vmatpush1.msra.mxu0 0.0
    %3488 = vmatprep.subr.mxu0 0.0
    %3489 = vmatpush1.msra.mxu0 0.0
    %3490 = vmatprep.subr.mxu0 0.0
    %3491 = vmatpush1.msra.mxu0 0.0
    %3492 = vmatprep.subr.mxu0 0.0
    %3493 = vmatpush1.msra.mxu0 0.0
    %3494 = vmatprep.subr.mxu0 0.0
    %3495 = vmatpush1.msra.mxu0 0.0
    %3496 = vmatprep.subr.mxu0 0.0
    %3497 = vmatpush1.msra.mxu0 0.0
    %3498 = vmatprep.subr.mxu0 0.0
    %3499 = vmatpush1.msra.mxu0 0.0
    %3500 = vmatprep.subr.mxu0 0.0
    %3501 = vmatpush1.msra.mxu0 0.0
    %3502 = vmatprep.subr.mxu0 0.0
    %3503 = vmatpush1.msra.mxu0 0.0
    %3504 = vmatprep.subr.mxu0 0.0
    %3505 = vmatpush1.msra.mxu0 0.0
    %3506 = vmatprep.subr.mxu0 0.0
    %3507 = vmatpush1.msra.mxu0 0.0
    %3508 = vmatprep.subr.mxu0 0.0
    %3509 = vmatpush1.msra.mxu0 0.0
    %3510 = vmatprep.subr.mxu0 0.0
    %3511 = vmatpush1.msra.mxu0 0.0
    %3512 = vmatprep.subr.mxu0 0.0
    %3513 = vmatpush1.msra.mxu0 0.0
    %3514 = vmatprep.subr.mxu0 0.0
    %3515 = vmatpush1.msra.mxu0 0.0
    %3516 = vmatprep.subr.mxu0 0.0
    %3517 = vmatpush1.msra.mxu0 0.0
    %3518 = vmatprep.subr.mxu0 0.0
    %3519 = vmatpush1.msra.mxu0 0.0
    %3520 = vmatprep.subr.mxu0 0.0
    %3521 = vmatpush1.msra.mxu0 0.0
    %3522 = vmatprep.subr.mxu0 0.0
    %3523 = vmatpush1.msra.mxu0 0.0
    %3524 = vmatprep.subr.mxu0 0.0
    %3525 = vmatpush1.msra.mxu0 0.0
    %3526 = vmatprep.subr.mxu0 0.0
    %3527 = vmatpush1.msra.mxu0 0.0
    %3528 = vmatprep.subr.mxu0 0.0
    %3529 = vmatpush1.msra.mxu0 0.0
    %3530 = vmatprep.subr.mxu0 0.0
    %3531 = vmatpush1.msra.mxu0 0.0
    %3532 = vmatprep.subr.mxu0 0.0
    %3533 = vmatpush1.msra.mxu0 0.0
    %3534 = vmatprep.subr.mxu0 0.0
    %3535 = vmatpush1.msra.mxu0 0.0
    %3536 = vmatprep.subr.mxu0 0.0
    %3537 = vmatpush1.msra.mxu0 0.0
    %3538 = vmatprep.subr.mxu0 0.0
    %3539 = vmatpush1.msra.mxu0 0.0
    %3540 = vmatprep.mubr.f32.mxu0 0.0
    %3541 = vmatmul.mubr.f32.gmra.mrb[0].mxu0 %v3474
    %v3542 = vpop.f32.mrb[0].mxu0
    %v3543 = vadd.f32 0.0, %v3542
    %v3544 = vpop.f32.mrb[0].mxu0
    %3545 = vdwg.mxu0
    %3547 = vrot.lane.b32.xlu0 %v3543, 16
    %v3548 = vpop.permute.xlu0 %3547
    %3550 = vst.msk [vmem:[#allocation2 + $0x8] sm:$0xff] %vm1039, %v3548
    %3551 = vrot.lane.b32.xlu0 %v2361, 104
    %v3552 = vpop.permute.xlu0 %3551
    %3553 = vrot.lane.b32.xlu0 %v2361, 72
    %v3554 = vpop.permute.xlu0 %3553
    %v3555 = vsel %vm533, %v3552, 0
    %v3557 = vsel %vm533, %v3554, 0
    %3559 = vmatprep.subr.mxu0 0.0
    %3560 = vmatpush1.xpose.msra.mxu0 %v3557
    %3561 = vmatprep.subr.mxu0 0.0
    %3562 = vmatpush1.xpose.msra.mxu0 0.0
    %3563 = vmatprep.subr.mxu0 0.0
    %3564 = vmatpush1.xpose.msra.mxu0 0.0
    %3565 = vmatprep.subr.mxu0 0.0
    %3566 = vmatpush1.xpose.msra.mxu0 0.0
    %3567 = vmatprep.subr.mxu0 0.0
    %3568 = vmatpush1.xpose.msra.mxu0 0.0
    %3569 = vmatprep.subr.mxu0 0.0
    %3570 = vmatpush1.xpose.msra.mxu0 0.0
    %3571 = vmatprep.subr.mxu0 0.0
    %3572 = vmatpush1.xpose.msra.mxu0 0.0
    %3573 = vmatprep.subr.mxu0 0.0
    %3574 = vmatpush1.xpose.msra.mxu0 0.0
    %3575 = vmatprep.subr.mxu0 0.0
    %3576 = vmatpush1.xpose.msra.mxu0 0.0
    %3577 = vmatprep.subr.mxu0 0.0
    %3578 = vmatpush1.xpose.msra.mxu0 0.0
    %3579 = vmatprep.subr.mxu0 0.0
    %3580 = vmatpush1.xpose.msra.mxu0 0.0
    %3581 = vmatprep.subr.mxu0 0.0
    %3582 = vmatpush1.xpose.msra.mxu0 0.0
    %3583 = vmatprep.subr.mxu0 0.0
    %3584 = vmatpush1.xpose.msra.mxu0 0.0
    %3585 = vmatprep.subr.mxu0 0.0
    %3586 = vmatpush1.xpose.msra.mxu0 0.0
    %3587 = vmatprep.subr.mxu0 0.0
    %3588 = vmatpush1.xpose.msra.mxu0 0.0
    %3589 = vmatprep.subr.mxu0 0.0
    %3590 = vmatpush1.xpose.msra.mxu0 0.0
    %3591 = vmatprep.subr.mxu0 0.0
    %3592 = vmatpush1.xpose.msra.mxu0 0.0
    %3593 = vmatprep.subr.mxu0 0.0
    %3594 = vmatpush1.xpose.msra.mxu0 0.0
    %3595 = vmatprep.subr.mxu0 0.0
    %3596 = vmatpush1.xpose.msra.mxu0 0.0
    %3597 = vmatprep.subr.mxu0 0.0
    %3598 = vmatpush1.xpose.msra.mxu0 0.0
    %3599 = vmatprep.subr.mxu0 0.0
    %3600 = vmatpush1.xpose.msra.mxu0 0.0
    %3601 = vmatprep.subr.mxu0 0.0
    %3602 = vmatpush1.xpose.msra.mxu0 0.0
    %3603 = vmatprep.subr.mxu0 0.0
    %3604 = vmatpush1.xpose.msra.mxu0 0.0
    %3605 = vmatprep.subr.mxu0 0.0
    %3606 = vmatpush1.xpose.msra.mxu0 0.0
    %3607 = vmatprep.subr.mxu0 0.0
    %3608 = vmatpush1.xpose.msra.mxu0 0.0
    %3609 = vmatprep.subr.mxu0 0.0
    %3610 = vmatpush1.xpose.msra.mxu0 0.0
    %3611 = vmatprep.subr.mxu0 0.0
    %3612 = vmatpush1.xpose.msra.mxu0 0.0
    %3613 = vmatprep.subr.mxu0 0.0
    %3614 = vmatpush1.xpose.msra.mxu0 0.0
    %3615 = vmatprep.subr.mxu0 0.0
    %3616 = vmatpush1.xpose.msra.mxu0 0.0
    %3617 = vmatprep.subr.mxu0 0.0
    %3618 = vmatpush1.xpose.msra.mxu0 0.0
    %3619 = vmatprep.subr.mxu0 0.0
    %3620 = vmatpush1.xpose.msra.mxu0 0.0
    %3621 = vmatprep.subr.mxu0 0.0
    %3622 = vmatpush1.xpose.msra.mxu0 0.0
    %3623 = vmatprep.mubr.f32.mxu0 0.0
    %3624 = vmatmul.mubr.f32.gmra.mrb[0].mxu0 %v3555
    %v3625 = vpop.f32.mrb[0].mxu0
    %v3626 = vadd.f32 0.0, %v3625
    %v3627 = vpop.f32.mrb[0].mxu0
    %3628 = vdwg.mxu0
    %v3629 = vmul.f32 %v3626, 0.35355338
    %v3630 = vsel %vm533, %v3629, -inf
    %3631 = vmax.xlane.f32.xlu0 %v3630
    %v3632 = vpop.xlane.xlu0 %3631
    %v3633 = vsub.f32 %v3629, %v3632
    %v3634 = vmul.f32 %v3633, 1.442695
    %v3635 = vpow.pop %v3634
    %v3636 = vsel %vm533, %v3635, 0.0
    %3637 = vadd.xlane.f32.xlu0 %v3636
    %v3638 = vpop.xlane.xlu0 %3637
    %v3639 = vrcp.pop %v3638
    %v3640 = vmul.f32 %v3635, %v3639
    %3641 = vrot.lane.b32.xlu0 %v2361, 40
    %v3642 = vpop.permute.xlu0 %3641
    %v3645 = vsel %vm533, %v3640, 0
    %3647 = vmatprep.subr.mxu0 0.0
    %3648 = vmatpush1.msra.mxu0 %v3642
    %3649 = vmatprep.subr.mxu0 0.0
    %3650 = vmatpush1.msra.mxu0 0.0
    %3651 = vmatprep.subr.mxu0 0.0
    %3652 = vmatpush1.msra.mxu0 0.0
    %3653 = vmatprep.subr.mxu0 0.0
    %3654 = vmatpush1.msra.mxu0 0.0
    %3655 = vmatprep.subr.mxu0 0.0
    %3656 = vmatpush1.msra.mxu0 0.0
    %3657 = vmatprep.subr.mxu0 0.0
    %3658 = vmatpush1.msra.mxu0 0.0
    %3659 = vmatprep.subr.mxu0 0.0
    %3660 = vmatpush1.msra.mxu0 0.0
    %3661 = vmatprep.subr.mxu0 0.0
    %3662 = vmatpush1.msra.mxu0 0.0
    %3663 = vmatprep.subr.mxu0 0.0
    %3664 = vmatpush1.msra.mxu0 0.0
    %3665 = vmatprep.subr.mxu0 0.0
    %3666 = vmatpush1.msra.mxu0 0.0
    %3667 = vmatprep.subr.mxu0 0.0
    %3668 = vmatpush1.msra.mxu0 0.0
    %3669 = vmatprep.subr.mxu0 0.0
    %3670 = vmatpush1.msra.mxu0 0.0
    %3671 = vmatprep.subr.mxu0 0.0
    %3672 = vmatpush1.msra.mxu0 0.0
    %3673 = vmatprep.subr.mxu0 0.0
    %3674 = vmatpush1.msra.mxu0 0.0
    %3675 = vmatprep.subr.mxu0 0.0
    %3676 = vmatpush1.msra.mxu0 0.0
    %3677 = vmatprep.subr.mxu0 0.0
    %3678 = vmatpush1.msra.mxu0 0.0
    %3679 = vmatprep.subr.mxu0 0.0
    %3680 = vmatpush1.msra.mxu0 0.0
    %3681 = vmatprep.subr.mxu0 0.0
    %3682 = vmatpush1.msra.mxu0 0.0
    %3683 = vmatprep.subr.mxu0 0.0
    %3684 = vmatpush1.msra.mxu0 0.0
    %3685 = vmatprep.subr.mxu0 0.0
    %3686 = vmatpush1.msra.mxu0 0.0
    %3687 = vmatprep.subr.mxu0 0.0
    %3688 = vmatpush1.msra.mxu0 0.0
    %3689 = vmatprep.subr.mxu0 0.0
    %3690 = vmatpush1.msra.mxu0 0.0
    %3691 = vmatprep.subr.mxu0 0.0
    %3692 = vmatpush1.msra.mxu0 0.0
    %3693 = vmatprep.subr.mxu0 0.0
    %3694 = vmatpush1.msra.mxu0 0.0
    %3695 = vmatprep.subr.mxu0 0.0
    %3696 = vmatpush1.msra.mxu0 0.0
    %3697 = vmatprep.subr.mxu0 0.0
    %3698 = vmatpush1.msra.mxu0 0.0
    %3699 = vmatprep.subr.mxu0 0.0
    %3700 = vmatpush1.msra.mxu0 0.0
    %3701 = vmatprep.subr.mxu0 0.0
    %3702 = vmatpush1.msra.mxu0 0.0
    %3703 = vmatprep.subr.mxu0 0.0
    %3704 = vmatpush1.msra.mxu0 0.0
    %3705 = vmatprep.subr.mxu0 0.0
    %3706 = vmatpush1.msra.mxu0 0.0
    %3707 = vmatprep.subr.mxu0 0.0
    %3708 = vmatpush1.msra.mxu0 0.0
    %3709 = vmatprep.subr.mxu0 0.0
    %3710 = vmatpush1.msra.mxu0 0.0
    %3711 = vmatprep.mubr.f32.mxu0 0.0
    %3712 = vmatmul.mubr.f32.gmra.mrb[0].mxu0 %v3645
    %v3713 = vpop.f32.mrb[0].mxu0
    %v3714 = vadd.f32 0.0, %v3713
    %v3715 = vpop.f32.mrb[0].mxu0
    %3716 = vdwg.mxu0
    %3718 = vrot.lane.b32.xlu0 %v3714, 24
    %v3719 = vpop.permute.xlu0 %3718
    %3721 = vst.msk [vmem:[#allocation2 + $0x8] sm:$0xff] %vm1211, %v3719
    %v3722 = vld [vmem:[#allocation2] sm:$0xff]
    %v3723 = vld [vmem:[#allocation2 + $0x8] sm:$0xff]
    %s3724 = scalar_lea.vmem [#allocation11], 32
    %v3725 = vld [vmem:[%s3724] sm:$0xff]
    %v3726 = vld [vmem:[%s3724 + $0x8] sm:$0xff]
    %v3727 = vld [vmem:[%s3724 + $0x10] sm:$0xff]
    %v3728 = vld [vmem:[%s3724 + $0x18] sm:$0xff]
    %s3729 = scalar_lea.vmem [#allocation12], 1
    %v3730 = vld [vmem:[%s3729] sm:$0x1]
    %v3732 = vlaneseq
    %v3733 = vshrl.u32 %v3732, 7
    %v3734 = vsub.s32 0, %v3733
    %v3735 = vrot.slane %v3730, %v3734
    %v3738 = vsel %vm352, %v3722, 0
    %v3741 = vsel %vm352, %v3723, 0
    %3743 = vmatprep.subr.mxu0 0.0
    %3744 = vmatpush1.msra.mxu0 %v3725
    %3745 = vmatprep.subr.mxu0 0.0
    %3746 = vmatpush1.msra.mxu0 %v3726
    %3747 = vmatprep.subr.mxu0 0.0
    %3748 = vmatpush1.msra.mxu0 %v3727
    %3749 = vmatprep.subr.mxu0 0.0
    %3750 = vmatpush1.msra.mxu0 %v3728
    %3751 = vmatprep.subr.mxu0 0.0
    %3752 = vmatpush1.msra.mxu0 0.0
    %3753 = vmatprep.subr.mxu0 0.0
    %3754 = vmatpush1.msra.mxu0 0.0
    %3755 = vmatprep.subr.mxu0 0.0
    %3756 = vmatpush1.msra.mxu0 0.0
    %3757 = vmatprep.subr.mxu0 0.0
    %3758 = vmatpush1.msra.mxu0 0.0
    %3759 = vmatprep.subr.mxu0 0.0
    %3760 = vmatpush1.msra.mxu0 0.0
    %3761 = vmatprep.subr.mxu0 0.0
    %3762 = vmatpush1.msra.mxu0 0.0
    %3763 = vmatprep.subr.mxu0 0.0
    %3764 = vmatpush1.msra.mxu0 0.0
    %3765 = vmatprep.subr.mxu0 0.0
    %3766 = vmatpush1.msra.mxu0 0.0
    %3767 = vmatprep.subr.mxu0 0.0
    %3768 = vmatpush1.msra.mxu0 0.0
    %3769 = vmatprep.subr.mxu0 0.0
    %3770 = vmatpush1.msra.mxu0 0.0
    %3771 = vmatprep.subr.mxu0 0.0
    %3772 = vmatpush1.msra.mxu0 0.0
    %3773 = vmatprep.subr.mxu0 0.0
    %3774 = vmatpush1.msra.mxu0 0.0
    %3775 = vmatprep.subr.mxu0 0.0
    %3776 = vmatpush1.msra.mxu0 0.0
    %3777 = vmatprep.subr.mxu0 0.0
    %3778 = vmatpush1.msra.mxu0 0.0
    %3779 = vmatprep.subr.mxu0 0.0
    %3780 = vmatpush1.msra.mxu0 0.0
    %3781 = vmatprep.subr.mxu0 0.0
    %3782 = vmatpush1.msra.mxu0 0.0
    %3783 = vmatprep.subr.mxu0 0.0
    %3784 = vmatpush1.msra.mxu0 0.0
    %3785 = vmatprep.subr.mxu0 0.0
    %3786 = vmatpush1.msra.mxu0 0.0
    %3787 = vmatprep.subr.mxu0 0.0
    %3788 = vmatpush1.msra.mxu0 0.0
    %3789 = vmatprep.subr.mxu0 0.0
    %3790 = vmatpush1.msra.mxu0 0.0
    %3791 = vmatprep.subr.mxu0 0.0
    %3792 = vmatpush1.msra.mxu0 0.0
    %3793 = vmatprep.subr.mxu0 0.0
    %3794 = vmatpush1.msra.mxu0 0.0
    %3795 = vmatprep.subr.mxu0 0.0
    %3796 = vmatpush1.msra.mxu0 0.0
    %3797 = vmatprep.subr.mxu0 0.0
    %3798 = vmatpush1.msra.mxu0 0.0
    %3799 = vmatprep.subr.mxu0 0.0
    %3800 = vmatpush1.msra.mxu0 0.0
    %3801 = vmatprep.subr.mxu0 0.0
    %3802 = vmatpush1.msra.mxu0 0.0
    %3803 = vmatprep.subr.mxu0 0.0
    %3804 = vmatpush1.msra.mxu0 0.0
    %3805 = vmatprep.subr.mxu0 0.0
    %3806 = vmatpush1.msra.mxu0 0.0
    %3807 = vmatprep.mubr.f32.mxu0 0.0
    %3808 = vmatmul.mubr.f32.gmra.mrb[0].mxu0 %v3738
    %v3809 = vpop.f32.mrb[0].mxu0
    %v3810 = vadd.f32 %v3735, %v3809
    %v3811 = vpop.f32.mrb[0].mxu0
    %3812 = vmatprep.mubr.f32.mxu0 0.0
    %3813 = vmatmul.mubr.f32.gmra.mrb[0].mxu0 %v3741
    %v3814 = vpop.f32.mrb[0].mxu0
    %v3815 = vadd.f32 %v3735, %v3814
    %v3816 = vpop.f32.mrb[0].mxu0
    %3817 = vdwg.mxu0
    %v3818 = vadd.f32 %v2268, %v3810
    %v3819 = vadd.f32 %v2269, %v3815
    %s3820 = scalar_lea.vmem [#allocation18], 1
    %v3821 = vld [vmem:[%s3820] sm:$0x1]
    %s3822 = scalar_lea.vmem [#allocation20], 1
    %v3823 = vld [vmem:[%s3822] sm:$0x1]
    %v3824 = vsel %vm352, %v3818, 0.0
    %3825 = vadd.xlane.f32.xlu0 %v3824
    %v3826 = vpop.xlane.xlu0 %3825
    %v3827 = vsel %vm352, %v3819, 0.0
    %3828 = vadd.xlane.f32.xlu0 %v3827
    %v3829 = vpop.xlane.xlu0 %3828
    %v3830 = vmul.f32 %v3826, %v1996
    %v3831 = vmul.f32 %v3829, %v1996
    %v3832 = vsub.f32 %v3818, %v3830
    %v3833 = vsub.f32 %v3819, %v3831
    %v3834 = vmul.f32 %v3832, %v3832
    %v3835 = vmul.f32 %v3833, %v3833
    %v3836 = vsel %vm352, %v3834, 0.0
    %3837 = vadd.xlane.f32.xlu0 %v3836
    %v3838 = vpop.xlane.xlu0 %3837
    %v3839 = vsel %vm352, %v3835, 0.0
    %3840 = vadd.xlane.f32.xlu0 %v3839
    %v3841 = vpop.xlane.xlu0 %3840
    %v3842 = vmul.f32 %v3838, %v1996
    %v3843 = vmul.f32 %v3841, %v1996
    %v3844 = vadd.f32 %v3842, 1e-05
    %v3845 = vadd.f32 %v3843, 1e-05
    %v3846 = vrsqrt.pop %v3844
    %v3847 = vrsqrt.pop %v3845
    %v3848 = vmul.f32 %v3832, %v3846
    %v3849 = vmul.f32 %v3833, %v3847
    %v3851 = vlaneseq
    %v3852 = vshrl.u32 %v3851, 7
    %v3853 = vsub.s32 0, %v3852
    %v3854 = vrot.slane %v3821, %v3853
    %v3856 = vmul.f32 %v3848, %v3854
    %v3857 = vmul.f32 %v3849, %v3854
    %v3859 = vlaneseq
    %v3860 = vshrl.u32 %v3859, 7
    %v3861 = vsub.s32 0, %v3860
    %v3862 = vrot.slane %v3823, %v3861
    %v3864 = vadd.f32 %v3856, %v3862
    %v3865 = vadd.f32 %v3857, %v3862
    %s3866 = scalar_lea.vmem [#allocation14], 32
    %v3867 = vld [vmem:[%s3866] sm:$0xff]
    %v3868 = vld [vmem:[%s3866 + $0x8] sm:$0xff]
    %v3869 = vld [vmem:[%s3866 + $0x10] sm:$0xff]
    %v3870 = vld [vmem:[%s3866 + $0x18] sm:$0xff]
    %s3871 = scalar_lea.vmem [#allocation15], 1
    %v3872 = vld [vmem:[%s3871] sm:$0x1]
    %v3874 = vlaneseq
    %v3875 = vshrl.u32 %v3874, 7
    %v3876 = vsub.s32 0, %v3875
    %v3877 = vrot.slane %v3872, %v3876
    %v3880 = vsel %vm352, %v3864, 0
    %v3883 = vsel %vm352, %v3865, 0
    %3885 = vmatprep.subr.mxu0 0.0
    %3886 = vmatpush1.msra.mxu0 %v3867
    %3887 = vmatprep.subr.mxu0 0.0
    %3888 = vmatpush1.msra.mxu0 %v3868
    %3889 = vmatprep.subr.mxu0 0.0
    %3890 = vmatpush1.msra.mxu0 %v3869
    %3891 = vmatprep.subr.mxu0 0.0
    %3892 = vmatpush1.msra.mxu0 %v3870
    %3893 = vmatprep.subr.mxu0 0.0
    %3894 = vmatpush1.msra.mxu0 0.0
    %3895 = vmatprep.subr.mxu0 0.0
    %3896 = vmatpush1.msra.mxu0 0.0
    %3897 = vmatprep.subr.mxu0 0.0
    %3898 = vmatpush1.msra.mxu0 0.0
    %3899 = vmatprep.subr.mxu0 0.0
    %3900 = vmatpush1.msra.mxu0 0.0
    %3901 = vmatprep.subr.mxu0 0.0
    %3902 = vmatpush1.msra.mxu0 0.0
    %3903 = vmatprep.subr.mxu0 0.0
    %3904 = vmatpush1.msra.mxu0 0.0
    %3905 = vmatprep.subr.mxu0 0.0
    %3906 = vmatpush1.msra.mxu0 0.0
    %3907 = vmatprep.subr.mxu0 0.0
    %3908 = vmatpush1.msra.mxu0 0.0
    %3909 = vmatprep.subr.mxu0 0.0
    %3910 = vmatpush1.msra.mxu0 0.0
    %3911 = vmatprep.subr.mxu0 0.0
    %3912 = vmatpush1.msra.mxu0 0.0
    %3913 = vmatprep.subr.mxu0 0.0
    %3914 = vmatpush1.msra.mxu0 0.0
    %3915 = vmatprep.subr.mxu0 0.0
    %3916 = vmatpush1.msra.mxu0 0.0
    %3917 = vmatprep.subr.mxu0 0.0
    %3918 = vmatpush1.msra.mxu0 0.0
    %3919 = vmatprep.subr.mxu0 0.0
    %3920 = vmatpush1.msra.mxu0 0.0
    %3921 = vmatprep.subr.mxu0 0.0
    %3922 = vmatpush1.msra.mxu0 0.0
    %3923 = vmatprep.subr.mxu0 0.0
    %3924 = vmatpush1.msra.mxu0 0.0
    %3925 = vmatprep.subr.mxu0 0.0
    %3926 = vmatpush1.msra.mxu0 0.0
    %3927 = vmatprep.subr.mxu0 0.0
    %3928 = vmatpush1.msra.mxu0 0.0
    %3929 = vmatprep.subr.mxu0 0.0
    %3930 = vmatpush1.msra.mxu0 0.0
    %3931 = vmatprep.subr.mxu0 0.0
    %3932 = vmatpush1.msra.mxu0 0.0
    %3933 = vmatprep.subr.mxu0 0.0
    %3934 = vmatpush1.msra.mxu0 0.0
    %3935 = vmatprep.subr.mxu0 0.0
    %3936 = vmatpush1.msra.mxu0 0.0
    %3937 = vmatprep.subr.mxu0 0.0
    %3938 = vmatpush1.msra.mxu0 0.0
    %3939 = vmatprep.subr.mxu0 0.0
    %3940 = vmatpush1.msra.mxu0 0.0
    %3941 = vmatprep.subr.mxu0 0.0
    %3942 = vmatpush1.msra.mxu0 0.0
    %3943 = vmatprep.subr.mxu0 0.0
    %3944 = vmatpush1.msra.mxu0 0.0
    %3945 = vmatprep.subr.mxu0 0.0
    %3946 = vmatpush1.msra.mxu0 0.0
    %3947 = vmatprep.subr.mxu0 0.0
    %3948 = vmatpush1.msra.mxu0 0.0
    %3949 = vmatprep.mubr.f32.mxu0 0.0
    %3950 = vmatmul.mubr.f32.gmra.mrb[0].mxu0 %v3880
    %v3951 = vpop.f32.mrb[0].mxu0
    %v3952 = vadd.f32 %v3877, %v3951
    %v3953 = vpop.f32.mrb[0].mxu0
    %3954 = vmatprep.mubr.f32.mxu0 0.0
    %3955 = vmatmul.mubr.f32.gmra.mrb[0].mxu0 %v3883
    %v3956 = vpop.f32.mrb[0].mxu0
    %v3957 = vadd.f32 %v3877, %v3956
    %v3958 = vpop.f32.mrb[0].mxu0
    %3959 = vdwg.mxu0
    %v3960 = vmax.f32 %v3952, 0.0
    %v3961 = vmax.f32 %v3957, 0.0
    %s3962 = scalar_lea.vmem %s10, 64
    %v3963 = vld [vmem:[%s3962] sm:$0xff]
    %v3964 = vld [vmem:[%s3962 + $0x8] sm:$0xff]
    %v3965 = vld [vmem:[%s3962 + $0x10] sm:$0xff]
    %v3966 = vld [vmem:[%s3962 + $0x18] sm:$0xff]
    %v3967 = vld [vmem:[%s3962 + $0x20] sm:$0xff]
    %v3968 = vld [vmem:[%s3962 + $0x28] sm:$0xff]
    %v3969 = vld [vmem:[%s3962 + $0x30] sm:$0xff]
    %v3970 = vld [vmem:[%s3962 + $0x38] sm:$0xff]
    %s3971 = scalar_lea.vmem [#allocation17], 1
    %v3972 = vld [vmem:[%s3971] sm:$0x1]
    %v3974 = vlaneseq
    %v3975 = vshrl.u32 %v3974, 7
    %v3976 = vsub.s32 0, %v3975
    %v3977 = vrot.slane %v3972, %v3976
    %v3980 = vsel %vm2142, %v3960, 0
    %v3983 = vsel %vm2142, %v3961, 0
    %3985 = vmatprep.subr.mxu0 0.0
    %3986 = vmatpush1.msra.mxu0 %v3963
    %3987 = vmatprep.subr.mxu0 0.0
    %3988 = vmatpush1.msra.mxu0 %v3964
    %3989 = vmatprep.subr.mxu0 0.0
    %3990 = vmatpush1.msra.mxu0 %v3965
    %3991 = vmatprep.subr.mxu0 0.0
    %3992 = vmatpush1.msra.mxu0 %v3966
    %3993 = vmatprep.subr.mxu0 0.0
    %3994 = vmatpush1.msra.mxu0 %v3967
    %3995 = vmatprep.subr.mxu0 0.0
    %3996 = vmatpush1.msra.mxu0 %v3968
    %3997 = vmatprep.subr.mxu0 0.0
    %3998 = vmatpush1.msra.mxu0 %v3969
    %3999 = vmatprep.subr.mxu0 0.0
    %4000 = vmatpush1.msra.mxu0 %v3970
    %4001 = vmatprep.subr.mxu0 0.0
    %4002 = vmatpush1.msra.mxu0 0.0
    %4003 = vmatprep.subr.mxu0 0.0
    %4004 = vmatpush1.msra.mxu0 0.0
    %4005 = vmatprep.subr.mxu0 0.0
    %4006 = vmatpush1.msra.mxu0 0.0
    %4007 = vmatprep.subr.mxu0 0.0
    %4008 = vmatpush1.msra.mxu0 0.0
    %4009 = vmatprep.subr.mxu0 0.0
    %4010 = vmatpush1.msra.mxu0 0.0
    %4011 = vmatprep.subr.mxu0 0.0
    %4012 = vmatpush1.msra.mxu0 0.0
    %4013 = vmatprep.subr.mxu0 0.0
    %4014 = vmatpush1.msra.mxu0 0.0
    %4015 = vmatprep.subr.mxu0 0.0
    %4016 = vmatpush1.msra.mxu0 0.0
    %4017 = vmatprep.subr.mxu0 0.0
    %4018 = vmatpush1.msra.mxu0 0.0
    %4019 = vmatprep.subr.mxu0 0.0
    %4020 = vmatpush1.msra.mxu0 0.0
    %4021 = vmatprep.subr.mxu0 0.0
    %4022 = vmatpush1.msra.mxu0 0.0
    %4023 = vmatprep.subr.mxu0 0.0
    %4024 = vmatpush1.msra.mxu0 0.0
    %4025 = vmatprep.subr.mxu0 0.0
    %4026 = vmatpush1.msra.mxu0 0.0
    %4027 = vmatprep.subr.mxu0 0.0
    %4028 = vmatpush1.msra.mxu0 0.0
    %4029 = vmatprep.subr.mxu0 0.0
    %4030 = vmatpush1.msra.mxu0 0.0
    %4031 = vmatprep.subr.mxu0 0.0
    %4032 = vmatpush1.msra.mxu0 0.0
    %4033 = vmatprep.subr.mxu0 0.0
    %4034 = vmatpush1.msra.mxu0 0.0
    %4035 = vmatprep.subr.mxu0 0.0
    %4036 = vmatpush1.msra.mxu0 0.0
    %4037 = vmatprep.subr.mxu0 0.0
    %4038 = vmatpush1.msra.mxu0 0.0
    %4039 = vmatprep.subr.mxu0 0.0
    %4040 = vmatpush1.msra.mxu0 0.0
    %4041 = vmatprep.subr.mxu0 0.0
    %4042 = vmatpush1.msra.mxu0 0.0
    %4043 = vmatprep.subr.mxu0 0.0
    %4044 = vmatpush1.msra.mxu0 0.0
    %4045 = vmatprep.subr.mxu0 0.0
    %4046 = vmatpush1.msra.mxu0 0.0
    %4047 = vmatprep.subr.mxu0 0.0
    %4048 = vmatpush1.msra.mxu0 0.0
    %4049 = vmatprep.mubr.f32.mxu0 0.0
    %4050 = vmatmul.mubr.f32.gmra.mrb[0].mxu0 %v3980
    %v4051 = vpop.f32.mrb[0].mxu0
    %v4052 = vadd.f32 %v3977, %v4051
    %v4053 = vpop.f32.mrb[0].mxu0
    %4054 = vmatprep.mubr.f32.mxu0 0.0
    %4055 = vmatmul.mubr.f32.gmra.mrb[0].mxu0 %v3983
    %v4056 = vpop.f32.mrb[0].mxu0
    %v4057 = vadd.f32 %v3977, %v4056
    %v4058 = vpop.f32.mrb[0].mxu0
    %4059 = vdwg.mxu0
    %v4060 = vadd.f32 %v3864, %v4052
    %v4061 = vadd.f32 %v3865, %v4057
    %s4062 = scalar_lea.vmem [#allocation21], 1
    %v4063 = vld [vmem:[%s4062] sm:$0x1]
    %s4064 = scalar_lea.vmem [#allocation23], 1
    %v4065 = vld [vmem:[%s4064] sm:$0x1]
    %v4066 = vsel %vm352, %v4060, 0.0
    %4067 = vadd.xlane.f32.xlu0 %v4066
    %v4068 = vpop.xlane.xlu0 %4067
    %v4069 = vsel %vm352, %v4061, 0.0
    %4070 = vadd.xlane.f32.xlu0 %v4069
    %v4071 = vpop.xlane.xlu0 %4070
    %v4072 = vmul.f32 %v4068, %v1996
    %v4073 = vmul.f32 %v4071, %v1996
    %v4074 = vsub.f32 %v4060, %v4072
    %v4075 = vsub.f32 %v4061, %v4073
    %v4076 = vmul.f32 %v4074, %v4074
    %v4077 = vmul.f32 %v4075, %v4075
    %v4078 = vsel %vm352, %v4076, 0.0
    %4079 = vadd.xlane.f32.xlu0 %v4078
    %v4080 = vpop.xlane.xlu0 %4079
    %v4081 = vsel %vm352, %v4077, 0.0
    %4082 = vadd.xlane.f32.xlu0 %v4081
    %v4083 = vpop.xlane.xlu0 %4082
    %v4084 = vmul.f32 %v4080, %v1996
    %v4085 = vmul.f32 %v4083, %v1996
    %v4086 = vadd.f32 %v4084, 1e-05
    %v4087 = vadd.f32 %v4085, 1e-05
    %v4088 = vrsqrt.pop %v4086
    %v4089 = vrsqrt.pop %v4087
    %v4090 = vmul.f32 %v4074, %v4088
    %v4091 = vmul.f32 %v4075, %v4089
    %v4093 = vlaneseq
    %v4094 = vshrl.u32 %v4093, 7
    %v4095 = vsub.s32 0, %v4094
    %v4096 = vrot.slane %v4063, %v4095
    %v4098 = vmul.f32 %v4090, %v4096
    %v4099 = vmul.f32 %v4091, %v4096
    %v4101 = vlaneseq
    %v4102 = vshrl.u32 %v4101, 7
    %v4103 = vsub.s32 0, %v4102
    %v4104 = vrot.slane %v4065, %v4103
    %v4106 = vadd.f32 %v4098, %v4104
    %v4107 = vadd.f32 %v4099, %v4104
    %v4108 = vadd.f32 %v4106, %v4107
    %v4109 = vmul.f32 %v4108, 0.5
    %v4110 = vld [vmem:[#allocation24] sm:$0xff]
    %v4111 = vld [vmem:[#allocation24 + $0x8] sm:$0xff]
    %v4112 = vld [vmem:[#allocation24 + $0x10] sm:$0xff]
    %v4113 = vld [vmem:[#allocation24 + $0x18] sm:$0xff]
    %v4114 = vld [vmem:[#allocation24 + $0x20] sm:$0xff]
    %v4115 = vld [vmem:[#allocation24 + $0x28] sm:$0xff]
    %v4116 = vld [vmem:[#allocation24 + $0x30] sm:$0xff]
    %v4117 = vld [vmem:[#allocation24 + $0x38] sm:$0xff]
    %v4118 = vld [vmem:[#allocation24 + $0x40] sm:$0xff]
    %v4119 = vld [vmem:[#allocation24 + $0x48] sm:$0xff]
    %v4120 = vld [vmem:[#allocation24 + $0x50] sm:$0xff]
    %v4121 = vld [vmem:[#allocation24 + $0x58] sm:$0xff]
    %v4122 = vld [vmem:[#allocation24 + $0x60] sm:$0xff]
    %v4123 = vld [vmem:[#allocation24 + $0x68] sm:$0xff]
    %v4124 = vld [vmem:[#allocation24 + $0x70] sm:$0xff]
    %v4125 = vld [vmem:[#allocation24 + $0x78] sm:$0xff]
    %v4126 = vld [vmem:[#allocation24 + $0x80] sm:$0xff]
    %v4127 = vld [vmem:[#allocation24 + $0x88] sm:$0xff]
    %v4128 = vld [vmem:[#allocation24 + $0x90] sm:$0xff]
    %v4129 = vld [vmem:[#allocation24 + $0x98] sm:$0xff]
    %v4130 = vld [vmem:[#allocation24 + $0xa0] sm:$0xff]
    %v4131 = vld [vmem:[#allocation24 + $0xa8] sm:$0xff]
    %v4132 = vld [vmem:[#allocation24 + $0xb0] sm:$0xff]
    %v4133 = vld [vmem:[#allocation24 + $0xb8] sm:$0xff]
    %v4134 = vld [vmem:[#allocation24 + $0xc0] sm:$0xff]
    %v4135 = vld [vmem:[#allocation24 + $0xc8] sm:$0xff]
    %v4136 = vld [vmem:[#allocation24 + $0xd0] sm:$0xff]
    %v4137 = vld [vmem:[#allocation24 + $0xd8] sm:$0xff]
    %v4138 = vld [vmem:[#allocation24 + $0xe0] sm:$0xff]
    %v4139 = vld [vmem:[#allocation24 + $0xe8] sm:$0xff]
    %v4140 = vld [vmem:[#allocation24 + $0xf0] sm:$0xff]
    %v4141 = vld [vmem:[#allocation24 + $0xf8] sm:$0xff]
    %v4142 = vld [vmem:[#allocation26] sm:$0xff]
    %v4144 = vlaneseq
    %v4145 = vshrl.u32 %v4144, 7
    %v4146 = vsub.s32 0, %v4145
    %v4147 = vrot.slane %v4142, %v4146
    %v4148 = vlaneseq
    %v4149 = vshrl.u32 %v4148, 7
    %v4150 = vsub.s32 1, %v4149
    %v4151 = vrot.slane %v4142, %v4150
    %v4152 = vlaneseq
    %v4153 = vshrl.u32 %v4152, 7
    %v4154 = vsub.s32 2, %v4153
    %v4155 = vrot.slane %v4142, %v4154
    %v4156 = vlaneseq
    %v4157 = vshrl.u32 %v4156, 7
    %v4158 = vsub.s32 3, %v4157
    %v4159 = vrot.slane %v4142, %v4158
    %v4160 = vlaneseq
    %v4161 = vshrl.u32 %v4160, 7
    %v4162 = vsub.s32 4, %v4161
    %v4163 = vrot.slane %v4142, %v4162
    %v4164 = vlaneseq
    %v4165 = vshrl.u32 %v4164, 7
    %v4166 = vsub.s32 5, %v4165
    %v4167 = vrot.slane %v4142, %v4166
    %v4168 = vlaneseq
    %v4169 = vshrl.u32 %v4168, 7
    %v4170 = vsub.s32 6, %v4169
    %v4171 = vrot.slane %v4142, %v4170
    %v4172 = vlaneseq
    %v4173 = vshrl.u32 %v4172, 7
    %v4174 = vsub.s32 7, %v4173
    %v4175 = vrot.slane %v4142, %v4174
    %v4185 = vsel %vm352, %v4109, 0
    %4187 = vmatprep.subr.mxu0 %v4111
    %4188 = vmatpush1.msra.mxu0 %v4110
    %4189 = vmatprep.subr.mxu0 %v4119
    %4190 = vmatpush1.msra.mxu0 %v4118
    %4191 = vmatprep.subr.mxu0 %v4127
    %4192 = vmatpush1.msra.mxu0 %v4126
    %4193 = vmatprep.subr.mxu0 %v4135
    %4194 = vmatpush1.msra.mxu0 %v4134
    %4195 = vmatprep.subr.mxu0 0.0
    %4196 = vmatpush1.msra.mxu0 0.0
    %4197 = vmatprep.subr.mxu0 0.0
    %4198 = vmatpush1.msra.mxu0 0.0
    %4199 = vmatprep.subr.mxu0 0.0
    %4200 = vmatpush1.msra.mxu0 0.0
    %4201 = vmatprep.subr.mxu0 0.0
    %4202 = vmatpush1.msra.mxu0 0.0
    %4203 = vmatprep.subr.mxu0 0.0
    %4204 = vmatpush1.msra.mxu0 0.0
    %4205 = vmatprep.subr.mxu0 0.0
    %4206 = vmatpush1.msra.mxu0 0.0
    %4207 = vmatprep.subr.mxu0 0.0
    %4208 = vmatpush1.msra.mxu0 0.0
    %4209 = vmatprep.subr.mxu0 0.0
    %4210 = vmatpush1.msra.mxu0 0.0
    %4211 = vmatprep.subr.mxu0 0.0
    %4212 = vmatpush1.msra.mxu0 0.0
    %4213 = vmatprep.subr.mxu0 0.0
    %4214 = vmatpush1.msra.mxu0 0.0
    %4215 = vmatprep.subr.mxu0 0.0
    %4216 = vmatpush1.msra.mxu0 0.0
    %4217 = vmatprep.subr.mxu0 0.0
    %4218 = vmatpush1.msra.mxu0 0.0
    %4219 = vmatprep.subr.mxu0 0.0
    %4220 = vmatpush1.msra.mxu0 0.0
    %4221 = vmatprep.subr.mxu0 0.0
    %4222 = vmatpush1.msra.mxu0 0.0
    %4223 = vmatprep.subr.mxu0 0.0
    %4224 = vmatpush1.msra.mxu0 0.0
    %4225 = vmatprep.subr.mxu0 0.0
    %4226 = vmatpush1.msra.mxu0 0.0
    %4227 = vmatprep.subr.mxu0 0.0
    %4228 = vmatpush1.msra.mxu0 0.0
    %4229 = vmatprep.subr.mxu0 0.0
    %4230 = vmatpush1.msra.mxu0 0.0
    %4231 = vmatprep.subr.mxu0 0.0
    %4232 = vmatpush1.msra.mxu0 0.0
    %4233 = vmatprep.subr.mxu0 0.0
    %4234 = vmatpush1.msra.mxu0 0.0
    %4235 = vmatprep.subr.mxu0 0.0
    %4236 = vmatpush1.msra.mxu0 0.0
    %4237 = vmatprep.subr.mxu0 0.0
    %4238 = vmatpush1.msra.mxu0 0.0
    %4239 = vmatprep.subr.mxu0 0.0
    %4240 = vmatpush1.msra.mxu0 0.0
    %4241 = vmatprep.subr.mxu0 0.0
    %4242 = vmatpush1.msra.mxu0 0.0
    %4243 = vmatprep.subr.mxu0 0.0
    %4244 = vmatpush1.msra.mxu0 0.0
    %4245 = vmatprep.subr.mxu0 0.0
    %4246 = vmatpush1.msra.mxu0 0.0
    %4247 = vmatprep.subr.mxu0 0.0
    %4248 = vmatpush1.msra.mxu0 0.0
    %4249 = vmatprep.subr.mxu0 0.0
    %4250 = vmatpush1.msra.mxu0 0.0
    %4251 = vmatprep.mubr.f32.mxu0 0.0
    %4252 = vmatmul.mubr.f32.gmra.mrb[0].mxu0 %v4185
    %v4253 = vpop.f32.mrb[0].mxu0
    %v4254 = vadd.f32 %v4147, %v4253
    %v4255 = vpop.f32.mrb[0].mxu0
    %v4256 = vadd.f32 %v4151, %v4255
    %4257 = vdwg.mxu0
    %4258 = vmatprep.subr.mxu0 %v4113
    %4259 = vmatpush1.msra.mxu0 %v4112
    %4260 = vmatprep.subr.mxu0 %v4121
    %4261 = vmatpush1.msra.mxu0 %v4120
    %4262 = vmatprep.subr.mxu0 %v4129
    %4263 = vmatpush1.msra.mxu0 %v4128
    %4264 = vmatprep.subr.mxu0 %v4137
    %4265 = vmatpush1.msra.mxu0 %v4136
    %4266 = vmatprep.subr.mxu0 0.0
    %4267 = vmatpush1.msra.mxu0 0.0
    %4268 = vmatprep.subr.mxu0 0.0
    %4269 = vmatpush1.msra.mxu0 0.0
    %4270 = vmatprep.subr.mxu0 0.0
    %4271 = vmatpush1.msra.mxu0 0.0
    %4272 = vmatprep.subr.mxu0 0.0
    %4273 = vmatpush1.msra.mxu0 0.0
    %4274 = vmatprep.subr.mxu0 0.0
    %4275 = vmatpush1.msra.mxu0 0.0
    %4276 = vmatprep.subr.mxu0 0.0
    %4277 = vmatpush1.msra.mxu0 0.0
    %4278 = vmatprep.subr.mxu0 0.0
    %4279 = vmatpush1.msra.mxu0 0.0
    %4280 = vmatprep.subr.mxu0 0.0
    %4281 = vmatpush1.msra.mxu0 0.0
    %4282 = vmatprep.subr.mxu0 0.0
    %4283 = vmatpush1.msra.mxu0 0.0
    %4284 = vmatprep.subr.mxu0 0.0
    %4285 = vmatpush1.msra.mxu0 0.0
    %4286 = vmatprep.subr.mxu0 0.0
    %4287 = vmatpush1.msra.mxu0 0.0
    %4288 = vmatprep.subr.mxu0 0.0
    %4289 = vmatpush1.msra.mxu0 0.0
    %4290 = vmatprep.subr.mxu0 0.0
    %4291 = vmatpush1.msra.mxu0 0.0
    %4292 = vmatprep.subr.mxu0 0.0
    %4293 = vmatpush1.msra.mxu0 0.0
    %4294 = vmatprep.subr.mxu0 0.0
    %4295 = vmatpush1.msra.mxu0 0.0
    %4296 = vmatprep.subr.mxu0 0.0
    %4297 = vmatpush1.msra.mxu0 0.0
    %4298 = vmatprep.subr.mxu0 0.0
    %4299 = vmatpush1.msra.mxu0 0.0
    %4300 = vmatprep.subr.mxu0 0.0
    %4301 = vmatpush1.msra.mxu0 0.0
    %4302 = vmatprep.subr.mxu0 0.0
    %4303 = vmatpush1.msra.mxu0 0.0
    %4304 = vmatprep.subr.mxu0 0.0
    %4305 = vmatpush1.msra.mxu0 0.0
    %4306 = vmatprep.subr.mxu0 0.0
    %4307 = vmatpush1.msra.mxu0 0.0
    %4308 = vmatprep.subr.mxu0 0.0
    %4309 = vmatpush1.msra.mxu0 0.0
    %4310 = vmatprep.subr.mxu0 0.0
    %4311 = vmatpush1.msra.mxu0 0.0
    %4312 = vmatprep.subr.mxu0 0.0
    %4313 = vmatpush1.msra.mxu0 0.0
    %4314 = vmatprep.subr.mxu0 0.0
    %4315 = vmatpush1.msra.mxu0 0.0
    %4316 = vmatprep.subr.mxu0 0.0
    %4317 = vmatpush1.msra.mxu0 0.0
    %4318 = vmatprep.subr.mxu0 0.0
    %4319 = vmatpush1.msra.mxu0 0.0
    %4320 = vmatprep.subr.mxu0 0.0
    %4321 = vmatpush1.msra.mxu0 0.0
    %4322 = vmatprep.mubr.f32.mxu0 0.0
    %4323 = vmatmul.mubr.f32.gmra.mrb[0].mxu0 %v4185
    %v4324 = vpop.f32.mrb[0].mxu0
    %v4325 = vadd.f32 %v4155, %v4324
    %v4326 = vpop.f32.mrb[0].mxu0
    %v4327 = vadd.f32 %v4159, %v4326
    %4328 = vdwg.mxu0
    %4329 = vmatprep.subr.mxu0 %v4115
    %4330 = vmatpush1.msra.mxu0 %v4114
    %4331 = vmatprep.subr.mxu0 %v4123
    %4332 = vmatpush1.msra.mxu0 %v4122
    %4333 = vmatprep.subr.mxu0 %v4131
    %4334 = vmatpush1.msra.mxu0 %v4130
    %4335 = vmatprep.subr.mxu0 %v4139
    %4336 = vmatpush1.msra.mxu0 %v4138
    %4337 = vmatprep.subr.mxu0 0.0
    %4338 = vmatpush1.msra.mxu0 0.0
    %4339 = vmatprep.subr.mxu0 0.0
    %4340 = vmatpush1.msra.mxu0 0.0
    %4341 = vmatprep.subr.mxu0 0.0
    %4342 = vmatpush1.msra.mxu0 0.0
    %4343 = vmatprep.subr.mxu0 0.0
    %4344 = vmatpush1.msra.mxu0 0.0
    %4345 = vmatprep.subr.mxu0 0.0
    %4346 = vmatpush1.msra.mxu0 0.0
    %4347 = vmatprep.subr.mxu0 0.0
    %4348 = vmatpush1.msra.mxu0 0.0
    %4349 = vmatprep.subr.mxu0 0.0
    %4350 = vmatpush1.msra.mxu0 0.0
    %4351 = vmatprep.subr.mxu0 0.0
    %4352 = vmatpush1.msra.mxu0 0.0
    %4353 = vmatprep.subr.mxu0 0.0
    %4354 = vmatpush1.msra.mxu0 0.0
    %4355 = vmatprep.subr.mxu0 0.0
    %4356 = vmatpush1.msra.mxu0 0.0
    %4357 = vmatprep.subr.mxu0 0.0
    %4358 = vmatpush1.msra.mxu0 0.0
    %4359 = vmatprep.subr.mxu0 0.0
    %4360 = vmatpush1.msra.mxu0 0.0
    %4361 = vmatprep.subr.mxu0 0.0
    %4362 = vmatpush1.msra.mxu0 0.0
    %4363 = vmatprep.subr.mxu0 0.0
    %4364 = vmatpush1.msra.mxu0 0.0
    %4365 = vmatprep.subr.mxu0 0.0
    %4366 = vmatpush1.msra.mxu0 0.0
    %4367 = vmatprep.subr.mxu0 0.0
    %4368 = vmatpush1.msra.mxu0 0.0
    %4369 = vmatprep.subr.mxu0 0.0
    %4370 = vmatpush1.msra.mxu0 0.0
    %4371 = vmatprep.subr.mxu0 0.0
    %4372 = vmatpush1.msra.mxu0 0.0
    %4373 = vmatprep.subr.mxu0 0.0
    %4374 = vmatpush1.msra.mxu0 0.0
    %4375 = vmatprep.subr.mxu0 0.0
    %4376 = vmatpush1.msra.mxu0 0.0
    %4377 = vmatprep.subr.mxu0 0.0
    %4378 = vmatpush1.msra.mxu0 0.0
    %4379 = vmatprep.subr.mxu0 0.0
    %4380 = vmatpush1.msra.mxu0 0.0
    %4381 = vmatprep.subr.mxu0 0.0
    %4382 = vmatpush1.msra.mxu0 0.0
    %4383 = vmatprep.subr.mxu0 0.0
    %4384 = vmatpush1.msra.mxu0 0.0
    %4385 = vmatprep.subr.mxu0 0.0
    %4386 = vmatpush1.msra.mxu0 0.0
    %4387 = vmatprep.subr.mxu0 0.0
    %4388 = vmatpush1.msra.mxu0 0.0
    %4389 = vmatprep.subr.mxu0 0.0
    %4390 = vmatpush1.msra.mxu0 0.0
    %4391 = vmatprep.subr.mxu0 0.0
    %4392 = vmatpush1.msra.mxu0 0.0
    %4393 = vmatprep.mubr.f32.mxu0 0.0
    %4394 = vmatmul.mubr.f32.gmra.mrb[0].mxu0 %v4185
    %v4395 = vpop.f32.mrb[0].mxu0
    %v4396 = vadd.f32 %v4163, %v4395
    %v4397 = vpop.f32.mrb[0].mxu0
    %v4398 = vadd.f32 %v4167, %v4397
    %4399 = vdwg.mxu0
    %4400 = vmatprep.subr.mxu0 %v4117
    %4401 = vmatpush1.msra.mxu0 %v4116
    %4402 = vmatprep.subr.mxu0 %v4125
    %4403 = vmatpush1.msra.mxu0 %v4124
    %4404 = vmatprep.subr.mxu0 %v4133
    %4405 = vmatpush1.msra.mxu0 %v4132
    %4406 = vmatprep.subr.mxu0 %v4141
    %4407 = vmatpush1.msra.mxu0 %v4140
    %4408 = vmatprep.subr.mxu0 0.0
    %4409 = vmatpush1.msra.mxu0 0.0
    %4410 = vmatprep.subr.mxu0 0.0
    %4411 = vmatpush1.msra.mxu0 0.0
    %4412 = vmatprep.subr.mxu0 0.0
    %4413 = vmatpush1.msra.mxu0 0.0
    %4414 = vmatprep.subr.mxu0 0.0
    %4415 = vmatpush1.msra.mxu0 0.0
    %4416 = vmatprep.subr.mxu0 0.0
    %4417 = vmatpush1.msra.mxu0 0.0
    %4418 = vmatprep.subr.mxu0 0.0
    %4419 = vmatpush1.msra.mxu0 0.0
    %4420 = vmatprep.subr.mxu0 0.0
    %4421 = vmatpush1.msra.mxu0 0.0
    %4422 = vmatprep.subr.mxu0 0.0
    %4423 = vmatpush1.msra.mxu0 0.0
    %4424 = vmatprep.subr.mxu0 0.0
    %4425 = vmatpush1.msra.mxu0 0.0
    %4426 = vmatprep.subr.mxu0 0.0
    %4427 = vmatpush1.msra.mxu0 0.0
    %4428 = vmatprep.subr.mxu0 0.0
    %4429 = vmatpush1.msra.mxu0 0.0
    %4430 = vmatprep.subr.mxu0 0.0
    %4431 = vmatpush1.msra.mxu0 0.0
    %4432 = vmatprep.subr.mxu0 0.0
    %4433 = vmatpush1.msra.mxu0 0.0
    %4434 = vmatprep.subr.mxu0 0.0
    %4435 = vmatpush1.msra.mxu0 0.0
    %4436 = vmatprep.subr.mxu0 0.0
    %4437 = vmatpush1.msra.mxu0 0.0
    %4438 = vmatprep.subr.mxu0 0.0
    %4439 = vmatpush1.msra.mxu0 0.0
    %4440 = vmatprep.subr.mxu0 0.0
    %4441 = vmatpush1.msra.mxu0 0.0
    %4442 = vmatprep.subr.mxu0 0.0
    %4443 = vmatpush1.msra.mxu0 0.0
    %4444 = vmatprep.subr.mxu0 0.0
    %4445 = vmatpush1.msra.mxu0 0.0
    %4446 = vmatprep.subr.mxu0 0.0
    %4447 = vmatpush1.msra.mxu0 0.0
    %4448 = vmatprep.subr.mxu0 0.0
    %4449 = vmatpush1.msra.mxu0 0.0
    %4450 = vmatprep.subr.mxu0 0.0
    %4451 = vmatpush1.msra.mxu0 0.0
    %4452 = vmatprep.subr.mxu0 0.0
    %4453 = vmatpush1.msra.mxu0 0.0
    %4454 = vmatprep.subr.mxu0 0.0
    %4455 = vmatpush1.msra.mxu0 0.0
    %4456 = vmatprep.subr.mxu0 0.0
    %4457 = vmatpush1.msra.mxu0 0.0
    %4458 = vmatprep.subr.mxu0 0.0
    %4459 = vmatpush1.msra.mxu0 0.0
    %4460 = vmatprep.subr.mxu0 0.0
    %4461 = vmatpush1.msra.mxu0 0.0
    %4462 = vmatprep.subr.mxu0 0.0
    %4463 = vmatpush1.msra.mxu0 0.0
    %4464 = vmatprep.mubr.f32.mxu0 0.0
    %4465 = vmatmul.mubr.f32.gmra.mrb[0].mxu0 %v4185
    %v4466 = vpop.f32.mrb[0].mxu0
    %v4467 = vadd.f32 %v4171, %v4466
    %v4468 = vpop.f32.mrb[0].mxu0
    %v4469 = vadd.f32 %v4175, %v4468
    %4470 = vdwg.mxu0
    %v4471 = vmax.f32 %v4254, 0.0
    %v4472 = vmax.f32 %v4256, 0.0
    %v4473 = vmax.f32 %v4325, 0.0
    %v4474 = vmax.f32 %v4327, 0.0
    %v4475 = vmax.f32 %v4396, 0.0
    %v4476 = vmax.f32 %v4398, 0.0
    %v4477 = vmax.f32 %v4467, 0.0
    %v4478 = vmax.f32 %v4469, 0.0
    %v4479 = vld [vmem:[#allocation27] sm:$0xff]
    %v4480 = vld [vmem:[#allocation27 + $0x8] sm:$0xff]
    %v4481 = vld [vmem:[#allocation27 + $0x10] sm:$0xff]
    %v4482 = vld [vmem:[#allocation27 + $0x18] sm:$0xff]
    %v4483 = vld [vmem:[#allocation27 + $0x20] sm:$0xff]
    %v4484 = vld [vmem:[#allocation27 + $0x28] sm:$0xff]
    %v4485 = vld [vmem:[#allocation27 + $0x30] sm:$0xff]
    %v4486 = vld [vmem:[#allocation27 + $0x38] sm:$0xff]
    %v4487 = vld [vmem:[#allocation27 + $0x40] sm:$0xff]
    %v4488 = vld [vmem:[#allocation27 + $0x48] sm:$0xff]
    %v4489 = vld [vmem:[#allocation27 + $0x50] sm:$0xff]
    %v4490 = vld [vmem:[#allocation27 + $0x58] sm:$0xff]
    %v4491 = vld [vmem:[#allocation27 + $0x60] sm:$0xff]
    %v4492 = vld [vmem:[#allocation27 + $0x68] sm:$0xff]
    %v4493 = vld [vmem:[#allocation27 + $0x70] sm:$0xff]
    %v4494 = vld [vmem:[#allocation27 + $0x78] sm:$0xff]
    %v4495 = vld [vmem:[#allocation27 + $0x80] sm:$0xff]
    %v4496 = vld [vmem:[#allocation27 + $0x88] sm:$0xff]
    %v4497 = vld [vmem:[#allocation27 + $0x90] sm:$0xff]
    %v4498 = vld [vmem:[#allocation27 + $0x98] sm:$0xff]
    %v4499 = vld [vmem:[#allocation27 + $0xa0] sm:$0xff]
    %v4500 = vld [vmem:[#allocation27 + $0xa8] sm:$0xff]
    %v4501 = vld [vmem:[#allocation27 + $0xb0] sm:$0xff]
    %v4502 = vld [vmem:[#allocation27 + $0xb8] sm:$0xff]
    %v4503 = vld [vmem:[#allocation27 + $0xc0] sm:$0xff]
    %v4504 = vld [vmem:[#allocation27 + $0xc8] sm:$0xff]
    %v4505 = vld [vmem:[#allocation27 + $0xd0] sm:$0xff]
    %v4506 = vld [vmem:[#allocation27 + $0xd8] sm:$0xff]
    %v4507 = vld [vmem:[#allocation27 + $0xe0] sm:$0xff]
    %v4508 = vld [vmem:[#allocation27 + $0xe8] sm:$0xff]
    %v4509 = vld [vmem:[#allocation27 + $0xf0] sm:$0xff]
    %v4510 = vld [vmem:[#allocation27 + $0xf8] sm:$0xff]
    %v4511 = vld [vmem:[#allocation27 + $0x100] sm:$0xff]
    %v4512 = vld [vmem:[#allocation27 + $0x108] sm:$0xff]
    %v4513 = vld [vmem:[#allocation27 + $0x110] sm:$0xff]
    %v4514 = vld [vmem:[#allocation27 + $0x118] sm:$0xff]
    %v4515 = vld [vmem:[#allocation27 + $0x120] sm:$0xff]
    %v4516 = vld [vmem:[#allocation27 + $0x128] sm:$0xff]
    %v4517 = vld [vmem:[#allocation27 + $0x130] sm:$0xff]
    %v4518 = vld [vmem:[#allocation27 + $0x138] sm:$0xff]
    %v4519 = vld [vmem:[#allocation27 + $0x140] sm:$0xff]
    %v4520 = vld [vmem:[#allocation27 + $0x148] sm:$0xff]
    %v4521 = vld [vmem:[#allocation27 + $0x150] sm:$0xff]
    %v4522 = vld [vmem:[#allocation27 + $0x158] sm:$0xff]
    %v4523 = vld [vmem:[#allocation27 + $0x160] sm:$0xff]
    %v4524 = vld [vmem:[#allocation27 + $0x168] sm:$0xff]
    %v4525 = vld [vmem:[#allocation27 + $0x170] sm:$0xff]
    %v4526 = vld [vmem:[#allocation27 + $0x178] sm:$0xff]
    %v4527 = vld [vmem:[#allocation27 + $0x180] sm:$0xff]
    %v4528 = vld [vmem:[#allocation27 + $0x188] sm:$0xff]
    %v4529 = vld [vmem:[#allocation27 + $0x190] sm:$0xff]
    %v4530 = vld [vmem:[#allocation27 + $0x198] sm:$0xff]
    %v4531 = vld [vmem:[#allocation27 + $0x1a0] sm:$0xff]
    %v4532 = vld [vmem:[#allocation27 + $0x1a8] sm:$0xff]
    %v4533 = vld [vmem:[#allocation27 + $0x1b0] sm:$0xff]
    %v4534 = vld [vmem:[#allocation27 + $0x1b8] sm:$0xff]
    %v4535 = vld [vmem:[#allocation27 + $0x1c0] sm:$0xff]
    %v4536 = vld [vmem:[#allocation27 + $0x1c8] sm:$0xff]
    %v4537 = vld [vmem:[#allocation27 + $0x1d0] sm:$0xff]
    %v4538 = vld [vmem:[#allocation27 + $0x1d8] sm:$0xff]
    %v4539 = vld [vmem:[#allocation27 + $0x1e0] sm:$0xff]
    %v4540 = vld [vmem:[#allocation27 + $0x1e8] sm:$0xff]
    %v4541 = vld [vmem:[#allocation27 + $0x1f0] sm:$0xff]
    %v4542 = vld [vmem:[#allocation27 + $0x1f8] sm:$0xff]
    %v4543 = vld [vmem:[#allocation27 + $0x200] sm:$0xff]
    %v4544 = vld [vmem:[#allocation27 + $0x208] sm:$0xff]
    %v4545 = vld [vmem:[#allocation27 + $0x210] sm:$0xff]
    %v4546 = vld [vmem:[#allocation27 + $0x218] sm:$0xff]
    %v4547 = vld [vmem:[#allocation27 + $0x220] sm:$0xff]
    %v4548 = vld [vmem:[#allocation27 + $0x228] sm:$0xff]
    %v4549 = vld [vmem:[#allocation27 + $0x230] sm:$0xff]
    %v4550 = vld [vmem:[#allocation27 + $0x238] sm:$0xff]
    %v4551 = vld [vmem:[#allocation27 + $0x240] sm:$0xff]
    %v4552 = vld [vmem:[#allocation27 + $0x248] sm:$0xff]
    %v4553 = vld [vmem:[#allocation27 + $0x250] sm:$0xff]
    %v4554 = vld [vmem:[#allocation27 + $0x258] sm:$0xff]
    %v4555 = vld [vmem:[#allocation27 + $0x260] sm:$0xff]
    %v4556 = vld [vmem:[#allocation27 + $0x268] sm:$0xff]
    %v4557 = vld [vmem:[#allocation27 + $0x270] sm:$0xff]
    %v4558 = vld [vmem:[#allocation27 + $0x278] sm:$0xff]
    %v4559 = vld [vmem:[#allocation27 + $0x280] sm:$0xff]
    %v4560 = vld [vmem:[#allocation27 + $0x288] sm:$0xff]
    %v4561 = vld [vmem:[#allocation27 + $0x290] sm:$0xff]
    %v4562 = vld [vmem:[#allocation27 + $0x298] sm:$0xff]
    %v4563 = vld [vmem:[#allocation27 + $0x2a0] sm:$0xff]
    %v4564 = vld [vmem:[#allocation27 + $0x2a8] sm:$0xff]
    %v4565 = vld [vmem:[#allocation27 + $0x2b0] sm:$0xff]
    %v4566 = vld [vmem:[#allocation27 + $0x2b8] sm:$0xff]
    %v4567 = vld [vmem:[#allocation27 + $0x2c0] sm:$0xff]
    %v4568 = vld [vmem:[#allocation27 + $0x2c8] sm:$0xff]
    %v4569 = vld [vmem:[#allocation27 + $0x2d0] sm:$0xff]
    %v4570 = vld [vmem:[#allocation27 + $0x2d8] sm:$0xff]
    %v4571 = vld [vmem:[#allocation27 + $0x2e0] sm:$0xff]
    %v4572 = vld [vmem:[#allocation27 + $0x2e8] sm:$0xff]
    %v4573 = vld [vmem:[#allocation27 + $0x2f0] sm:$0xff]
    %v4574 = vld [vmem:[#allocation27 + $0x2f8] sm:$0xff]
    %v4575 = vld [vmem:[#allocation27 + $0x300] sm:$0xff]
    %v4576 = vld [vmem:[#allocation27 + $0x308] sm:$0xff]
    %v4577 = vld [vmem:[#allocation27 + $0x310] sm:$0xff]
    %v4578 = vld [vmem:[#allocation27 + $0x318] sm:$0xff]
    %v4579 = vld [vmem:[#allocation27 + $0x320] sm:$0xff]
    %v4580 = vld [vmem:[#allocation27 + $0x328] sm:$0xff]
    %v4581 = vld [vmem:[#allocation27 + $0x330] sm:$0xff]
    %v4582 = vld [vmem:[#allocation27 + $0x338] sm:$0xff]
    %v4583 = vld [vmem:[#allocation27 + $0x340] sm:$0xff]
    %v4584 = vld [vmem:[#allocation27 + $0x348] sm:$0xff]
    %v4585 = vld [vmem:[#allocation27 + $0x350] sm:$0xff]
    %v4586 = vld [vmem:[#allocation27 + $0x358] sm:$0xff]
    %v4587 = vld [vmem:[#allocation27 + $0x360] sm:$0xff]
    %v4588 = vld [vmem:[#allocation27 + $0x368] sm:$0xff]
    %v4589 = vld [vmem:[#allocation27 + $0x370] sm:$0xff]
    %v4590 = vld [vmem:[#allocation27 + $0x378] sm:$0xff]
    %v4591 = vld [vmem:[#allocation27 + $0x380] sm:$0xff]
    %v4592 = vld [vmem:[#allocation27 + $0x388] sm:$0xff]
    %v4593 = vld [vmem:[#allocation27 + $0x390] sm:$0xff]
    %v4594 = vld [vmem:[#allocation27 + $0x398] sm:$0xff]
    %v4595 = vld [vmem:[#allocation27 + $0x3a0] sm:$0xff]
    %v4596 = vld [vmem:[#allocation27 + $0x3a8] sm:$0xff]
    %v4597 = vld [vmem:[#allocation27 + $0x3b0] sm:$0xff]
    %v4598 = vld [vmem:[#allocation27 + $0x3b8] sm:$0xff]
    %v4599 = vld [vmem:[#allocation27 + $0x3c0] sm:$0xff]
    %v4600 = vld [vmem:[#allocation27 + $0x3c8] sm:$0xff]
    %v4601 = vld [vmem:[#allocation27 + $0x3d0] sm:$0xff]
    %v4602 = vld [vmem:[#allocation27 + $0x3d8] sm:$0xff]
    %v4603 = vld [vmem:[#allocation27 + $0x3e0] sm:$0xff]
    %v4604 = vld [vmem:[#allocation27 + $0x3e8] sm:$0xff]
    %v4605 = vld [vmem:[#allocation27 + $0x3f0] sm:$0xff]
    %v4606 = vld [vmem:[#allocation27 + $0x3f8] sm:$0xff]
    %v4607 = vld [vmem:[#allocation27 + $0x400] sm:$0xff]
    %v4608 = vld [vmem:[#allocation27 + $0x408] sm:$0xff]
    %v4609 = vld [vmem:[#allocation27 + $0x410] sm:$0xff]
    %v4610 = vld [vmem:[#allocation27 + $0x418] sm:$0xff]
    %v4611 = vld [vmem:[#allocation27 + $0x420] sm:$0xff]
    %v4612 = vld [vmem:[#allocation27 + $0x428] sm:$0xff]
    %v4613 = vld [vmem:[#allocation27 + $0x430] sm:$0xff]
    %v4614 = vld [vmem:[#allocation27 + $0x438] sm:$0xff]
    %v4615 = vld [vmem:[#allocation27 + $0x440] sm:$0xff]
    %v4616 = vld [vmem:[#allocation27 + $0x448] sm:$0xff]
    %v4617 = vld [vmem:[#allocation27 + $0x450] sm:$0xff]
    %v4618 = vld [vmem:[#allocation27 + $0x458] sm:$0xff]
    %v4619 = vld [vmem:[#allocation27 + $0x460] sm:$0xff]
    %v4620 = vld [vmem:[#allocation27 + $0x468] sm:$0xff]
    %v4621 = vld [vmem:[#allocation27 + $0x470] sm:$0xff]
    %v4622 = vld [vmem:[#allocation27 + $0x478] sm:$0xff]
    %v4623 = vld [vmem:[#allocation27 + $0x480] sm:$0xff]
    %v4624 = vld [vmem:[#allocation27 + $0x488] sm:$0xff]
    %v4625 = vld [vmem:[#allocation27 + $0x490] sm:$0xff]
    %v4626 = vld [vmem:[#allocation27 + $0x498] sm:$0xff]
    %v4627 = vld [vmem:[#allocation27 + $0x4a0] sm:$0xff]
    %v4628 = vld [vmem:[#allocation27 + $0x4a8] sm:$0xff]
    %v4629 = vld [vmem:[#allocation27 + $0x4b0] sm:$0xff]
    %v4630 = vld [vmem:[#allocation27 + $0x4b8] sm:$0xff]
    %v4631 = vld [vmem:[#allocation27 + $0x4c0] sm:$0xff]
    %v4632 = vld [vmem:[#allocation27 + $0x4c8] sm:$0xff]
    %v4633 = vld [vmem:[#allocation27 + $0x4d0] sm:$0xff]
    %v4634 = vld [vmem:[#allocation27 + $0x4d8] sm:$0xff]
    %v4635 = vld [vmem:[#allocation27 + $0x4e0] sm:$0xff]
    %v4636 = vld [vmem:[#allocation27 + $0x4e8] sm:$0xff]
    %v4637 = vld [vmem:[#allocation27 + $0x4f0] sm:$0xff]
    %v4638 = vld [vmem:[#allocation27 + $0x4f8] sm:$0xff]
    %v4639 = vld [vmem:[#allocation27 + $0x500] sm:$0xff]
    %v4640 = vld [vmem:[#allocation27 + $0x508] sm:$0xff]
    %v4641 = vld [vmem:[#allocation27 + $0x510] sm:$0xff]
    %v4642 = vld [vmem:[#allocation27 + $0x518] sm:$0xff]
    %v4643 = vld [vmem:[#allocation27 + $0x520] sm:$0xff]
    %v4644 = vld [vmem:[#allocation27 + $0x528] sm:$0xff]
    %v4645 = vld [vmem:[#allocation27 + $0x530] sm:$0xff]
    %v4646 = vld [vmem:[#allocation27 + $0x538] sm:$0xff]
    %v4647 = vld [vmem:[#allocation27 + $0x540] sm:$0xff]
    %v4648 = vld [vmem:[#allocation27 + $0x548] sm:$0xff]
    %v4649 = vld [vmem:[#allocation27 + $0x550] sm:$0xff]
    %v4650 = vld [vmem:[#allocation27 + $0x558] sm:$0xff]
    %v4651 = vld [vmem:[#allocation27 + $0x560] sm:$0xff]
    %v4652 = vld [vmem:[#allocation27 + $0x568] sm:$0xff]
    %v4653 = vld [vmem:[#allocation27 + $0x570] sm:$0xff]
    %v4654 = vld [vmem:[#allocation27 + $0x578] sm:$0xff]
    %v4655 = vld [vmem:[#allocation27 + $0x580] sm:$0xff]
    %v4656 = vld [vmem:[#allocation27 + $0x588] sm:$0xff]
    %v4657 = vld [vmem:[#allocation27 + $0x590] sm:$0xff]
    %v4658 = vld [vmem:[#allocation27 + $0x598] sm:$0xff]
    %v4659 = vld [vmem:[#allocation27 + $0x5a0] sm:$0xff]
    %v4660 = vld [vmem:[#allocation27 + $0x5a8] sm:$0xff]
    %v4661 = vld [vmem:[#allocation27 + $0x5b0] sm:$0xff]
    %v4662 = vld [vmem:[#allocation27 + $0x5b8] sm:$0xff]
    %v4663 = vld [vmem:[#allocation27 + $0x5c0] sm:$0xff]
    %v4664 = vld [vmem:[#allocation27 + $0x5c8] sm:$0xff]
    %v4665 = vld [vmem:[#allocation27 + $0x5d0] sm:$0xff]
    %v4666 = vld [vmem:[#allocation27 + $0x5d8] sm:$0xff]
    %v4667 = vld [vmem:[#allocation27 + $0x5e0] sm:$0xff]
    %v4668 = vld [vmem:[#allocation27 + $0x5e8] sm:$0xff]
    %v4669 = vld [vmem:[#allocation27 + $0x5f0] sm:$0xff]
    %v4670 = vld [vmem:[#allocation27 + $0x5f8] sm:$0xff]
    %v4671 = vld [vmem:[#allocation27 + $0x600] sm:$0xff]
    %v4672 = vld [vmem:[#allocation27 + $0x608] sm:$0xff]
    %v4673 = vld [vmem:[#allocation27 + $0x610] sm:$0xff]
    %v4674 = vld [vmem:[#allocation27 + $0x618] sm:$0xff]
    %v4675 = vld [vmem:[#allocation27 + $0x620] sm:$0xff]
    %v4676 = vld [vmem:[#allocation27 + $0x628] sm:$0xff]
    %v4677 = vld [vmem:[#allocation27 + $0x630] sm:$0xff]
    %v4678 = vld [vmem:[#allocation27 + $0x638] sm:$0xff]
    %v4679 = vld [vmem:[#allocation27 + $0x640] sm:$0xff]
    %v4680 = vld [vmem:[#allocation27 + $0x648] sm:$0xff]
    %v4681 = vld [vmem:[#allocation27 + $0x650] sm:$0xff]
    %v4682 = vld [vmem:[#allocation27 + $0x658] sm:$0xff]
    %v4683 = vld [vmem:[#allocation27 + $0x660] sm:$0xff]
    %v4684 = vld [vmem:[#allocation27 + $0x668] sm:$0xff]
    %v4685 = vld [vmem:[#allocation27 + $0x670] sm:$0xff]
    %v4686 = vld [vmem:[#allocation27 + $0x678] sm:$0xff]
    %v4687 = vld [vmem:[#allocation27 + $0x680] sm:$0xff]
    %v4688 = vld [vmem:[#allocation27 + $0x688] sm:$0xff]
    %v4689 = vld [vmem:[#allocation27 + $0x690] sm:$0xff]
    %v4690 = vld [vmem:[#allocation27 + $0x698] sm:$0xff]
    %v4691 = vld [vmem:[#allocation27 + $0x6a0] sm:$0xff]
    %v4692 = vld [vmem:[#allocation27 + $0x6a8] sm:$0xff]
    %v4693 = vld [vmem:[#allocation27 + $0x6b0] sm:$0xff]
    %v4694 = vld [vmem:[#allocation27 + $0x6b8] sm:$0xff]
    %v4695 = vld [vmem:[#allocation27 + $0x6c0] sm:$0xff]
    %v4696 = vld [vmem:[#allocation27 + $0x6c8] sm:$0xff]
    %v4697 = vld [vmem:[#allocation27 + $0x6d0] sm:$0xff]
    %v4698 = vld [vmem:[#allocation27 + $0x6d8] sm:$0xff]
    %v4699 = vld [vmem:[#allocation27 + $0x6e0] sm:$0xff]
    %v4700 = vld [vmem:[#allocation27 + $0x6e8] sm:$0xff]
    %v4701 = vld [vmem:[#allocation27 + $0x6f0] sm:$0xff]
    %v4702 = vld [vmem:[#allocation27 + $0x6f8] sm:$0xff]
    %v4703 = vld [vmem:[#allocation27 + $0x700] sm:$0xff]
    %v4704 = vld [vmem:[#allocation27 + $0x708] sm:$0xff]
    %v4705 = vld [vmem:[#allocation27 + $0x710] sm:$0xff]
    %v4706 = vld [vmem:[#allocation27 + $0x718] sm:$0xff]
    %v4707 = vld [vmem:[#allocation27 + $0x720] sm:$0xff]
    %v4708 = vld [vmem:[#allocation27 + $0x728] sm:$0xff]
    %v4709 = vld [vmem:[#allocation27 + $0x730] sm:$0xff]
    %v4710 = vld [vmem:[#allocation27 + $0x738] sm:$0xff]
    %v4711 = vld [vmem:[#allocation27 + $0x740] sm:$0xff]
    %v4712 = vld [vmem:[#allocation27 + $0x748] sm:$0xff]
    %v4713 = vld [vmem:[#allocation27 + $0x750] sm:$0xff]
    %v4714 = vld [vmem:[#allocation27 + $0x758] sm:$0xff]
    %v4715 = vld [vmem:[#allocation27 + $0x760] sm:$0xff]
    %v4716 = vld [vmem:[#allocation27 + $0x768] sm:$0xff]
    %v4717 = vld [vmem:[#allocation27 + $0x770] sm:$0xff]
    %v4718 = vld [vmem:[#allocation27 + $0x778] sm:$0xff]
    %v4719 = vld [vmem:[#allocation27 + $0x780] sm:$0xff]
    %v4720 = vld [vmem:[#allocation27 + $0x788] sm:$0xff]
    %v4721 = vld [vmem:[#allocation27 + $0x790] sm:$0xff]
    %v4722 = vld [vmem:[#allocation27 + $0x798] sm:$0xff]
    %v4723 = vld [vmem:[#allocation27 + $0x7a0] sm:$0xff]
    %v4724 = vld [vmem:[#allocation27 + $0x7a8] sm:$0xff]
    %v4725 = vld [vmem:[#allocation27 + $0x7b0] sm:$0xff]
    %v4726 = vld [vmem:[#allocation27 + $0x7b8] sm:$0xff]
    %v4727 = vld [vmem:[#allocation27 + $0x7c0] sm:$0xff]
    %v4728 = vld [vmem:[#allocation27 + $0x7c8] sm:$0xff]
    %v4729 = vld [vmem:[#allocation27 + $0x7d0] sm:$0xff]
    %v4730 = vld [vmem:[#allocation27 + $0x7d8] sm:$0xff]
    %v4731 = vld [vmem:[#allocation27 + $0x7e0] sm:$0xff]
    %v4732 = vld [vmem:[#allocation27 + $0x7e8] sm:$0xff]
    %v4733 = vld [vmem:[#allocation27 + $0x7f0] sm:$0xff]
    %v4734 = vld [vmem:[#allocation27 + $0x7f8] sm:$0xff]
    %v4735 = vld [vmem:[#allocation27 + $0x800] sm:$0xff]
    %v4736 = vld [vmem:[#allocation27 + $0x808] sm:$0xff]
    %v4737 = vld [vmem:[#allocation27 + $0x810] sm:$0xff]
    %v4738 = vld [vmem:[#allocation27 + $0x818] sm:$0xff]
    %v4739 = vld [vmem:[#allocation27 + $0x820] sm:$0xff]
    %v4740 = vld [vmem:[#allocation27 + $0x828] sm:$0xff]
    %v4741 = vld [vmem:[#allocation27 + $0x830] sm:$0xff]
    %v4742 = vld [vmem:[#allocation27 + $0x838] sm:$0xff]
    %v4743 = vld [vmem:[#allocation27 + $0x840] sm:$0xff]
    %v4744 = vld [vmem:[#allocation27 + $0x848] sm:$0xff]
    %v4745 = vld [vmem:[#allocation27 + $0x850] sm:$0xff]
    %v4746 = vld [vmem:[#allocation27 + $0x858] sm:$0xff]
    %v4747 = vld [vmem:[#allocation27 + $0x860] sm:$0xff]
    %v4748 = vld [vmem:[#allocation27 + $0x868] sm:$0xff]
    %v4749 = vld [vmem:[#allocation27 + $0x870] sm:$0xff]
    %v4750 = vld [vmem:[#allocation27 + $0x878] sm:$0xff]
    %v4751 = vld [vmem:[#allocation27 + $0x880] sm:$0xff]
    %v4752 = vld [vmem:[#allocation27 + $0x888] sm:$0xff]
    %v4753 = vld [vmem:[#allocation27 + $0x890] sm:$0xff]
    %v4754 = vld [vmem:[#allocation27 + $0x898] sm:$0xff]
    %v4755 = vld [vmem:[#allocation27 + $0x8a0] sm:$0xff]
    %v4756 = vld [vmem:[#allocation27 + $0x8a8] sm:$0xff]
    %v4757 = vld [vmem:[#allocation27 + $0x8b0] sm:$0xff]
    %v4758 = vld [vmem:[#allocation27 + $0x8b8] sm:$0xff]
    %v4759 = vld [vmem:[#allocation27 + $0x8c0] sm:$0xff]
    %v4760 = vld [vmem:[#allocation27 + $0x8c8] sm:$0xff]
    %v4761 = vld [vmem:[#allocation27 + $0x8d0] sm:$0xff]
    %v4762 = vld [vmem:[#allocation27 + $0x8d8] sm:$0xff]
    %v4763 = vld [vmem:[#allocation27 + $0x8e0] sm:$0xff]
    %v4764 = vld [vmem:[#allocation27 + $0x8e8] sm:$0xff]
    %v4765 = vld [vmem:[#allocation27 + $0x8f0] sm:$0xff]
    %v4766 = vld [vmem:[#allocation27 + $0x8f8] sm:$0xff]
    %v4767 = vld [vmem:[#allocation27 + $0x900] sm:$0xff]
    %v4768 = vld [vmem:[#allocation27 + $0x908] sm:$0xff]
    %v4769 = vld [vmem:[#allocation27 + $0x910] sm:$0xff]
    %v4770 = vld [vmem:[#allocation27 + $0x918] sm:$0xff]
    %v4771 = vld [vmem:[#allocation27 + $0x920] sm:$0xff]
    %v4772 = vld [vmem:[#allocation27 + $0x928] sm:$0xff]
    %v4773 = vld [vmem:[#allocation27 + $0x930] sm:$0xff]
    %v4774 = vld [vmem:[#allocation27 + $0x938] sm:$0xff]
    %v4775 = vld [vmem:[#allocation27 + $0x940] sm:$0xff]
    %v4776 = vld [vmem:[#allocation27 + $0x948] sm:$0xff]
    %v4777 = vld [vmem:[#allocation27 + $0x950] sm:$0xff]
    %v4778 = vld [vmem:[#allocation27 + $0x958] sm:$0xff]
    %v4779 = vld [vmem:[#allocation27 + $0x960] sm:$0xff]
    %v4780 = vld [vmem:[#allocation27 + $0x968] sm:$0xff]
    %v4781 = vld [vmem:[#allocation27 + $0x970] sm:$0xff]
    %v4782 = vld [vmem:[#allocation27 + $0x978] sm:$0xff]
    %v4783 = vld [vmem:[#allocation27 + $0x980] sm:$0xff]
    %v4784 = vld [vmem:[#allocation27 + $0x988] sm:$0xff]
    %v4785 = vld [vmem:[#allocation27 + $0x990] sm:$0xff]
    %v4786 = vld [vmem:[#allocation27 + $0x998] sm:$0xff]
    %v4787 = vld [vmem:[#allocation27 + $0x9a0] sm:$0xff]
    %v4788 = vld [vmem:[#allocation27 + $0x9a8] sm:$0xff]
    %v4789 = vld [vmem:[#allocation27 + $0x9b0] sm:$0xff]
    %v4790 = vld [vmem:[#allocation27 + $0x9b8] sm:$0xff]
    %v4791 = vld [vmem:[#allocation27 + $0x9c0] sm:$0xff]
    %v4792 = vld [vmem:[#allocation27 + $0x9c8] sm:$0xff]
    %v4793 = vld [vmem:[#allocation27 + $0x9d0] sm:$0xff]
    %v4794 = vld [vmem:[#allocation27 + $0x9d8] sm:$0xff]
    %v4795 = vld [vmem:[#allocation27 + $0x9e0] sm:$0xff]
    %v4796 = vld [vmem:[#allocation27 + $0x9e8] sm:$0xff]
    %v4797 = vld [vmem:[#allocation27 + $0x9f0] sm:$0xff]
    %v4798 = vld [vmem:[#allocation27 + $0x9f8] sm:$0xff]
    %v4799 = vld [vmem:[#allocation27 + $0xa00] sm:$0xff]
    %v4800 = vld [vmem:[#allocation27 + $0xa08] sm:$0xff]
    %v4801 = vld [vmem:[#allocation27 + $0xa10] sm:$0xff]
    %v4802 = vld [vmem:[#allocation27 + $0xa18] sm:$0xff]
    %v4803 = vld [vmem:[#allocation27 + $0xa20] sm:$0xff]
    %v4804 = vld [vmem:[#allocation27 + $0xa28] sm:$0xff]
    %v4805 = vld [vmem:[#allocation27 + $0xa30] sm:$0xff]
    %v4806 = vld [vmem:[#allocation27 + $0xa38] sm:$0xff]
    %v4807 = vld [vmem:[#allocation27 + $0xa40] sm:$0xff]
    %v4808 = vld [vmem:[#allocation27 + $0xa48] sm:$0xff]
    %v4809 = vld [vmem:[#allocation27 + $0xa50] sm:$0xff]
    %v4810 = vld [vmem:[#allocation27 + $0xa58] sm:$0xff]
    %v4811 = vld [vmem:[#allocation27 + $0xa60] sm:$0xff]
    %v4812 = vld [vmem:[#allocation27 + $0xa68] sm:$0xff]
    %v4813 = vld [vmem:[#allocation27 + $0xa70] sm:$0xff]
    %v4814 = vld [vmem:[#allocation27 + $0xa78] sm:$0xff]
    %v4815 = vld [vmem:[#allocation27 + $0xa80] sm:$0xff]
    %v4816 = vld [vmem:[#allocation27 + $0xa88] sm:$0xff]
    %v4817 = vld [vmem:[#allocation27 + $0xa90] sm:$0xff]
    %v4818 = vld [vmem:[#allocation27 + $0xa98] sm:$0xff]
    %v4819 = vld [vmem:[#allocation27 + $0xaa0] sm:$0xff]
    %v4820 = vld [vmem:[#allocation27 + $0xaa8] sm:$0xff]
    %v4821 = vld [vmem:[#allocation27 + $0xab0] sm:$0xff]
    %v4822 = vld [vmem:[#allocation27 + $0xab8] sm:$0xff]
    %v4823 = vld [vmem:[#allocation27 + $0xac0] sm:$0xff]
    %v4824 = vld [vmem:[#allocation27 + $0xac8] sm:$0xff]
    %v4825 = vld [vmem:[#allocation27 + $0xad0] sm:$0xff]
    %v4826 = vld [vmem:[#allocation27 + $0xad8] sm:$0xff]
    %v4827 = vld [vmem:[#allocation27 + $0xae0] sm:$0xff]
    %v4828 = vld [vmem:[#allocation27 + $0xae8] sm:$0xff]
    %v4829 = vld [vmem:[#allocation27 + $0xaf0] sm:$0xff]
    %v4830 = vld [vmem:[#allocation27 + $0xaf8] sm:$0xff]
    %v4831 = vld [vmem:[#allocation27 + $0xb00] sm:$0xff]
    %v4832 = vld [vmem:[#allocation27 + $0xb08] sm:$0xff]
    %v4833 = vld [vmem:[#allocation27 + $0xb10] sm:$0xff]
    %v4834 = vld [vmem:[#allocation27 + $0xb18] sm:$0xff]
    %v4835 = vld [vmem:[#allocation27 + $0xb20] sm:$0xff]
    %v4836 = vld [vmem:[#allocation27 + $0xb28] sm:$0xff]
    %v4837 = vld [vmem:[#allocation27 + $0xb30] sm:$0xff]
    %v4838 = vld [vmem:[#allocation27 + $0xb38] sm:$0xff]
    %v4839 = vld [vmem:[#allocation27 + $0xb40] sm:$0xff]
    %v4840 = vld [vmem:[#allocation27 + $0xb48] sm:$0xff]
    %v4841 = vld [vmem:[#allocation27 + $0xb50] sm:$0xff]
    %v4842 = vld [vmem:[#allocation27 + $0xb58] sm:$0xff]
    %v4843 = vld [vmem:[#allocation27 + $0xb60] sm:$0xff]
    %v4844 = vld [vmem:[#allocation27 + $0xb68] sm:$0xff]
    %v4845 = vld [vmem:[#allocation27 + $0xb70] sm:$0xff]
    %v4846 = vld [vmem:[#allocation27 + $0xb78] sm:$0xff]
    %v4847 = vld [vmem:[#allocation27 + $0xb80] sm:$0xff]
    %v4848 = vld [vmem:[#allocation27 + $0xb88] sm:$0xff]
    %v4849 = vld [vmem:[#allocation27 + $0xb90] sm:$0xff]
    %v4850 = vld [vmem:[#allocation27 + $0xb98] sm:$0xff]
    %v4851 = vld [vmem:[#allocation27 + $0xba0] sm:$0xff]
    %v4852 = vld [vmem:[#allocation27 + $0xba8] sm:$0xff]
    %v4853 = vld [vmem:[#allocation27 + $0xbb0] sm:$0xff]
    %v4854 = vld [vmem:[#allocation27 + $0xbb8] sm:$0xff]
    %v4855 = vld [vmem:[#allocation27 + $0xbc0] sm:$0xff]
    %v4856 = vld [vmem:[#allocation27 + $0xbc8] sm:$0xff]
    %v4857 = vld [vmem:[#allocation27 + $0xbd0] sm:$0xff]
    %v4858 = vld [vmem:[#allocation27 + $0xbd8] sm:$0xff]
    %v4859 = vld [vmem:[#allocation27 + $0xbe0] sm:$0xff]
    %v4860 = vld [vmem:[#allocation27 + $0xbe8] sm:$0xff]
    %v4861 = vld [vmem:[#allocation27 + $0xbf0] sm:$0xff]
    %v4862 = vld [vmem:[#allocation27 + $0xbf8] sm:$0xff]
    %v4863 = vld [vmem:[#allocation27 + $0xc00] sm:$0xff]
    %v4864 = vld [vmem:[#allocation27 + $0xc08] sm:$0xff]
    %v4865 = vld [vmem:[#allocation27 + $0xc10] sm:$0xff]
    %v4866 = vld [vmem:[#allocation27 + $0xc18] sm:$0xff]
    %v4867 = vld [vmem:[#allocation27 + $0xc20] sm:$0xff]
    %v4868 = vld [vmem:[#allocation27 + $0xc28] sm:$0xff]
    %v4869 = vld [vmem:[#allocation27 + $0xc30] sm:$0xff]
    %v4870 = vld [vmem:[#allocation27 + $0xc38] sm:$0xff]
    %v4871 = vld [vmem:[#allocation27 + $0xc40] sm:$0xff]
    %v4872 = vld [vmem:[#allocation27 + $0xc48] sm:$0xff]
    %v4873 = vld [vmem:[#allocation27 + $0xc50] sm:$0xff]
    %v4874 = vld [vmem:[#allocation27 + $0xc58] sm:$0xff]
    %v4875 = vld [vmem:[#allocation27 + $0xc60] sm:$0xff]
    %v4876 = vld [vmem:[#allocation27 + $0xc68] sm:$0xff]
    %v4877 = vld [vmem:[#allocation27 + $0xc70] sm:$0xff]
    %v4878 = vld [vmem:[#allocation27 + $0xc78] sm:$0xff]
    %v4879 = vld [vmem:[#allocation27 + $0xc80] sm:$0xff]
    %v4880 = vld [vmem:[#allocation27 + $0xc88] sm:$0xff]
    %v4881 = vld [vmem:[#allocation27 + $0xc90] sm:$0xff]
    %v4882 = vld [vmem:[#allocation27 + $0xc98] sm:$0xff]
    %v4883 = vld [vmem:[#allocation27 + $0xca0] sm:$0xff]
    %v4884 = vld [vmem:[#allocation27 + $0xca8] sm:$0xff]
    %v4885 = vld [vmem:[#allocation27 + $0xcb0] sm:$0xff]
    %v4886 = vld [vmem:[#allocation27 + $0xcb8] sm:$0xff]
    %v4887 = vld [vmem:[#allocation27 + $0xcc0] sm:$0xff]
    %v4888 = vld [vmem:[#allocation27 + $0xcc8] sm:$0xff]
    %v4889 = vld [vmem:[#allocation27 + $0xcd0] sm:$0xff]
    %v4890 = vld [vmem:[#allocation27 + $0xcd8] sm:$0xff]
    %v4891 = vld [vmem:[#allocation27 + $0xce0] sm:$0xff]
    %v4892 = vld [vmem:[#allocation27 + $0xce8] sm:$0xff]
    %v4893 = vld [vmem:[#allocation27 + $0xcf0] sm:$0xff]
    %v4894 = vld [vmem:[#allocation27 + $0xcf8] sm:$0xff]
    %v4895 = vld [vmem:[#allocation27 + $0xd00] sm:$0xff]
    %v4896 = vld [vmem:[#allocation27 + $0xd08] sm:$0xff]
    %v4897 = vld [vmem:[#allocation27 + $0xd10] sm:$0xff]
    %v4898 = vld [vmem:[#allocation27 + $0xd18] sm:$0xff]
    %v4899 = vld [vmem:[#allocation27 + $0xd20] sm:$0xff]
    %v4900 = vld [vmem:[#allocation27 + $0xd28] sm:$0xff]
    %v4901 = vld [vmem:[#allocation27 + $0xd30] sm:$0xff]
    %v4902 = vld [vmem:[#allocation27 + $0xd38] sm:$0xff]
    %v4903 = vld [vmem:[#allocation27 + $0xd40] sm:$0xff]
    %v4904 = vld [vmem:[#allocation27 + $0xd48] sm:$0xff]
    %v4905 = vld [vmem:[#allocation27 + $0xd50] sm:$0xff]
    %v4906 = vld [vmem:[#allocation27 + $0xd58] sm:$0xff]
    %v4907 = vld [vmem:[#allocation27 + $0xd60] sm:$0xff]
    %v4908 = vld [vmem:[#allocation27 + $0xd68] sm:$0xff]
    %v4909 = vld [vmem:[#allocation27 + $0xd70] sm:$0xff]
    %v4910 = vld [vmem:[#allocation27 + $0xd78] sm:$0xff]
    %v4911 = vld [vmem:[#allocation27 + $0xd80] sm:$0xff]
    %v4912 = vld [vmem:[#allocation27 + $0xd88] sm:$0xff]
    %v4913 = vld [vmem:[#allocation27 + $0xd90] sm:$0xff]
    %v4914 = vld [vmem:[#allocation27 + $0xd98] sm:$0xff]
    %v4915 = vld [vmem:[#allocation27 + $0xda0] sm:$0xff]
    %v4916 = vld [vmem:[#allocation27 + $0xda8] sm:$0xff]
    %v4917 = vld [vmem:[#allocation27 + $0xdb0] sm:$0xff]
    %v4918 = vld [vmem:[#allocation27 + $0xdb8] sm:$0xff]
    %v4919 = vld [vmem:[#allocation27 + $0xdc0] sm:$0xff]
    %v4920 = vld [vmem:[#allocation27 + $0xdc8] sm:$0xff]
    %v4921 = vld [vmem:[#allocation27 + $0xdd0] sm:$0xff]
    %v4922 = vld [vmem:[#allocation27 + $0xdd8] sm:$0xff]
    %v4923 = vld [vmem:[#allocation27 + $0xde0] sm:$0xff]
    %v4924 = vld [vmem:[#allocation27 + $0xde8] sm:$0xff]
    %v4925 = vld [vmem:[#allocation27 + $0xdf0] sm:$0xff]
    %v4926 = vld [vmem:[#allocation27 + $0xdf8] sm:$0xff]
    %v4927 = vld [vmem:[#allocation27 + $0xe00] sm:$0xff]
    %v4928 = vld [vmem:[#allocation27 + $0xe08] sm:$0xff]
    %v4929 = vld [vmem:[#allocation27 + $0xe10] sm:$0xff]
    %v4930 = vld [vmem:[#allocation27 + $0xe18] sm:$0xff]
    %v4931 = vld [vmem:[#allocation27 + $0xe20] sm:$0xff]
    %v4932 = vld [vmem:[#allocation27 + $0xe28] sm:$0xff]
    %v4933 = vld [vmem:[#allocation27 + $0xe30] sm:$0xff]
    %v4934 = vld [vmem:[#allocation27 + $0xe38] sm:$0xff]
    %v4935 = vld [vmem:[#allocation27 + $0xe40] sm:$0xff]
    %v4936 = vld [vmem:[#allocation27 + $0xe48] sm:$0xff]
    %v4937 = vld [vmem:[#allocation27 + $0xe50] sm:$0xff]
    %v4938 = vld [vmem:[#allocation27 + $0xe58] sm:$0xff]
    %v4939 = vld [vmem:[#allocation27 + $0xe60] sm:$0xff]
    %v4940 = vld [vmem:[#allocation27 + $0xe68] sm:$0xff]
    %v4941 = vld [vmem:[#allocation27 + $0xe70] sm:$0xff]
    %v4942 = vld [vmem:[#allocation27 + $0xe78] sm:$0xff]
    %v4943 = vld [vmem:[#allocation27 + $0xe80] sm:$0xff]
    %v4944 = vld [vmem:[#allocation27 + $0xe88] sm:$0xff]
    %v4945 = vld [vmem:[#allocation27 + $0xe90] sm:$0xff]
    %v4946 = vld [vmem:[#allocation27 + $0xe98] sm:$0xff]
    %v4947 = vld [vmem:[#allocation27 + $0xea0] sm:$0xff]
    %v4948 = vld [vmem:[#allocation27 + $0xea8] sm:$0xff]
    %v4949 = vld [vmem:[#allocation27 + $0xeb0] sm:$0xff]
    %v4950 = vld [vmem:[#allocation27 + $0xeb8] sm:$0xff]
    %v4951 = vld [vmem:[#allocation27 + $0xec0] sm:$0xff]
    %v4952 = vld [vmem:[#allocation27 + $0xec8] sm:$0xff]
    %v4953 = vld [vmem:[#allocation27 + $0xed0] sm:$0xff]
    %v4954 = vld [vmem:[#allocation27 + $0xed8] sm:$0xff]
    %v4955 = vld [vmem:[#allocation27 + $0xee0] sm:$0xff]
    %v4956 = vld [vmem:[#allocation27 + $0xee8] sm:$0xff]
    %v4957 = vld [vmem:[#allocation27 + $0xef0] sm:$0xff]
    %v4958 = vld [vmem:[#allocation27 + $0xef8] sm:$0xff]
    %v4959 = vld [vmem:[#allocation27 + $0xf00] sm:$0xff]
    %v4960 = vld [vmem:[#allocation27 + $0xf08] sm:$0xff]
    %v4961 = vld [vmem:[#allocation27 + $0xf10] sm:$0xff]
    %v4962 = vld [vmem:[#allocation27 + $0xf18] sm:$0xff]
    %v4963 = vld [vmem:[#allocation27 + $0xf20] sm:$0xff]
    %v4964 = vld [vmem:[#allocation27 + $0xf28] sm:$0xff]
    %v4965 = vld [vmem:[#allocation27 + $0xf30] sm:$0xff]
    %v4966 = vld [vmem:[#allocation27 + $0xf38] sm:$0xff]
    %v4967 = vld [vmem:[#allocation27 + $0xf40] sm:$0xff]
    %v4968 = vld [vmem:[#allocation27 + $0xf48] sm:$0xff]
    %v4969 = vld [vmem:[#allocation27 + $0xf50] sm:$0xff]
    %v4970 = vld [vmem:[#allocation27 + $0xf58] sm:$0xff]
    %v4971 = vld [vmem:[#allocation27 + $0xf60] sm:$0xff]
    %v4972 = vld [vmem:[#allocation27 + $0xf68] sm:$0xff]
    %v4973 = vld [vmem:[#allocation27 + $0xf70] sm:$0xff]
    %v4974 = vld [vmem:[#allocation27 + $0xf78] sm:$0xff]
    %v4975 = vld [vmem:[#allocation27 + $0xf80] sm:$0xff]
    %v4976 = vld [vmem:[#allocation27 + $0xf88] sm:$0xff]
    %v4977 = vld [vmem:[#allocation27 + $0xf90] sm:$0xff]
    %v4978 = vld [vmem:[#allocation27 + $0xf98] sm:$0xff]
    %v4979 = vld [vmem:[#allocation27 + $0xfa0] sm:$0xff]
    %v4980 = vld [vmem:[#allocation27 + $0xfa8] sm:$0xff]
    %v4981 = vld [vmem:[#allocation27 + $0xfb0] sm:$0xff]
    %v4982 = vld [vmem:[#allocation27 + $0xfb8] sm:$0xff]
    %v4983 = vld [vmem:[#allocation27 + $0xfc0] sm:$0xff]
    %v4984 = vld [vmem:[#allocation27 + $0xfc8] sm:$0xff]
    %v4985 = vld [vmem:[#allocation27 + $0xfd0] sm:$0xff]
    %v4986 = vld [vmem:[#allocation27 + $0xfd8] sm:$0xff]
    %v4987 = vld [vmem:[#allocation27 + $0xfe0] sm:$0xff]
    %v4988 = vld [vmem:[#allocation27 + $0xfe8] sm:$0xff]
    %v4989 = vld [vmem:[#allocation27 + $0xff0] sm:$0xff]
    %v4990 = vld [vmem:[#allocation27 + $0xff8] sm:$0xff]
    %v4991 = vld [vmem:[#allocation29] sm:$0xf]
    %v4993 = vlaneseq
    %v4994 = vshrl.u32 %v4993, 7
    %v4995 = vsub.s32 0, %v4994
    %v4996 = vrot.slane %v4991, %v4995
    %v4997 = vlaneseq
    %v4998 = vshrl.u32 %v4997, 7
    %v4999 = vsub.s32 1, %v4998
    %v5000 = vrot.slane %v4991, %v4999
    %v5001 = vlaneseq
    %v5002 = vshrl.u32 %v5001, 7
    %v5003 = vsub.s32 2, %v5002
    %v5004 = vrot.slane %v4991, %v5003
    %v5005 = vlaneseq
    %v5006 = vshrl.u32 %v5005, 7
    %v5007 = vsub.s32 3, %v5006
    %v5008 = vrot.slane %v4991, %v5007
    %5013 = vmatprep.subr.mxu0 %v4480
    %5014 = vmatpush1.msra.mxu0 %v4479
    %5015 = vmatprep.subr.mxu0 %v4484
    %5016 = vmatpush1.msra.mxu0 %v4483
    %5017 = vmatprep.subr.mxu0 %v4488
    %5018 = vmatpush1.msra.mxu0 %v4487
    %5019 = vmatprep.subr.mxu0 %v4492
    %5020 = vmatpush1.msra.mxu0 %v4491
    %5021 = vmatprep.subr.mxu0 %v4496
    %5022 = vmatpush1.msra.mxu0 %v4495
    %5023 = vmatprep.subr.mxu0 %v4500
    %5024 = vmatpush1.msra.mxu0 %v4499
    %5025 = vmatprep.subr.mxu0 %v4504
    %5026 = vmatpush1.msra.mxu0 %v4503
    %5027 = vmatprep.subr.mxu0 %v4508
    %5028 = vmatpush1.msra.mxu0 %v4507
    %5029 = vmatprep.subr.mxu0 %v4512
    %5030 = vmatpush1.msra.mxu0 %v4511
    %5031 = vmatprep.subr.mxu0 %v4516
    %5032 = vmatpush1.msra.mxu0 %v4515
    %5033 = vmatprep.subr.mxu0 %v4520
    %5034 = vmatpush1.msra.mxu0 %v4519
    %5035 = vmatprep.subr.mxu0 %v4524
    %5036 = vmatpush1.msra.mxu0 %v4523
    %5037 = vmatprep.subr.mxu0 %v4528
    %5038 = vmatpush1.msra.mxu0 %v4527
    %5039 = vmatprep.subr.mxu0 %v4532
    %5040 = vmatpush1.msra.mxu0 %v4531
    %5041 = vmatprep.subr.mxu0 %v4536
    %5042 = vmatpush1.msra.mxu0 %v4535
    %5043 = vmatprep.subr.mxu0 %v4540
    %5044 = vmatpush1.msra.mxu0 %v4539
    %5045 = vmatprep.subr.mxu0 %v4544
    %5046 = vmatpush1.msra.mxu0 %v4543
    %5047 = vmatprep.subr.mxu0 %v4548
    %5048 = vmatpush1.msra.mxu0 %v4547
    %5049 = vmatprep.subr.mxu0 %v4552
    %5050 = vmatpush1.msra.mxu0 %v4551
    %5051 = vmatprep.subr.mxu0 %v4556
    %5052 = vmatpush1.msra.mxu0 %v4555
    %5053 = vmatprep.subr.mxu0 %v4560
    %5054 = vmatpush1.msra.mxu0 %v4559
    %5055 = vmatprep.subr.mxu0 %v4564
    %5056 = vmatpush1.msra.mxu0 %v4563
    %5057 = vmatprep.subr.mxu0 %v4568
    %5058 = vmatpush1.msra.mxu0 %v4567
    %5059 = vmatprep.subr.mxu0 %v4572
    %5060 = vmatpush1.msra.mxu0 %v4571
    %5061 = vmatprep.subr.mxu0 %v4576
    %5062 = vmatpush1.msra.mxu0 %v4575
    %5063 = vmatprep.subr.mxu0 %v4580
    %5064 = vmatpush1.msra.mxu0 %v4579
    %5065 = vmatprep.subr.mxu0 %v4584
    %5066 = vmatpush1.msra.mxu0 %v4583
    %5067 = vmatprep.subr.mxu0 %v4588
    %5068 = vmatpush1.msra.mxu0 %v4587
    %5069 = vmatprep.subr.mxu0 %v4592
    %5070 = vmatpush1.msra.mxu0 %v4591
    %5071 = vmatprep.subr.mxu0 %v4596
    %5072 = vmatpush1.msra.mxu0 %v4595
    %5073 = vmatprep.subr.mxu0 %v4600
    %5074 = vmatpush1.msra.mxu0 %v4599
    %5075 = vmatprep.subr.mxu0 %v4604
    %5076 = vmatpush1.msra.mxu0 %v4603
    %5077 = vmatprep.mubr.f32.mxu0 %v4472
    %5078 = vmatmul.mubr.f32.gmra.mrb[0].mxu0 %v4471
    %v5079 = vpop.f32.mrb[0].mxu0
    %v5080 = vadd.f32 %v4996, %v5079
    %v5081 = vpop.f32.mrb[0].mxu0
    %v5082 = vadd.f32 %v5000, %v5081
    %5083 = vdwg.mxu0
    %5084 = vmatprep.subr.mxu0 %v4608
    %5085 = vmatpush1.msra.mxu0 %v4607
    %5086 = vmatprep.subr.mxu0 %v4612
    %5087 = vmatpush1.msra.mxu0 %v4611
    %5088 = vmatprep.subr.mxu0 %v4616
    %5089 = vmatpush1.msra.mxu0 %v4615
    %5090 = vmatprep.subr.mxu0 %v4620
    %5091 = vmatpush1.msra.mxu0 %v4619
    %5092 = vmatprep.subr.mxu0 %v4624
    %5093 = vmatpush1.msra.mxu0 %v4623
    %5094 = vmatprep.subr.mxu0 %v4628
    %5095 = vmatpush1.msra.mxu0 %v4627
    %5096 = vmatprep.subr.mxu0 %v4632
    %5097 = vmatpush1.msra.mxu0 %v4631
    %5098 = vmatprep.subr.mxu0 %v4636
    %5099 = vmatpush1.msra.mxu0 %v4635
    %5100 = vmatprep.subr.mxu0 %v4640
    %5101 = vmatpush1.msra.mxu0 %v4639
    %5102 = vmatprep.subr.mxu0 %v4644
    %5103 = vmatpush1.msra.mxu0 %v4643
    %5104 = vmatprep.subr.mxu0 %v4648
    %5105 = vmatpush1.msra.mxu0 %v4647
    %5106 = vmatprep.subr.mxu0 %v4652
    %5107 = vmatpush1.msra.mxu0 %v4651
    %5108 = vmatprep.subr.mxu0 %v4656
    %5109 = vmatpush1.msra.mxu0 %v4655
    %5110 = vmatprep.subr.mxu0 %v4660
    %5111 = vmatpush1.msra.mxu0 %v4659
    %5112 = vmatprep.subr.mxu0 %v4664
    %5113 = vmatpush1.msra.mxu0 %v4663
    %5114 = vmatprep.subr.mxu0 %v4668
    %5115 = vmatpush1.msra.mxu0 %v4667
    %5116 = vmatprep.subr.mxu0 %v4672
    %5117 = vmatpush1.msra.mxu0 %v4671
    %5118 = vmatprep.subr.mxu0 %v4676
    %5119 = vmatpush1.msra.mxu0 %v4675
    %5120 = vmatprep.subr.mxu0 %v4680
    %5121 = vmatpush1.msra.mxu0 %v4679
    %5122 = vmatprep.subr.mxu0 %v4684
    %5123 = vmatpush1.msra.mxu0 %v4683
    %5124 = vmatprep.subr.mxu0 %v4688
    %5125 = vmatpush1.msra.mxu0 %v4687
    %5126 = vmatprep.subr.mxu0 %v4692
    %5127 = vmatpush1.msra.mxu0 %v4691
    %5128 = vmatprep.subr.mxu0 %v4696
    %5129 = vmatpush1.msra.mxu0 %v4695
    %5130 = vmatprep.subr.mxu0 %v4700
    %5131 = vmatpush1.msra.mxu0 %v4699
    %5132 = vmatprep.subr.mxu0 %v4704
    %5133 = vmatpush1.msra.mxu0 %v4703
    %5134 = vmatprep.subr.mxu0 %v4708
    %5135 = vmatpush1.msra.mxu0 %v4707
    %5136 = vmatprep.subr.mxu0 %v4712
    %5137 = vmatpush1.msra.mxu0 %v4711
    %5138 = vmatprep.subr.mxu0 %v4716
    %5139 = vmatpush1.msra.mxu0 %v4715
    %5140 = vmatprep.subr.mxu0 %v4720
    %5141 = vmatpush1.msra.mxu0 %v4719
    %5142 = vmatprep.subr.mxu0 %v4724
    %5143 = vmatpush1.msra.mxu0 %v4723
    %5144 = vmatprep.subr.mxu0 %v4728
    %5145 = vmatpush1.msra.mxu0 %v4727
    %5146 = vmatprep.subr.mxu0 %v4732
    %5147 = vmatpush1.msra.mxu0 %v4731
    %5148 = vmatprep.mubr.f32.mxu0 %v4474
    %5149 = vmatmul.mubr.f32.gmra.mrb[0].mxu0 %v4473
    %v5150 = vpop.f32.mrb[0].mxu0
    %v5151 = vadd.f32 %v5080, %v5150
    %v5152 = vpop.f32.mrb[0].mxu0
    %v5153 = vadd.f32 %v5082, %v5152
    %5154 = vdwg.mxu0
    %5155 = vmatprep.subr.mxu0 %v4736
    %5156 = vmatpush1.msra.mxu0 %v4735
    %5157 = vmatprep.subr.mxu0 %v4740
    %5158 = vmatpush1.msra.mxu0 %v4739
    %5159 = vmatprep.subr.mxu0 %v4744
    %5160 = vmatpush1.msra.mxu0 %v4743
    %5161 = vmatprep.subr.mxu0 %v4748
    %5162 = vmatpush1.msra.mxu0 %v4747
    %5163 = vmatprep.subr.mxu0 %v4752
    %5164 = vmatpush1.msra.mxu0 %v4751
    %5165 = vmatprep.subr.mxu0 %v4756
    %5166 = vmatpush1.msra.mxu0 %v4755
    %5167 = vmatprep.subr.mxu0 %v4760
    %5168 = vmatpush1.msra.mxu0 %v4759
    %5169 = vmatprep.subr.mxu0 %v4764
    %5170 = vmatpush1.msra.mxu0 %v4763
    %5171 = vmatprep.subr.mxu0 %v4768
    %5172 = vmatpush1.msra.mxu0 %v4767
    %5173 = vmatprep.subr.mxu0 %v4772
    %5174 = vmatpush1.msra.mxu0 %v4771
    %5175 = vmatprep.subr.mxu0 %v4776
    %5176 = vmatpush1.msra.mxu0 %v4775
    %5177 = vmatprep.subr.mxu0 %v4780
    %5178 = vmatpush1.msra.mxu0 %v4779
    %5179 = vmatprep.subr.mxu0 %v4784
    %5180 = vmatpush1.msra.mxu0 %v4783
    %5181 = vmatprep.subr.mxu0 %v4788
    %5182 = vmatpush1.msra.mxu0 %v4787
    %5183 = vmatprep.subr.mxu0 %v4792
    %5184 = vmatpush1.msra.mxu0 %v4791
    %5185 = vmatprep.subr.mxu0 %v4796
    %5186 = vmatpush1.msra.mxu0 %v4795
    %5187 = vmatprep.subr.mxu0 %v4800
    %5188 = vmatpush1.msra.mxu0 %v4799
    %5189 = vmatprep.subr.mxu0 %v4804
    %5190 = vmatpush1.msra.mxu0 %v4803
    %5191 = vmatprep.subr.mxu0 %v4808
    %5192 = vmatpush1.msra.mxu0 %v4807
    %5193 = vmatprep.subr.mxu0 %v4812
    %5194 = vmatpush1.msra.mxu0 %v4811
    %5195 = vmatprep.subr.mxu0 %v4816
    %5196 = vmatpush1.msra.mxu0 %v4815
    %5197 = vmatprep.subr.mxu0 %v4820
    %5198 = vmatpush1.msra.mxu0 %v4819
    %5199 = vmatprep.subr.mxu0 %v4824
    %5200 = vmatpush1.msra.mxu0 %v4823
    %5201 = vmatprep.subr.mxu0 %v4828
    %5202 = vmatpush1.msra.mxu0 %v4827
    %5203 = vmatprep.subr.mxu0 %v4832
    %5204 = vmatpush1.msra.mxu0 %v4831
    %5205 = vmatprep.subr.mxu0 %v4836
    %5206 = vmatpush1.msra.mxu0 %v4835
    %5207 = vmatprep.subr.mxu0 %v4840
    %5208 = vmatpush1.msra.mxu0 %v4839
    %5209 = vmatprep.subr.mxu0 %v4844
    %5210 = vmatpush1.msra.mxu0 %v4843
    %5211 = vmatprep.subr.mxu0 %v4848
    %5212 = vmatpush1.msra.mxu0 %v4847
    %5213 = vmatprep.subr.mxu0 %v4852
    %5214 = vmatpush1.msra.mxu0 %v4851
    %5215 = vmatprep.subr.mxu0 %v4856
    %5216 = vmatpush1.msra.mxu0 %v4855
    %5217 = vmatprep.subr.mxu0 %v4860
    %5218 = vmatpush1.msra.mxu0 %v4859
    %5219 = vmatprep.mubr.f32.mxu0 %v4476
    %5220 = vmatmul.mubr.f32.gmra.mrb[0].mxu0 %v4475
    %v5221 = vpop.f32.mrb[0].mxu0
    %v5222 = vadd.f32 %v5151, %v5221
    %v5223 = vpop.f32.mrb[0].mxu0
    %v5224 = vadd.f32 %v5153, %v5223
    %5225 = vdwg.mxu0
    %5226 = vmatprep.subr.mxu0 %v4864
    %5227 = vmatpush1.msra.mxu0 %v4863
    %5228 = vmatprep.subr.mxu0 %v4868
    %5229 = vmatpush1.msra.mxu0 %v4867
    %5230 = vmatprep.subr.mxu0 %v4872
    %5231 = vmatpush1.msra.mxu0 %v4871
    %5232 = vmatprep.subr.mxu0 %v4876
    %5233 = vmatpush1.msra.mxu0 %v4875
    %5234 = vmatprep.subr.mxu0 %v4880
    %5235 = vmatpush1.msra.mxu0 %v4879
    %5236 = vmatprep.subr.mxu0 %v4884
    %5237 = vmatpush1.msra.mxu0 %v4883
    %5238 = vmatprep.subr.mxu0 %v4888
    %5239 = vmatpush1.msra.mxu0 %v4887
    %5240 = vmatprep.subr.mxu0 %v4892
    %5241 = vmatpush1.msra.mxu0 %v4891
    %5242 = vmatprep.subr.mxu0 %v4896
    %5243 = vmatpush1.msra.mxu0 %v4895
    %5244 = vmatprep.subr.mxu0 %v4900
    %5245 = vmatpush1.msra.mxu0 %v4899
    %5246 = vmatprep.subr.mxu0 %v4904
    %5247 = vmatpush1.msra.mxu0 %v4903
    %5248 = vmatprep.subr.mxu0 %v4908
    %5249 = vmatpush1.msra.mxu0 %v4907
    %5250 = vmatprep.subr.mxu0 %v4912
    %5251 = vmatpush1.msra.mxu0 %v4911
    %5252 = vmatprep.subr.mxu0 %v4916
    %5253 = vmatpush1.msra.mxu0 %v4915
    %5254 = vmatprep.subr.mxu0 %v4920
    %5255 = vmatpush1.msra.mxu0 %v4919
    %5256 = vmatprep.subr.mxu0 %v4924
    %5257 = vmatpush1.msra.mxu0 %v4923
    %5258 = vmatprep.subr.mxu0 %v4928
    %5259 = vmatpush1.msra.mxu0 %v4927
    %5260 = vmatprep.subr.mxu0 %v4932
    %5261 = vmatpush1.msra.mxu0 %v4931
    %5262 = vmatprep.subr.mxu0 %v4936
    %5263 = vmatpush1.msra.mxu0 %v4935
    %5264 = vmatprep.subr.mxu0 %v4940
    %5265 = vmatpush1.msra.mxu0 %v4939
    %5266 = vmatprep.subr.mxu0 %v4944
    %5267 = vmatpush1.msra.mxu0 %v4943
    %5268 = vmatprep.subr.mxu0 %v4948
    %5269 = vmatpush1.msra.mxu0 %v4947
    %5270 = vmatprep.subr.mxu0 %v4952
    %5271 = vmatpush1.msra.mxu0 %v4951
    %5272 = vmatprep.subr.mxu0 %v4956
    %5273 = vmatpush1.msra.mxu0 %v4955
    %5274 = vmatprep.subr.mxu0 %v4960
    %5275 = vmatpush1.msra.mxu0 %v4959
    %5276 = vmatprep.subr.mxu0 %v4964
    %5277 = vmatpush1.msra.mxu0 %v4963
    %5278 = vmatprep.subr.mxu0 %v4968
    %5279 = vmatpush1.msra.mxu0 %v4967
    %5280 = vmatprep.subr.mxu0 %v4972
    %5281 = vmatpush1.msra.mxu0 %v4971
    %5282 = vmatprep.subr.mxu0 %v4976
    %5283 = vmatpush1.msra.mxu0 %v4975
    %5284 = vmatprep.subr.mxu0 %v4980
    %5285 = vmatpush1.msra.mxu0 %v4979
    %5286 = vmatprep.subr.mxu0 %v4984
    %5287 = vmatpush1.msra.mxu0 %v4983
    %5288 = vmatprep.subr.mxu0 %v4988
    %5289 = vmatpush1.msra.mxu0 %v4987
    %5290 = vmatprep.mubr.f32.mxu0 %v4478
    %5291 = vmatmul.mubr.f32.gmra.mrb[0].mxu0 %v4477
    %v5292 = vpop.f32.mrb[0].mxu0
    %v5293 = vadd.f32 %v5222, %v5292
    %v5294 = vpop.f32.mrb[0].mxu0
    %v5295 = vadd.f32 %v5224, %v5294
    %5296 = vdwg.mxu0
    %5297 = vmatprep.subr.mxu0 %v4482
    %5298 = vmatpush1.msra.mxu0 %v4481
    %5299 = vmatprep.subr.mxu0 %v4486
    %5300 = vmatpush1.msra.mxu0 %v4485
    %5301 = vmatprep.subr.mxu0 %v4490
    %5302 = vmatpush1.msra.mxu0 %v4489
    %5303 = vmatprep.subr.mxu0 %v4494
    %5304 = vmatpush1.msra.mxu0 %v4493
    %5305 = vmatprep.subr.mxu0 %v4498
    %5306 = vmatpush1.msra.mxu0 %v4497
    %5307 = vmatprep.subr.mxu0 %v4502
    %5308 = vmatpush1.msra.mxu0 %v4501
    %5309 = vmatprep.subr.mxu0 %v4506
    %5310 = vmatpush1.msra.mxu0 %v4505
    %5311 = vmatprep.subr.mxu0 %v4510
    %5312 = vmatpush1.msra.mxu0 %v4509
    %5313 = vmatprep.subr.mxu0 %v4514
    %5314 = vmatpush1.msra.mxu0 %v4513
    %5315 = vmatprep.subr.mxu0 %v4518
    %5316 = vmatpush1.msra.mxu0 %v4517
    %5317 = vmatprep.subr.mxu0 %v4522
    %5318 = vmatpush1.msra.mxu0 %v4521
    %5319 = vmatprep.subr.mxu0 %v4526
    %5320 = vmatpush1.msra.mxu0 %v4525
    %5321 = vmatprep.subr.mxu0 %v4530
    %5322 = vmatpush1.msra.mxu0 %v4529
    %5323 = vmatprep.subr.mxu0 %v4534
    %5324 = vmatpush1.msra.mxu0 %v4533
    %5325 = vmatprep.subr.mxu0 %v4538
    %5326 = vmatpush1.msra.mxu0 %v4537
    %5327 = vmatprep.subr.mxu0 %v4542
    %5328 = vmatpush1.msra.mxu0 %v4541
    %5329 = vmatprep.subr.mxu0 %v4546
    %5330 = vmatpush1.msra.mxu0 %v4545
    %5331 = vmatprep.subr.mxu0 %v4550
    %5332 = vmatpush1.msra.mxu0 %v4549
    %5333 = vmatprep.subr.mxu0 %v4554
    %5334 = vmatpush1.msra.mxu0 %v4553
    %5335 = vmatprep.subr.mxu0 %v4558
    %5336 = vmatpush1.msra.mxu0 %v4557
    %5337 = vmatprep.subr.mxu0 %v4562
    %5338 = vmatpush1.msra.mxu0 %v4561
    %5339 = vmatprep.subr.mxu0 %v4566
    %5340 = vmatpush1.msra.mxu0 %v4565
    %5341 = vmatprep.subr.mxu0 %v4570
    %5342 = vmatpush1.msra.mxu0 %v4569
    %5343 = vmatprep.subr.mxu0 %v4574
    %5344 = vmatpush1.msra.mxu0 %v4573
    %5345 = vmatprep.subr.mxu0 %v4578
    %5346 = vmatpush1.msra.mxu0 %v4577
    %5347 = vmatprep.subr.mxu0 %v4582
    %5348 = vmatpush1.msra.mxu0 %v4581
    %5349 = vmatprep.subr.mxu0 %v4586
    %5350 = vmatpush1.msra.mxu0 %v4585
    %5351 = vmatprep.subr.mxu0 %v4590
    %5352 = vmatpush1.msra.mxu0 %v4589
    %5353 = vmatprep.subr.mxu0 %v4594
    %5354 = vmatpush1.msra.mxu0 %v4593
    %5355 = vmatprep.subr.mxu0 %v4598
    %5356 = vmatpush1.msra.mxu0 %v4597
    %5357 = vmatprep.subr.mxu0 %v4602
    %5358 = vmatpush1.msra.mxu0 %v4601
    %5359 = vmatprep.subr.mxu0 %v4606
    %5360 = vmatpush1.msra.mxu0 %v4605
    %5361 = vmatprep.mubr.f32.mxu0 %v4472
    %5362 = vmatmul.mubr.f32.gmra.mrb[0].mxu0 %v4471
    %v5363 = vpop.f32.mrb[0].mxu0
    %v5364 = vadd.f32 %v5004, %v5363
    %v5365 = vpop.f32.mrb[0].mxu0
    %v5366 = vadd.f32 %v5008, %v5365
    %5367 = vdwg.mxu0
    %5368 = vmatprep.subr.mxu0 %v4610
    %5369 = vmatpush1.msra.mxu0 %v4609
    %5370 = vmatprep.subr.mxu0 %v4614
    %5371 = vmatpush1.msra.mxu0 %v4613
    %5372 = vmatprep.subr.mxu0 %v4618
    %5373 = vmatpush1.msra.mxu0 %v4617
    %5374 = vmatprep.subr.mxu0 %v4622
    %5375 = vmatpush1.msra.mxu0 %v4621
    %5376 = vmatprep.subr.mxu0 %v4626
    %5377 = vmatpush1.msra.mxu0 %v4625
    %5378 = vmatprep.subr.mxu0 %v4630
    %5379 = vmatpush1.msra.mxu0 %v4629
    %5380 = vmatprep.subr.mxu0 %v4634
    %5381 = vmatpush1.msra.mxu0 %v4633
    %5382 = vmatprep.subr.mxu0 %v4638
    %5383 = vmatpush1.msra.mxu0 %v4637
    %5384 = vmatprep.subr.mxu0 %v4642
    %5385 = vmatpush1.msra.mxu0 %v4641
    %5386 = vmatprep.subr.mxu0 %v4646
    %5387 = vmatpush1.msra.mxu0 %v4645
    %5388 = vmatprep.subr.mxu0 %v4650
    %5389 = vmatpush1.msra.mxu0 %v4649
    %5390 = vmatprep.subr.mxu0 %v4654
    %5391 = vmatpush1.msra.mxu0 %v4653
    %5392 = vmatprep.subr.mxu0 %v4658
    %5393 = vmatpush1.msra.mxu0 %v4657
    %5394 = vmatprep.subr.mxu0 %v4662
    %5395 = vmatpush1.msra.mxu0 %v4661
    %5396 = vmatprep.subr.mxu0 %v4666
    %5397 = vmatpush1.msra.mxu0 %v4665
    %5398 = vmatprep.subr.mxu0 %v4670
    %5399 = vmatpush1.msra.mxu0 %v4669
    %5400 = vmatprep.subr.mxu0 %v4674
    %5401 = vmatpush1.msra.mxu0 %v4673
    %5402 = vmatprep.subr.mxu0 %v4678
    %5403 = vmatpush1.msra.mxu0 %v4677
    %5404 = vmatprep.subr.mxu0 %v4682
    %5405 = vmatpush1.msra.mxu0 %v4681
    %5406 = vmatprep.subr.mxu0 %v4686
    %5407 = vmatpush1.msra.mxu0 %v4685
    %5408 = vmatprep.subr.mxu0 %v4690
    %5409 = vmatpush1.msra.mxu0 %v4689
    %5410 = vmatprep.subr.mxu0 %v4694
    %5411 = vmatpush1.msra.mxu0 %v4693
    %5412 = vmatprep.subr.mxu0 %v4698
    %5413 = vmatpush1.msra.mxu0 %v4697
    %5414 = vmatprep.subr.mxu0 %v4702
    %5415 = vmatpush1.msra.mxu0 %v4701
    %5416 = vmatprep.subr.mxu0 %v4706
    %5417 = vmatpush1.msra.mxu0 %v4705
    %5418 = vmatprep.subr.mxu0 %v4710
    %5419 = vmatpush1.msra.mxu0 %v4709
    %5420 = vmatprep.subr.mxu0 %v4714
    %5421 = vmatpush1.msra.mxu0 %v4713
    %5422 = vmatprep.subr.mxu0 %v4718
    %5423 = vmatpush1.msra.mxu0 %v4717
    %5424 = vmatprep.subr.mxu0 %v4722
    %5425 = vmatpush1.msra.mxu0 %v4721
    %5426 = vmatprep.subr.mxu0 %v4726
    %5427 = vmatpush1.msra.mxu0 %v4725
    %5428 = vmatprep.subr.mxu0 %v4730
    %5429 = vmatpush1.msra.mxu0 %v4729
    %5430 = vmatprep.subr.mxu0 %v4734
    %5431 = vmatpush1.msra.mxu0 %v4733
    %5432 = vmatprep.mubr.f32.mxu0 %v4474
    %5433 = vmatmul.mubr.f32.gmra.mrb[0].mxu0 %v4473
    %v5434 = vpop.f32.mrb[0].mxu0
    %v5435 = vadd.f32 %v5364, %v5434
    %v5436 = vpop.f32.mrb[0].mxu0
    %v5437 = vadd.f32 %v5366, %v5436
    %5438 = vdwg.mxu0
    %5439 = vmatprep.subr.mxu0 %v4738
    %5440 = vmatpush1.msra.mxu0 %v4737
    %5441 = vmatprep.subr.mxu0 %v4742
    %5442 = vmatpush1.msra.mxu0 %v4741
    %5443 = vmatprep.subr.mxu0 %v4746
    %5444 = vmatpush1.msra.mxu0 %v4745
    %5445 = vmatprep.subr.mxu0 %v4750
    %5446 = vmatpush1.msra.mxu0 %v4749
    %5447 = vmatprep.subr.mxu0 %v4754
    %5448 = vmatpush1.msra.mxu0 %v4753
    %5449 = vmatprep.subr.mxu0 %v4758
    %5450 = vmatpush1.msra.mxu0 %v4757
    %5451 = vmatprep.subr.mxu0 %v4762
    %5452 = vmatpush1.msra.mxu0 %v4761
    %5453 = vmatprep.subr.mxu0 %v4766
    %5454 = vmatpush1.msra.mxu0 %v4765
    %5455 = vmatprep.subr.mxu0 %v4770
    %5456 = vmatpush1.msra.mxu0 %v4769
    %5457 = vmatprep.subr.mxu0 %v4774
    %5458 = vmatpush1.msra.mxu0 %v4773
    %5459 = vmatprep.subr.mxu0 %v4778
    %5460 = vmatpush1.msra.mxu0 %v4777
    %5461 = vmatprep.subr.mxu0 %v4782
    %5462 = vmatpush1.msra.mxu0 %v4781
    %5463 = vmatprep.subr.mxu0 %v4786
    %5464 = vmatpush1.msra.mxu0 %v4785
    %5465 = vmatprep.subr.mxu0 %v4790
    %5466 = vmatpush1.msra.mxu0 %v4789
    %5467 = vmatprep.subr.mxu0 %v4794
    %5468 = vmatpush1.msra.mxu0 %v4793
    %5469 = vmatprep.subr.mxu0 %v4798
    %5470 = vmatpush1.msra.mxu0 %v4797
    %5471 = vmatprep.subr.mxu0 %v4802
    %5472 = vmatpush1.msra.mxu0 %v4801
    %5473 = vmatprep.subr.mxu0 %v4806
    %5474 = vmatpush1.msra.mxu0 %v4805
    %5475 = vmatprep.subr.mxu0 %v4810
    %5476 = vmatpush1.msra.mxu0 %v4809
    %5477 = vmatprep.subr.mxu0 %v4814
    %5478 = vmatpush1.msra.mxu0 %v4813
    %5479 = vmatprep.subr.mxu0 %v4818
    %5480 = vmatpush1.msra.mxu0 %v4817
    %5481 = vmatprep.subr.mxu0 %v4822
    %5482 = vmatpush1.msra.mxu0 %v4821
    %5483 = vmatprep.subr.mxu0 %v4826
    %5484 = vmatpush1.msra.mxu0 %v4825
    %5485 = vmatprep.subr.mxu0 %v4830
    %5486 = vmatpush1.msra.mxu0 %v4829
    %5487 = vmatprep.subr.mxu0 %v4834
    %5488 = vmatpush1.msra.mxu0 %v4833
    %5489 = vmatprep.subr.mxu0 %v4838
    %5490 = vmatpush1.msra.mxu0 %v4837
    %5491 = vmatprep.subr.mxu0 %v4842
    %5492 = vmatpush1.msra.mxu0 %v4841
    %5493 = vmatprep.subr.mxu0 %v4846
    %5494 = vmatpush1.msra.mxu0 %v4845
    %5495 = vmatprep.subr.mxu0 %v4850
    %5496 = vmatpush1.msra.mxu0 %v4849
    %5497 = vmatprep.subr.mxu0 %v4854
    %5498 = vmatpush1.msra.mxu0 %v4853
    %5499 = vmatprep.subr.mxu0 %v4858
    %5500 = vmatpush1.msra.mxu0 %v4857
    %5501 = vmatprep.subr.mxu0 %v4862
    %5502 = vmatpush1.msra.mxu0 %v4861
    %5503 = vmatprep.mubr.f32.mxu0 %v4476
    %5504 = vmatmul.mubr.f32.gmra.mrb[0].mxu0 %v4475
    %v5505 = vpop.f32.mrb[0].mxu0
    %v5506 = vadd.f32 %v5435, %v5505
    %v5507 = vpop.f32.mrb[0].mxu0
    %v5508 = vadd.f32 %v5437, %v5507
    %5509 = vdwg.mxu0
    %5510 = vmatprep.subr.mxu0 %v4866
    %5511 = vmatpush1.msra.mxu0 %v4865
    %5512 = vmatprep.subr.mxu0 %v4870
    %5513 = vmatpush1.msra.mxu0 %v4869
    %5514 = vmatprep.subr.mxu0 %v4874
    %5515 = vmatpush1.msra.mxu0 %v4873
    %5516 = vmatprep.subr.mxu0 %v4878
    %5517 = vmatpush1.msra.mxu0 %v4877
    %5518 = vmatprep.subr.mxu0 %v4882
    %5519 = vmatpush1.msra.mxu0 %v4881
    %5520 = vmatprep.subr.mxu0 %v4886
    %5521 = vmatpush1.msra.mxu0 %v4885
    %5522 = vmatprep.subr.mxu0 %v4890
    %5523 = vmatpush1.msra.mxu0 %v4889
    %5524 = vmatprep.subr.mxu0 %v4894
    %5525 = vmatpush1.msra.mxu0 %v4893
    %5526 = vmatprep.subr.mxu0 %v4898
    %5527 = vmatpush1.msra.mxu0 %v4897
    %5528 = vmatprep.subr.mxu0 %v4902
    %5529 = vmatpush1.msra.mxu0 %v4901
    %5530 = vmatprep.subr.mxu0 %v4906
    %5531 = vmatpush1.msra.mxu0 %v4905
    %5532 = vmatprep.subr.mxu0 %v4910
    %5533 = vmatpush1.msra.mxu0 %v4909
    %5534 = vmatprep.subr.mxu0 %v4914
    %5535 = vmatpush1.msra.mxu0 %v4913
    %5536 = vmatprep.subr.mxu0 %v4918
    %5537 = vmatpush1.msra.mxu0 %v4917
    %5538 = vmatprep.subr.mxu0 %v4922
    %5539 = vmatpush1.msra.mxu0 %v4921
    %5540 = vmatprep.subr.mxu0 %v4926
    %5541 = vmatpush1.msra.mxu0 %v4925
    %5542 = vmatprep.subr.mxu0 %v4930
    %5543 = vmatpush1.msra.mxu0 %v4929
    %5544 = vmatprep.subr.mxu0 %v4934
    %5545 = vmatpush1.msra.mxu0 %v4933
    %5546 = vmatprep.subr.mxu0 %v4938
    %5547 = vmatpush1.msra.mxu0 %v4937
    %5548 = vmatprep.subr.mxu0 %v4942
    %5549 = vmatpush1.msra.mxu0 %v4941
    %5550 = vmatprep.subr.mxu0 %v4946
    %5551 = vmatpush1.msra.mxu0 %v4945
    %5552 = vmatprep.subr.mxu0 %v4950
    %5553 = vmatpush1.msra.mxu0 %v4949
    %5554 = vmatprep.subr.mxu0 %v4954
    %5555 = vmatpush1.msra.mxu0 %v4953
    %5556 = vmatprep.subr.mxu0 %v4958
    %5557 = vmatpush1.msra.mxu0 %v4957
    %5558 = vmatprep.subr.mxu0 %v4962
    %5559 = vmatpush1.msra.mxu0 %v4961
    %5560 = vmatprep.subr.mxu0 %v4966
    %5561 = vmatpush1.msra.mxu0 %v4965
    %5562 = vmatprep.subr.mxu0 %v4970
    %5563 = vmatpush1.msra.mxu0 %v4969
    %5564 = vmatprep.subr.mxu0 %v4974
    %5565 = vmatpush1.msra.mxu0 %v4973
    %5566 = vmatprep.subr.mxu0 %v4978
    %5567 = vmatpush1.msra.mxu0 %v4977
    %5568 = vmatprep.subr.mxu0 %v4982
    %5569 = vmatpush1.msra.mxu0 %v4981
    %5570 = vmatprep.subr.mxu0 %v4986
    %5571 = vmatpush1.msra.mxu0 %v4985
    %5572 = vmatprep.subr.mxu0 %v4990
    %5573 = vmatpush1.msra.mxu0 %v4989
    %5574 = vmatprep.mubr.f32.mxu0 %v4478
    %5575 = vmatmul.mubr.f32.gmra.mrb[0].mxu0 %v4477
    %v5576 = vpop.f32.mrb[0].mxu0
    %v5577 = vadd.f32 %v5506, %v5576
    %v5578 = vpop.f32.mrb[0].mxu0
    %v5579 = vadd.f32 %v5508, %v5578
    %5580 = vdwg.mxu0
    %v5581 = vmax.f32 %v5293, 0.0
    %v5582 = vmax.f32 %v5295, 0.0
    %v5583 = vmax.f32 %v5577, 0.0
    %v5584 = vmax.f32 %v5579, 0.0
    %v5585 = vld [vmem:[#allocation30] sm:$0xff]
    %v5586 = vld [vmem:[#allocation30 + $0x8] sm:$0xff]
    %v5587 = vld [vmem:[#allocation30 + $0x10] sm:$0xff]
    %v5588 = vld [vmem:[#allocation30 + $0x18] sm:$0xff]
    %v5589 = vld [vmem:[#allocation30 + $0x20] sm:$0xff]
    %v5590 = vld [vmem:[#allocation30 + $0x28] sm:$0xff]
    %v5591 = vld [vmem:[#allocation30 + $0x30] sm:$0xff]
    %v5592 = vld [vmem:[#allocation30 + $0x38] sm:$0xff]
    %v5593 = vld [vmem:[#allocation30 + $0x40] sm:$0xff]
    %v5594 = vld [vmem:[#allocation30 + $0x48] sm:$0xff]
    %v5595 = vld [vmem:[#allocation30 + $0x50] sm:$0xff]
    %v5596 = vld [vmem:[#allocation30 + $0x58] sm:$0xff]
    %v5597 = vld [vmem:[#allocation30 + $0x60] sm:$0xff]
    %v5598 = vld [vmem:[#allocation30 + $0x68] sm:$0xff]
    %v5599 = vld [vmem:[#allocation30 + $0x70] sm:$0xff]
    %v5600 = vld [vmem:[#allocation30 + $0x78] sm:$0xff]
    %v5601 = vld [vmem:[#allocation30 + $0x80] sm:$0xff]
    %v5602 = vld [vmem:[#allocation30 + $0x88] sm:$0xff]
    %v5603 = vld [vmem:[#allocation30 + $0x90] sm:$0xff]
    %v5604 = vld [vmem:[#allocation30 + $0x98] sm:$0xff]
    %v5605 = vld [vmem:[#allocation30 + $0xa0] sm:$0xff]
    %v5606 = vld [vmem:[#allocation30 + $0xa8] sm:$0xff]
    %v5607 = vld [vmem:[#allocation30 + $0xb0] sm:$0xff]
    %v5608 = vld [vmem:[#allocation30 + $0xb8] sm:$0xff]
    %v5609 = vld [vmem:[#allocation30 + $0xc0] sm:$0xff]
    %v5610 = vld [vmem:[#allocation30 + $0xc8] sm:$0xff]
    %v5611 = vld [vmem:[#allocation30 + $0xd0] sm:$0xff]
    %v5612 = vld [vmem:[#allocation30 + $0xd8] sm:$0xff]
    %v5613 = vld [vmem:[#allocation30 + $0xe0] sm:$0xff]
    %v5614 = vld [vmem:[#allocation30 + $0xe8] sm:$0xff]
    %v5615 = vld [vmem:[#allocation30 + $0xf0] sm:$0xff]
    %v5616 = vld [vmem:[#allocation30 + $0xf8] sm:$0xff]
    %v5617 = vld [vmem:[#allocation30 + $0x100] sm:$0xff]
    %v5618 = vld [vmem:[#allocation30 + $0x108] sm:$0xff]
    %v5619 = vld [vmem:[#allocation30 + $0x110] sm:$0xff]
    %v5620 = vld [vmem:[#allocation30 + $0x118] sm:$0xff]
    %v5621 = vld [vmem:[#allocation30 + $0x120] sm:$0xff]
    %v5622 = vld [vmem:[#allocation30 + $0x128] sm:$0xff]
    %v5623 = vld [vmem:[#allocation30 + $0x130] sm:$0xff]
    %v5624 = vld [vmem:[#allocation30 + $0x138] sm:$0xff]
    %v5625 = vld [vmem:[#allocation30 + $0x140] sm:$0xff]
    %v5626 = vld [vmem:[#allocation30 + $0x148] sm:$0xff]
    %v5627 = vld [vmem:[#allocation30 + $0x150] sm:$0xff]
    %v5628 = vld [vmem:[#allocation30 + $0x158] sm:$0xff]
    %v5629 = vld [vmem:[#allocation30 + $0x160] sm:$0xff]
    %v5630 = vld [vmem:[#allocation30 + $0x168] sm:$0xff]
    %v5631 = vld [vmem:[#allocation30 + $0x170] sm:$0xff]
    %v5632 = vld [vmem:[#allocation30 + $0x178] sm:$0xff]
    %v5633 = vld [vmem:[#allocation30 + $0x180] sm:$0xff]
    %v5634 = vld [vmem:[#allocation30 + $0x188] sm:$0xff]
    %v5635 = vld [vmem:[#allocation30 + $0x190] sm:$0xff]
    %v5636 = vld [vmem:[#allocation30 + $0x198] sm:$0xff]
    %v5637 = vld [vmem:[#allocation30 + $0x1a0] sm:$0xff]
    %v5638 = vld [vmem:[#allocation30 + $0x1a8] sm:$0xff]
    %v5639 = vld [vmem:[#allocation30 + $0x1b0] sm:$0xff]
    %v5640 = vld [vmem:[#allocation30 + $0x1b8] sm:$0xff]
    %v5641 = vld [vmem:[#allocation30 + $0x1c0] sm:$0xff]
    %v5642 = vld [vmem:[#allocation30 + $0x1c8] sm:$0xff]
    %v5643 = vld [vmem:[#allocation30 + $0x1d0] sm:$0xff]
    %v5644 = vld [vmem:[#allocation30 + $0x1d8] sm:$0xff]
    %v5645 = vld [vmem:[#allocation30 + $0x1e0] sm:$0xff]
    %v5646 = vld [vmem:[#allocation30 + $0x1e8] sm:$0xff]
    %v5647 = vld [vmem:[#allocation30 + $0x1f0] sm:$0xff]
    %v5648 = vld [vmem:[#allocation30 + $0x1f8] sm:$0xff]
    %v5649 = vld [vmem:[#allocation30 + $0x200] sm:$0xff]
    %v5650 = vld [vmem:[#allocation30 + $0x208] sm:$0xff]
    %v5651 = vld [vmem:[#allocation30 + $0x210] sm:$0xff]
    %v5652 = vld [vmem:[#allocation30 + $0x218] sm:$0xff]
    %v5653 = vld [vmem:[#allocation30 + $0x220] sm:$0xff]
    %v5654 = vld [vmem:[#allocation30 + $0x228] sm:$0xff]
    %v5655 = vld [vmem:[#allocation30 + $0x230] sm:$0xff]
    %v5656 = vld [vmem:[#allocation30 + $0x238] sm:$0xff]
    %v5657 = vld [vmem:[#allocation30 + $0x240] sm:$0xff]
    %v5658 = vld [vmem:[#allocation30 + $0x248] sm:$0xff]
    %v5659 = vld [vmem:[#allocation30 + $0x250] sm:$0xff]
    %v5660 = vld [vmem:[#allocation30 + $0x258] sm:$0xff]
    %v5661 = vld [vmem:[#allocation30 + $0x260] sm:$0xff]
    %v5662 = vld [vmem:[#allocation30 + $0x268] sm:$0xff]
    %v5663 = vld [vmem:[#allocation30 + $0x270] sm:$0xff]
    %v5664 = vld [vmem:[#allocation30 + $0x278] sm:$0xff]
    %v5665 = vld [vmem:[#allocation30 + $0x280] sm:$0xff]
    %v5666 = vld [vmem:[#allocation30 + $0x288] sm:$0xff]
    %v5667 = vld [vmem:[#allocation30 + $0x290] sm:$0xff]
    %v5668 = vld [vmem:[#allocation30 + $0x298] sm:$0xff]
    %v5669 = vld [vmem:[#allocation30 + $0x2a0] sm:$0xff]
    %v5670 = vld [vmem:[#allocation30 + $0x2a8] sm:$0xff]
    %v5671 = vld [vmem:[#allocation30 + $0x2b0] sm:$0xff]
    %v5672 = vld [vmem:[#allocation30 + $0x2b8] sm:$0xff]
    %v5673 = vld [vmem:[#allocation30 + $0x2c0] sm:$0xff]
    %v5674 = vld [vmem:[#allocation30 + $0x2c8] sm:$0xff]
    %v5675 = vld [vmem:[#allocation30 + $0x2d0] sm:$0xff]
    %v5676 = vld [vmem:[#allocation30 + $0x2d8] sm:$0xff]
    %v5677 = vld [vmem:[#allocation30 + $0x2e0] sm:$0xff]
    %v5678 = vld [vmem:[#allocation30 + $0x2e8] sm:$0xff]
    %v5679 = vld [vmem:[#allocation30 + $0x2f0] sm:$0xff]
    %v5680 = vld [vmem:[#allocation30 + $0x2f8] sm:$0xff]
    %v5681 = vld [vmem:[#allocation30 + $0x300] sm:$0xff]
    %v5682 = vld [vmem:[#allocation30 + $0x308] sm:$0xff]
    %v5683 = vld [vmem:[#allocation30 + $0x310] sm:$0xff]
    %v5684 = vld [vmem:[#allocation30 + $0x318] sm:$0xff]
    %v5685 = vld [vmem:[#allocation30 + $0x320] sm:$0xff]
    %v5686 = vld [vmem:[#allocation30 + $0x328] sm:$0xff]
    %v5687 = vld [vmem:[#allocation30 + $0x330] sm:$0xff]
    %v5688 = vld [vmem:[#allocation30 + $0x338] sm:$0xff]
    %v5689 = vld [vmem:[#allocation30 + $0x340] sm:$0xff]
    %v5690 = vld [vmem:[#allocation30 + $0x348] sm:$0xff]
    %v5691 = vld [vmem:[#allocation30 + $0x350] sm:$0xff]
    %v5692 = vld [vmem:[#allocation30 + $0x358] sm:$0xff]
    %v5693 = vld [vmem:[#allocation30 + $0x360] sm:$0xff]
    %v5694 = vld [vmem:[#allocation30 + $0x368] sm:$0xff]
    %v5695 = vld [vmem:[#allocation30 + $0x370] sm:$0xff]
    %v5696 = vld [vmem:[#allocation30 + $0x378] sm:$0xff]
    %v5697 = vld [vmem:[#allocation30 + $0x380] sm:$0xff]
    %v5698 = vld [vmem:[#allocation30 + $0x388] sm:$0xff]
    %v5699 = vld [vmem:[#allocation30 + $0x390] sm:$0xff]
    %v5700 = vld [vmem:[#allocation30 + $0x398] sm:$0xff]
    %v5701 = vld [vmem:[#allocation30 + $0x3a0] sm:$0xff]
    %v5702 = vld [vmem:[#allocation30 + $0x3a8] sm:$0xff]
    %v5703 = vld [vmem:[#allocation30 + $0x3b0] sm:$0xff]
    %v5704 = vld [vmem:[#allocation30 + $0x3b8] sm:$0xff]
    %v5705 = vld [vmem:[#allocation30 + $0x3c0] sm:$0xff]
    %v5706 = vld [vmem:[#allocation30 + $0x3c8] sm:$0xff]
    %v5707 = vld [vmem:[#allocation30 + $0x3d0] sm:$0xff]
    %v5708 = vld [vmem:[#allocation30 + $0x3d8] sm:$0xff]
    %v5709 = vld [vmem:[#allocation30 + $0x3e0] sm:$0xff]
    %v5710 = vld [vmem:[#allocation30 + $0x3e8] sm:$0xff]
    %v5711 = vld [vmem:[#allocation30 + $0x3f0] sm:$0xff]
    %v5712 = vld [vmem:[#allocation30 + $0x3f8] sm:$0xff]
    %v5713 = vld [vmem:[#allocation32] sm:$0x3]
    %v5715 = vlaneseq
    %v5716 = vshrl.u32 %v5715, 7
    %v5717 = vsub.s32 0, %v5716
    %v5718 = vrot.slane %v5713, %v5717
    %v5719 = vlaneseq
    %v5720 = vshrl.u32 %v5719, 7
    %v5721 = vsub.s32 1, %v5720
    %v5722 = vrot.slane %v5713, %v5721
    %5725 = vmatprep.subr.mxu0 %v5586
    %5726 = vmatpush1.msra.mxu0 %v5585
    %5727 = vmatprep.subr.mxu0 %v5588
    %5728 = vmatpush1.msra.mxu0 %v5587
    %5729 = vmatprep.subr.mxu0 %v5590
    %5730 = vmatpush1.msra.mxu0 %v5589
    %5731 = vmatprep.subr.mxu0 %v5592
    %5732 = vmatpush1.msra.mxu0 %v5591
    %5733 = vmatprep.subr.mxu0 %v5594
    %5734 = vmatpush1.msra.mxu0 %v5593
    %5735 = vmatprep.subr.mxu0 %v5596
    %5736 = vmatpush1.msra.mxu0 %v5595
    %5737 = vmatprep.subr.mxu0 %v5598
    %5738 = vmatpush1.msra.mxu0 %v5597
    %5739 = vmatprep.subr.mxu0 %v5600
    %5740 = vmatpush1.msra.mxu0 %v5599
    %5741 = vmatprep.subr.mxu0 %v5602
    %5742 = vmatpush1.msra.mxu0 %v5601
    %5743 = vmatprep.subr.mxu0 %v5604
    %5744 = vmatpush1.msra.mxu0 %v5603
    %5745 = vmatprep.subr.mxu0 %v5606
    %5746 = vmatpush1.msra.mxu0 %v5605
    %5747 = vmatprep.subr.mxu0 %v5608
    %5748 = vmatpush1.msra.mxu0 %v5607
    %5749 = vmatprep.subr.mxu0 %v5610
    %5750 = vmatpush1.msra.mxu0 %v5609
    %5751 = vmatprep.subr.mxu0 %v5612
    %5752 = vmatpush1.msra.mxu0 %v5611
    %5753 = vmatprep.subr.mxu0 %v5614
    %5754 = vmatpush1.msra.mxu0 %v5613
    %5755 = vmatprep.subr.mxu0 %v5616
    %5756 = vmatpush1.msra.mxu0 %v5615
    %5757 = vmatprep.subr.mxu0 %v5618
    %5758 = vmatpush1.msra.mxu0 %v5617
    %5759 = vmatprep.subr.mxu0 %v5620
    %5760 = vmatpush1.msra.mxu0 %v5619
    %5761 = vmatprep.subr.mxu0 %v5622
    %5762 = vmatpush1.msra.mxu0 %v5621
    %5763 = vmatprep.subr.mxu0 %v5624
    %5764 = vmatpush1.msra.mxu0 %v5623
    %5765 = vmatprep.subr.mxu0 %v5626
    %5766 = vmatpush1.msra.mxu0 %v5625
    %5767 = vmatprep.subr.mxu0 %v5628
    %5768 = vmatpush1.msra.mxu0 %v5627
    %5769 = vmatprep.subr.mxu0 %v5630
    %5770 = vmatpush1.msra.mxu0 %v5629
    %5771 = vmatprep.subr.mxu0 %v5632
    %5772 = vmatpush1.msra.mxu0 %v5631
    %5773 = vmatprep.subr.mxu0 %v5634
    %5774 = vmatpush1.msra.mxu0 %v5633
    %5775 = vmatprep.subr.mxu0 %v5636
    %5776 = vmatpush1.msra.mxu0 %v5635
    %5777 = vmatprep.subr.mxu0 %v5638
    %5778 = vmatpush1.msra.mxu0 %v5637
    %5779 = vmatprep.subr.mxu0 %v5640
    %5780 = vmatpush1.msra.mxu0 %v5639
    %5781 = vmatprep.subr.mxu0 %v5642
    %5782 = vmatpush1.msra.mxu0 %v5641
    %5783 = vmatprep.subr.mxu0 %v5644
    %5784 = vmatpush1.msra.mxu0 %v5643
    %5785 = vmatprep.subr.mxu0 %v5646
    %5786 = vmatpush1.msra.mxu0 %v5645
    %5787 = vmatprep.subr.mxu0 %v5648
    %5788 = vmatpush1.msra.mxu0 %v5647
    %5789 = vmatprep.mubr.f32.mxu0 %v5582
    %5790 = vmatmul.mubr.f32.gmra.mrb[0].mxu0 %v5581
    %v5791 = vpop.f32.mrb[0].mxu0
    %v5792 = vadd.f32 %v5718, %v5791
    %v5793 = vpop.f32.mrb[0].mxu0
    %v5794 = vadd.f32 %v5722, %v5793
    %5795 = vdwg.mxu0
    %5796 = vmatprep.subr.mxu0 %v5650
    %5797 = vmatpush1.msra.mxu0 %v5649
    %5798 = vmatprep.subr.mxu0 %v5652
    %5799 = vmatpush1.msra.mxu0 %v5651
    %5800 = vmatprep.subr.mxu0 %v5654
    %5801 = vmatpush1.msra.mxu0 %v5653
    %5802 = vmatprep.subr.mxu0 %v5656
    %5803 = vmatpush1.msra.mxu0 %v5655
    %5804 = vmatprep.subr.mxu0 %v5658
    %5805 = vmatpush1.msra.mxu0 %v5657
    %5806 = vmatprep.subr.mxu0 %v5660
    %5807 = vmatpush1.msra.mxu0 %v5659
    %5808 = vmatprep.subr.mxu0 %v5662
    %5809 = vmatpush1.msra.mxu0 %v5661
    %5810 = vmatprep.subr.mxu0 %v5664
    %5811 = vmatpush1.msra.mxu0 %v5663
    %5812 = vmatprep.subr.mxu0 %v5666
    %5813 = vmatpush1.msra.mxu0 %v5665
    %5814 = vmatprep.subr.mxu0 %v5668
    %5815 = vmatpush1.msra.mxu0 %v5667
    %5816 = vmatprep.subr.mxu0 %v5670
    %5817 = vmatpush1.msra.mxu0 %v5669
    %5818 = vmatprep.subr.mxu0 %v5672
    %5819 = vmatpush1.msra.mxu0 %v5671
    %5820 = vmatprep.subr.mxu0 %v5674
    %5821 = vmatpush1.msra.mxu0 %v5673
    %5822 = vmatprep.subr.mxu0 %v5676
    %5823 = vmatpush1.msra.mxu0 %v5675
    %5824 = vmatprep.subr.mxu0 %v5678
    %5825 = vmatpush1.msra.mxu0 %v5677
    %5826 = vmatprep.subr.mxu0 %v5680
    %5827 = vmatpush1.msra.mxu0 %v5679
    %5828 = vmatprep.subr.mxu0 %v5682
    %5829 = vmatpush1.msra.mxu0 %v5681
    %5830 = vmatprep.subr.mxu0 %v5684
    %5831 = vmatpush1.msra.mxu0 %v5683
    %5832 = vmatprep.subr.mxu0 %v5686
    %5833 = vmatpush1.msra.mxu0 %v5685
    %5834 = vmatprep.subr.mxu0 %v5688
    %5835 = vmatpush1.msra.mxu0 %v5687
    %5836 = vmatprep.subr.mxu0 %v5690
    %5837 = vmatpush1.msra.mxu0 %v5689
    %5838 = vmatprep.subr.mxu0 %v5692
    %5839 = vmatpush1.msra.mxu0 %v5691
    %5840 = vmatprep.subr.mxu0 %v5694
    %5841 = vmatpush1.msra.mxu0 %v5693
    %5842 = vmatprep.subr.mxu0 %v5696
    %5843 = vmatpush1.msra.mxu0 %v5695
    %5844 = vmatprep.subr.mxu0 %v5698
    %5845 = vmatpush1.msra.mxu0 %v5697
    %5846 = vmatprep.subr.mxu0 %v5700
    %5847 = vmatpush1.msra.mxu0 %v5699
    %5848 = vmatprep.subr.mxu0 %v5702
    %5849 = vmatpush1.msra.mxu0 %v5701
    %5850 = vmatprep.subr.mxu0 %v5704
    %5851 = vmatpush1.msra.mxu0 %v5703
    %5852 = vmatprep.subr.mxu0 %v5706
    %5853 = vmatpush1.msra.mxu0 %v5705
    %5854 = vmatprep.subr.mxu0 %v5708
    %5855 = vmatpush1.msra.mxu0 %v5707
    %5856 = vmatprep.subr.mxu0 %v5710
    %5857 = vmatpush1.msra.mxu0 %v5709
    %5858 = vmatprep.subr.mxu0 %v5712
    %5859 = vmatpush1.msra.mxu0 %v5711
    %5860 = vmatprep.mubr.f32.mxu0 %v5584
    %5861 = vmatmul.mubr.f32.gmra.mrb[0].mxu0 %v5583
    %v5862 = vpop.f32.mrb[0].mxu0
    %v5863 = vadd.f32 %v5792, %v5862
    %v5864 = vpop.f32.mrb[0].mxu0
    %v5865 = vadd.f32 %v5794, %v5864
    %5866 = vdwg.mxu0
    %v5867 = vmax.f32 %v5863, 0.0
    %v5868 = vmax.f32 %v5865, 0.0
    %v5869 = vld [vmem:[%s22] sm:$0xff]
    %v5870 = vld [vmem:[%s22 + $0x8] sm:$0xff]
    %v5871 = vld [vmem:[%s22 + $0x10] sm:$0xff]
    %v5872 = vld [vmem:[%s22 + $0x18] sm:$0xff]
    %v5873 = vld [vmem:[%s22 + $0x20] sm:$0xff]
    %v5874 = vld [vmem:[%s22 + $0x28] sm:$0xff]
    %v5875 = vld [vmem:[%s22 + $0x30] sm:$0xff]
    %v5876 = vld [vmem:[%s22 + $0x38] sm:$0xff]
    %v5877 = vld [vmem:[%s22 + $0x40] sm:$0xff]
    %v5878 = vld [vmem:[%s22 + $0x48] sm:$0xff]
    %v5879 = vld [vmem:[%s22 + $0x50] sm:$0xff]
    %v5880 = vld [vmem:[%s22 + $0x58] sm:$0xff]
    %v5881 = vld [vmem:[%s22 + $0x60] sm:$0xff]
    %v5882 = vld [vmem:[%s22 + $0x68] sm:$0xff]
    %v5883 = vld [vmem:[%s22 + $0x70] sm:$0xff]
    %v5884 = vld [vmem:[%s22 + $0x78] sm:$0xff]
    %v5885 = vld [vmem:[%s22 + $0x80] sm:$0xff]
    %v5886 = vld [vmem:[%s22 + $0x88] sm:$0xff]
    %v5887 = vld [vmem:[%s22 + $0x90] sm:$0xff]
    %v5888 = vld [vmem:[%s22 + $0x98] sm:$0xff]
    %v5889 = vld [vmem:[%s22 + $0xa0] sm:$0xff]
    %v5890 = vld [vmem:[%s22 + $0xa8] sm:$0xff]
    %v5891 = vld [vmem:[%s22 + $0xb0] sm:$0xff]
    %v5892 = vld [vmem:[%s22 + $0xb8] sm:$0xff]
    %v5893 = vld [vmem:[%s22 + $0xc0] sm:$0xff]
    %v5894 = vld [vmem:[%s22 + $0xc8] sm:$0xff]
    %v5895 = vld [vmem:[%s22 + $0xd0] sm:$0xff]
    %v5896 = vld [vmem:[%s22 + $0xd8] sm:$0xff]
    %v5897 = vld [vmem:[%s22 + $0xe0] sm:$0xff]
    %v5898 = vld [vmem:[%s22 + $0xe8] sm:$0xff]
    %v5899 = vld [vmem:[%s22 + $0xf0] sm:$0xff]
    %v5900 = vld [vmem:[%s22 + $0xf8] sm:$0xff]
    %v5901 = vld [vmem:[#allocation33] sm:$0x1]
    %v5903 = vlaneseq
    %v5904 = vshrl.u32 %v5903, 7
    %v5905 = vsub.s32 0, %v5904
    %v5906 = vrot.slane %v5901, %v5905
    %5908 = vmatprep.subr.mxu0 0.0
    %5909 = vmatpush1.msra.mxu0 %v5869
    %5910 = vmatprep.subr.mxu0 0.0
    %5911 = vmatpush1.msra.mxu0 %v5870
    %5912 = vmatprep.subr.mxu0 0.0
    %5913 = vmatpush1.msra.mxu0 %v5871
    %5914 = vmatprep.subr.mxu0 0.0
    %5915 = vmatpush1.msra.mxu0 %v5872
    %5916 = vmatprep.subr.mxu0 0.0
    %5917 = vmatpush1.msra.mxu0 %v5873
    %5918 = vmatprep.subr.mxu0 0.0
    %5919 = vmatpush1.msra.mxu0 %v5874
    %5920 = vmatprep.subr.mxu0 0.0
    %5921 = vmatpush1.msra.mxu0 %v5875
    %5922 = vmatprep.subr.mxu0 0.0
    %5923 = vmatpush1.msra.mxu0 %v5876
    %5924 = vmatprep.subr.mxu0 0.0
    %5925 = vmatpush1.msra.mxu0 %v5877
    %5926 = vmatprep.subr.mxu0 0.0
    %5927 = vmatpush1.msra.mxu0 %v5878
    %5928 = vmatprep.subr.mxu0 0.0
    %5929 = vmatpush1.msra.mxu0 %v5879
    %5930 = vmatprep.subr.mxu0 0.0
    %5931 = vmatpush1.msra.mxu0 %v5880
    %5932 = vmatprep.subr.mxu0 0.0
    %5933 = vmatpush1.msra.mxu0 %v5881
    %5934 = vmatprep.subr.mxu0 0.0
    %5935 = vmatpush1.msra.mxu0 %v5882
    %5936 = vmatprep.subr.mxu0 0.0
    %5937 = vmatpush1.msra.mxu0 %v5883
    %5938 = vmatprep.subr.mxu0 0.0
    %5939 = vmatpush1.msra.mxu0 %v5884
    %5940 = vmatprep.subr.mxu0 0.0
    %5941 = vmatpush1.msra.mxu0 %v5885
    %5942 = vmatprep.subr.mxu0 0.0
    %5943 = vmatpush1.msra.mxu0 %v5886
    %5944 = vmatprep.subr.mxu0 0.0
    %5945 = vmatpush1.msra.mxu0 %v5887
    %5946 = vmatprep.subr.mxu0 0.0
    %5947 = vmatpush1.msra.mxu0 %v5888
    %5948 = vmatprep.subr.mxu0 0.0
    %5949 = vmatpush1.msra.mxu0 %v5889
    %5950 = vmatprep.subr.mxu0 0.0
    %5951 = vmatpush1.msra.mxu0 %v5890
    %5952 = vmatprep.subr.mxu0 0.0
    %5953 = vmatpush1.msra.mxu0 %v5891
    %5954 = vmatprep.subr.mxu0 0.0
    %5955 = vmatpush1.msra.mxu0 %v5892
    %5956 = vmatprep.subr.mxu0 0.0
    %5957 = vmatpush1.msra.mxu0 %v5893
    %5958 = vmatprep.subr.mxu0 0.0
    %5959 = vmatpush1.msra.mxu0 %v5894
    %5960 = vmatprep.subr.mxu0 0.0
    %5961 = vmatpush1.msra.mxu0 %v5895
    %5962 = vmatprep.subr.mxu0 0.0
    %5963 = vmatpush1.msra.mxu0 %v5896
    %5964 = vmatprep.subr.mxu0 0.0
    %5965 = vmatpush1.msra.mxu0 %v5897
    %5966 = vmatprep.subr.mxu0 0.0
    %5967 = vmatpush1.msra.mxu0 %v5898
    %5968 = vmatprep.subr.mxu0 0.0
    %5969 = vmatpush1.msra.mxu0 %v5899
    %5970 = vmatprep.subr.mxu0 0.0
    %5971 = vmatpush1.msra.mxu0 %v5900
    %5972 = vmatprep.mubr.f32.mxu0 %v5868
    %5973 = vmatmul.mubr.f32.gmra.mrb[0].mxu0 %v5867
    %v5974 = vpop.f32.mrb[0].mxu0
    %v5975 = vadd.f32 %v5906, %v5974
    %v5976 = vpop.f32.mrb[0].mxu0
    %5977 = vdwg.mxu0
    %5978 = vst.msk [vmem:[#allocation35] sm:$0xff] %vm533, %v5975
    // Predicated region
    $region178: #{transformer_encoder_model.1} parent=1 // pred_check
      _
    $region179: #{transformer_encoder_model.1} parent=1 // pred_check_branch
      %5980 = sbr.rel (0) target = $region181
    $region180: #{transformer_encoder_model.1} parent=1 // pred_region
      %s5982 = ssub.s32 128, 128
      %5983 = vsyncadd [#allocation5], %s5982
      %s5985 = sshll.u32 [#allocation35], 4
      %s5986 = int_to_ptr.vmem [resolvable:$true] %s5985
      %5988 = dma.vmem_to_hbm [thread:$0]  %s5986, 128, %s24, [#allocation5]
    $region181: #{transformer_encoder_model.1} parent=1 // pred_fallthru
      _
    // Predicated region
    $region182: #{transformer_encoder_model.1} parent=1 // pred_check
      _
    $region183: #{transformer_encoder_model.1} parent=1 // pred_check_branch
      %5990 = sbr.rel (0) target = $region185
    $region184: #{transformer_encoder_model.1} parent=1 // pred_region
      %5991 = dma.done [#allocation5], 128
    $region185: #{transformer_encoder_model.1} parent=1 // pred_fallthru
      _
    %5992 = vsyncpa [#allocation4], 1
    %5993 = vsyncpa [#allocation7], 1
    %5994 = vsyncpa [#allocation10], 1
    %5995 = vsyncpa [#allocation13], 1
    %5996 = vsyncpa [#allocation16], 1
    %5997 = vsyncpa [#allocation19], 1
    %5998 = vsyncpa [#allocation22], 1
    %5999 = vsyncpa [#allocation25], 1
    %6000 = vsyncpa [#allocation28], 1
    %6001 = vsyncpa [#allocation31], 1
    %6002 = vsyncpa [#allocation34], 1
    %6003 = vsyncpa [#allocation5], 1

</llo_original>
